<compile_context>
chip_gen: v7x
topology: tpu7x:2x2x1
jax: 0.10.0
libtpu: 0.0.40
codegen_flags: <defaults>
</compile_context>

<pallas_src>
import jax
import jax.numpy as jnp
from jax import lax
from jax.experimental import pallas as pl
from jax.experimental.pallas import tpu as pltpu


# ----------------------------- geometry constants --------------------------- #
# Per-image flattened spatial columns (col = y*32 + x), zero padded so every
# shifted conv-tap slice stays in bounds.
PAD_IN = 1040          # >= R1 + 4*32 + 4
R1 = 904               # conv1 "wide" output columns (col = oy*32 + ox)
M1 = 864               # columns kept after the 2x2 window max of conv1
Q1 = 240               # compacted pool1 columns (col = qy*16 + qx), zero padded
R2 = 168               # conv2 "wide" output columns (col = oy*16 + ox)
M2 = 144               # columns kept after the 2x2 window max of conv2
C1P = 8                # conv1 out-channels padded 6 -> 8 (aligned sublane slices)


# ------------------------------ fused kernel -------------------------------- #

def _cnn_fused_kernel(x_ref, w1_ref, b1_ref, w2_ref, b2_ref, s1_ref,
                      f1w_ref, f1b_ref, f2w_ref, f2b_ref, f3w_ref, f3b_ref,
                      out_ref):
    bf16 = jnp.bfloat16
    x = x_ref[0]                                             # [3, PAD_IN] f32

    # ---- conv1 (5x5 valid) as 25 shifted-slice matmuls; col r = oy*32 + ox ----
    acc1 = jnp.zeros((C1P, R1), jnp.float32)
    for t in range(25):
        dy, dx = divmod(t, 5)
        s = dy * 32 + dx
        acc1 = acc1 + jnp.dot(
            w1_ref[t * C1P:(t + 1) * C1P, :].astype(bf16),   # [8, 3]
            x[:, s:s + R1].astype(bf16),                     # [3, R1]
            preferred_element_type=jnp.float32)
    acc1 = jnp.maximum(acc1 + b1_ref[...], 0.0)              # bias + ReLU

    # ---- maxpool 2x2 stride 2: window max via column-shifted maxes ----
    m1 = jnp.maximum(jnp.maximum(acc1[:, 0:M1], acc1[:, 1:M1 + 1]),
                     jnp.maximum(acc1[:, 32:M1 + 32], acc1[:, 33:M1 + 33]))
    # compact the 14x14 valid anchors onto columns qy*16 + qx (zero padded)
    p1 = jnp.dot(m1.astype(bf16), s1_ref[...],
                 preferred_element_type=jnp.float32)         # [8, Q1]

    # ---- conv2 (5x5 valid); col r = oy*16 + ox ----
    acc2 = jnp.zeros((16, R2), jnp.float32)
    for t in range(25):
        dy, dx = divmod(t, 5)
        s = dy * 16 + dx
        acc2 = acc2 + jnp.dot(
            w2_ref[t * 16:(t + 1) * 16, :].astype(bf16),     # [16, 8]
            p1[:, s:s + R2].astype(bf16),                    # [8, R2]
            preferred_element_type=jnp.float32)
    acc2 = jnp.maximum(acc2 + b2_ref[...], 0.0)

    # ---- maxpool 2x2 stride 2 ----
    m2 = jnp.maximum(jnp.maximum(acc2[:, 0:M2], acc2[:, 1:M2 + 1]),
                     jnp.maximum(acc2[:, 16:M2 + 16], acc2[:, 17:M2 + 17]))

    # ---- flatten: gather the 5x5 pooled columns (channel-minor order, which
    #      matches the host-side permuted fc1 weight) ----
    cols = []
    for q in range(25):
        py, px = divmod(q, 5)
        c0 = 32 * py + 2 * px
        cols.append(m2[:, c0:c0 + 1])                        # [16, 1]
    vec = jnp.concatenate(cols, axis=0).astype(bf16)         # [400, 1]

    # ---- fc1 -> relu -> fc2 -> relu -> fc3 (column oriented) ----
    h = jnp.dot(f1w_ref[...], vec, preferred_element_type=jnp.float32) + f1b_ref[...]
    h = jnp.maximum(h, 0.0).astype(bf16)                     # [120, 1]
    h = jnp.dot(f2w_ref[...], h, preferred_element_type=jnp.float32) + f2b_ref[...]
    h = jnp.maximum(h, 0.0).astype(bf16)                     # [84, 1]
    y = jnp.dot(f3w_ref[...], h, preferred_element_type=jnp.float32) + f3b_ref[...]
    out_ref[...] = y.reshape(1, 10, 1)                       # [10, 1] logits


# --------------------------- parameter preparation --------------------------- #

def init_params(key):
    """Torch-layout params (uniform(-1/sqrt(fan_in), 1/sqrt(fan_in)) init)."""
    def uni(k, shape, fan_in):
        bound = 1.0 / float(fan_in) ** 0.5
        return jax.random.uniform(k, shape, jnp.float32, -bound, bound)

    ks = jax.random.split(key, 10)
    return {
        "conv1_w": uni(ks[0], (5, 5, 3, 6), 3 * 5 * 5),     # HWIO
        "conv1_b": uni(ks[1], (6,), 3 * 5 * 5),
        "conv2_w": uni(ks[2], (5, 5, 6, 16), 6 * 5 * 5),
        "conv2_b": uni(ks[3], (16,), 6 * 5 * 5),
        "fc1_w": uni(ks[4], (16 * 5 * 5, 120), 16 * 5 * 5),  # row idx = c*25 + py*5 + px
        "fc1_b": uni(ks[5], (120,), 16 * 5 * 5),
        "fc2_w": uni(ks[6], (120, 84), 120),
        "fc2_b": uni(ks[7], (84,), 120),
        "fc3_w": uni(ks[8], (84, 10), 84),
        "fc3_b": uni(ks[9], (10,), 84),
    }


def _pool1_select_matrix():
    """S1[64*qy + 2*qx, 16*qy + qx] = 1 for qy, qx in [0, 14)."""
    qy, qx = jnp.meshgrid(jnp.arange(14), jnp.arange(14), indexing="ij")
    rows = (64 * qy + 2 * qx).reshape(-1)
    cols = (16 * qy + qx).reshape(-1)
    return jnp.zeros((M1, Q1), jnp.float32).at[rows, cols].set(1.0)


def prepare_params(p):
    """One-time host-side reshapes/permutations/padding into kernel layout."""
    f32, bf16 = jnp.float32, jnp.bfloat16
    # conv1: [5,5,3,6] -> per-tap transposed [co, ci], co padded 6->8, stacked.
    w1 = jnp.transpose(p["conv1_w"], (0, 1, 3, 2))                   # [5,5,6,3]
    w1 = jnp.pad(w1, ((0, 0), (0, 0), (0, C1P - 6), (0, 0)))         # [5,5,8,3]
    w1t = w1.reshape(25 * C1P, 3).astype(f32)
    b1 = jnp.pad(p["conv1_b"], (0, C1P - 6)).reshape(C1P, 1).astype(f32)
    # conv2: [5,5,6,16] -> per-tap [co, ci(=8 padded)], stacked.
    w2 = jnp.transpose(p["conv2_w"], (0, 1, 3, 2))                   # [5,5,16,6]
    w2 = jnp.pad(w2, ((0, 0), (0, 0), (0, 0), (0, C1P - 6)))         # [5,5,16,8]
    w2t = w2.reshape(25 * 16, C1P).astype(f32)
    b2 = p["conv2_b"].reshape(16, 1).astype(f32)
    # fc1: fold the torch (C,H,W) flatten into the weight permutation:
    # kernel consumes index q*16 + c  (q = py*5 + px), torch index is c*25 + q.
    f1 = p["fc1_w"].reshape(16, 25, 120)                             # [c, q, n]
    f1 = jnp.transpose(f1, (2, 1, 0)).reshape(120, 400)              # [n, q*16+c]
    return {
        "w1t": w1t, "b1": b1, "w2t": w2t, "b2": b2,
        "s1": _pool1_select_matrix().astype(bf16),
        "f1w": f1.astype(bf16),
        "f1b": p["fc1_b"].reshape(120, 1).astype(f32),
        "f2w": p["fc2_w"].T.astype(bf16),
        "f2b": p["fc2_b"].reshape(84, 1).astype(f32),
        "f3w": p["fc3_w"].T.astype(bf16),
        "f3b": p["fc3_b"].reshape(10, 1).astype(f32),
    }


# -------------------------------- forward ------------------------------------ #

def cnn_forward(kp, x_nchw):
    """Forward pass matching the PyTorch CNN. Input: NCHW [B, 3, 32, 32] f32."""
    B = x_nchw.shape[0]
    # NCHW is already channel-major -> [B, 3, H*W]; just pad the spatial columns.
    x = x_nchw.astype(jnp.float32).reshape(B, 3, 32 * 32)
    x = jnp.pad(x, ((0, 0), (0, 0), (0, PAD_IN - 32 * 32)))

    flops = 2 * B * (25 * C1P * 3 * R1 + C1P * M1 * Q1 + 25 * 16 * C1P * R2
                     + 120 * 400 + 84 * 120 + 10 * 84)
    bytes_accessed = int(x.size * 4 + B * 10 * 4
                         + sum(int(v.size) * v.dtype.itemsize for v in kp.values()))

    out = pl.pallas_call(
        _cnn_fused_kernel,
        grid=(B,),
        out_shape=jax.ShapeDtypeStruct((B, 10, 1), jnp.float32),
        in_specs=[
            pl.BlockSpec((1, 3, PAD_IN), lambda b: (b, 0, 0)),    # per-image input
            pl.BlockSpec((25 * C1P, 3), lambda b: (0, 0)),        # conv1 taps
            pl.BlockSpec((C1P, 1), lambda b: (0, 0)),
            pl.BlockSpec((25 * 16, C1P), lambda b: (0, 0)),       # conv2 taps
            pl.BlockSpec((16, 1), lambda b: (0, 0)),
            pl.BlockSpec((M1, Q1), lambda b: (0, 0)),             # pool1 selection
            pl.BlockSpec((120, 400), lambda b: (0, 0)),           # fc1
            pl.BlockSpec((120, 1), lambda b: (0, 0)),
            pl.BlockSpec((84, 120), lambda b: (0, 0)),            # fc2
            pl.BlockSpec((84, 1), lambda b: (0, 0)),
            pl.BlockSpec((10, 84), lambda b: (0, 0)),             # fc3
            pl.BlockSpec((10, 1), lambda b: (0, 0)),
        ],
        out_specs=pl.BlockSpec((1, 10, 1), lambda b: (b, 0, 0)),
        compiler_params=pltpu.CompilerParams(
            dimension_semantics=("parallel",),
            vmem_limit_bytes=32 * 1024 * 1024,
        ),
        cost_estimate=pl.CostEstimate(
            flops=flops, transcendentals=0, bytes_accessed=bytes_accessed),
    )(x, kp["w1t"], kp["b1"], kp["w2t"], kp["b2"], kp["s1"],
      kp["f1w"], kp["f1b"], kp["f2w"], kp["f2b"], kp["f3w"], kp["f3b"])
    return out[:, :, 0]


# ------------------------- pure-JAX reference (for check) -------------------- #

def cnn_reference(params, x_nchw):
    dn = ("NCHW", "OIHW", "NCHW")
    w1 = jnp.transpose(params["conv1_w"], (3, 2, 0, 1))
    w2 = jnp.transpose(params["conv2_w"], (3, 2, 0, 1))
    y = lax.conv_general_dilated(x_nchw, w1, (1, 1), "VALID", dimension_numbers=dn)
    y = jax.nn.relu(y + params["conv1_b"].reshape(1, 6, 1, 1))
    y = lax.reduce_window(y, -jnp.inf, lax.max, (1, 1, 2, 2), (1, 1, 2, 2), "VALID")
    y = lax.conv_general_dilated(y, w2, (1, 1), "VALID", dimension_numbers=dn)
    y = jax.nn.relu(y + params["conv2_b"].reshape(1, 16, 1, 1))
    y = lax.reduce_window(y, -jnp.inf, lax.max, (1, 1, 2, 2), (1, 1, 2, 2), "VALID")
    y = y.reshape(y.shape[0], -1)                     # NCHW flatten == torch order
    y = jax.nn.relu(y @ params["fc1_w"] + params["fc1_b"])
    y = jax.nn.relu(y @ params["fc2_w"] + params["fc2_b"])
    return y @ params["fc3_w"] + params["fc3_b"]


if __name__ == "__main__":
    key = jax.random.PRNGKey(0)
    pkey, xkey = jax.random.split(key)
    params = init_params(pkey)
    kparams = prepare_params(params)
    # Spatial must be 32x32 so the flatten matches 16*5*5 (as in the module).
    x = jax.random.normal(xkey, (2, 3, 32, 32), jnp.float32)

    out = jax.block_until_ready(jax.jit(cnn_forward)(kparams, x))
    assert out.shape == (2, 10) and out.dtype == jnp.float32
    assert bool(jnp.all(jnp.isfinite(out)))

    ref = jax.block_until_ready(jax.jit(cnn_reference)(params, x))
    max_err = float(jnp.max(jnp.abs(out - ref)))
    assert max_err < 1e-1, f"mismatch vs reference: {max_err}"
    print("KERNEL_OK")
</pallas_src>

<mosaic_0001>
module attributes {stable_mosaic.version = 11 : i64} {
  func.func @_cnn_fused_kernel(%arg0: i32, %arg1: memref<1x3x1040xf32, #tpu.memory_space<vmem>>, %arg2: memref<200x3xf32, #tpu.memory_space<vmem>>, %arg3: memref<8x1xf32, #tpu.memory_space<vmem>>, %arg4: memref<400x8xf32, #tpu.memory_space<vmem>>, %arg5: memref<16x1xf32, #tpu.memory_space<vmem>>, %arg6: memref<864x240xbf16, #tpu.memory_space<vmem>>, %arg7: memref<120x400xbf16, #tpu.memory_space<vmem>>, %arg8: memref<120x1xf32, #tpu.memory_space<vmem>>, %arg9: memref<84x120xbf16, #tpu.memory_space<vmem>>, %arg10: memref<84x1xf32, #tpu.memory_space<vmem>>, %arg11: memref<10x84xbf16, #tpu.memory_space<vmem>>, %arg12: memref<10x1xf32, #tpu.memory_space<vmem>>, %arg13: memref<1x10x1xf32, #tpu.memory_space<vmem>>) attributes {dimension_semantics = [#tpu.dimension_semantics<parallel>], iteration_bounds = array<i64: 2>, scalar_prefetch = 0 : i64, scratch_operands = 0 : i64, tpu.core_type = #tpu.core_type<tc>, window_params = [{transform_indices = @transform_0, window_bounds = array<i64: 1, 3, 1040>}, {pipeline_mode = #tpu.pipeline_mode<synchronous>, transform_indices = @transform_1, window_bounds = array<i64: 200, 3>}, {pipeline_mode = #tpu.pipeline_mode<synchronous>, transform_indices = @transform_2, window_bounds = array<i64: 8, 1>}, {pipeline_mode = #tpu.pipeline_mode<synchronous>, transform_indices = @transform_3, window_bounds = array<i64: 400, 8>}, {pipeline_mode = #tpu.pipeline_mode<synchronous>, transform_indices = @transform_4, window_bounds = array<i64: 16, 1>}, {pipeline_mode = #tpu.pipeline_mode<synchronous>, transform_indices = @transform_5, window_bounds = array<i64: 864, 240>}, {pipeline_mode = #tpu.pipeline_mode<synchronous>, transform_indices = @transform_6, window_bounds = array<i64: 120, 400>}, {pipeline_mode = #tpu.pipeline_mode<synchronous>, transform_indices = @transform_7, window_bounds = array<i64: 120, 1>}, {pipeline_mode = #tpu.pipeline_mode<synchronous>, transform_indices = @transform_8, window_bounds = array<i64: 84, 120>}, {pipeline_mode = #tpu.pipeline_mode<synchronous>, transform_indices = @transform_9, window_bounds = array<i64: 84, 1>}, {pipeline_mode = #tpu.pipeline_mode<synchronous>, transform_indices = @transform_10, window_bounds = array<i64: 10, 84>}, {pipeline_mode = #tpu.pipeline_mode<synchronous>, transform_indices = @transform_11, window_bounds = array<i64: 10, 1>}, {transform_indices = @transform_12, window_bounds = array<i64: 1, 10, 1>}]} {
    %c0 = arith.constant 0 : index
    %c0_0 = arith.constant 0 : index
    %c0_1 = arith.constant 0 : index
    %0 = vector.load %arg1[%c0, %c0_0, %c0_1] : memref<1x3x1040xf32, #tpu.memory_space<vmem>>, vector<1x3x1040xf32>
    %1 = vector.shape_cast %0 : vector<1x3x1040xf32> to vector<3x1040xf32>
    %cst = arith.constant 0.000000e+00 : f32
    %2 = vector.broadcast %cst : f32 to vector<8x904xf32>
    %c0_2 = arith.constant 0 : index
    %c0_3 = arith.constant 0 : index
    %3 = vector.load %arg2[%c0_2, %c0_3] : memref<200x3xf32, #tpu.memory_space<vmem>>, vector<8x3xf32>
    %4 = arith.truncf %3 : vector<8x3xf32> to vector<8x3xbf16>
    %5 = vector.extract_strided_slice %1 {offsets = [0, 0], sizes = [3, 904], strides = [1, 1]} : vector<3x1040xf32> to vector<3x904xf32>
    %6 = arith.truncf %5 : vector<3x904xf32> to vector<3x904xbf16>
    %cst_4 = arith.constant dense<0.000000e+00> : vector<8x904xf32>
    %7 = tpu.matmul %4, %6, %cst_4 {dimension_numbers = #tpu.dot_dimension_numbers<[1], [0], [0], [1], [0, 0, 1, 1], [], []>} : vector<8x3xbf16>, vector<3x904xbf16>, vector<8x904xf32> -> vector<8x904xf32>
    %8 = arith.addf %2, %7 : vector<8x904xf32>
    %c8 = arith.constant 8 : index
    %c0_5 = arith.constant 0 : index
    %9 = vector.load %arg2[%c8, %c0_5] : memref<200x3xf32, #tpu.memory_space<vmem>>, vector<8x3xf32>
    %10 = arith.truncf %9 : vector<8x3xf32> to vector<8x3xbf16>
    %11 = vector.extract_strided_slice %1 {offsets = [0, 1], sizes = [3, 904], strides = [1, 1]} : vector<3x1040xf32> to vector<3x904xf32>
    %12 = arith.truncf %11 : vector<3x904xf32> to vector<3x904xbf16>
    %cst_6 = arith.constant dense<0.000000e+00> : vector<8x904xf32>
    %13 = tpu.matmul %10, %12, %cst_6 {dimension_numbers = #tpu.dot_dimension_numbers<[1], [0], [0], [1], [0, 0, 1, 1], [], []>} : vector<8x3xbf16>, vector<3x904xbf16>, vector<8x904xf32> -> vector<8x904xf32>
    %14 = arith.addf %8, %13 : vector<8x904xf32>
    %c16 = arith.constant 16 : index
    %c0_7 = arith.constant 0 : index
    %15 = vector.load %arg2[%c16, %c0_7] : memref<200x3xf32, #tpu.memory_space<vmem>>, vector<8x3xf32>
    %16 = arith.truncf %15 : vector<8x3xf32> to vector<8x3xbf16>
    %17 = vector.extract_strided_slice %1 {offsets = [0, 2], sizes = [3, 904], strides = [1, 1]} : vector<3x1040xf32> to vector<3x904xf32>
    %18 = arith.truncf %17 : vector<3x904xf32> to vector<3x904xbf16>
    %cst_8 = arith.constant dense<0.000000e+00> : vector<8x904xf32>
    %19 = tpu.matmul %16, %18, %cst_8 {dimension_numbers = #tpu.dot_dimension_numbers<[1], [0], [0], [1], [0, 0, 1, 1], [], []>} : vector<8x3xbf16>, vector<3x904xbf16>, vector<8x904xf32> -> vector<8x904xf32>
    %20 = arith.addf %14, %19 : vector<8x904xf32>
    %c24 = arith.constant 24 : index
    %c0_9 = arith.constant 0 : index
    %21 = vector.load %arg2[%c24, %c0_9] : memref<200x3xf32, #tpu.memory_space<vmem>>, vector<8x3xf32>
    %22 = arith.truncf %21 : vector<8x3xf32> to vector<8x3xbf16>
    %23 = vector.extract_strided_slice %1 {offsets = [0, 3], sizes = [3, 904], strides = [1, 1]} : vector<3x1040xf32> to vector<3x904xf32>
    %24 = arith.truncf %23 : vector<3x904xf32> to vector<3x904xbf16>
    %cst_10 = arith.constant dense<0.000000e+00> : vector<8x904xf32>
    %25 = tpu.matmul %22, %24, %cst_10 {dimension_numbers = #tpu.dot_dimension_numbers<[1], [0], [0], [1], [0, 0, 1, 1], [], []>} : vector<8x3xbf16>, vector<3x904xbf16>, vector<8x904xf32> -> vector<8x904xf32>
    %26 = arith.addf %20, %25 : vector<8x904xf32>
    %c32 = arith.constant 32 : index
    %c0_11 = arith.constant 0 : index
    %27 = vector.load %arg2[%c32, %c0_11] : memref<200x3xf32, #tpu.memory_space<vmem>>, vector<8x3xf32>
    %28 = arith.truncf %27 : vector<8x3xf32> to vector<8x3xbf16>
    %29 = vector.extract_strided_slice %1 {offsets = [0, 4], sizes = [3, 904], strides = [1, 1]} : vector<3x1040xf32> to vector<3x904xf32>
    %30 = arith.truncf %29 : vector<3x904xf32> to vector<3x904xbf16>
    %cst_12 = arith.constant dense<0.000000e+00> : vector<8x904xf32>
    %31 = tpu.matmul %28, %30, %cst_12 {dimension_numbers = #tpu.dot_dimension_numbers<[1], [0], [0], [1], [0, 0, 1, 1], [], []>} : vector<8x3xbf16>, vector<3x904xbf16>, vector<8x904xf32> -> vector<8x904xf32>
    %32 = arith.addf %26, %31 : vector<8x904xf32>
    %c40 = arith.constant 40 : index
    %c0_13 = arith.constant 0 : index
    %33 = vector.load %arg2[%c40, %c0_13] : memref<200x3xf32, #tpu.memory_space<vmem>>, vector<8x3xf32>
    %34 = arith.truncf %33 : vector<8x3xf32> to vector<8x3xbf16>
    %35 = vector.extract_strided_slice %1 {offsets = [0, 32], sizes = [3, 904], strides = [1, 1]} : vector<3x1040xf32> to vector<3x904xf32>
    %36 = arith.truncf %35 : vector<3x904xf32> to vector<3x904xbf16>
    %cst_14 = arith.constant dense<0.000000e+00> : vector<8x904xf32>
    %37 = tpu.matmul %34, %36, %cst_14 {dimension_numbers = #tpu.dot_dimension_numbers<[1], [0], [0], [1], [0, 0, 1, 1], [], []>} : vector<8x3xbf16>, vector<3x904xbf16>, vector<8x904xf32> -> vector<8x904xf32>
    %38 = arith.addf %32, %37 : vector<8x904xf32>
    %c48 = arith.constant 48 : index
    %c0_15 = arith.constant 0 : index
    %39 = vector.load %arg2[%c48, %c0_15] : memref<200x3xf32, #tpu.memory_space<vmem>>, vector<8x3xf32>
    %40 = arith.truncf %39 : vector<8x3xf32> to vector<8x3xbf16>
    %41 = vector.extract_strided_slice %1 {offsets = [0, 33], sizes = [3, 904], strides = [1, 1]} : vector<3x1040xf32> to vector<3x904xf32>
    %42 = arith.truncf %41 : vector<3x904xf32> to vector<3x904xbf16>
    %cst_16 = arith.constant dense<0.000000e+00> : vector<8x904xf32>
    %43 = tpu.matmul %40, %42, %cst_16 {dimension_numbers = #tpu.dot_dimension_numbers<[1], [0], [0], [1], [0, 0, 1, 1], [], []>} : vector<8x3xbf16>, vector<3x904xbf16>, vector<8x904xf32> -> vector<8x904xf32>
    %44 = arith.addf %38, %43 : vector<8x904xf32>
    %c56 = arith.constant 56 : index
    %c0_17 = arith.constant 0 : index
    %45 = vector.load %arg2[%c56, %c0_17] : memref<200x3xf32, #tpu.memory_space<vmem>>, vector<8x3xf32>
    %46 = arith.truncf %45 : vector<8x3xf32> to vector<8x3xbf16>
    %47 = vector.extract_strided_slice %1 {offsets = [0, 34], sizes = [3, 904], strides = [1, 1]} : vector<3x1040xf32> to vector<3x904xf32>
    %48 = arith.truncf %47 : vector<3x904xf32> to vector<3x904xbf16>
    %cst_18 = arith.constant dense<0.000000e+00> : vector<8x904xf32>
    %49 = tpu.matmul %46, %48, %cst_18 {dimension_numbers = #tpu.dot_dimension_numbers<[1], [0], [0], [1], [0, 0, 1, 1], [], []>} : vector<8x3xbf16>, vector<3x904xbf16>, vector<8x904xf32> -> vector<8x904xf32>
    %50 = arith.addf %44, %49 : vector<8x904xf32>
    %c64 = arith.constant 64 : index
    %c0_19 = arith.constant 0 : index
    %51 = vector.load %arg2[%c64, %c0_19] : memref<200x3xf32, #tpu.memory_space<vmem>>, vector<8x3xf32>
    %52 = arith.truncf %51 : vector<8x3xf32> to vector<8x3xbf16>
    %53 = vector.extract_strided_slice %1 {offsets = [0, 35], sizes = [3, 904], strides = [1, 1]} : vector<3x1040xf32> to vector<3x904xf32>
    %54 = arith.truncf %53 : vector<3x904xf32> to vector<3x904xbf16>
    %cst_20 = arith.constant dense<0.000000e+00> : vector<8x904xf32>
    %55 = tpu.matmul %52, %54, %cst_20 {dimension_numbers = #tpu.dot_dimension_numbers<[1], [0], [0], [1], [0, 0, 1, 1], [], []>} : vector<8x3xbf16>, vector<3x904xbf16>, vector<8x904xf32> -> vector<8x904xf32>
    %56 = arith.addf %50, %55 : vector<8x904xf32>
    %c72 = arith.constant 72 : index
    %c0_21 = arith.constant 0 : index
    %57 = vector.load %arg2[%c72, %c0_21] : memref<200x3xf32, #tpu.memory_space<vmem>>, vector<8x3xf32>
    %58 = arith.truncf %57 : vector<8x3xf32> to vector<8x3xbf16>
    %59 = vector.extract_strided_slice %1 {offsets = [0, 36], sizes = [3, 904], strides = [1, 1]} : vector<3x1040xf32> to vector<3x904xf32>
    %60 = arith.truncf %59 : vector<3x904xf32> to vector<3x904xbf16>
    %cst_22 = arith.constant dense<0.000000e+00> : vector<8x904xf32>
    %61 = tpu.matmul %58, %60, %cst_22 {dimension_numbers = #tpu.dot_dimension_numbers<[1], [0], [0], [1], [0, 0, 1, 1], [], []>} : vector<8x3xbf16>, vector<3x904xbf16>, vector<8x904xf32> -> vector<8x904xf32>
    %62 = arith.addf %56, %61 : vector<8x904xf32>
    %c80 = arith.constant 80 : index
    %c0_23 = arith.constant 0 : index
    %63 = vector.load %arg2[%c80, %c0_23] : memref<200x3xf32, #tpu.memory_space<vmem>>, vector<8x3xf32>
    %64 = arith.truncf %63 : vector<8x3xf32> to vector<8x3xbf16>
    %65 = vector.extract_strided_slice %1 {offsets = [0, 64], sizes = [3, 904], strides = [1, 1]} : vector<3x1040xf32> to vector<3x904xf32>
    %66 = arith.truncf %65 : vector<3x904xf32> to vector<3x904xbf16>
    %cst_24 = arith.constant dense<0.000000e+00> : vector<8x904xf32>
    %67 = tpu.matmul %64, %66, %cst_24 {dimension_numbers = #tpu.dot_dimension_numbers<[1], [0], [0], [1], [0, 0, 1, 1], [], []>} : vector<8x3xbf16>, vector<3x904xbf16>, vector<8x904xf32> -> vector<8x904xf32>
    %68 = arith.addf %62, %67 : vector<8x904xf32>
    %c88 = arith.constant 88 : index
    %c0_25 = arith.constant 0 : index
    %69 = vector.load %arg2[%c88, %c0_25] : memref<200x3xf32, #tpu.memory_space<vmem>>, vector<8x3xf32>
    %70 = arith.truncf %69 : vector<8x3xf32> to vector<8x3xbf16>
    %71 = vector.extract_strided_slice %1 {offsets = [0, 65], sizes = [3, 904], strides = [1, 1]} : vector<3x1040xf32> to vector<3x904xf32>
    %72 = arith.truncf %71 : vector<3x904xf32> to vector<3x904xbf16>
    %cst_26 = arith.constant dense<0.000000e+00> : vector<8x904xf32>
    %73 = tpu.matmul %70, %72, %cst_26 {dimension_numbers = #tpu.dot_dimension_numbers<[1], [0], [0], [1], [0, 0, 1, 1], [], []>} : vector<8x3xbf16>, vector<3x904xbf16>, vector<8x904xf32> -> vector<8x904xf32>
    %74 = arith.addf %68, %73 : vector<8x904xf32>
    %c96 = arith.constant 96 : index
    %c0_27 = arith.constant 0 : index
    %75 = vector.load %arg2[%c96, %c0_27] : memref<200x3xf32, #tpu.memory_space<vmem>>, vector<8x3xf32>
    %76 = arith.truncf %75 : vector<8x3xf32> to vector<8x3xbf16>
    %77 = vector.extract_strided_slice %1 {offsets = [0, 66], sizes = [3, 904], strides = [1, 1]} : vector<3x1040xf32> to vector<3x904xf32>
    %78 = arith.truncf %77 : vector<3x904xf32> to vector<3x904xbf16>
    %cst_28 = arith.constant dense<0.000000e+00> : vector<8x904xf32>
    %79 = tpu.matmul %76, %78, %cst_28 {dimension_numbers = #tpu.dot_dimension_numbers<[1], [0], [0], [1], [0, 0, 1, 1], [], []>} : vector<8x3xbf16>, vector<3x904xbf16>, vector<8x904xf32> -> vector<8x904xf32>
    %80 = arith.addf %74, %79 : vector<8x904xf32>
    %c104 = arith.constant 104 : index
    %c0_29 = arith.constant 0 : index
    %81 = vector.load %arg2[%c104, %c0_29] : memref<200x3xf32, #tpu.memory_space<vmem>>, vector<8x3xf32>
    %82 = arith.truncf %81 : vector<8x3xf32> to vector<8x3xbf16>
    %83 = vector.extract_strided_slice %1 {offsets = [0, 67], sizes = [3, 904], strides = [1, 1]} : vector<3x1040xf32> to vector<3x904xf32>
    %84 = arith.truncf %83 : vector<3x904xf32> to vector<3x904xbf16>
    %cst_30 = arith.constant dense<0.000000e+00> : vector<8x904xf32>
    %85 = tpu.matmul %82, %84, %cst_30 {dimension_numbers = #tpu.dot_dimension_numbers<[1], [0], [0], [1], [0, 0, 1, 1], [], []>} : vector<8x3xbf16>, vector<3x904xbf16>, vector<8x904xf32> -> vector<8x904xf32>
    %86 = arith.addf %80, %85 : vector<8x904xf32>
    %c112 = arith.constant 112 : index
    %c0_31 = arith.constant 0 : index
    %87 = vector.load %arg2[%c112, %c0_31] : memref<200x3xf32, #tpu.memory_space<vmem>>, vector<8x3xf32>
    %88 = arith.truncf %87 : vector<8x3xf32> to vector<8x3xbf16>
    %89 = vector.extract_strided_slice %1 {offsets = [0, 68], sizes = [3, 904], strides = [1, 1]} : vector<3x1040xf32> to vector<3x904xf32>
    %90 = arith.truncf %89 : vector<3x904xf32> to vector<3x904xbf16>
    %cst_32 = arith.constant dense<0.000000e+00> : vector<8x904xf32>
    %91 = tpu.matmul %88, %90, %cst_32 {dimension_numbers = #tpu.dot_dimension_numbers<[1], [0], [0], [1], [0, 0, 1, 1], [], []>} : vector<8x3xbf16>, vector<3x904xbf16>, vector<8x904xf32> -> vector<8x904xf32>
    %92 = arith.addf %86, %91 : vector<8x904xf32>
    %c120 = arith.constant 120 : index
    %c0_33 = arith.constant 0 : index
    %93 = vector.load %arg2[%c120, %c0_33] : memref<200x3xf32, #tpu.memory_space<vmem>>, vector<8x3xf32>
    %94 = arith.truncf %93 : vector<8x3xf32> to vector<8x3xbf16>
    %95 = vector.extract_strided_slice %1 {offsets = [0, 96], sizes = [3, 904], strides = [1, 1]} : vector<3x1040xf32> to vector<3x904xf32>
    %96 = arith.truncf %95 : vector<3x904xf32> to vector<3x904xbf16>
    %cst_34 = arith.constant dense<0.000000e+00> : vector<8x904xf32>
    %97 = tpu.matmul %94, %96, %cst_34 {dimension_numbers = #tpu.dot_dimension_numbers<[1], [0], [0], [1], [0, 0, 1, 1], [], []>} : vector<8x3xbf16>, vector<3x904xbf16>, vector<8x904xf32> -> vector<8x904xf32>
    %98 = arith.addf %92, %97 : vector<8x904xf32>
    %c128 = arith.constant 128 : index
    %c0_35 = arith.constant 0 : index
    %99 = vector.load %arg2[%c128, %c0_35] : memref<200x3xf32, #tpu.memory_space<vmem>>, vector<8x3xf32>
    %100 = arith.truncf %99 : vector<8x3xf32> to vector<8x3xbf16>
    %101 = vector.extract_strided_slice %1 {offsets = [0, 97], sizes = [3, 904], strides = [1, 1]} : vector<3x1040xf32> to vector<3x904xf32>
    %102 = arith.truncf %101 : vector<3x904xf32> to vector<3x904xbf16>
    %cst_36 = arith.constant dense<0.000000e+00> : vector<8x904xf32>
    %103 = tpu.matmul %100, %102, %cst_36 {dimension_numbers = #tpu.dot_dimension_numbers<[1], [0], [0], [1], [0, 0, 1, 1], [], []>} : vector<8x3xbf16>, vector<3x904xbf16>, vector<8x904xf32> -> vector<8x904xf32>
    %104 = arith.addf %98, %103 : vector<8x904xf32>
    %c136 = arith.constant 136 : index
    %c0_37 = arith.constant 0 : index
    %105 = vector.load %arg2[%c136, %c0_37] : memref<200x3xf32, #tpu.memory_space<vmem>>, vector<8x3xf32>
    %106 = arith.truncf %105 : vector<8x3xf32> to vector<8x3xbf16>
    %107 = vector.extract_strided_slice %1 {offsets = [0, 98], sizes = [3, 904], strides = [1, 1]} : vector<3x1040xf32> to vector<3x904xf32>
    %108 = arith.truncf %107 : vector<3x904xf32> to vector<3x904xbf16>
    %cst_38 = arith.constant dense<0.000000e+00> : vector<8x904xf32>
    %109 = tpu.matmul %106, %108, %cst_38 {dimension_numbers = #tpu.dot_dimension_numbers<[1], [0], [0], [1], [0, 0, 1, 1], [], []>} : vector<8x3xbf16>, vector<3x904xbf16>, vector<8x904xf32> -> vector<8x904xf32>
    %110 = arith.addf %104, %109 : vector<8x904xf32>
    %c144 = arith.constant 144 : index
    %c0_39 = arith.constant 0 : index
    %111 = vector.load %arg2[%c144, %c0_39] : memref<200x3xf32, #tpu.memory_space<vmem>>, vector<8x3xf32>
    %112 = arith.truncf %111 : vector<8x3xf32> to vector<8x3xbf16>
    %113 = vector.extract_strided_slice %1 {offsets = [0, 99], sizes = [3, 904], strides = [1, 1]} : vector<3x1040xf32> to vector<3x904xf32>
    %114 = arith.truncf %113 : vector<3x904xf32> to vector<3x904xbf16>
    %cst_40 = arith.constant dense<0.000000e+00> : vector<8x904xf32>
    %115 = tpu.matmul %112, %114, %cst_40 {dimension_numbers = #tpu.dot_dimension_numbers<[1], [0], [0], [1], [0, 0, 1, 1], [], []>} : vector<8x3xbf16>, vector<3x904xbf16>, vector<8x904xf32> -> vector<8x904xf32>
    %116 = arith.addf %110, %115 : vector<8x904xf32>
    %c152 = arith.constant 152 : index
    %c0_41 = arith.constant 0 : index
    %117 = vector.load %arg2[%c152, %c0_41] : memref<200x3xf32, #tpu.memory_space<vmem>>, vector<8x3xf32>
    %118 = arith.truncf %117 : vector<8x3xf32> to vector<8x3xbf16>
    %119 = vector.extract_strided_slice %1 {offsets = [0, 100], sizes = [3, 904], strides = [1, 1]} : vector<3x1040xf32> to vector<3x904xf32>
    %120 = arith.truncf %119 : vector<3x904xf32> to vector<3x904xbf16>
    %cst_42 = arith.constant dense<0.000000e+00> : vector<8x904xf32>
    %121 = tpu.matmul %118, %120, %cst_42 {dimension_numbers = #tpu.dot_dimension_numbers<[1], [0], [0], [1], [0, 0, 1, 1], [], []>} : vector<8x3xbf16>, vector<3x904xbf16>, vector<8x904xf32> -> vector<8x904xf32>
    %122 = arith.addf %116, %121 : vector<8x904xf32>
    %c160 = arith.constant 160 : index
    %c0_43 = arith.constant 0 : index
    %123 = vector.load %arg2[%c160, %c0_43] : memref<200x3xf32, #tpu.memory_space<vmem>>, vector<8x3xf32>
    %124 = arith.truncf %123 : vector<8x3xf32> to vector<8x3xbf16>
    %125 = vector.extract_strided_slice %1 {offsets = [0, 128], sizes = [3, 904], strides = [1, 1]} : vector<3x1040xf32> to vector<3x904xf32>
    %126 = arith.truncf %125 : vector<3x904xf32> to vector<3x904xbf16>
    %cst_44 = arith.constant dense<0.000000e+00> : vector<8x904xf32>
    %127 = tpu.matmul %124, %126, %cst_44 {dimension_numbers = #tpu.dot_dimension_numbers<[1], [0], [0], [1], [0, 0, 1, 1], [], []>} : vector<8x3xbf16>, vector<3x904xbf16>, vector<8x904xf32> -> vector<8x904xf32>
    %128 = arith.addf %122, %127 : vector<8x904xf32>
    %c168 = arith.constant 168 : index
    %c0_45 = arith.constant 0 : index
    %129 = vector.load %arg2[%c168, %c0_45] : memref<200x3xf32, #tpu.memory_space<vmem>>, vector<8x3xf32>
    %130 = arith.truncf %129 : vector<8x3xf32> to vector<8x3xbf16>
    %131 = vector.extract_strided_slice %1 {offsets = [0, 129], sizes = [3, 904], strides = [1, 1]} : vector<3x1040xf32> to vector<3x904xf32>
    %132 = arith.truncf %131 : vector<3x904xf32> to vector<3x904xbf16>
    %cst_46 = arith.constant dense<0.000000e+00> : vector<8x904xf32>
    %133 = tpu.matmul %130, %132, %cst_46 {dimension_numbers = #tpu.dot_dimension_numbers<[1], [0], [0], [1], [0, 0, 1, 1], [], []>} : vector<8x3xbf16>, vector<3x904xbf16>, vector<8x904xf32> -> vector<8x904xf32>
    %134 = arith.addf %128, %133 : vector<8x904xf32>
    %c176 = arith.constant 176 : index
    %c0_47 = arith.constant 0 : index
    %135 = vector.load %arg2[%c176, %c0_47] : memref<200x3xf32, #tpu.memory_space<vmem>>, vector<8x3xf32>
    %136 = arith.truncf %135 : vector<8x3xf32> to vector<8x3xbf16>
    %137 = vector.extract_strided_slice %1 {offsets = [0, 130], sizes = [3, 904], strides = [1, 1]} : vector<3x1040xf32> to vector<3x904xf32>
    %138 = arith.truncf %137 : vector<3x904xf32> to vector<3x904xbf16>
    %cst_48 = arith.constant dense<0.000000e+00> : vector<8x904xf32>
    %139 = tpu.matmul %136, %138, %cst_48 {dimension_numbers = #tpu.dot_dimension_numbers<[1], [0], [0], [1], [0, 0, 1, 1], [], []>} : vector<8x3xbf16>, vector<3x904xbf16>, vector<8x904xf32> -> vector<8x904xf32>
    %140 = arith.addf %134, %139 : vector<8x904xf32>
    %c184 = arith.constant 184 : index
    %c0_49 = arith.constant 0 : index
    %141 = vector.load %arg2[%c184, %c0_49] : memref<200x3xf32, #tpu.memory_space<vmem>>, vector<8x3xf32>
    %142 = arith.truncf %141 : vector<8x3xf32> to vector<8x3xbf16>
    %143 = vector.extract_strided_slice %1 {offsets = [0, 131], sizes = [3, 904], strides = [1, 1]} : vector<3x1040xf32> to vector<3x904xf32>
    %144 = arith.truncf %143 : vector<3x904xf32> to vector<3x904xbf16>
    %cst_50 = arith.constant dense<0.000000e+00> : vector<8x904xf32>
    %145 = tpu.matmul %142, %144, %cst_50 {dimension_numbers = #tpu.dot_dimension_numbers<[1], [0], [0], [1], [0, 0, 1, 1], [], []>} : vector<8x3xbf16>, vector<3x904xbf16>, vector<8x904xf32> -> vector<8x904xf32>
    %146 = arith.addf %140, %145 : vector<8x904xf32>
    %c192 = arith.constant 192 : index
    %c0_51 = arith.constant 0 : index
    %147 = vector.load %arg2[%c192, %c0_51] : memref<200x3xf32, #tpu.memory_space<vmem>>, vector<8x3xf32>
    %148 = arith.truncf %147 : vector<8x3xf32> to vector<8x3xbf16>
    %149 = vector.extract_strided_slice %1 {offsets = [0, 132], sizes = [3, 904], strides = [1, 1]} : vector<3x1040xf32> to vector<3x904xf32>
    %150 = arith.truncf %149 : vector<3x904xf32> to vector<3x904xbf16>
    %cst_52 = arith.constant dense<0.000000e+00> : vector<8x904xf32>
    %151 = tpu.matmul %148, %150, %cst_52 {dimension_numbers = #tpu.dot_dimension_numbers<[1], [0], [0], [1], [0, 0, 1, 1], [], []>} : vector<8x3xbf16>, vector<3x904xbf16>, vector<8x904xf32> -> vector<8x904xf32>
    %152 = arith.addf %146, %151 : vector<8x904xf32>
    %c0_53 = arith.constant 0 : index
    %c0_54 = arith.constant 0 : index
    %153 = vector.load %arg3[%c0_53, %c0_54] : memref<8x1xf32, #tpu.memory_space<vmem>>, vector<8x1xf32>
    %154 = vector.broadcast %153 : vector<8x1xf32> to vector<8x904xf32>
    %155 = arith.addf %152, %154 : vector<8x904xf32>
    %cst_55 = arith.constant 0.000000e+00 : f32
    %156 = vector.broadcast %cst_55 : f32 to vector<8x904xf32>
    %157 = arith.maximumf %155, %156 : vector<8x904xf32>
    %158 = vector.extract_strided_slice %157 {offsets = [0, 0], sizes = [8, 864], strides = [1, 1]} : vector<8x904xf32> to vector<8x864xf32>
    %159 = vector.extract_strided_slice %157 {offsets = [0, 1], sizes = [8, 864], strides = [1, 1]} : vector<8x904xf32> to vector<8x864xf32>
    %160 = arith.maximumf %158, %159 : vector<8x864xf32>
    %161 = vector.extract_strided_slice %157 {offsets = [0, 32], sizes = [8, 864], strides = [1, 1]} : vector<8x904xf32> to vector<8x864xf32>
    %162 = vector.extract_strided_slice %157 {offsets = [0, 33], sizes = [8, 864], strides = [1, 1]} : vector<8x904xf32> to vector<8x864xf32>
    %163 = arith.maximumf %161, %162 : vector<8x864xf32>
    %164 = arith.maximumf %160, %163 : vector<8x864xf32>
    %165 = arith.truncf %164 : vector<8x864xf32> to vector<8x864xbf16>
    %c0_56 = arith.constant 0 : index
    %c0_57 = arith.constant 0 : index
    %166 = vector.load %arg6[%c0_56, %c0_57] : memref<864x240xbf16, #tpu.memory_space<vmem>>, vector<864x240xbf16>
    %cst_58 = arith.constant dense<0.000000e+00> : vector<8x240xf32>
    %167 = tpu.matmul %165, %166, %cst_58 {dimension_numbers = #tpu.dot_dimension_numbers<[1], [0], [0], [1], [0, 0, 1, 1], [], []>} : vector<8x864xbf16>, vector<864x240xbf16>, vector<8x240xf32> -> vector<8x240xf32>
    %cst_59 = arith.constant 0.000000e+00 : f32
    %168 = vector.broadcast %cst_59 : f32 to vector<16x168xf32>
    %c0_60 = arith.constant 0 : index
    %c0_61 = arith.constant 0 : index
    %169 = vector.load %arg4[%c0_60, %c0_61] : memref<400x8xf32, #tpu.memory_space<vmem>>, vector<16x8xf32>
    %170 = arith.truncf %169 : vector<16x8xf32> to vector<16x8xbf16>
    %171 = vector.extract_strided_slice %167 {offsets = [0, 0], sizes = [8, 168], strides = [1, 1]} : vector<8x240xf32> to vector<8x168xf32>
    %172 = arith.truncf %171 : vector<8x168xf32> to vector<8x168xbf16>
    %cst_62 = arith.constant dense<0.000000e+00> : vector<16x168xf32>
    %173 = tpu.matmul %170, %172, %cst_62 {dimension_numbers = #tpu.dot_dimension_numbers<[1], [0], [0], [1], [0, 0, 1, 1], [], []>} : vector<16x8xbf16>, vector<8x168xbf16>, vector<16x168xf32> -> vector<16x168xf32>
    %174 = arith.addf %168, %173 : vector<16x168xf32>
    %c16_63 = arith.constant 16 : index
    %c0_64 = arith.constant 0 : index
    %175 = vector.load %arg4[%c16_63, %c0_64] : memref<400x8xf32, #tpu.memory_space<vmem>>, vector<16x8xf32>
    %176 = arith.truncf %175 : vector<16x8xf32> to vector<16x8xbf16>
    %177 = vector.extract_strided_slice %167 {offsets = [0, 1], sizes = [8, 168], strides = [1, 1]} : vector<8x240xf32> to vector<8x168xf32>
    %178 = arith.truncf %177 : vector<8x168xf32> to vector<8x168xbf16>
    %cst_65 = arith.constant dense<0.000000e+00> : vector<16x168xf32>
    %179 = tpu.matmul %176, %178, %cst_65 {dimension_numbers = #tpu.dot_dimension_numbers<[1], [0], [0], [1], [0, 0, 1, 1], [], []>} : vector<16x8xbf16>, vector<8x168xbf16>, vector<16x168xf32> -> vector<16x168xf32>
    %180 = arith.addf %174, %179 : vector<16x168xf32>
    %c32_66 = arith.constant 32 : index
    %c0_67 = arith.constant 0 : index
    %181 = vector.load %arg4[%c32_66, %c0_67] : memref<400x8xf32, #tpu.memory_space<vmem>>, vector<16x8xf32>
    %182 = arith.truncf %181 : vector<16x8xf32> to vector<16x8xbf16>
    %183 = vector.extract_strided_slice %167 {offsets = [0, 2], sizes = [8, 168], strides = [1, 1]} : vector<8x240xf32> to vector<8x168xf32>
    %184 = arith.truncf %183 : vector<8x168xf32> to vector<8x168xbf16>
    %cst_68 = arith.constant dense<0.000000e+00> : vector<16x168xf32>
    %185 = tpu.matmul %182, %184, %cst_68 {dimension_numbers = #tpu.dot_dimension_numbers<[1], [0], [0], [1], [0, 0, 1, 1], [], []>} : vector<16x8xbf16>, vector<8x168xbf16>, vector<16x168xf32> -> vector<16x168xf32>
    %186 = arith.addf %180, %185 : vector<16x168xf32>
    %c48_69 = arith.constant 48 : index
    %c0_70 = arith.constant 0 : index
    %187 = vector.load %arg4[%c48_69, %c0_70] : memref<400x8xf32, #tpu.memory_space<vmem>>, vector<16x8xf32>
    %188 = arith.truncf %187 : vector<16x8xf32> to vector<16x8xbf16>
    %189 = vector.extract_strided_slice %167 {offsets = [0, 3], sizes = [8, 168], strides = [1, 1]} : vector<8x240xf32> to vector<8x168xf32>
    %190 = arith.truncf %189 : vector<8x168xf32> to vector<8x168xbf16>
    %cst_71 = arith.constant dense<0.000000e+00> : vector<16x168xf32>
    %191 = tpu.matmul %188, %190, %cst_71 {dimension_numbers = #tpu.dot_dimension_numbers<[1], [0], [0], [1], [0, 0, 1, 1], [], []>} : vector<16x8xbf16>, vector<8x168xbf16>, vector<16x168xf32> -> vector<16x168xf32>
    %192 = arith.addf %186, %191 : vector<16x168xf32>
    %c64_72 = arith.constant 64 : index
    %c0_73 = arith.constant 0 : index
    %193 = vector.load %arg4[%c64_72, %c0_73] : memref<400x8xf32, #tpu.memory_space<vmem>>, vector<16x8xf32>
    %194 = arith.truncf %193 : vector<16x8xf32> to vector<16x8xbf16>
    %195 = vector.extract_strided_slice %167 {offsets = [0, 4], sizes = [8, 168], strides = [1, 1]} : vector<8x240xf32> to vector<8x168xf32>
    %196 = arith.truncf %195 : vector<8x168xf32> to vector<8x168xbf16>
    %cst_74 = arith.constant dense<0.000000e+00> : vector<16x168xf32>
    %197 = tpu.matmul %194, %196, %cst_74 {dimension_numbers = #tpu.dot_dimension_numbers<[1], [0], [0], [1], [0, 0, 1, 1], [], []>} : vector<16x8xbf16>, vector<8x168xbf16>, vector<16x168xf32> -> vector<16x168xf32>
    %198 = arith.addf %192, %197 : vector<16x168xf32>
    %c80_75 = arith.constant 80 : index
    %c0_76 = arith.constant 0 : index
    %199 = vector.load %arg4[%c80_75, %c0_76] : memref<400x8xf32, #tpu.memory_space<vmem>>, vector<16x8xf32>
    %200 = arith.truncf %199 : vector<16x8xf32> to vector<16x8xbf16>
    %201 = vector.extract_strided_slice %167 {offsets = [0, 16], sizes = [8, 168], strides = [1, 1]} : vector<8x240xf32> to vector<8x168xf32>
    %202 = arith.truncf %201 : vector<8x168xf32> to vector<8x168xbf16>
    %cst_77 = arith.constant dense<0.000000e+00> : vector<16x168xf32>
    %203 = tpu.matmul %200, %202, %cst_77 {dimension_numbers = #tpu.dot_dimension_numbers<[1], [0], [0], [1], [0, 0, 1, 1], [], []>} : vector<16x8xbf16>, vector<8x168xbf16>, vector<16x168xf32> -> vector<16x168xf32>
    %204 = arith.addf %198, %203 : vector<16x168xf32>
    %c96_78 = arith.constant 96 : index
    %c0_79 = arith.constant 0 : index
    %205 = vector.load %arg4[%c96_78, %c0_79] : memref<400x8xf32, #tpu.memory_space<vmem>>, vector<16x8xf32>
    %206 = arith.truncf %205 : vector<16x8xf32> to vector<16x8xbf16>
    %207 = vector.extract_strided_slice %167 {offsets = [0, 17], sizes = [8, 168], strides = [1, 1]} : vector<8x240xf32> to vector<8x168xf32>
    %208 = arith.truncf %207 : vector<8x168xf32> to vector<8x168xbf16>
    %cst_80 = arith.constant dense<0.000000e+00> : vector<16x168xf32>
    %209 = tpu.matmul %206, %208, %cst_80 {dimension_numbers = #tpu.dot_dimension_numbers<[1], [0], [0], [1], [0, 0, 1, 1], [], []>} : vector<16x8xbf16>, vector<8x168xbf16>, vector<16x168xf32> -> vector<16x168xf32>
    %210 = arith.addf %204, %209 : vector<16x168xf32>
    %c112_81 = arith.constant 112 : index
    %c0_82 = arith.constant 0 : index
    %211 = vector.load %arg4[%c112_81, %c0_82] : memref<400x8xf32, #tpu.memory_space<vmem>>, vector<16x8xf32>
    %212 = arith.truncf %211 : vector<16x8xf32> to vector<16x8xbf16>
    %213 = vector.extract_strided_slice %167 {offsets = [0, 18], sizes = [8, 168], strides = [1, 1]} : vector<8x240xf32> to vector<8x168xf32>
    %214 = arith.truncf %213 : vector<8x168xf32> to vector<8x168xbf16>
    %cst_83 = arith.constant dense<0.000000e+00> : vector<16x168xf32>
    %215 = tpu.matmul %212, %214, %cst_83 {dimension_numbers = #tpu.dot_dimension_numbers<[1], [0], [0], [1], [0, 0, 1, 1], [], []>} : vector<16x8xbf16>, vector<8x168xbf16>, vector<16x168xf32> -> vector<16x168xf32>
    %216 = arith.addf %210, %215 : vector<16x168xf32>
    %c128_84 = arith.constant 128 : index
    %c0_85 = arith.constant 0 : index
    %217 = vector.load %arg4[%c128_84, %c0_85] : memref<400x8xf32, #tpu.memory_space<vmem>>, vector<16x8xf32>
    %218 = arith.truncf %217 : vector<16x8xf32> to vector<16x8xbf16>
    %219 = vector.extract_strided_slice %167 {offsets = [0, 19], sizes = [8, 168], strides = [1, 1]} : vector<8x240xf32> to vector<8x168xf32>
    %220 = arith.truncf %219 : vector<8x168xf32> to vector<8x168xbf16>
    %cst_86 = arith.constant dense<0.000000e+00> : vector<16x168xf32>
    %221 = tpu.matmul %218, %220, %cst_86 {dimension_numbers = #tpu.dot_dimension_numbers<[1], [0], [0], [1], [0, 0, 1, 1], [], []>} : vector<16x8xbf16>, vector<8x168xbf16>, vector<16x168xf32> -> vector<16x168xf32>
    %222 = arith.addf %216, %221 : vector<16x168xf32>
    %c144_87 = arith.constant 144 : index
    %c0_88 = arith.constant 0 : index
    %223 = vector.load %arg4[%c144_87, %c0_88] : memref<400x8xf32, #tpu.memory_space<vmem>>, vector<16x8xf32>
    %224 = arith.truncf %223 : vector<16x8xf32> to vector<16x8xbf16>
    %225 = vector.extract_strided_slice %167 {offsets = [0, 20], sizes = [8, 168], strides = [1, 1]} : vector<8x240xf32> to vector<8x168xf32>
    %226 = arith.truncf %225 : vector<8x168xf32> to vector<8x168xbf16>
    %cst_89 = arith.constant dense<0.000000e+00> : vector<16x168xf32>
    %227 = tpu.matmul %224, %226, %cst_89 {dimension_numbers = #tpu.dot_dimension_numbers<[1], [0], [0], [1], [0, 0, 1, 1], [], []>} : vector<16x8xbf16>, vector<8x168xbf16>, vector<16x168xf32> -> vector<16x168xf32>
    %228 = arith.addf %222, %227 : vector<16x168xf32>
    %c160_90 = arith.constant 160 : index
    %c0_91 = arith.constant 0 : index
    %229 = vector.load %arg4[%c160_90, %c0_91] : memref<400x8xf32, #tpu.memory_space<vmem>>, vector<16x8xf32>
    %230 = arith.truncf %229 : vector<16x8xf32> to vector<16x8xbf16>
    %231 = vector.extract_strided_slice %167 {offsets = [0, 32], sizes = [8, 168], strides = [1, 1]} : vector<8x240xf32> to vector<8x168xf32>
    %232 = arith.truncf %231 : vector<8x168xf32> to vector<8x168xbf16>
    %cst_92 = arith.constant dense<0.000000e+00> : vector<16x168xf32>
    %233 = tpu.matmul %230, %232, %cst_92 {dimension_numbers = #tpu.dot_dimension_numbers<[1], [0], [0], [1], [0, 0, 1, 1], [], []>} : vector<16x8xbf16>, vector<8x168xbf16>, vector<16x168xf32> -> vector<16x168xf32>
    %234 = arith.addf %228, %233 : vector<16x168xf32>
    %c176_93 = arith.constant 176 : index
    %c0_94 = arith.constant 0 : index
    %235 = vector.load %arg4[%c176_93, %c0_94] : memref<400x8xf32, #tpu.memory_space<vmem>>, vector<16x8xf32>
    %236 = arith.truncf %235 : vector<16x8xf32> to vector<16x8xbf16>
    %237 = vector.extract_strided_slice %167 {offsets = [0, 33], sizes = [8, 168], strides = [1, 1]} : vector<8x240xf32> to vector<8x168xf32>
    %238 = arith.truncf %237 : vector<8x168xf32> to vector<8x168xbf16>
    %cst_95 = arith.constant dense<0.000000e+00> : vector<16x168xf32>
    %239 = tpu.matmul %236, %238, %cst_95 {dimension_numbers = #tpu.dot_dimension_numbers<[1], [0], [0], [1], [0, 0, 1, 1], [], []>} : vector<16x8xbf16>, vector<8x168xbf16>, vector<16x168xf32> -> vector<16x168xf32>
    %240 = arith.addf %234, %239 : vector<16x168xf32>
    %c192_96 = arith.constant 192 : index
    %c0_97 = arith.constant 0 : index
    %241 = vector.load %arg4[%c192_96, %c0_97] : memref<400x8xf32, #tpu.memory_space<vmem>>, vector<16x8xf32>
    %242 = arith.truncf %241 : vector<16x8xf32> to vector<16x8xbf16>
    %243 = vector.extract_strided_slice %167 {offsets = [0, 34], sizes = [8, 168], strides = [1, 1]} : vector<8x240xf32> to vector<8x168xf32>
    %244 = arith.truncf %243 : vector<8x168xf32> to vector<8x168xbf16>
    %cst_98 = arith.constant dense<0.000000e+00> : vector<16x168xf32>
    %245 = tpu.matmul %242, %244, %cst_98 {dimension_numbers = #tpu.dot_dimension_numbers<[1], [0], [0], [1], [0, 0, 1, 1], [], []>} : vector<16x8xbf16>, vector<8x168xbf16>, vector<16x168xf32> -> vector<16x168xf32>
    %246 = arith.addf %240, %245 : vector<16x168xf32>
    %c208 = arith.constant 208 : index
    %c0_99 = arith.constant 0 : index
    %247 = vector.load %arg4[%c208, %c0_99] : memref<400x8xf32, #tpu.memory_space<vmem>>, vector<16x8xf32>
    %248 = arith.truncf %247 : vector<16x8xf32> to vector<16x8xbf16>
    %249 = vector.extract_strided_slice %167 {offsets = [0, 35], sizes = [8, 168], strides = [1, 1]} : vector<8x240xf32> to vector<8x168xf32>
    %250 = arith.truncf %249 : vector<8x168xf32> to vector<8x168xbf16>
    %cst_100 = arith.constant dense<0.000000e+00> : vector<16x168xf32>
    %251 = tpu.matmul %248, %250, %cst_100 {dimension_numbers = #tpu.dot_dimension_numbers<[1], [0], [0], [1], [0, 0, 1, 1], [], []>} : vector<16x8xbf16>, vector<8x168xbf16>, vector<16x168xf32> -> vector<16x168xf32>
    %252 = arith.addf %246, %251 : vector<16x168xf32>
    %c224 = arith.constant 224 : index
    %c0_101 = arith.constant 0 : index
    %253 = vector.load %arg4[%c224, %c0_101] : memref<400x8xf32, #tpu.memory_space<vmem>>, vector<16x8xf32>
    %254 = arith.truncf %253 : vector<16x8xf32> to vector<16x8xbf16>
    %255 = vector.extract_strided_slice %167 {offsets = [0, 36], sizes = [8, 168], strides = [1, 1]} : vector<8x240xf32> to vector<8x168xf32>
    %256 = arith.truncf %255 : vector<8x168xf32> to vector<8x168xbf16>
    %cst_102 = arith.constant dense<0.000000e+00> : vector<16x168xf32>
    %257 = tpu.matmul %254, %256, %cst_102 {dimension_numbers = #tpu.dot_dimension_numbers<[1], [0], [0], [1], [0, 0, 1, 1], [], []>} : vector<16x8xbf16>, vector<8x168xbf16>, vector<16x168xf32> -> vector<16x168xf32>
    %258 = arith.addf %252, %257 : vector<16x168xf32>
    %c240 = arith.constant 240 : index
    %c0_103 = arith.constant 0 : index
    %259 = vector.load %arg4[%c240, %c0_103] : memref<400x8xf32, #tpu.memory_space<vmem>>, vector<16x8xf32>
    %260 = arith.truncf %259 : vector<16x8xf32> to vector<16x8xbf16>
    %261 = vector.extract_strided_slice %167 {offsets = [0, 48], sizes = [8, 168], strides = [1, 1]} : vector<8x240xf32> to vector<8x168xf32>
    %262 = arith.truncf %261 : vector<8x168xf32> to vector<8x168xbf16>
    %cst_104 = arith.constant dense<0.000000e+00> : vector<16x168xf32>
    %263 = tpu.matmul %260, %262, %cst_104 {dimension_numbers = #tpu.dot_dimension_numbers<[1], [0], [0], [1], [0, 0, 1, 1], [], []>} : vector<16x8xbf16>, vector<8x168xbf16>, vector<16x168xf32> -> vector<16x168xf32>
    %264 = arith.addf %258, %263 : vector<16x168xf32>
    %c256 = arith.constant 256 : index
    %c0_105 = arith.constant 0 : index
    %265 = vector.load %arg4[%c256, %c0_105] : memref<400x8xf32, #tpu.memory_space<vmem>>, vector<16x8xf32>
    %266 = arith.truncf %265 : vector<16x8xf32> to vector<16x8xbf16>
    %267 = vector.extract_strided_slice %167 {offsets = [0, 49], sizes = [8, 168], strides = [1, 1]} : vector<8x240xf32> to vector<8x168xf32>
    %268 = arith.truncf %267 : vector<8x168xf32> to vector<8x168xbf16>
    %cst_106 = arith.constant dense<0.000000e+00> : vector<16x168xf32>
    %269 = tpu.matmul %266, %268, %cst_106 {dimension_numbers = #tpu.dot_dimension_numbers<[1], [0], [0], [1], [0, 0, 1, 1], [], []>} : vector<16x8xbf16>, vector<8x168xbf16>, vector<16x168xf32> -> vector<16x168xf32>
    %270 = arith.addf %264, %269 : vector<16x168xf32>
    %c272 = arith.constant 272 : index
    %c0_107 = arith.constant 0 : index
    %271 = vector.load %arg4[%c272, %c0_107] : memref<400x8xf32, #tpu.memory_space<vmem>>, vector<16x8xf32>
    %272 = arith.truncf %271 : vector<16x8xf32> to vector<16x8xbf16>
    %273 = vector.extract_strided_slice %167 {offsets = [0, 50], sizes = [8, 168], strides = [1, 1]} : vector<8x240xf32> to vector<8x168xf32>
    %274 = arith.truncf %273 : vector<8x168xf32> to vector<8x168xbf16>
    %cst_108 = arith.constant dense<0.000000e+00> : vector<16x168xf32>
    %275 = tpu.matmul %272, %274, %cst_108 {dimension_numbers = #tpu.dot_dimension_numbers<[1], [0], [0], [1], [0, 0, 1, 1], [], []>} : vector<16x8xbf16>, vector<8x168xbf16>, vector<16x168xf32> -> vector<16x168xf32>
    %276 = arith.addf %270, %275 : vector<16x168xf32>
    %c288 = arith.constant 288 : index
    %c0_109 = arith.constant 0 : index
    %277 = vector.load %arg4[%c288, %c0_109] : memref<400x8xf32, #tpu.memory_space<vmem>>, vector<16x8xf32>
    %278 = arith.truncf %277 : vector<16x8xf32> to vector<16x8xbf16>
    %279 = vector.extract_strided_slice %167 {offsets = [0, 51], sizes = [8, 168], strides = [1, 1]} : vector<8x240xf32> to vector<8x168xf32>
    %280 = arith.truncf %279 : vector<8x168xf32> to vector<8x168xbf16>
    %cst_110 = arith.constant dense<0.000000e+00> : vector<16x168xf32>
    %281 = tpu.matmul %278, %280, %cst_110 {dimension_numbers = #tpu.dot_dimension_numbers<[1], [0], [0], [1], [0, 0, 1, 1], [], []>} : vector<16x8xbf16>, vector<8x168xbf16>, vector<16x168xf32> -> vector<16x168xf32>
    %282 = arith.addf %276, %281 : vector<16x168xf32>
    %c304 = arith.constant 304 : index
    %c0_111 = arith.constant 0 : index
    %283 = vector.load %arg4[%c304, %c0_111] : memref<400x8xf32, #tpu.memory_space<vmem>>, vector<16x8xf32>
    %284 = arith.truncf %283 : vector<16x8xf32> to vector<16x8xbf16>
    %285 = vector.extract_strided_slice %167 {offsets = [0, 52], sizes = [8, 168], strides = [1, 1]} : vector<8x240xf32> to vector<8x168xf32>
    %286 = arith.truncf %285 : vector<8x168xf32> to vector<8x168xbf16>
    %cst_112 = arith.constant dense<0.000000e+00> : vector<16x168xf32>
    %287 = tpu.matmul %284, %286, %cst_112 {dimension_numbers = #tpu.dot_dimension_numbers<[1], [0], [0], [1], [0, 0, 1, 1], [], []>} : vector<16x8xbf16>, vector<8x168xbf16>, vector<16x168xf32> -> vector<16x168xf32>
    %288 = arith.addf %282, %287 : vector<16x168xf32>
    %c320 = arith.constant 320 : index
    %c0_113 = arith.constant 0 : index
    %289 = vector.load %arg4[%c320, %c0_113] : memref<400x8xf32, #tpu.memory_space<vmem>>, vector<16x8xf32>
    %290 = arith.truncf %289 : vector<16x8xf32> to vector<16x8xbf16>
    %291 = vector.extract_strided_slice %167 {offsets = [0, 64], sizes = [8, 168], strides = [1, 1]} : vector<8x240xf32> to vector<8x168xf32>
    %292 = arith.truncf %291 : vector<8x168xf32> to vector<8x168xbf16>
    %cst_114 = arith.constant dense<0.000000e+00> : vector<16x168xf32>
    %293 = tpu.matmul %290, %292, %cst_114 {dimension_numbers = #tpu.dot_dimension_numbers<[1], [0], [0], [1], [0, 0, 1, 1], [], []>} : vector<16x8xbf16>, vector<8x168xbf16>, vector<16x168xf32> -> vector<16x168xf32>
    %294 = arith.addf %288, %293 : vector<16x168xf32>
    %c336 = arith.constant 336 : index
    %c0_115 = arith.constant 0 : index
    %295 = vector.load %arg4[%c336, %c0_115] : memref<400x8xf32, #tpu.memory_space<vmem>>, vector<16x8xf32>
    %296 = arith.truncf %295 : vector<16x8xf32> to vector<16x8xbf16>
    %297 = vector.extract_strided_slice %167 {offsets = [0, 65], sizes = [8, 168], strides = [1, 1]} : vector<8x240xf32> to vector<8x168xf32>
    %298 = arith.truncf %297 : vector<8x168xf32> to vector<8x168xbf16>
    %cst_116 = arith.constant dense<0.000000e+00> : vector<16x168xf32>
    %299 = tpu.matmul %296, %298, %cst_116 {dimension_numbers = #tpu.dot_dimension_numbers<[1], [0], [0], [1], [0, 0, 1, 1], [], []>} : vector<16x8xbf16>, vector<8x168xbf16>, vector<16x168xf32> -> vector<16x168xf32>
    %300 = arith.addf %294, %299 : vector<16x168xf32>
    %c352 = arith.constant 352 : index
    %c0_117 = arith.constant 0 : index
    %301 = vector.load %arg4[%c352, %c0_117] : memref<400x8xf32, #tpu.memory_space<vmem>>, vector<16x8xf32>
    %302 = arith.truncf %301 : vector<16x8xf32> to vector<16x8xbf16>
    %303 = vector.extract_strided_slice %167 {offsets = [0, 66], sizes = [8, 168], strides = [1, 1]} : vector<8x240xf32> to vector<8x168xf32>
    %304 = arith.truncf %303 : vector<8x168xf32> to vector<8x168xbf16>
    %cst_118 = arith.constant dense<0.000000e+00> : vector<16x168xf32>
    %305 = tpu.matmul %302, %304, %cst_118 {dimension_numbers = #tpu.dot_dimension_numbers<[1], [0], [0], [1], [0, 0, 1, 1], [], []>} : vector<16x8xbf16>, vector<8x168xbf16>, vector<16x168xf32> -> vector<16x168xf32>
    %306 = arith.addf %300, %305 : vector<16x168xf32>
    %c368 = arith.constant 368 : index
    %c0_119 = arith.constant 0 : index
    %307 = vector.load %arg4[%c368, %c0_119] : memref<400x8xf32, #tpu.memory_space<vmem>>, vector<16x8xf32>
    %308 = arith.truncf %307 : vector<16x8xf32> to vector<16x8xbf16>
    %309 = vector.extract_strided_slice %167 {offsets = [0, 67], sizes = [8, 168], strides = [1, 1]} : vector<8x240xf32> to vector<8x168xf32>
    %310 = arith.truncf %309 : vector<8x168xf32> to vector<8x168xbf16>
    %cst_120 = arith.constant dense<0.000000e+00> : vector<16x168xf32>
    %311 = tpu.matmul %308, %310, %cst_120 {dimension_numbers = #tpu.dot_dimension_numbers<[1], [0], [0], [1], [0, 0, 1, 1], [], []>} : vector<16x8xbf16>, vector<8x168xbf16>, vector<16x168xf32> -> vector<16x168xf32>
    %312 = arith.addf %306, %311 : vector<16x168xf32>
    %c384 = arith.constant 384 : index
    %c0_121 = arith.constant 0 : index
    %313 = vector.load %arg4[%c384, %c0_121] : memref<400x8xf32, #tpu.memory_space<vmem>>, vector<16x8xf32>
    %314 = arith.truncf %313 : vector<16x8xf32> to vector<16x8xbf16>
    %315 = vector.extract_strided_slice %167 {offsets = [0, 68], sizes = [8, 168], strides = [1, 1]} : vector<8x240xf32> to vector<8x168xf32>
    %316 = arith.truncf %315 : vector<8x168xf32> to vector<8x168xbf16>
    %cst_122 = arith.constant dense<0.000000e+00> : vector<16x168xf32>
    %317 = tpu.matmul %314, %316, %cst_122 {dimension_numbers = #tpu.dot_dimension_numbers<[1], [0], [0], [1], [0, 0, 1, 1], [], []>} : vector<16x8xbf16>, vector<8x168xbf16>, vector<16x168xf32> -> vector<16x168xf32>
    %318 = arith.addf %312, %317 : vector<16x168xf32>
    %c0_123 = arith.constant 0 : index
    %c0_124 = arith.constant 0 : index
    %319 = vector.load %arg5[%c0_123, %c0_124] : memref<16x1xf32, #tpu.memory_space<vmem>>, vector<16x1xf32>
    %320 = vector.broadcast %319 : vector<16x1xf32> to vector<16x168xf32>
    %321 = arith.addf %318, %320 : vector<16x168xf32>
    %cst_125 = arith.constant 0.000000e+00 : f32
    %322 = vector.broadcast %cst_125 : f32 to vector<16x168xf32>
    %323 = arith.maximumf %321, %322 : vector<16x168xf32>
    %324 = vector.extract_strided_slice %323 {offsets = [0, 0], sizes = [16, 144], strides = [1, 1]} : vector<16x168xf32> to vector<16x144xf32>
    %325 = vector.extract_strided_slice %323 {offsets = [0, 1], sizes = [16, 144], strides = [1, 1]} : vector<16x168xf32> to vector<16x144xf32>
    %326 = arith.maximumf %324, %325 : vector<16x144xf32>
    %327 = vector.extract_strided_slice %323 {offsets = [0, 16], sizes = [16, 144], strides = [1, 1]} : vector<16x168xf32> to vector<16x144xf32>
    %328 = vector.extract_strided_slice %323 {offsets = [0, 17], sizes = [16, 144], strides = [1, 1]} : vector<16x168xf32> to vector<16x144xf32>
    %329 = arith.maximumf %327, %328 : vector<16x144xf32>
    %330 = arith.maximumf %326, %329 : vector<16x144xf32>
    %331 = vector.extract_strided_slice %330 {offsets = [0, 0], sizes = [16, 1], strides = [1, 1]} : vector<16x144xf32> to vector<16x1xf32>
    %332 = vector.extract_strided_slice %330 {offsets = [0, 2], sizes = [16, 1], strides = [1, 1]} : vector<16x144xf32> to vector<16x1xf32>
    %333 = vector.extract_strided_slice %330 {offsets = [0, 4], sizes = [16, 1], strides = [1, 1]} : vector<16x144xf32> to vector<16x1xf32>
    %334 = vector.extract_strided_slice %330 {offsets = [0, 6], sizes = [16, 1], strides = [1, 1]} : vector<16x144xf32> to vector<16x1xf32>
    %335 = vector.extract_strided_slice %330 {offsets = [0, 8], sizes = [16, 1], strides = [1, 1]} : vector<16x144xf32> to vector<16x1xf32>
    %336 = vector.extract_strided_slice %330 {offsets = [0, 32], sizes = [16, 1], strides = [1, 1]} : vector<16x144xf32> to vector<16x1xf32>
    %337 = vector.extract_strided_slice %330 {offsets = [0, 34], sizes = [16, 1], strides = [1, 1]} : vector<16x144xf32> to vector<16x1xf32>
    %338 = vector.extract_strided_slice %330 {offsets = [0, 36], sizes = [16, 1], strides = [1, 1]} : vector<16x144xf32> to vector<16x1xf32>
    %339 = vector.extract_strided_slice %330 {offsets = [0, 38], sizes = [16, 1], strides = [1, 1]} : vector<16x144xf32> to vector<16x1xf32>
    %340 = vector.extract_strided_slice %330 {offsets = [0, 40], sizes = [16, 1], strides = [1, 1]} : vector<16x144xf32> to vector<16x1xf32>
    %341 = vector.extract_strided_slice %330 {offsets = [0, 64], sizes = [16, 1], strides = [1, 1]} : vector<16x144xf32> to vector<16x1xf32>
    %342 = vector.extract_strided_slice %330 {offsets = [0, 66], sizes = [16, 1], strides = [1, 1]} : vector<16x144xf32> to vector<16x1xf32>
    %343 = vector.extract_strided_slice %330 {offsets = [0, 68], sizes = [16, 1], strides = [1, 1]} : vector<16x144xf32> to vector<16x1xf32>
    %344 = vector.extract_strided_slice %330 {offsets = [0, 70], sizes = [16, 1], strides = [1, 1]} : vector<16x144xf32> to vector<16x1xf32>
    %345 = vector.extract_strided_slice %330 {offsets = [0, 72], sizes = [16, 1], strides = [1, 1]} : vector<16x144xf32> to vector<16x1xf32>
    %346 = vector.extract_strided_slice %330 {offsets = [0, 96], sizes = [16, 1], strides = [1, 1]} : vector<16x144xf32> to vector<16x1xf32>
    %347 = vector.extract_strided_slice %330 {offsets = [0, 98], sizes = [16, 1], strides = [1, 1]} : vector<16x144xf32> to vector<16x1xf32>
    %348 = vector.extract_strided_slice %330 {offsets = [0, 100], sizes = [16, 1], strides = [1, 1]} : vector<16x144xf32> to vector<16x1xf32>
    %349 = vector.extract_strided_slice %330 {offsets = [0, 102], sizes = [16, 1], strides = [1, 1]} : vector<16x144xf32> to vector<16x1xf32>
    %350 = vector.extract_strided_slice %330 {offsets = [0, 104], sizes = [16, 1], strides = [1, 1]} : vector<16x144xf32> to vector<16x1xf32>
    %351 = vector.extract_strided_slice %330 {offsets = [0, 128], sizes = [16, 1], strides = [1, 1]} : vector<16x144xf32> to vector<16x1xf32>
    %352 = vector.extract_strided_slice %330 {offsets = [0, 130], sizes = [16, 1], strides = [1, 1]} : vector<16x144xf32> to vector<16x1xf32>
    %353 = vector.extract_strided_slice %330 {offsets = [0, 132], sizes = [16, 1], strides = [1, 1]} : vector<16x144xf32> to vector<16x1xf32>
    %354 = vector.extract_strided_slice %330 {offsets = [0, 134], sizes = [16, 1], strides = [1, 1]} : vector<16x144xf32> to vector<16x1xf32>
    %355 = vector.extract_strided_slice %330 {offsets = [0, 136], sizes = [16, 1], strides = [1, 1]} : vector<16x144xf32> to vector<16x1xf32>
    %356 = tpu.concatenate %331, %332, %333, %334, %335, %336, %337, %338, %339, %340, %341, %342, %343, %344, %345, %346 in 0 : vector<16x1xf32>, vector<16x1xf32>, vector<16x1xf32>, vector<16x1xf32>, vector<16x1xf32>, vector<16x1xf32>, vector<16x1xf32>, vector<16x1xf32>, vector<16x1xf32>, vector<16x1xf32>, vector<16x1xf32>, vector<16x1xf32>, vector<16x1xf32>, vector<16x1xf32>, vector<16x1xf32>, vector<16x1xf32> -> vector<256x1xf32>
    %357 = tpu.concatenate %347, %348, %349, %350, %351, %352, %353, %354, %355 in 0 : vector<16x1xf32>, vector<16x1xf32>, vector<16x1xf32>, vector<16x1xf32>, vector<16x1xf32>, vector<16x1xf32>, vector<16x1xf32>, vector<16x1xf32>, vector<16x1xf32> -> vector<144x1xf32>
    %358 = tpu.concatenate %356, %357 in 0 : vector<256x1xf32>, vector<144x1xf32> -> vector<400x1xf32>
    %359 = arith.truncf %358 : vector<400x1xf32> to vector<400x1xbf16>
    %c0_126 = arith.constant 0 : index
    %c0_127 = arith.constant 0 : index
    %360 = vector.load %arg7[%c0_126, %c0_127] : memref<120x400xbf16, #tpu.memory_space<vmem>>, vector<120x400xbf16>
    %cst_128 = arith.constant dense<0.000000e+00> : vector<120x1xf32>
    %361 = tpu.matmul %360, %359, %cst_128 {dimension_numbers = #tpu.dot_dimension_numbers<[1], [0], [0], [1], [0, 0, 1, 1], [], []>} : vector<120x400xbf16>, vector<400x1xbf16>, vector<120x1xf32> -> vector<120x1xf32>
    %c0_129 = arith.constant 0 : index
    %c0_130 = arith.constant 0 : index
    %362 = vector.load %arg8[%c0_129, %c0_130] : memref<120x1xf32, #tpu.memory_space<vmem>>, vector<120x1xf32>
    %363 = arith.addf %361, %362 : vector<120x1xf32>
    %cst_131 = arith.constant 0.000000e+00 : f32
    %364 = vector.broadcast %cst_131 : f32 to vector<120x1xf32>
    %365 = arith.maximumf %363, %364 : vector<120x1xf32>
    %366 = arith.truncf %365 : vector<120x1xf32> to vector<120x1xbf16>
    %c0_132 = arith.constant 0 : index
    %c0_133 = arith.constant 0 : index
    %367 = vector.load %arg9[%c0_132, %c0_133] : memref<84x120xbf16, #tpu.memory_space<vmem>>, vector<84x120xbf16>
    %cst_134 = arith.constant dense<0.000000e+00> : vector<84x1xf32>
    %368 = tpu.matmul %367, %366, %cst_134 {dimension_numbers = #tpu.dot_dimension_numbers<[1], [0], [0], [1], [0, 0, 1, 1], [], []>} : vector<84x120xbf16>, vector<120x1xbf16>, vector<84x1xf32> -> vector<84x1xf32>
    %c0_135 = arith.constant 0 : index
    %c0_136 = arith.constant 0 : index
    %369 = vector.load %arg10[%c0_135, %c0_136] : memref<84x1xf32, #tpu.memory_space<vmem>>, vector<84x1xf32>
    %370 = arith.addf %368, %369 : vector<84x1xf32>
    %cst_137 = arith.constant 0.000000e+00 : f32
    %371 = vector.broadcast %cst_137 : f32 to vector<84x1xf32>
    %372 = arith.maximumf %370, %371 : vector<84x1xf32>
    %373 = arith.truncf %372 : vector<84x1xf32> to vector<84x1xbf16>
    %c0_138 = arith.constant 0 : index
    %c0_139 = arith.constant 0 : index
    %374 = vector.load %arg11[%c0_138, %c0_139] : memref<10x84xbf16, #tpu.memory_space<vmem>>, vector<10x84xbf16>
    %cst_140 = arith.constant dense<0.000000e+00> : vector<10x1xf32>
    %375 = tpu.matmul %374, %373, %cst_140 {dimension_numbers = #tpu.dot_dimension_numbers<[1], [0], [0], [1], [0, 0, 1, 1], [], []>} : vector<10x84xbf16>, vector<84x1xbf16>, vector<10x1xf32> -> vector<10x1xf32>
    %c0_141 = arith.constant 0 : index
    %c0_142 = arith.constant 0 : index
    %376 = vector.load %arg12[%c0_141, %c0_142] : memref<10x1xf32, #tpu.memory_space<vmem>>, vector<10x1xf32>
    %377 = arith.addf %375, %376 : vector<10x1xf32>
    %378 = vector.shape_cast %377 : vector<10x1xf32> to vector<1x10x1xf32>
    %c0_143 = arith.constant 0 : index
    %c0_144 = arith.constant 0 : index
    %c0_145 = arith.constant 0 : index
    %379 = vector.load %arg13[%c0_143, %c0_144, %c0_145] : memref<1x10x1xf32, #tpu.memory_space<vmem>>, vector<1x10x1xf32>
    tpu.vector_store %arg13[%c0_143, %c0_144, %c0_145], %378 {strides = array<i32>} : memref<1x10x1xf32, #tpu.memory_space<vmem>>, vector<1x10x1xf32>,
    return
  }
  func.func @transform_0(%arg0: i32) -> (i32, i32, i32) {
    %c0_i32 = arith.constant 0 : i32
    %c0_i32_0 = arith.constant 0 : i32
    %c0_i32_1 = arith.constant 0 : i32
    return %arg0, %c0_i32, %c0_i32_0 : i32, i32, i32
  }
  func.func @transform_1(%arg0: i32) -> (i32, i32) {
    %c0_i32 = arith.constant 0 : i32
    %c0_i32_0 = arith.constant 0 : i32
    %c0_i32_1 = arith.constant 0 : i32
    return %c0_i32, %c0_i32_0 : i32, i32
  }
  func.func @transform_2(%arg0: i32) -> (i32, i32) {
    %c0_i32 = arith.constant 0 : i32
    %c0_i32_0 = arith.constant 0 : i32
    %c0_i32_1 = arith.constant 0 : i32
    return %c0_i32, %c0_i32_0 : i32, i32
  }
  func.func @transform_3(%arg0: i32) -> (i32, i32) {
    %c0_i32 = arith.constant 0 : i32
    %c0_i32_0 = arith.constant 0 : i32
    %c0_i32_1 = arith.constant 0 : i32
    return %c0_i32, %c0_i32_0 : i32, i32
  }
  func.func @transform_4(%arg0: i32) -> (i32, i32) {
    %c0_i32 = arith.constant 0 : i32
    %c0_i32_0 = arith.constant 0 : i32
    %c0_i32_1 = arith.constant 0 : i32
    return %c0_i32, %c0_i32_0 : i32, i32
  }
  func.func @transform_5(%arg0: i32) -> (i32, i32) {
    %c0_i32 = arith.constant 0 : i32
    %c0_i32_0 = arith.constant 0 : i32
    %c0_i32_1 = arith.constant 0 : i32
    return %c0_i32, %c0_i32_0 : i32, i32
  }
  func.func @transform_6(%arg0: i32) -> (i32, i32) {
    %c0_i32 = arith.constant 0 : i32
    %c0_i32_0 = arith.constant 0 : i32
    %c0_i32_1 = arith.constant 0 : i32
    return %c0_i32, %c0_i32_0 : i32, i32
  }
  func.func @transform_7(%arg0: i32) -> (i32, i32) {
    %c0_i32 = arith.constant 0 : i32
    %c0_i32_0 = arith.constant 0 : i32
    %c0_i32_1 = arith.constant 0 : i32
    return %c0_i32, %c0_i32_0 : i32, i32
  }
  func.func @transform_8(%arg0: i32) -> (i32, i32) {
    %c0_i32 = arith.constant 0 : i32
    %c0_i32_0 = arith.constant 0 : i32
    %c0_i32_1 = arith.constant 0 : i32
    return %c0_i32, %c0_i32_0 : i32, i32
  }
  func.func @transform_9(%arg0: i32) -> (i32, i32) {
    %c0_i32 = arith.constant 0 : i32
    %c0_i32_0 = arith.constant 0 : i32
    %c0_i32_1 = arith.constant 0 : i32
    return %c0_i32, %c0_i32_0 : i32, i32
  }
  func.func @transform_10(%arg0: i32) -> (i32, i32) {
    %c0_i32 = arith.constant 0 : i32
    %c0_i32_0 = arith.constant 0 : i32
    %c0_i32_1 = arith.constant 0 : i32
    return %c0_i32, %c0_i32_0 : i32, i32
  }
  func.func @transform_11(%arg0: i32) -> (i32, i32) {
    %c0_i32 = arith.constant 0 : i32
    %c0_i32_0 = arith.constant 0 : i32
    %c0_i32_1 = arith.constant 0 : i32
    return %c0_i32, %c0_i32_0 : i32, i32
  }
  func.func @transform_12(%arg0: i32) -> (i32, i32, i32) {
    %c0_i32 = arith.constant 0 : i32
    %c0_i32_0 = arith.constant 0 : i32
    %c0_i32_1 = arith.constant 0 : i32
    return %arg0, %c0_i32, %c0_i32_0 : i32, i32, i32
  }
}

</mosaic_0001>

<llo_original>
// kernel: cnn_forward.1
$region0: #{cnn_forward.1}
  #allocation0 [shape = 'u32[]', space=smem, size = 0x4, offset = 0x4, fixed_abs, tag = 'smem constant byte address 0x4 - core index']
  #allocation1 [shape = 'u32[144,128]{1,0:T(1,128)}', space=vmem, size = 0x12000, scoped, tag = 'internal scratch']
  %s0 = inlined_call_operand.vmem [shape: f32[2,3,1040], index: 0, kind: input, shape index: {}]
  %s1 = inlined_call_operand.vmem [shape: f32[200,3], index: 1, kind: input, shape index: {}]
  %s2 = inlined_call_operand.vmem [shape: f32[8,1], index: 2, kind: input, shape index: {}]
  %s3 = inlined_call_operand.vmem [shape: f32[400,8], index: 3, kind: input, shape index: {}]
  %s4 = inlined_call_operand.vmem [shape: f32[16,1], index: 4, kind: input, shape index: {}]
  %s5 = inlined_call_operand.vmem [shape: bf16[864,240], index: 5, kind: input, shape index: {}]
  %s6 = inlined_call_operand.vmem [shape: bf16[120,400], index: 6, kind: input, shape index: {}]
  %s7 = inlined_call_operand.vmem [shape: f32[120,1], index: 7, kind: input, shape index: {}]
  %s8 = inlined_call_operand.vmem [shape: bf16[84,120], index: 8, kind: input, shape index: {}]
  %s9 = inlined_call_operand.vmem [shape: f32[84,1], index: 9, kind: input, shape index: {}]
  %s10 = inlined_call_operand.vmem [shape: bf16[10,84], index: 10, kind: input, shape index: {}]
  %s11 = inlined_call_operand.vmem [shape: f32[10,1], index: 11, kind: input, shape index: {}]
  %s12 = inlined_call_operand.vmem [shape: f32[2,10,1], index: 12, kind: output, shape index: {}]
  %s13 = sld [smem:[#allocation0]]
  $region81: #{cnn_forward.1} parent=0
    _
  %s15 = ssub.s32 1, %s13
  %s16 = scalar_select 0, %s15, %s13
  loop: start=0, step=1, limit=4
  $region2: #{cnn_forward.1} parent=0 // loop_pre_header
    _
  $region3: #{cnn_forward.1} parent=0 // loop_header
    %s18 = sphi 0, %s22
    %p19 = scmp.ge.s32.totalorder %s18, 4
    %s28 = sphi 0, %s30
    %s31 = sphi 0, %s28
    %s32 = sphi 0, %s31
    %s48 = sphi 0, %s32
    %s52 = sphi 0, %s52
    %s54 = sphi 0, %s52
    %s55 = sphi 0, %s54
    %s69 = sphi 0, %s55
    %s73 = sphi 0, %s73
    %s75 = sphi 0, %s73
    %s76 = sphi 0, %s75
    %s90 = sphi 0, %s76
    %s94 = sphi 0, %s94
    %s96 = sphi 0, %s94
    %s97 = sphi 0, %s96
    %s111 = sphi 0, %s97
    %s115 = sphi 0, %s115
    %s117 = sphi 0, %s115
    %s118 = sphi 0, %s117
    %s132 = sphi 0, %s118
    %s136 = sphi 0, %s136
    %s138 = sphi 0, %s136
    %s139 = sphi 0, %s138
    %s153 = sphi 0, %s139
    %s157 = sphi 0, %s157
    %s159 = sphi 0, %s157
    %s160 = sphi 0, %s159
    %s174 = sphi 0, %s160
    %s178 = sphi 0, %s178
    %s180 = sphi 0, %s178
    %s181 = sphi 0, %s180
    %s195 = sphi 0, %s181
    %s199 = sphi 0, %s199
    %s201 = sphi 0, %s199
    %s202 = sphi 0, %s201
    %s216 = sphi 0, %s202
    %s220 = sphi 0, %s220
    %s222 = sphi 0, %s220
    %s223 = sphi 0, %s222
    %s237 = sphi 0, %s223
    %s241 = sphi 0, %s241
    %s243 = sphi 0, %s241
    %s244 = sphi 0, %s243
    %s258 = sphi 0, %s244
    %s262 = sphi 0, %s262
    %s264 = sphi 0, %s262
    %s265 = sphi 0, %s264
    %s279 = sphi 0, %s265
    %s285 = sphi 0, %s287
    %s288 = sphi 0, %s285
    %s289 = sphi 0, %s288
    %s305 = sphi 0, %s289
  $region4: #{cnn_forward.1} parent=0 // loop_header_branch
    %21 = sbr.rel (%p19) target = $region8
  $region5: #{cnn_forward.1} parent=0 // loop_body
    %s23 = ssub.s32 %s18, 1
    %s24 = ssub.s32 %s18, 2
    %s25 = sadd.s32 %s18, 1
    %s26 = ssub.s32 %s18, %s25
    %p27 = scmp.eq.s32.totalorder %s26, 0
    %s29 = sadd.s32 %s28, 1
    %s30 = scalar_select %p27, %s28, %s29
    %p33 = pneg %p27
    %p34 = scmp.eq.s32.totalorder %s18, 1
    %p35 = por %p33, %p34
    %p36 = scmp.ne.s32.totalorder %s28, %s31
    %p37 = scmp.eq.s32.totalorder %s18, 0
    %p38 = por %p36, %p37
    %p39 = scmp.ne.s32.totalorder %s28, %s31
    %p40 = scmp.eq.s32.totalorder %s23, 1
    %p41 = por %p39, %p40
    %p42 = scmp.ne.s32.totalorder %s31, %s32
    %p43 = scmp.eq.s32.totalorder %s23, 0
    %p44 = por %p42, %p43
    %p45 = scmp.ne.s32.totalorder %s31, %s32
    %p46 = scmp.eq.s32.totalorder %s24, 1
    %p47 = por %p45, %p46
    %p49 = scmp.ne.s32.totalorder %s32, %s48
    %p50 = scmp.eq.s32.totalorder %s24, 0
    %p51 = por %p49, %p50
    %s53 = sadd.s32 %s52, 1
    %p56 = scmp.eq.s32.totalorder %s18, 1
    %p57 = scmp.ne.s32.totalorder %s52, %s54
    %p58 = scmp.eq.s32.totalorder %s18, 0
    %p59 = por %p57, %p58
    %p60 = scmp.ne.s32.totalorder %s52, %s54
    %p61 = scmp.eq.s32.totalorder %s23, 1
    %p62 = por %p60, %p61
    %p63 = scmp.ne.s32.totalorder %s54, %s55
    %p64 = scmp.eq.s32.totalorder %s23, 0
    %p65 = por %p63, %p64
    %p66 = scmp.ne.s32.totalorder %s54, %s55
    %p67 = scmp.eq.s32.totalorder %s24, 1
    %p68 = por %p66, %p67
    %p70 = scmp.ne.s32.totalorder %s55, %s69
    %p71 = scmp.eq.s32.totalorder %s24, 0
    %p72 = por %p70, %p71
    %s74 = sadd.s32 %s73, 1
    %p77 = scmp.eq.s32.totalorder %s18, 1
    %p78 = scmp.ne.s32.totalorder %s73, %s75
    %p79 = scmp.eq.s32.totalorder %s18, 0
    %p80 = por %p78, %p79
    %p81 = scmp.ne.s32.totalorder %s73, %s75
    %p82 = scmp.eq.s32.totalorder %s23, 1
    %p83 = por %p81, %p82
    %p84 = scmp.ne.s32.totalorder %s75, %s76
    %p85 = scmp.eq.s32.totalorder %s23, 0
    %p86 = por %p84, %p85
    %p87 = scmp.ne.s32.totalorder %s75, %s76
    %p88 = scmp.eq.s32.totalorder %s24, 1
    %p89 = por %p87, %p88
    %p91 = scmp.ne.s32.totalorder %s76, %s90
    %p92 = scmp.eq.s32.totalorder %s24, 0
    %p93 = por %p91, %p92
    %s95 = sadd.s32 %s94, 1
    %p98 = scmp.eq.s32.totalorder %s18, 1
    %p99 = scmp.ne.s32.totalorder %s94, %s96
    %p100 = scmp.eq.s32.totalorder %s18, 0
    %p101 = por %p99, %p100
    %p102 = scmp.ne.s32.totalorder %s94, %s96
    %p103 = scmp.eq.s32.totalorder %s23, 1
    %p104 = por %p102, %p103
    %p105 = scmp.ne.s32.totalorder %s96, %s97
    %p106 = scmp.eq.s32.totalorder %s23, 0
    %p107 = por %p105, %p106
    %p108 = scmp.ne.s32.totalorder %s96, %s97
    %p109 = scmp.eq.s32.totalorder %s24, 1
    %p110 = por %p108, %p109
    %p112 = scmp.ne.s32.totalorder %s97, %s111
    %p113 = scmp.eq.s32.totalorder %s24, 0
    %p114 = por %p112, %p113
    %s116 = sadd.s32 %s115, 1
    %p119 = scmp.eq.s32.totalorder %s18, 1
    %p120 = scmp.ne.s32.totalorder %s115, %s117
    %p121 = scmp.eq.s32.totalorder %s18, 0
    %p122 = por %p120, %p121
    %p123 = scmp.ne.s32.totalorder %s115, %s117
    %p124 = scmp.eq.s32.totalorder %s23, 1
    %p125 = por %p123, %p124
    %p126 = scmp.ne.s32.totalorder %s117, %s118
    %p127 = scmp.eq.s32.totalorder %s23, 0
    %p128 = por %p126, %p127
    %p129 = scmp.ne.s32.totalorder %s117, %s118
    %p130 = scmp.eq.s32.totalorder %s24, 1
    %p131 = por %p129, %p130
    %p133 = scmp.ne.s32.totalorder %s118, %s132
    %p134 = scmp.eq.s32.totalorder %s24, 0
    %p135 = por %p133, %p134
    %s137 = sadd.s32 %s136, 1
    %p140 = scmp.eq.s32.totalorder %s18, 1
    %p141 = scmp.ne.s32.totalorder %s136, %s138
    %p142 = scmp.eq.s32.totalorder %s18, 0
    %p143 = por %p141, %p142
    %p144 = scmp.ne.s32.totalorder %s136, %s138
    %p145 = scmp.eq.s32.totalorder %s23, 1
    %p146 = por %p144, %p145
    %p147 = scmp.ne.s32.totalorder %s138, %s139
    %p148 = scmp.eq.s32.totalorder %s23, 0
    %p149 = por %p147, %p148
    %p150 = scmp.ne.s32.totalorder %s138, %s139
    %p151 = scmp.eq.s32.totalorder %s24, 1
    %p152 = por %p150, %p151
    %p154 = scmp.ne.s32.totalorder %s139, %s153
    %p155 = scmp.eq.s32.totalorder %s24, 0
    %p156 = por %p154, %p155
    %s158 = sadd.s32 %s157, 1
    %p161 = scmp.eq.s32.totalorder %s18, 1
    %p162 = scmp.ne.s32.totalorder %s157, %s159
    %p163 = scmp.eq.s32.totalorder %s18, 0
    %p164 = por %p162, %p163
    %p165 = scmp.ne.s32.totalorder %s157, %s159
    %p166 = scmp.eq.s32.totalorder %s23, 1
    %p167 = por %p165, %p166
    %p168 = scmp.ne.s32.totalorder %s159, %s160
    %p169 = scmp.eq.s32.totalorder %s23, 0
    %p170 = por %p168, %p169
    %p171 = scmp.ne.s32.totalorder %s159, %s160
    %p172 = scmp.eq.s32.totalorder %s24, 1
    %p173 = por %p171, %p172
    %p175 = scmp.ne.s32.totalorder %s160, %s174
    %p176 = scmp.eq.s32.totalorder %s24, 0
    %p177 = por %p175, %p176
    %s179 = sadd.s32 %s178, 1
    %p182 = scmp.eq.s32.totalorder %s18, 1
    %p183 = scmp.ne.s32.totalorder %s178, %s180
    %p184 = scmp.eq.s32.totalorder %s18, 0
    %p185 = por %p183, %p184
    %p186 = scmp.ne.s32.totalorder %s178, %s180
    %p187 = scmp.eq.s32.totalorder %s23, 1
    %p188 = por %p186, %p187
    %p189 = scmp.ne.s32.totalorder %s180, %s181
    %p190 = scmp.eq.s32.totalorder %s23, 0
    %p191 = por %p189, %p190
    %p192 = scmp.ne.s32.totalorder %s180, %s181
    %p193 = scmp.eq.s32.totalorder %s24, 1
    %p194 = por %p192, %p193
    %p196 = scmp.ne.s32.totalorder %s181, %s195
    %p197 = scmp.eq.s32.totalorder %s24, 0
    %p198 = por %p196, %p197
    %s200 = sadd.s32 %s199, 1
    %p203 = scmp.eq.s32.totalorder %s18, 1
    %p204 = scmp.ne.s32.totalorder %s199, %s201
    %p205 = scmp.eq.s32.totalorder %s18, 0
    %p206 = por %p204, %p205
    %p207 = scmp.ne.s32.totalorder %s199, %s201
    %p208 = scmp.eq.s32.totalorder %s23, 1
    %p209 = por %p207, %p208
    %p210 = scmp.ne.s32.totalorder %s201, %s202
    %p211 = scmp.eq.s32.totalorder %s23, 0
    %p212 = por %p210, %p211
    %p213 = scmp.ne.s32.totalorder %s201, %s202
    %p214 = scmp.eq.s32.totalorder %s24, 1
    %p215 = por %p213, %p214
    %p217 = scmp.ne.s32.totalorder %s202, %s216
    %p218 = scmp.eq.s32.totalorder %s24, 0
    %p219 = por %p217, %p218
    %s221 = sadd.s32 %s220, 1
    %p224 = scmp.eq.s32.totalorder %s18, 1
    %p225 = scmp.ne.s32.totalorder %s220, %s222
    %p226 = scmp.eq.s32.totalorder %s18, 0
    %p227 = por %p225, %p226
    %p228 = scmp.ne.s32.totalorder %s220, %s222
    %p229 = scmp.eq.s32.totalorder %s23, 1
    %p230 = por %p228, %p229
    %p231 = scmp.ne.s32.totalorder %s222, %s223
    %p232 = scmp.eq.s32.totalorder %s23, 0
    %p233 = por %p231, %p232
    %p234 = scmp.ne.s32.totalorder %s222, %s223
    %p235 = scmp.eq.s32.totalorder %s24, 1
    %p236 = por %p234, %p235
    %p238 = scmp.ne.s32.totalorder %s223, %s237
    %p239 = scmp.eq.s32.totalorder %s24, 0
    %p240 = por %p238, %p239
    %s242 = sadd.s32 %s241, 1
    %p245 = scmp.eq.s32.totalorder %s18, 1
    %p246 = scmp.ne.s32.totalorder %s241, %s243
    %p247 = scmp.eq.s32.totalorder %s18, 0
    %p248 = por %p246, %p247
    %p249 = scmp.ne.s32.totalorder %s241, %s243
    %p250 = scmp.eq.s32.totalorder %s23, 1
    %p251 = por %p249, %p250
    %p252 = scmp.ne.s32.totalorder %s243, %s244
    %p253 = scmp.eq.s32.totalorder %s23, 0
    %p254 = por %p252, %p253
    %p255 = scmp.ne.s32.totalorder %s243, %s244
    %p256 = scmp.eq.s32.totalorder %s24, 1
    %p257 = por %p255, %p256
    %p259 = scmp.ne.s32.totalorder %s244, %s258
    %p260 = scmp.eq.s32.totalorder %s24, 0
    %p261 = por %p259, %p260
    %s263 = sadd.s32 %s262, 1
    %p266 = scmp.eq.s32.totalorder %s18, 1
    %p267 = scmp.ne.s32.totalorder %s262, %s264
    %p268 = scmp.eq.s32.totalorder %s18, 0
    %p269 = por %p267, %p268
    %p270 = scmp.ne.s32.totalorder %s262, %s264
    %p271 = scmp.eq.s32.totalorder %s23, 1
    %p272 = por %p270, %p271
    %p273 = scmp.ne.s32.totalorder %s264, %s265
    %p274 = scmp.eq.s32.totalorder %s23, 0
    %p275 = por %p273, %p274
    %p276 = scmp.ne.s32.totalorder %s264, %s265
    %p277 = scmp.eq.s32.totalorder %s24, 1
    %p278 = por %p276, %p277
    %p280 = scmp.ne.s32.totalorder %s265, %s279
    %p281 = scmp.eq.s32.totalorder %s24, 0
    %p282 = por %p280, %p281
    %s283 = ssub.s32 %s18, %s25
    %p284 = scmp.eq.s32.totalorder %s283, 0
    %s286 = sadd.s32 %s285, 1
    %s287 = scalar_select %p284, %s285, %s286
    %p290 = pneg %p284
    %p291 = scmp.eq.s32.totalorder %s18, 1
    %p292 = por %p290, %p291
    %p293 = scmp.ne.s32.totalorder %s285, %s288
    %p294 = scmp.eq.s32.totalorder %s18, 0
    %p295 = por %p293, %p294
    %p296 = scmp.ne.s32.totalorder %s285, %s288
    %p297 = scmp.eq.s32.totalorder %s23, 1
    %p298 = por %p296, %p297
    %p299 = scmp.ne.s32.totalorder %s288, %s289
    %p300 = scmp.eq.s32.totalorder %s23, 0
    %p301 = por %p299, %p300
    %p302 = scmp.ne.s32.totalorder %s288, %s289
    %p303 = scmp.eq.s32.totalorder %s24, 1
    %p304 = por %p302, %p303
    %p306 = scmp.ne.s32.totalorder %s289, %s305
    %p307 = scmp.eq.s32.totalorder %s24, 0
    %p308 = por %p306, %p307
    %p309 = scmp.le.s32.totalorder 1, %s18
    %p310 = scmp.lt.s32.totalorder %s18, 3
    %p311 = pnand %p309, %p310
    %p312 = pneg %p311
    // Predicated region
    $region9: #{cnn_forward.1} parent=5 // pred_check
      _
    $region10: #{cnn_forward.1} parent=5 // pred_check_branch
      %314 = sbr.rel (%p311) target = $region12
    $region11: #{cnn_forward.1} parent=5 // pred_region
      %s315 = ssub.s32 %s18, 1
      // Predicated region
      $region13: #{cnn_forward.1} parent=11 // pred_check
        %p316 = pneg %p65
      $region14: #{cnn_forward.1} parent=11 // pred_check_branch
        %318 = sbr.rel (%p316) target = $region16
      $region15: #{cnn_forward.1} parent=11 // pred_region
        _
      $region16: #{cnn_forward.1} parent=11 // pred_fallthru
        _
      // Predicated region
      $region17: #{cnn_forward.1} parent=11 // pred_check
        %p319 = pneg %p86
      $region18: #{cnn_forward.1} parent=11 // pred_check_branch
        %321 = sbr.rel (%p319) target = $region20
      $region19: #{cnn_forward.1} parent=11 // pred_region
        _
      $region20: #{cnn_forward.1} parent=11 // pred_fallthru
        _
      // Predicated region
      $region21: #{cnn_forward.1} parent=11 // pred_check
        %p322 = pneg %p107
      $region22: #{cnn_forward.1} parent=11 // pred_check_branch
        %324 = sbr.rel (%p322) target = $region24
      $region23: #{cnn_forward.1} parent=11 // pred_region
        _
      $region24: #{cnn_forward.1} parent=11 // pred_fallthru
        _
      // Predicated region
      $region25: #{cnn_forward.1} parent=11 // pred_check
        %p325 = pneg %p128
      $region26: #{cnn_forward.1} parent=11 // pred_check_branch
        %327 = sbr.rel (%p325) target = $region28
      $region27: #{cnn_forward.1} parent=11 // pred_region
        _
      $region28: #{cnn_forward.1} parent=11 // pred_fallthru
        _
      // Predicated region
      $region29: #{cnn_forward.1} parent=11 // pred_check
        %p328 = pneg %p149
      $region30: #{cnn_forward.1} parent=11 // pred_check_branch
        %330 = sbr.rel (%p328) target = $region32
      $region31: #{cnn_forward.1} parent=11 // pred_region
        _
      $region32: #{cnn_forward.1} parent=11 // pred_fallthru
        _
      // Predicated region
      $region33: #{cnn_forward.1} parent=11 // pred_check
        %p331 = pneg %p170
      $region34: #{cnn_forward.1} parent=11 // pred_check_branch
        %333 = sbr.rel (%p331) target = $region36
      $region35: #{cnn_forward.1} parent=11 // pred_region
        _
      $region36: #{cnn_forward.1} parent=11 // pred_fallthru
        _
      // Predicated region
      $region37: #{cnn_forward.1} parent=11 // pred_check
        %p334 = pneg %p191
      $region38: #{cnn_forward.1} parent=11 // pred_check_branch
        %336 = sbr.rel (%p334) target = $region40
      $region39: #{cnn_forward.1} parent=11 // pred_region
        _
      $region40: #{cnn_forward.1} parent=11 // pred_fallthru
        _
      // Predicated region
      $region41: #{cnn_forward.1} parent=11 // pred_check
        %p337 = pneg %p212
      $region42: #{cnn_forward.1} parent=11 // pred_check_branch
        %339 = sbr.rel (%p337) target = $region44
      $region43: #{cnn_forward.1} parent=11 // pred_region
        _
      $region44: #{cnn_forward.1} parent=11 // pred_fallthru
        _
      // Predicated region
      $region45: #{cnn_forward.1} parent=11 // pred_check
        %p340 = pneg %p233
      $region46: #{cnn_forward.1} parent=11 // pred_check_branch
        %342 = sbr.rel (%p340) target = $region48
      $region47: #{cnn_forward.1} parent=11 // pred_region
        _
      $region48: #{cnn_forward.1} parent=11 // pred_fallthru
        _
      // Predicated region
      $region49: #{cnn_forward.1} parent=11 // pred_check
        %p343 = pneg %p254
      $region50: #{cnn_forward.1} parent=11 // pred_check_branch
        %345 = sbr.rel (%p343) target = $region52
      $region51: #{cnn_forward.1} parent=11 // pred_region
        _
      $region52: #{cnn_forward.1} parent=11 // pred_fallthru
        _
      // Predicated region
      $region53: #{cnn_forward.1} parent=11 // pred_check
        %p346 = pneg %p275
      $region54: #{cnn_forward.1} parent=11 // pred_check_branch
        %348 = sbr.rel (%p346) target = $region56
      $region55: #{cnn_forward.1} parent=11 // pred_region
        _
      $region56: #{cnn_forward.1} parent=11 // pred_fallthru
        _
    $region12: #{cnn_forward.1} parent=5 // pred_fallthru
      _
    %p349 = scmp.lt.s32.totalorder %s18, 2
    // Predicated region
    $region57: #{cnn_forward.1} parent=5 // pred_check
      %p350 = pneg %p349
    $region58: #{cnn_forward.1} parent=5 // pred_check_branch
      %352 = sbr.rel (%p350) target = $region60
    $region59: #{cnn_forward.1} parent=5 // pred_region
      // Predicated region
      $region61: #{cnn_forward.1} parent=59 // pred_check
        %p353 = pneg %p38
      $region62: #{cnn_forward.1} parent=59 // pred_check_branch
        %355 = sbr.rel (%p353) target = $region64
      $region63: #{cnn_forward.1} parent=59 // pred_region
        %p356 = scmp.lt.s32.totalorder %s18, 1
        %s357 = scalar_select %p356, %s18, 1
        %s358 = smul.addr %s357, 9
        %s359 = smul.addr %s358, 4
        %s360 = scalar_lea.vmem %s0, %s359
      $region64: #{cnn_forward.1} parent=59 // pred_fallthru
        _
    $region60: #{cnn_forward.1} parent=5 // pred_fallthru
      _
    %p361 = scmp.le.s32.totalorder 1, %s18
    %p362 = scmp.lt.s32.totalorder %s18, 3
    %p363 = pnand %p361, %p362
    %p364 = pneg %p363
    // Predicated region
    $region65: #{cnn_forward.1} parent=5 // pred_check
      _
    $region66: #{cnn_forward.1} parent=5 // pred_check_branch
      %366 = sbr.rel (%p363) target = $region68
    $region67: #{cnn_forward.1} parent=5 // pred_region
      %s367 = ssub.s32 %s18, 1
      %p368 = scmp.lt.s32.totalorder %s23, 1
      %s369 = scalar_select %p368, %s23, 1
      %s370 = smul.addr %s369, 9
      %s371 = smul.addr %s370, 4
      %s372 = scalar_lea.vmem %s0, %s371
      %p373 = pneg %p44
      %p374 = pneg %p41
      %p375 = pneg %p65
      %p376 = pneg %p62
      %p377 = pneg %p86
      %p378 = pneg %p83
      %p379 = pneg %p107
      %p380 = pneg %p104
      %p381 = pneg %p128
      %p382 = pneg %p125
      %p383 = pneg %p149
      %p384 = pneg %p146
      %p385 = pneg %p170
      %p386 = pneg %p167
      %p387 = pneg %p191
      %p388 = pneg %p188
      %p389 = pneg %p212
      %p390 = pneg %p209
      %p391 = pneg %p233
      %p392 = pneg %p230
      %p393 = pneg %p254
      %p394 = pneg %p251
      %p395 = pneg %p275
      %p396 = pneg %p272
      %p397 = pneg %p301
      %p398 = pneg %p298
      %p399 = scmp.lt.s32.totalorder %s23, 1
      %s400 = scalar_select %p399, %s23, 1
      %s401 = smul.addr %s400, 2
      %s402 = smul.addr %s401, 8
      %s403 = scalar_lea.vmem %s12, %s402
      %p404 = scmp.lt.s32.totalorder %s23, 1
      %s405 = scalar_select %p404, %s23, 1
      %s406 = smul.addr %s405, 9
      %s407 = smul.addr %s406, 4
      %s408 = scalar_lea.vmem %s0, %s407
      %p409 = scmp.lt.s32.totalorder %s23, 1
      %s410 = scalar_select %p409, %s23, 1
      %s411 = smul.addr %s410, 2
      %s412 = smul.addr %s411, 8
      %s413 = scalar_lea.vmem %s12, %s412
      %v415 = vld [vmem:[%s408] sm:$0x77]
      %v416 = vld [vmem:[%s408 + $0x8] sm:$0x77]
      %v417 = vld [vmem:[%s408 + $0x10] sm:$0x77]
      %v418 = vld [vmem:[%s408 + $0x18] sm:$0x77]
      %v419 = vld [vmem:[%s408 + $0x20] sm:$0x7]
      %v420 = vld [vmem:[%s1] sm:$0xff]
      %v421 = vpack.c.bf16 %v420, %v420
      %v426 = vcombine.high %v415, %v415
      %v427 = vcombine.high %v416, %v416
      %v428 = vcombine.high %v417, %v417
      %v429 = vcombine.high %v418, %v418
      %v434 = vpack.c.bf16 %v415, %v415
      %v435 = vpack.c.bf16 %v426, %v426
      %v436 = vpack.c.bf16 %v416, %v416
      %v437 = vpack.c.bf16 %v427, %v427
      %v438 = vpack.c.bf16 %v417, %v417
      %v439 = vpack.c.bf16 %v428, %v428
      %v440 = vpack.c.bf16 %v418, %v418
      %v441 = vpack.c.bf16 %v429, %v429
      %v442 = vld [vmem:[%s1 + $0x8] sm:$0xff]
      %v443 = vpack.c.bf16 %v442, %v442
      %452 = vrot.lane.b32.xlu0 %v434, 127
      %v453 = vpop.permute.xlu0 %452
      %454 = vrot.lane.b32.xlu0 %v435, 127
      %v455 = vpop.permute.xlu0 %454
      %456 = vrot.lane.b32.xlu0 %v436, 127
      %v457 = vpop.permute.xlu0 %456
      %458 = vrot.lane.b32.xlu0 %v437, 127
      %v459 = vpop.permute.xlu0 %458
      %460 = vrot.lane.b32.xlu0 %v438, 127
      %v461 = vpop.permute.xlu0 %460
      %462 = vrot.lane.b32.xlu0 %v439, 127
      %v463 = vpop.permute.xlu0 %462
      %464 = vrot.lane.b32.xlu0 %v440, 127
      %v465 = vpop.permute.xlu0 %464
      %466 = vrot.lane.b32.xlu0 %v441, 127
      %v467 = vpop.permute.xlu0 %466
      %vm468 = vcmask 1039360
      %v469 = vsel %vm468, %v453, %v455
      %v470 = vsel %vm468, %v455, %v457
      %v471 = vsel %vm468, %v457, %v459
      %v472 = vsel %vm468, %v459, %v461
      %v473 = vsel %vm468, %v461, %v463
      %v474 = vsel %vm468, %v463, %v465
      %v475 = vsel %vm468, %v465, %v467
      %vm476 = vcmask 23552
      %v478 = vsel %vm476, %v443, 0
      %vm480 = vcmask 1040384
      %vm481 = vcmask 1041408
      %v482 = vsel %vm480, 4294967295, 65535
      %v483 = vsel %vm481, %v482, 0
      %v485 = vand.u32 %v469, %v483
      %v488 = vand.u32 %v470, %v483
      %v491 = vand.u32 %v471, %v483
      %v494 = vand.u32 %v472, %v483
      %v497 = vand.u32 %v473, %v483
      %v500 = vand.u32 %v474, %v483
      %v503 = vand.u32 %v475, %v483
      %v506 = vand.u32 %v467, %v483
      %508 = vmatprep.subr.bf16.mxu0 %v488
      %509 = vmatpush1.bf16.msra.mxu0 %v485
      %510 = vmatprep.subr.bf16.mxu0 0
      %511 = vmatpush1.bf16.msra.mxu0 0
      %512 = vmatprep.subr.bf16.mxu0 0
      %513 = vmatpush1.bf16.msra.mxu0 0
      %514 = vmatprep.subr.bf16.mxu0 0
      %515 = vmatpush1.bf16.msra.mxu0 0
      %516 = vmatprep.subr.bf16.mxu0 0
      %517 = vmatpush1.bf16.msra.mxu0 0
      %518 = vmatprep.subr.bf16.mxu0 0
      %519 = vmatpush1.bf16.msra.mxu0 0
      %520 = vmatprep.subr.bf16.mxu0 0
      %521 = vmatpush1.bf16.msra.mxu0 0
      %522 = vmatprep.subr.bf16.mxu0 0
      %523 = vmatpush1.bf16.msra.mxu0 0
      %524 = vmatprep.subr.bf16.mxu0 0
      %525 = vmatpush1.bf16.msra.mxu0 0
      %526 = vmatprep.subr.bf16.mxu0 0
      %527 = vmatpush1.bf16.msra.mxu0 0
      %528 = vmatprep.subr.bf16.mxu0 0
      %529 = vmatpush1.bf16.msra.mxu0 0
      %530 = vmatprep.subr.bf16.mxu0 0
      %531 = vmatpush1.bf16.msra.mxu0 0
      %532 = vmatprep.subr.bf16.mxu0 0
      %533 = vmatpush1.bf16.msra.mxu0 0
      %534 = vmatprep.subr.bf16.mxu0 0
      %535 = vmatpush1.bf16.msra.mxu0 0
      %536 = vmatprep.subr.bf16.mxu0 0
      %537 = vmatpush1.bf16.msra.mxu0 0
      %538 = vmatprep.subr.bf16.mxu0 0
      %539 = vmatpush1.bf16.msra.mxu0 0
      %540 = vmatprep.mubr.bf16.mxu0 0
      %541 = vmatmul.mubr.bf16.gmra.mrb[0].mxu0 %v478
      %v542 = vpop.f32.mrb[0].mxu0
      %v543 = vadd.f32 0.0, %v542
      %v544 = vpop.f32.mrb[0].mxu0
      %v545 = vadd.f32 0.0, %v544
      %v546 = vpop.f32.mrb[0].mxu0
      %v547 = vpop.f32.mrb[0].mxu0
      %548 = vdwg.mxu0
      %549 = vmatprep.subr.bf16.mxu0 %v494
      %550 = vmatpush1.bf16.msra.mxu0 %v491
      %551 = vmatprep.subr.bf16.mxu0 0
      %552 = vmatpush1.bf16.msra.mxu0 0
      %553 = vmatprep.subr.bf16.mxu0 0
      %554 = vmatpush1.bf16.msra.mxu0 0
      %555 = vmatprep.subr.bf16.mxu0 0
      %556 = vmatpush1.bf16.msra.mxu0 0
      %557 = vmatprep.subr.bf16.mxu0 0
      %558 = vmatpush1.bf16.msra.mxu0 0
      %559 = vmatprep.subr.bf16.mxu0 0
      %560 = vmatpush1.bf16.msra.mxu0 0
      %561 = vmatprep.subr.bf16.mxu0 0
      %562 = vmatpush1.bf16.msra.mxu0 0
      %563 = vmatprep.subr.bf16.mxu0 0
      %564 = vmatpush1.bf16.msra.mxu0 0
      %565 = vmatprep.subr.bf16.mxu0 0
      %566 = vmatpush1.bf16.msra.mxu0 0
      %567 = vmatprep.subr.bf16.mxu0 0
      %568 = vmatpush1.bf16.msra.mxu0 0
      %569 = vmatprep.subr.bf16.mxu0 0
      %570 = vmatpush1.bf16.msra.mxu0 0
      %571 = vmatprep.subr.bf16.mxu0 0
      %572 = vmatpush1.bf16.msra.mxu0 0
      %573 = vmatprep.subr.bf16.mxu0 0
      %574 = vmatpush1.bf16.msra.mxu0 0
      %575 = vmatprep.subr.bf16.mxu0 0
      %576 = vmatpush1.bf16.msra.mxu0 0
      %577 = vmatprep.subr.bf16.mxu0 0
      %578 = vmatpush1.bf16.msra.mxu0 0
      %579 = vmatprep.subr.bf16.mxu0 0
      %580 = vmatpush1.bf16.msra.mxu0 0
      %581 = vmatprep.mubr.bf16.mxu0 0
      %582 = vmatmul.mubr.bf16.gmra.mrb[0].mxu0 %v478
      %v583 = vpop.f32.mrb[0].mxu0
      %v584 = vadd.f32 0.0, %v583
      %v585 = vpop.f32.mrb[0].mxu0
      %v586 = vadd.f32 0.0, %v585
      %v587 = vpop.f32.mrb[0].mxu0
      %v588 = vpop.f32.mrb[0].mxu0
      %589 = vdwg.mxu0
      %590 = vmatprep.subr.bf16.mxu0 %v500
      %591 = vmatpush1.bf16.msra.mxu0 %v497
      %592 = vmatprep.subr.bf16.mxu0 0
      %593 = vmatpush1.bf16.msra.mxu0 0
      %594 = vmatprep.subr.bf16.mxu0 0
      %595 = vmatpush1.bf16.msra.mxu0 0
      %596 = vmatprep.subr.bf16.mxu0 0
      %597 = vmatpush1.bf16.msra.mxu0 0
      %598 = vmatprep.subr.bf16.mxu0 0
      %599 = vmatpush1.bf16.msra.mxu0 0
      %600 = vmatprep.subr.bf16.mxu0 0
      %601 = vmatpush1.bf16.msra.mxu0 0
      %602 = vmatprep.subr.bf16.mxu0 0
      %603 = vmatpush1.bf16.msra.mxu0 0
      %604 = vmatprep.subr.bf16.mxu0 0
      %605 = vmatpush1.bf16.msra.mxu0 0
      %606 = vmatprep.subr.bf16.mxu0 0
      %607 = vmatpush1.bf16.msra.mxu0 0
      %608 = vmatprep.subr.bf16.mxu0 0
      %609 = vmatpush1.bf16.msra.mxu0 0
      %610 = vmatprep.subr.bf16.mxu0 0
      %611 = vmatpush1.bf16.msra.mxu0 0
      %612 = vmatprep.subr.bf16.mxu0 0
      %613 = vmatpush1.bf16.msra.mxu0 0
      %614 = vmatprep.subr.bf16.mxu0 0
      %615 = vmatpush1.bf16.msra.mxu0 0
      %616 = vmatprep.subr.bf16.mxu0 0
      %617 = vmatpush1.bf16.msra.mxu0 0
      %618 = vmatprep.subr.bf16.mxu0 0
      %619 = vmatpush1.bf16.msra.mxu0 0
      %620 = vmatprep.subr.bf16.mxu0 0
      %621 = vmatpush1.bf16.msra.mxu0 0
      %622 = vmatprep.mubr.bf16.mxu0 0
      %623 = vmatmul.mubr.bf16.gmra.mrb[0].mxu0 %v478
      %v624 = vpop.f32.mrb[0].mxu0
      %v625 = vadd.f32 0.0, %v624
      %v626 = vpop.f32.mrb[0].mxu0
      %v627 = vadd.f32 0.0, %v626
      %v628 = vpop.f32.mrb[0].mxu0
      %v629 = vpop.f32.mrb[0].mxu0
      %630 = vdwg.mxu0
      %631 = vmatprep.subr.bf16.mxu0 %v506
      %632 = vmatpush1.bf16.msra.mxu0 %v503
      %633 = vmatprep.subr.bf16.mxu0 0
      %634 = vmatpush1.bf16.msra.mxu0 0
      %635 = vmatprep.subr.bf16.mxu0 0
      %636 = vmatpush1.bf16.msra.mxu0 0
      %637 = vmatprep.subr.bf16.mxu0 0
      %638 = vmatpush1.bf16.msra.mxu0 0
      %639 = vmatprep.subr.bf16.mxu0 0
      %640 = vmatpush1.bf16.msra.mxu0 0
      %641 = vmatprep.subr.bf16.mxu0 0
      %642 = vmatpush1.bf16.msra.mxu0 0
      %643 = vmatprep.subr.bf16.mxu0 0
      %644 = vmatpush1.bf16.msra.mxu0 0
      %645 = vmatprep.subr.bf16.mxu0 0
      %646 = vmatpush1.bf16.msra.mxu0 0
      %647 = vmatprep.subr.bf16.mxu0 0
      %648 = vmatpush1.bf16.msra.mxu0 0
      %649 = vmatprep.subr.bf16.mxu0 0
      %650 = vmatpush1.bf16.msra.mxu0 0
      %651 = vmatprep.subr.bf16.mxu0 0
      %652 = vmatpush1.bf16.msra.mxu0 0
      %653 = vmatprep.subr.bf16.mxu0 0
      %654 = vmatpush1.bf16.msra.mxu0 0
      %655 = vmatprep.subr.bf16.mxu0 0
      %656 = vmatpush1.bf16.msra.mxu0 0
      %657 = vmatprep.subr.bf16.mxu0 0
      %658 = vmatpush1.bf16.msra.mxu0 0
      %659 = vmatprep.subr.bf16.mxu0 0
      %660 = vmatpush1.bf16.msra.mxu0 0
      %661 = vmatprep.subr.bf16.mxu0 0
      %662 = vmatpush1.bf16.msra.mxu0 0
      %663 = vmatprep.mubr.bf16.mxu0 0
      %664 = vmatmul.mubr.bf16.gmra.mrb[0].mxu0 %v478
      %v665 = vpop.f32.mrb[0].mxu0
      %v666 = vadd.f32 0.0, %v665
      %v667 = vpop.f32.mrb[0].mxu0
      %v668 = vadd.f32 0.0, %v667
      %v669 = vpop.f32.mrb[0].mxu0
      %v670 = vpop.f32.mrb[0].mxu0
      %671 = vdwg.mxu0
      %v673 = vsel %vm476, %v421, 0
      %v676 = vand.u32 %v434, %v483
      %v679 = vand.u32 %v435, %v483
      %v682 = vand.u32 %v436, %v483
      %v685 = vand.u32 %v437, %v483
      %v688 = vand.u32 %v438, %v483
      %v691 = vand.u32 %v439, %v483
      %v694 = vand.u32 %v440, %v483
      %v697 = vand.u32 %v441, %v483
      %699 = vmatprep.subr.bf16.mxu0 %v679
      %700 = vmatpush1.bf16.msra.mxu0 %v676
      %701 = vmatprep.subr.bf16.mxu0 0
      %702 = vmatpush1.bf16.msra.mxu0 0
      %703 = vmatprep.subr.bf16.mxu0 0
      %704 = vmatpush1.bf16.msra.mxu0 0
      %705 = vmatprep.subr.bf16.mxu0 0
      %706 = vmatpush1.bf16.msra.mxu0 0
      %707 = vmatprep.subr.bf16.mxu0 0
      %708 = vmatpush1.bf16.msra.mxu0 0
      %709 = vmatprep.subr.bf16.mxu0 0
      %710 = vmatpush1.bf16.msra.mxu0 0
      %711 = vmatprep.subr.bf16.mxu0 0
      %712 = vmatpush1.bf16.msra.mxu0 0
      %713 = vmatprep.subr.bf16.mxu0 0
      %714 = vmatpush1.bf16.msra.mxu0 0
      %715 = vmatprep.subr.bf16.mxu0 0
      %716 = vmatpush1.bf16.msra.mxu0 0
      %717 = vmatprep.subr.bf16.mxu0 0
      %718 = vmatpush1.bf16.msra.mxu0 0
      %719 = vmatprep.subr.bf16.mxu0 0
      %720 = vmatpush1.bf16.msra.mxu0 0
      %721 = vmatprep.subr.bf16.mxu0 0
      %722 = vmatpush1.bf16.msra.mxu0 0
      %723 = vmatprep.subr.bf16.mxu0 0
      %724 = vmatpush1.bf16.msra.mxu0 0
      %725 = vmatprep.subr.bf16.mxu0 0
      %726 = vmatpush1.bf16.msra.mxu0 0
      %727 = vmatprep.subr.bf16.mxu0 0
      %728 = vmatpush1.bf16.msra.mxu0 0
      %729 = vmatprep.subr.bf16.mxu0 0
      %730 = vmatpush1.bf16.msra.mxu0 0
      %731 = vmatprep.mubr.bf16.mxu0 0
      %732 = vmatmul.mubr.bf16.gmra.mrb[0].mxu0 %v673
      %v733 = vpop.f32.mrb[0].mxu0
      %v734 = vadd.f32 %v543, %v733
      %v735 = vpop.f32.mrb[0].mxu0
      %v736 = vadd.f32 %v545, %v735
      %v737 = vpop.f32.mrb[0].mxu0
      %v738 = vpop.f32.mrb[0].mxu0
      %739 = vdwg.mxu0
      %740 = vmatprep.subr.bf16.mxu0 %v685
      %741 = vmatpush1.bf16.msra.mxu0 %v682
      %742 = vmatprep.subr.bf16.mxu0 0
      %743 = vmatpush1.bf16.msra.mxu0 0
      %744 = vmatprep.subr.bf16.mxu0 0
      %745 = vmatpush1.bf16.msra.mxu0 0
      %746 = vmatprep.subr.bf16.mxu0 0
      %747 = vmatpush1.bf16.msra.mxu0 0
      %748 = vmatprep.subr.bf16.mxu0 0
      %749 = vmatpush1.bf16.msra.mxu0 0
      %750 = vmatprep.subr.bf16.mxu0 0
      %751 = vmatpush1.bf16.msra.mxu0 0
      %752 = vmatprep.subr.bf16.mxu0 0
      %753 = vmatpush1.bf16.msra.mxu0 0
      %754 = vmatprep.subr.bf16.mxu0 0
      %755 = vmatpush1.bf16.msra.mxu0 0
      %756 = vmatprep.subr.bf16.mxu0 0
      %757 = vmatpush1.bf16.msra.mxu0 0
      %758 = vmatprep.subr.bf16.mxu0 0
      %759 = vmatpush1.bf16.msra.mxu0 0
      %760 = vmatprep.subr.bf16.mxu0 0
      %761 = vmatpush1.bf16.msra.mxu0 0
      %762 = vmatprep.subr.bf16.mxu0 0
      %763 = vmatpush1.bf16.msra.mxu0 0
      %764 = vmatprep.subr.bf16.mxu0 0
      %765 = vmatpush1.bf16.msra.mxu0 0
      %766 = vmatprep.subr.bf16.mxu0 0
      %767 = vmatpush1.bf16.msra.mxu0 0
      %768 = vmatprep.subr.bf16.mxu0 0
      %769 = vmatpush1.bf16.msra.mxu0 0
      %770 = vmatprep.subr.bf16.mxu0 0
      %771 = vmatpush1.bf16.msra.mxu0 0
      %772 = vmatprep.mubr.bf16.mxu0 0
      %773 = vmatmul.mubr.bf16.gmra.mrb[0].mxu0 %v673
      %v774 = vpop.f32.mrb[0].mxu0
      %v775 = vadd.f32 %v584, %v774
      %v776 = vpop.f32.mrb[0].mxu0
      %v777 = vadd.f32 %v586, %v776
      %v778 = vpop.f32.mrb[0].mxu0
      %v779 = vpop.f32.mrb[0].mxu0
      %780 = vdwg.mxu0
      %781 = vmatprep.subr.bf16.mxu0 %v691
      %782 = vmatpush1.bf16.msra.mxu0 %v688
      %783 = vmatprep.subr.bf16.mxu0 0
      %784 = vmatpush1.bf16.msra.mxu0 0
      %785 = vmatprep.subr.bf16.mxu0 0
      %786 = vmatpush1.bf16.msra.mxu0 0
      %787 = vmatprep.subr.bf16.mxu0 0
      %788 = vmatpush1.bf16.msra.mxu0 0
      %789 = vmatprep.subr.bf16.mxu0 0
      %790 = vmatpush1.bf16.msra.mxu0 0
      %791 = vmatprep.subr.bf16.mxu0 0
      %792 = vmatpush1.bf16.msra.mxu0 0
      %793 = vmatprep.subr.bf16.mxu0 0
      %794 = vmatpush1.bf16.msra.mxu0 0
      %795 = vmatprep.subr.bf16.mxu0 0
      %796 = vmatpush1.bf16.msra.mxu0 0
      %797 = vmatprep.subr.bf16.mxu0 0
      %798 = vmatpush1.bf16.msra.mxu0 0
      %799 = vmatprep.subr.bf16.mxu0 0
      %800 = vmatpush1.bf16.msra.mxu0 0
      %801 = vmatprep.subr.bf16.mxu0 0
      %802 = vmatpush1.bf16.msra.mxu0 0
      %803 = vmatprep.subr.bf16.mxu0 0
      %804 = vmatpush1.bf16.msra.mxu0 0
      %805 = vmatprep.subr.bf16.mxu0 0
      %806 = vmatpush1.bf16.msra.mxu0 0
      %807 = vmatprep.subr.bf16.mxu0 0
      %808 = vmatpush1.bf16.msra.mxu0 0
      %809 = vmatprep.subr.bf16.mxu0 0
      %810 = vmatpush1.bf16.msra.mxu0 0
      %811 = vmatprep.subr.bf16.mxu0 0
      %812 = vmatpush1.bf16.msra.mxu0 0
      %813 = vmatprep.mubr.bf16.mxu0 0
      %814 = vmatmul.mubr.bf16.gmra.mrb[0].mxu0 %v673
      %v815 = vpop.f32.mrb[0].mxu0
      %v816 = vadd.f32 %v625, %v815
      %v817 = vpop.f32.mrb[0].mxu0
      %v818 = vadd.f32 %v627, %v817
      %v819 = vpop.f32.mrb[0].mxu0
      %v820 = vpop.f32.mrb[0].mxu0
      %821 = vdwg.mxu0
      %822 = vmatprep.subr.bf16.mxu0 %v697
      %823 = vmatpush1.bf16.msra.mxu0 %v694
      %824 = vmatprep.subr.bf16.mxu0 0
      %825 = vmatpush1.bf16.msra.mxu0 0
      %826 = vmatprep.subr.bf16.mxu0 0
      %827 = vmatpush1.bf16.msra.mxu0 0
      %828 = vmatprep.subr.bf16.mxu0 0
      %829 = vmatpush1.bf16.msra.mxu0 0
      %830 = vmatprep.subr.bf16.mxu0 0
      %831 = vmatpush1.bf16.msra.mxu0 0
      %832 = vmatprep.subr.bf16.mxu0 0
      %833 = vmatpush1.bf16.msra.mxu0 0
      %834 = vmatprep.subr.bf16.mxu0 0
      %835 = vmatpush1.bf16.msra.mxu0 0
      %836 = vmatprep.subr.bf16.mxu0 0
      %837 = vmatpush1.bf16.msra.mxu0 0
      %838 = vmatprep.subr.bf16.mxu0 0
      %839 = vmatpush1.bf16.msra.mxu0 0
      %840 = vmatprep.subr.bf16.mxu0 0
      %841 = vmatpush1.bf16.msra.mxu0 0
      %842 = vmatprep.subr.bf16.mxu0 0
      %843 = vmatpush1.bf16.msra.mxu0 0
      %844 = vmatprep.subr.bf16.mxu0 0
      %845 = vmatpush1.bf16.msra.mxu0 0
      %846 = vmatprep.subr.bf16.mxu0 0
      %847 = vmatpush1.bf16.msra.mxu0 0
      %848 = vmatprep.subr.bf16.mxu0 0
      %849 = vmatpush1.bf16.msra.mxu0 0
      %850 = vmatprep.subr.bf16.mxu0 0
      %851 = vmatpush1.bf16.msra.mxu0 0
      %852 = vmatprep.subr.bf16.mxu0 0
      %853 = vmatpush1.bf16.msra.mxu0 0
      %854 = vmatprep.mubr.bf16.mxu0 0
      %855 = vmatmul.mubr.bf16.gmra.mrb[0].mxu0 %v673
      %v856 = vpop.f32.mrb[0].mxu0
      %v857 = vadd.f32 %v666, %v856
      %v858 = vpop.f32.mrb[0].mxu0
      %v859 = vadd.f32 %v668, %v858
      %v860 = vpop.f32.mrb[0].mxu0
      %v861 = vpop.f32.mrb[0].mxu0
      %862 = vdwg.mxu0
      %v863 = vld [vmem:[%s1 + $0x10] sm:$0xff]
      %v864 = vpack.c.bf16 %v863, %v863
      %865 = vrot.lane.b32.xlu0 %v434, 126
      %v866 = vpop.permute.xlu0 %865
      %867 = vrot.lane.b32.xlu0 %v435, 126
      %v868 = vpop.permute.xlu0 %867
      %869 = vrot.lane.b32.xlu0 %v436, 126
      %v870 = vpop.permute.xlu0 %869
      %871 = vrot.lane.b32.xlu0 %v437, 126
      %v872 = vpop.permute.xlu0 %871
      %873 = vrot.lane.b32.xlu0 %v438, 126
      %v874 = vpop.permute.xlu0 %873
      %875 = vrot.lane.b32.xlu0 %v439, 126
      %v876 = vpop.permute.xlu0 %875
      %877 = vrot.lane.b32.xlu0 %v440, 126
      %v878 = vpop.permute.xlu0 %877
      %879 = vrot.lane.b32.xlu0 %v441, 126
      %v880 = vpop.permute.xlu0 %879
      %vm881 = vcmask 1031168
      %v882 = vsel %vm881, %v866, %v868
      %v883 = vsel %vm881, %v868, %v870
      %v884 = vsel %vm881, %v870, %v872
      %v885 = vsel %vm881, %v872, %v874
      %v886 = vsel %vm881, %v874, %v876
      %v887 = vsel %vm881, %v876, %v878
      %v888 = vsel %vm881, %v878, %v880
      %v890 = vsel %vm476, %v864, 0
      %v893 = vand.u32 %v882, %v483
      %v896 = vand.u32 %v883, %v483
      %v899 = vand.u32 %v884, %v483
      %v902 = vand.u32 %v885, %v483
      %v905 = vand.u32 %v886, %v483
      %v908 = vand.u32 %v887, %v483
      %v911 = vand.u32 %v888, %v483
      %v914 = vand.u32 %v880, %v483
      %916 = vmatprep.subr.bf16.mxu0 %v896
      %917 = vmatpush1.bf16.msra.mxu0 %v893
      %918 = vmatprep.subr.bf16.mxu0 0
      %919 = vmatpush1.bf16.msra.mxu0 0
      %920 = vmatprep.subr.bf16.mxu0 0
      %921 = vmatpush1.bf16.msra.mxu0 0
      %922 = vmatprep.subr.bf16.mxu0 0
      %923 = vmatpush1.bf16.msra.mxu0 0
      %924 = vmatprep.subr.bf16.mxu0 0
      %925 = vmatpush1.bf16.msra.mxu0 0
      %926 = vmatprep.subr.bf16.mxu0 0
      %927 = vmatpush1.bf16.msra.mxu0 0
      %928 = vmatprep.subr.bf16.mxu0 0
      %929 = vmatpush1.bf16.msra.mxu0 0
      %930 = vmatprep.subr.bf16.mxu0 0
      %931 = vmatpush1.bf16.msra.mxu0 0
      %932 = vmatprep.subr.bf16.mxu0 0
      %933 = vmatpush1.bf16.msra.mxu0 0
      %934 = vmatprep.subr.bf16.mxu0 0
      %935 = vmatpush1.bf16.msra.mxu0 0
      %936 = vmatprep.subr.bf16.mxu0 0
      %937 = vmatpush1.bf16.msra.mxu0 0
      %938 = vmatprep.subr.bf16.mxu0 0
      %939 = vmatpush1.bf16.msra.mxu0 0
      %940 = vmatprep.subr.bf16.mxu0 0
      %941 = vmatpush1.bf16.msra.mxu0 0
      %942 = vmatprep.subr.bf16.mxu0 0
      %943 = vmatpush1.bf16.msra.mxu0 0
      %944 = vmatprep.subr.bf16.mxu0 0
      %945 = vmatpush1.bf16.msra.mxu0 0
      %946 = vmatprep.subr.bf16.mxu0 0
      %947 = vmatpush1.bf16.msra.mxu0 0
      %948 = vmatprep.mubr.bf16.mxu0 0
      %949 = vmatmul.mubr.bf16.gmra.mrb[0].mxu0 %v890
      %v950 = vpop.f32.mrb[0].mxu0
      %v951 = vadd.f32 0.0, %v950
      %v952 = vpop.f32.mrb[0].mxu0
      %v953 = vadd.f32 0.0, %v952
      %v954 = vpop.f32.mrb[0].mxu0
      %v955 = vpop.f32.mrb[0].mxu0
      %956 = vdwg.mxu0
      %957 = vmatprep.subr.bf16.mxu0 %v902
      %958 = vmatpush1.bf16.msra.mxu0 %v899
      %959 = vmatprep.subr.bf16.mxu0 0
      %960 = vmatpush1.bf16.msra.mxu0 0
      %961 = vmatprep.subr.bf16.mxu0 0
      %962 = vmatpush1.bf16.msra.mxu0 0
      %963 = vmatprep.subr.bf16.mxu0 0
      %964 = vmatpush1.bf16.msra.mxu0 0
      %965 = vmatprep.subr.bf16.mxu0 0
      %966 = vmatpush1.bf16.msra.mxu0 0
      %967 = vmatprep.subr.bf16.mxu0 0
      %968 = vmatpush1.bf16.msra.mxu0 0
      %969 = vmatprep.subr.bf16.mxu0 0
      %970 = vmatpush1.bf16.msra.mxu0 0
      %971 = vmatprep.subr.bf16.mxu0 0
      %972 = vmatpush1.bf16.msra.mxu0 0
      %973 = vmatprep.subr.bf16.mxu0 0
      %974 = vmatpush1.bf16.msra.mxu0 0
      %975 = vmatprep.subr.bf16.mxu0 0
      %976 = vmatpush1.bf16.msra.mxu0 0
      %977 = vmatprep.subr.bf16.mxu0 0
      %978 = vmatpush1.bf16.msra.mxu0 0
      %979 = vmatprep.subr.bf16.mxu0 0
      %980 = vmatpush1.bf16.msra.mxu0 0
      %981 = vmatprep.subr.bf16.mxu0 0
      %982 = vmatpush1.bf16.msra.mxu0 0
      %983 = vmatprep.subr.bf16.mxu0 0
      %984 = vmatpush1.bf16.msra.mxu0 0
      %985 = vmatprep.subr.bf16.mxu0 0
      %986 = vmatpush1.bf16.msra.mxu0 0
      %987 = vmatprep.subr.bf16.mxu0 0
      %988 = vmatpush1.bf16.msra.mxu0 0
      %989 = vmatprep.mubr.bf16.mxu0 0
      %990 = vmatmul.mubr.bf16.gmra.mrb[0].mxu0 %v890
      %v991 = vpop.f32.mrb[0].mxu0
      %v992 = vadd.f32 0.0, %v991
      %v993 = vpop.f32.mrb[0].mxu0
      %v994 = vadd.f32 0.0, %v993
      %v995 = vpop.f32.mrb[0].mxu0
      %v996 = vpop.f32.mrb[0].mxu0
      %997 = vdwg.mxu0
      %998 = vmatprep.subr.bf16.mxu0 %v908
      %999 = vmatpush1.bf16.msra.mxu0 %v905
      %1000 = vmatprep.subr.bf16.mxu0 0
      %1001 = vmatpush1.bf16.msra.mxu0 0
      %1002 = vmatprep.subr.bf16.mxu0 0
      %1003 = vmatpush1.bf16.msra.mxu0 0
      %1004 = vmatprep.subr.bf16.mxu0 0
      %1005 = vmatpush1.bf16.msra.mxu0 0
      %1006 = vmatprep.subr.bf16.mxu0 0
      %1007 = vmatpush1.bf16.msra.mxu0 0
      %1008 = vmatprep.subr.bf16.mxu0 0
      %1009 = vmatpush1.bf16.msra.mxu0 0
      %1010 = vmatprep.subr.bf16.mxu0 0
      %1011 = vmatpush1.bf16.msra.mxu0 0
      %1012 = vmatprep.subr.bf16.mxu0 0
      %1013 = vmatpush1.bf16.msra.mxu0 0
      %1014 = vmatprep.subr.bf16.mxu0 0
      %1015 = vmatpush1.bf16.msra.mxu0 0
      %1016 = vmatprep.subr.bf16.mxu0 0
      %1017 = vmatpush1.bf16.msra.mxu0 0
      %1018 = vmatprep.subr.bf16.mxu0 0
      %1019 = vmatpush1.bf16.msra.mxu0 0
      %1020 = vmatprep.subr.bf16.mxu0 0
      %1021 = vmatpush1.bf16.msra.mxu0 0
      %1022 = vmatprep.subr.bf16.mxu0 0
      %1023 = vmatpush1.bf16.msra.mxu0 0
      %1024 = vmatprep.subr.bf16.mxu0 0
      %1025 = vmatpush1.bf16.msra.mxu0 0
      %1026 = vmatprep.subr.bf16.mxu0 0
      %1027 = vmatpush1.bf16.msra.mxu0 0
      %1028 = vmatprep.subr.bf16.mxu0 0
      %1029 = vmatpush1.bf16.msra.mxu0 0
      %1030 = vmatprep.mubr.bf16.mxu0 0
      %1031 = vmatmul.mubr.bf16.gmra.mrb[0].mxu0 %v890
      %v1032 = vpop.f32.mrb[0].mxu0
      %v1033 = vadd.f32 0.0, %v1032
      %v1034 = vpop.f32.mrb[0].mxu0
      %v1035 = vadd.f32 0.0, %v1034
      %v1036 = vpop.f32.mrb[0].mxu0
      %v1037 = vpop.f32.mrb[0].mxu0
      %1038 = vdwg.mxu0
      %1039 = vmatprep.subr.bf16.mxu0 %v914
      %1040 = vmatpush1.bf16.msra.mxu0 %v911
      %1041 = vmatprep.subr.bf16.mxu0 0
      %1042 = vmatpush1.bf16.msra.mxu0 0
      %1043 = vmatprep.subr.bf16.mxu0 0
      %1044 = vmatpush1.bf16.msra.mxu0 0
      %1045 = vmatprep.subr.bf16.mxu0 0
      %1046 = vmatpush1.bf16.msra.mxu0 0
      %1047 = vmatprep.subr.bf16.mxu0 0
      %1048 = vmatpush1.bf16.msra.mxu0 0
      %1049 = vmatprep.subr.bf16.mxu0 0
      %1050 = vmatpush1.bf16.msra.mxu0 0
      %1051 = vmatprep.subr.bf16.mxu0 0
      %1052 = vmatpush1.bf16.msra.mxu0 0
      %1053 = vmatprep.subr.bf16.mxu0 0
      %1054 = vmatpush1.bf16.msra.mxu0 0
      %1055 = vmatprep.subr.bf16.mxu0 0
      %1056 = vmatpush1.bf16.msra.mxu0 0
      %1057 = vmatprep.subr.bf16.mxu0 0
      %1058 = vmatpush1.bf16.msra.mxu0 0
      %1059 = vmatprep.subr.bf16.mxu0 0
      %1060 = vmatpush1.bf16.msra.mxu0 0
      %1061 = vmatprep.subr.bf16.mxu0 0
      %1062 = vmatpush1.bf16.msra.mxu0 0
      %1063 = vmatprep.subr.bf16.mxu0 0
      %1064 = vmatpush1.bf16.msra.mxu0 0
      %1065 = vmatprep.subr.bf16.mxu0 0
      %1066 = vmatpush1.bf16.msra.mxu0 0
      %1067 = vmatprep.subr.bf16.mxu0 0
      %1068 = vmatpush1.bf16.msra.mxu0 0
      %1069 = vmatprep.subr.bf16.mxu0 0
      %1070 = vmatpush1.bf16.msra.mxu0 0
      %1071 = vmatprep.mubr.bf16.mxu0 0
      %1072 = vmatmul.mubr.bf16.gmra.mrb[0].mxu0 %v890
      %v1073 = vpop.f32.mrb[0].mxu0
      %v1074 = vadd.f32 0.0, %v1073
      %v1075 = vpop.f32.mrb[0].mxu0
      %v1076 = vadd.f32 0.0, %v1075
      %v1077 = vpop.f32.mrb[0].mxu0
      %v1078 = vpop.f32.mrb[0].mxu0
      %1079 = vdwg.mxu0
      %v1080 = vadd.f32 %v734, %v951
      %v1081 = vadd.f32 %v736, %v953
      %v1082 = vadd.f32 %v775, %v992
      %v1083 = vadd.f32 %v777, %v994
      %v1084 = vadd.f32 %v816, %v1033
      %v1085 = vadd.f32 %v818, %v1035
      %v1086 = vadd.f32 %v857, %v1074
      %v1087 = vadd.f32 %v859, %v1076
      %v1088 = vld [vmem:[%s1 + $0x18] sm:$0xff]
      %v1089 = vpack.c.bf16 %v1088, %v1088
      %1090 = vrot.lane.b32.xlu0 %v434, 125
      %v1091 = vpop.permute.xlu0 %1090
      %1092 = vrot.lane.b32.xlu0 %v435, 125
      %v1093 = vpop.permute.xlu0 %1092
      %1094 = vrot.lane.b32.xlu0 %v436, 125
      %v1095 = vpop.permute.xlu0 %1094
      %1096 = vrot.lane.b32.xlu0 %v437, 125
      %v1097 = vpop.permute.xlu0 %1096
      %1098 = vrot.lane.b32.xlu0 %v438, 125
      %v1099 = vpop.permute.xlu0 %1098
      %1100 = vrot.lane.b32.xlu0 %v439, 125
      %v1101 = vpop.permute.xlu0 %1100
      %1102 = vrot.lane.b32.xlu0 %v440, 125
      %v1103 = vpop.permute.xlu0 %1102
      %1104 = vrot.lane.b32.xlu0 %v441, 125
      %v1105 = vpop.permute.xlu0 %1104
      %vm1106 = vcmask 1022976
      %v1107 = vsel %vm1106, %v1091, %v1093
      %v1108 = vsel %vm1106, %v1093, %v1095
      %v1109 = vsel %vm1106, %v1095, %v1097
      %v1110 = vsel %vm1106, %v1097, %v1099
      %v1111 = vsel %vm1106, %v1099, %v1101
      %v1112 = vsel %vm1106, %v1101, %v1103
      %v1113 = vsel %vm1106, %v1103, %v1105
      %v1115 = vsel %vm476, %v1089, 0
      %v1118 = vand.u32 %v1107, %v483
      %v1121 = vand.u32 %v1108, %v483
      %v1124 = vand.u32 %v1109, %v483
      %v1127 = vand.u32 %v1110, %v483
      %v1130 = vand.u32 %v1111, %v483
      %v1133 = vand.u32 %v1112, %v483
      %v1136 = vand.u32 %v1113, %v483
      %v1139 = vand.u32 %v1105, %v483
      %1141 = vmatprep.subr.bf16.mxu0 %v1121
      %1142 = vmatpush1.bf16.msra.mxu0 %v1118
      %1143 = vmatprep.subr.bf16.mxu0 0
      %1144 = vmatpush1.bf16.msra.mxu0 0
      %1145 = vmatprep.subr.bf16.mxu0 0
      %1146 = vmatpush1.bf16.msra.mxu0 0
      %1147 = vmatprep.subr.bf16.mxu0 0
      %1148 = vmatpush1.bf16.msra.mxu0 0
      %1149 = vmatprep.subr.bf16.mxu0 0
      %1150 = vmatpush1.bf16.msra.mxu0 0
      %1151 = vmatprep.subr.bf16.mxu0 0
      %1152 = vmatpush1.bf16.msra.mxu0 0
      %1153 = vmatprep.subr.bf16.mxu0 0
      %1154 = vmatpush1.bf16.msra.mxu0 0
      %1155 = vmatprep.subr.bf16.mxu0 0
      %1156 = vmatpush1.bf16.msra.mxu0 0
      %1157 = vmatprep.subr.bf16.mxu0 0
      %1158 = vmatpush1.bf16.msra.mxu0 0
      %1159 = vmatprep.subr.bf16.mxu0 0
      %1160 = vmatpush1.bf16.msra.mxu0 0
      %1161 = vmatprep.subr.bf16.mxu0 0
      %1162 = vmatpush1.bf16.msra.mxu0 0
      %1163 = vmatprep.subr.bf16.mxu0 0
      %1164 = vmatpush1.bf16.msra.mxu0 0
      %1165 = vmatprep.subr.bf16.mxu0 0
      %1166 = vmatpush1.bf16.msra.mxu0 0
      %1167 = vmatprep.subr.bf16.mxu0 0
      %1168 = vmatpush1.bf16.msra.mxu0 0
      %1169 = vmatprep.subr.bf16.mxu0 0
      %1170 = vmatpush1.bf16.msra.mxu0 0
      %1171 = vmatprep.subr.bf16.mxu0 0
      %1172 = vmatpush1.bf16.msra.mxu0 0
      %1173 = vmatprep.mubr.bf16.mxu0 0
      %1174 = vmatmul.mubr.bf16.gmra.mrb[0].mxu0 %v1115
      %v1175 = vpop.f32.mrb[0].mxu0
      %v1176 = vadd.f32 0.0, %v1175
      %v1177 = vpop.f32.mrb[0].mxu0
      %v1178 = vadd.f32 0.0, %v1177
      %v1179 = vpop.f32.mrb[0].mxu0
      %v1180 = vpop.f32.mrb[0].mxu0
      %1181 = vdwg.mxu0
      %1182 = vmatprep.subr.bf16.mxu0 %v1127
      %1183 = vmatpush1.bf16.msra.mxu0 %v1124
      %1184 = vmatprep.subr.bf16.mxu0 0
      %1185 = vmatpush1.bf16.msra.mxu0 0
      %1186 = vmatprep.subr.bf16.mxu0 0
      %1187 = vmatpush1.bf16.msra.mxu0 0
      %1188 = vmatprep.subr.bf16.mxu0 0
      %1189 = vmatpush1.bf16.msra.mxu0 0
      %1190 = vmatprep.subr.bf16.mxu0 0
      %1191 = vmatpush1.bf16.msra.mxu0 0
      %1192 = vmatprep.subr.bf16.mxu0 0
      %1193 = vmatpush1.bf16.msra.mxu0 0
      %1194 = vmatprep.subr.bf16.mxu0 0
      %1195 = vmatpush1.bf16.msra.mxu0 0
      %1196 = vmatprep.subr.bf16.mxu0 0
      %1197 = vmatpush1.bf16.msra.mxu0 0
      %1198 = vmatprep.subr.bf16.mxu0 0
      %1199 = vmatpush1.bf16.msra.mxu0 0
      %1200 = vmatprep.subr.bf16.mxu0 0
      %1201 = vmatpush1.bf16.msra.mxu0 0
      %1202 = vmatprep.subr.bf16.mxu0 0
      %1203 = vmatpush1.bf16.msra.mxu0 0
      %1204 = vmatprep.subr.bf16.mxu0 0
      %1205 = vmatpush1.bf16.msra.mxu0 0
      %1206 = vmatprep.subr.bf16.mxu0 0
      %1207 = vmatpush1.bf16.msra.mxu0 0
      %1208 = vmatprep.subr.bf16.mxu0 0
      %1209 = vmatpush1.bf16.msra.mxu0 0
      %1210 = vmatprep.subr.bf16.mxu0 0
      %1211 = vmatpush1.bf16.msra.mxu0 0
      %1212 = vmatprep.subr.bf16.mxu0 0
      %1213 = vmatpush1.bf16.msra.mxu0 0
      %1214 = vmatprep.mubr.bf16.mxu0 0
      %1215 = vmatmul.mubr.bf16.gmra.mrb[0].mxu0 %v1115
      %v1216 = vpop.f32.mrb[0].mxu0
      %v1217 = vadd.f32 0.0, %v1216
      %v1218 = vpop.f32.mrb[0].mxu0
      %v1219 = vadd.f32 0.0, %v1218
      %v1220 = vpop.f32.mrb[0].mxu0
      %v1221 = vpop.f32.mrb[0].mxu0
      %1222 = vdwg.mxu0
      %1223 = vmatprep.subr.bf16.mxu0 %v1133
      %1224 = vmatpush1.bf16.msra.mxu0 %v1130
      %1225 = vmatprep.subr.bf16.mxu0 0
      %1226 = vmatpush1.bf16.msra.mxu0 0
      %1227 = vmatprep.subr.bf16.mxu0 0
      %1228 = vmatpush1.bf16.msra.mxu0 0
      %1229 = vmatprep.subr.bf16.mxu0 0
      %1230 = vmatpush1.bf16.msra.mxu0 0
      %1231 = vmatprep.subr.bf16.mxu0 0
      %1232 = vmatpush1.bf16.msra.mxu0 0
      %1233 = vmatprep.subr.bf16.mxu0 0
      %1234 = vmatpush1.bf16.msra.mxu0 0
      %1235 = vmatprep.subr.bf16.mxu0 0
      %1236 = vmatpush1.bf16.msra.mxu0 0
      %1237 = vmatprep.subr.bf16.mxu0 0
      %1238 = vmatpush1.bf16.msra.mxu0 0
      %1239 = vmatprep.subr.bf16.mxu0 0
      %1240 = vmatpush1.bf16.msra.mxu0 0
      %1241 = vmatprep.subr.bf16.mxu0 0
      %1242 = vmatpush1.bf16.msra.mxu0 0
      %1243 = vmatprep.subr.bf16.mxu0 0
      %1244 = vmatpush1.bf16.msra.mxu0 0
      %1245 = vmatprep.subr.bf16.mxu0 0
      %1246 = vmatpush1.bf16.msra.mxu0 0
      %1247 = vmatprep.subr.bf16.mxu0 0
      %1248 = vmatpush1.bf16.msra.mxu0 0
      %1249 = vmatprep.subr.bf16.mxu0 0
      %1250 = vmatpush1.bf16.msra.mxu0 0
      %1251 = vmatprep.subr.bf16.mxu0 0
      %1252 = vmatpush1.bf16.msra.mxu0 0
      %1253 = vmatprep.subr.bf16.mxu0 0
      %1254 = vmatpush1.bf16.msra.mxu0 0
      %1255 = vmatprep.mubr.bf16.mxu0 0
      %1256 = vmatmul.mubr.bf16.gmra.mrb[0].mxu0 %v1115
      %v1257 = vpop.f32.mrb[0].mxu0
      %v1258 = vadd.f32 0.0, %v1257
      %v1259 = vpop.f32.mrb[0].mxu0
      %v1260 = vadd.f32 0.0, %v1259
      %v1261 = vpop.f32.mrb[0].mxu0
      %v1262 = vpop.f32.mrb[0].mxu0
      %1263 = vdwg.mxu0
      %1264 = vmatprep.subr.bf16.mxu0 %v1139
      %1265 = vmatpush1.bf16.msra.mxu0 %v1136
      %1266 = vmatprep.subr.bf16.mxu0 0
      %1267 = vmatpush1.bf16.msra.mxu0 0
      %1268 = vmatprep.subr.bf16.mxu0 0
      %1269 = vmatpush1.bf16.msra.mxu0 0
      %1270 = vmatprep.subr.bf16.mxu0 0
      %1271 = vmatpush1.bf16.msra.mxu0 0
      %1272 = vmatprep.subr.bf16.mxu0 0
      %1273 = vmatpush1.bf16.msra.mxu0 0
      %1274 = vmatprep.subr.bf16.mxu0 0
      %1275 = vmatpush1.bf16.msra.mxu0 0
      %1276 = vmatprep.subr.bf16.mxu0 0
      %1277 = vmatpush1.bf16.msra.mxu0 0
      %1278 = vmatprep.subr.bf16.mxu0 0
      %1279 = vmatpush1.bf16.msra.mxu0 0
      %1280 = vmatprep.subr.bf16.mxu0 0
      %1281 = vmatpush1.bf16.msra.mxu0 0
      %1282 = vmatprep.subr.bf16.mxu0 0
      %1283 = vmatpush1.bf16.msra.mxu0 0
      %1284 = vmatprep.subr.bf16.mxu0 0
      %1285 = vmatpush1.bf16.msra.mxu0 0
      %1286 = vmatprep.subr.bf16.mxu0 0
      %1287 = vmatpush1.bf16.msra.mxu0 0
      %1288 = vmatprep.subr.bf16.mxu0 0
      %1289 = vmatpush1.bf16.msra.mxu0 0
      %1290 = vmatprep.subr.bf16.mxu0 0
      %1291 = vmatpush1.bf16.msra.mxu0 0
      %1292 = vmatprep.subr.bf16.mxu0 0
      %1293 = vmatpush1.bf16.msra.mxu0 0
      %1294 = vmatprep.subr.bf16.mxu0 0
      %1295 = vmatpush1.bf16.msra.mxu0 0
      %1296 = vmatprep.mubr.bf16.mxu0 0
      %1297 = vmatmul.mubr.bf16.gmra.mrb[0].mxu0 %v1115
      %v1298 = vpop.f32.mrb[0].mxu0
      %v1299 = vadd.f32 0.0, %v1298
      %v1300 = vpop.f32.mrb[0].mxu0
      %v1301 = vadd.f32 0.0, %v1300
      %v1302 = vpop.f32.mrb[0].mxu0
      %v1303 = vpop.f32.mrb[0].mxu0
      %1304 = vdwg.mxu0
      %v1305 = vadd.f32 %v1080, %v1176
      %v1306 = vadd.f32 %v1081, %v1178
      %v1307 = vadd.f32 %v1082, %v1217
      %v1308 = vadd.f32 %v1083, %v1219
      %v1309 = vadd.f32 %v1084, %v1258
      %v1310 = vadd.f32 %v1085, %v1260
      %v1311 = vadd.f32 %v1086, %v1299
      %v1312 = vadd.f32 %v1087, %v1301
      %v1313 = vld [vmem:[%s1 + $0x20] sm:$0xff]
      %v1314 = vpack.c.bf16 %v1313, %v1313
      %1315 = vrot.lane.b32.xlu0 %v434, 124
      %v1316 = vpop.permute.xlu0 %1315
      %1317 = vrot.lane.b32.xlu0 %v435, 124
      %v1318 = vpop.permute.xlu0 %1317
      %1319 = vrot.lane.b32.xlu0 %v436, 124
      %v1320 = vpop.permute.xlu0 %1319
      %1321 = vrot.lane.b32.xlu0 %v437, 124
      %v1322 = vpop.permute.xlu0 %1321
      %1323 = vrot.lane.b32.xlu0 %v438, 124
      %v1324 = vpop.permute.xlu0 %1323
      %1325 = vrot.lane.b32.xlu0 %v439, 124
      %v1326 = vpop.permute.xlu0 %1325
      %1327 = vrot.lane.b32.xlu0 %v440, 124
      %v1328 = vpop.permute.xlu0 %1327
      %1329 = vrot.lane.b32.xlu0 %v441, 124
      %v1330 = vpop.permute.xlu0 %1329
      %vm1331 = vcmask 1014784
      %v1332 = vsel %vm1331, %v1316, %v1318
      %v1333 = vsel %vm1331, %v1318, %v1320
      %v1334 = vsel %vm1331, %v1320, %v1322
      %v1335 = vsel %vm1331, %v1322, %v1324
      %v1336 = vsel %vm1331, %v1324, %v1326
      %v1337 = vsel %vm1331, %v1326, %v1328
      %v1338 = vsel %vm1331, %v1328, %v1330
      %v1340 = vsel %vm476, %v1314, 0
      %v1343 = vand.u32 %v1332, %v483
      %v1346 = vand.u32 %v1333, %v483
      %v1349 = vand.u32 %v1334, %v483
      %v1352 = vand.u32 %v1335, %v483
      %v1355 = vand.u32 %v1336, %v483
      %v1358 = vand.u32 %v1337, %v483
      %v1361 = vand.u32 %v1338, %v483
      %v1364 = vand.u32 %v1330, %v483
      %1366 = vmatprep.subr.bf16.mxu0 %v1346
      %1367 = vmatpush1.bf16.msra.mxu0 %v1343
      %1368 = vmatprep.subr.bf16.mxu0 0
      %1369 = vmatpush1.bf16.msra.mxu0 0
      %1370 = vmatprep.subr.bf16.mxu0 0
      %1371 = vmatpush1.bf16.msra.mxu0 0
      %1372 = vmatprep.subr.bf16.mxu0 0
      %1373 = vmatpush1.bf16.msra.mxu0 0
      %1374 = vmatprep.subr.bf16.mxu0 0
      %1375 = vmatpush1.bf16.msra.mxu0 0
      %1376 = vmatprep.subr.bf16.mxu0 0
      %1377 = vmatpush1.bf16.msra.mxu0 0
      %1378 = vmatprep.subr.bf16.mxu0 0
      %1379 = vmatpush1.bf16.msra.mxu0 0
      %1380 = vmatprep.subr.bf16.mxu0 0
      %1381 = vmatpush1.bf16.msra.mxu0 0
      %1382 = vmatprep.subr.bf16.mxu0 0
      %1383 = vmatpush1.bf16.msra.mxu0 0
      %1384 = vmatprep.subr.bf16.mxu0 0
      %1385 = vmatpush1.bf16.msra.mxu0 0
      %1386 = vmatprep.subr.bf16.mxu0 0
      %1387 = vmatpush1.bf16.msra.mxu0 0
      %1388 = vmatprep.subr.bf16.mxu0 0
      %1389 = vmatpush1.bf16.msra.mxu0 0
      %1390 = vmatprep.subr.bf16.mxu0 0
      %1391 = vmatpush1.bf16.msra.mxu0 0
      %1392 = vmatprep.subr.bf16.mxu0 0
      %1393 = vmatpush1.bf16.msra.mxu0 0
      %1394 = vmatprep.subr.bf16.mxu0 0
      %1395 = vmatpush1.bf16.msra.mxu0 0
      %1396 = vmatprep.subr.bf16.mxu0 0
      %1397 = vmatpush1.bf16.msra.mxu0 0
      %1398 = vmatprep.mubr.bf16.mxu0 0
      %1399 = vmatmul.mubr.bf16.gmra.mrb[0].mxu0 %v1340
      %v1400 = vpop.f32.mrb[0].mxu0
      %v1401 = vadd.f32 0.0, %v1400
      %v1402 = vpop.f32.mrb[0].mxu0
      %v1403 = vadd.f32 0.0, %v1402
      %v1404 = vpop.f32.mrb[0].mxu0
      %v1405 = vpop.f32.mrb[0].mxu0
      %1406 = vdwg.mxu0
      %1407 = vmatprep.subr.bf16.mxu0 %v1352
      %1408 = vmatpush1.bf16.msra.mxu0 %v1349
      %1409 = vmatprep.subr.bf16.mxu0 0
      %1410 = vmatpush1.bf16.msra.mxu0 0
      %1411 = vmatprep.subr.bf16.mxu0 0
      %1412 = vmatpush1.bf16.msra.mxu0 0
      %1413 = vmatprep.subr.bf16.mxu0 0
      %1414 = vmatpush1.bf16.msra.mxu0 0
      %1415 = vmatprep.subr.bf16.mxu0 0
      %1416 = vmatpush1.bf16.msra.mxu0 0
      %1417 = vmatprep.subr.bf16.mxu0 0
      %1418 = vmatpush1.bf16.msra.mxu0 0
      %1419 = vmatprep.subr.bf16.mxu0 0
      %1420 = vmatpush1.bf16.msra.mxu0 0
      %1421 = vmatprep.subr.bf16.mxu0 0
      %1422 = vmatpush1.bf16.msra.mxu0 0
      %1423 = vmatprep.subr.bf16.mxu0 0
      %1424 = vmatpush1.bf16.msra.mxu0 0
      %1425 = vmatprep.subr.bf16.mxu0 0
      %1426 = vmatpush1.bf16.msra.mxu0 0
      %1427 = vmatprep.subr.bf16.mxu0 0
      %1428 = vmatpush1.bf16.msra.mxu0 0
      %1429 = vmatprep.subr.bf16.mxu0 0
      %1430 = vmatpush1.bf16.msra.mxu0 0
      %1431 = vmatprep.subr.bf16.mxu0 0
      %1432 = vmatpush1.bf16.msra.mxu0 0
      %1433 = vmatprep.subr.bf16.mxu0 0
      %1434 = vmatpush1.bf16.msra.mxu0 0
      %1435 = vmatprep.subr.bf16.mxu0 0
      %1436 = vmatpush1.bf16.msra.mxu0 0
      %1437 = vmatprep.subr.bf16.mxu0 0
      %1438 = vmatpush1.bf16.msra.mxu0 0
      %1439 = vmatprep.mubr.bf16.mxu0 0
      %1440 = vmatmul.mubr.bf16.gmra.mrb[0].mxu0 %v1340
      %v1441 = vpop.f32.mrb[0].mxu0
      %v1442 = vadd.f32 0.0, %v1441
      %v1443 = vpop.f32.mrb[0].mxu0
      %v1444 = vadd.f32 0.0, %v1443
      %v1445 = vpop.f32.mrb[0].mxu0
      %v1446 = vpop.f32.mrb[0].mxu0
      %1447 = vdwg.mxu0
      %1448 = vmatprep.subr.bf16.mxu0 %v1358
      %1449 = vmatpush1.bf16.msra.mxu0 %v1355
      %1450 = vmatprep.subr.bf16.mxu0 0
      %1451 = vmatpush1.bf16.msra.mxu0 0
      %1452 = vmatprep.subr.bf16.mxu0 0
      %1453 = vmatpush1.bf16.msra.mxu0 0
      %1454 = vmatprep.subr.bf16.mxu0 0
      %1455 = vmatpush1.bf16.msra.mxu0 0
      %1456 = vmatprep.subr.bf16.mxu0 0
      %1457 = vmatpush1.bf16.msra.mxu0 0
      %1458 = vmatprep.subr.bf16.mxu0 0
      %1459 = vmatpush1.bf16.msra.mxu0 0
      %1460 = vmatprep.subr.bf16.mxu0 0
      %1461 = vmatpush1.bf16.msra.mxu0 0
      %1462 = vmatprep.subr.bf16.mxu0 0
      %1463 = vmatpush1.bf16.msra.mxu0 0
      %1464 = vmatprep.subr.bf16.mxu0 0
      %1465 = vmatpush1.bf16.msra.mxu0 0
      %1466 = vmatprep.subr.bf16.mxu0 0
      %1467 = vmatpush1.bf16.msra.mxu0 0
      %1468 = vmatprep.subr.bf16.mxu0 0
      %1469 = vmatpush1.bf16.msra.mxu0 0
      %1470 = vmatprep.subr.bf16.mxu0 0
      %1471 = vmatpush1.bf16.msra.mxu0 0
      %1472 = vmatprep.subr.bf16.mxu0 0
      %1473 = vmatpush1.bf16.msra.mxu0 0
      %1474 = vmatprep.subr.bf16.mxu0 0
      %1475 = vmatpush1.bf16.msra.mxu0 0
      %1476 = vmatprep.subr.bf16.mxu0 0
      %1477 = vmatpush1.bf16.msra.mxu0 0
      %1478 = vmatprep.subr.bf16.mxu0 0
      %1479 = vmatpush1.bf16.msra.mxu0 0
      %1480 = vmatprep.mubr.bf16.mxu0 0
      %1481 = vmatmul.mubr.bf16.gmra.mrb[0].mxu0 %v1340
      %v1482 = vpop.f32.mrb[0].mxu0
      %v1483 = vadd.f32 0.0, %v1482
      %v1484 = vpop.f32.mrb[0].mxu0
      %v1485 = vadd.f32 0.0, %v1484
      %v1486 = vpop.f32.mrb[0].mxu0
      %v1487 = vpop.f32.mrb[0].mxu0
      %1488 = vdwg.mxu0
      %1489 = vmatprep.subr.bf16.mxu0 %v1364
      %1490 = vmatpush1.bf16.msra.mxu0 %v1361
      %1491 = vmatprep.subr.bf16.mxu0 0
      %1492 = vmatpush1.bf16.msra.mxu0 0
      %1493 = vmatprep.subr.bf16.mxu0 0
      %1494 = vmatpush1.bf16.msra.mxu0 0
      %1495 = vmatprep.subr.bf16.mxu0 0
      %1496 = vmatpush1.bf16.msra.mxu0 0
      %1497 = vmatprep.subr.bf16.mxu0 0
      %1498 = vmatpush1.bf16.msra.mxu0 0
      %1499 = vmatprep.subr.bf16.mxu0 0
      %1500 = vmatpush1.bf16.msra.mxu0 0
      %1501 = vmatprep.subr.bf16.mxu0 0
      %1502 = vmatpush1.bf16.msra.mxu0 0
      %1503 = vmatprep.subr.bf16.mxu0 0
      %1504 = vmatpush1.bf16.msra.mxu0 0
      %1505 = vmatprep.subr.bf16.mxu0 0
      %1506 = vmatpush1.bf16.msra.mxu0 0
      %1507 = vmatprep.subr.bf16.mxu0 0
      %1508 = vmatpush1.bf16.msra.mxu0 0
      %1509 = vmatprep.subr.bf16.mxu0 0
      %1510 = vmatpush1.bf16.msra.mxu0 0
      %1511 = vmatprep.subr.bf16.mxu0 0
      %1512 = vmatpush1.bf16.msra.mxu0 0
      %1513 = vmatprep.subr.bf16.mxu0 0
      %1514 = vmatpush1.bf16.msra.mxu0 0
      %1515 = vmatprep.subr.bf16.mxu0 0
      %1516 = vmatpush1.bf16.msra.mxu0 0
      %1517 = vmatprep.subr.bf16.mxu0 0
      %1518 = vmatpush1.bf16.msra.mxu0 0
      %1519 = vmatprep.subr.bf16.mxu0 0
      %1520 = vmatpush1.bf16.msra.mxu0 0
      %1521 = vmatprep.mubr.bf16.mxu0 0
      %1522 = vmatmul.mubr.bf16.gmra.mrb[0].mxu0 %v1340
      %v1523 = vpop.f32.mrb[0].mxu0
      %v1524 = vadd.f32 0.0, %v1523
      %v1525 = vpop.f32.mrb[0].mxu0
      %v1526 = vadd.f32 0.0, %v1525
      %v1527 = vpop.f32.mrb[0].mxu0
      %v1528 = vpop.f32.mrb[0].mxu0
      %1529 = vdwg.mxu0
      %v1530 = vadd.f32 %v1305, %v1401
      %v1531 = vadd.f32 %v1306, %v1403
      %v1532 = vadd.f32 %v1307, %v1442
      %v1533 = vadd.f32 %v1308, %v1444
      %v1534 = vadd.f32 %v1309, %v1483
      %v1535 = vadd.f32 %v1310, %v1485
      %v1536 = vadd.f32 %v1311, %v1524
      %v1537 = vadd.f32 %v1312, %v1526
      %v1538 = vld [vmem:[%s1 + $0x28] sm:$0xff]
      %v1539 = vpack.c.bf16 %v1538, %v1538
      %1540 = vrot.lane.b32.xlu0 %v434, 96
      %v1541 = vpop.permute.xlu0 %1540
      %1542 = vrot.lane.b32.xlu0 %v435, 96
      %v1543 = vpop.permute.xlu0 %1542
      %1544 = vrot.lane.b32.xlu0 %v436, 96
      %v1545 = vpop.permute.xlu0 %1544
      %1546 = vrot.lane.b32.xlu0 %v437, 96
      %v1547 = vpop.permute.xlu0 %1546
      %1548 = vrot.lane.b32.xlu0 %v438, 96
      %v1549 = vpop.permute.xlu0 %1548
      %1550 = vrot.lane.b32.xlu0 %v439, 96
      %v1551 = vpop.permute.xlu0 %1550
      %1552 = vrot.lane.b32.xlu0 %v440, 96
      %v1553 = vpop.permute.xlu0 %1552
      %1554 = vrot.lane.b32.xlu0 %v441, 96
      %v1555 = vpop.permute.xlu0 %1554
      %vm1556 = vcmask 785408
      %v1557 = vsel %vm1556, %v1541, %v1543
      %v1558 = vsel %vm1556, %v1543, %v1545
      %v1559 = vsel %vm1556, %v1545, %v1547
      %v1560 = vsel %vm1556, %v1547, %v1549
      %v1561 = vsel %vm1556, %v1549, %v1551
      %v1562 = vsel %vm1556, %v1551, %v1553
      %v1563 = vsel %vm1556, %v1553, %v1555
      %v1565 = vsel %vm476, %v1539, 0
      %v1568 = vand.u32 %v1557, %v483
      %v1571 = vand.u32 %v1558, %v483
      %v1574 = vand.u32 %v1559, %v483
      %v1577 = vand.u32 %v1560, %v483
      %v1580 = vand.u32 %v1561, %v483
      %v1583 = vand.u32 %v1562, %v483
      %v1586 = vand.u32 %v1563, %v483
      %v1589 = vand.u32 %v1555, %v483
      %1591 = vmatprep.subr.bf16.mxu0 %v1571
      %1592 = vmatpush1.bf16.msra.mxu0 %v1568
      %1593 = vmatprep.subr.bf16.mxu0 0
      %1594 = vmatpush1.bf16.msra.mxu0 0
      %1595 = vmatprep.subr.bf16.mxu0 0
      %1596 = vmatpush1.bf16.msra.mxu0 0
      %1597 = vmatprep.subr.bf16.mxu0 0
      %1598 = vmatpush1.bf16.msra.mxu0 0
      %1599 = vmatprep.subr.bf16.mxu0 0
      %1600 = vmatpush1.bf16.msra.mxu0 0
      %1601 = vmatprep.subr.bf16.mxu0 0
      %1602 = vmatpush1.bf16.msra.mxu0 0
      %1603 = vmatprep.subr.bf16.mxu0 0
      %1604 = vmatpush1.bf16.msra.mxu0 0
      %1605 = vmatprep.subr.bf16.mxu0 0
      %1606 = vmatpush1.bf16.msra.mxu0 0
      %1607 = vmatprep.subr.bf16.mxu0 0
      %1608 = vmatpush1.bf16.msra.mxu0 0
      %1609 = vmatprep.subr.bf16.mxu0 0
      %1610 = vmatpush1.bf16.msra.mxu0 0
      %1611 = vmatprep.subr.bf16.mxu0 0
      %1612 = vmatpush1.bf16.msra.mxu0 0
      %1613 = vmatprep.subr.bf16.mxu0 0
      %1614 = vmatpush1.bf16.msra.mxu0 0
      %1615 = vmatprep.subr.bf16.mxu0 0
      %1616 = vmatpush1.bf16.msra.mxu0 0
      %1617 = vmatprep.subr.bf16.mxu0 0
      %1618 = vmatpush1.bf16.msra.mxu0 0
      %1619 = vmatprep.subr.bf16.mxu0 0
      %1620 = vmatpush1.bf16.msra.mxu0 0
      %1621 = vmatprep.subr.bf16.mxu0 0
      %1622 = vmatpush1.bf16.msra.mxu0 0
      %1623 = vmatprep.mubr.bf16.mxu0 0
      %1624 = vmatmul.mubr.bf16.gmra.mrb[0].mxu0 %v1565
      %v1625 = vpop.f32.mrb[0].mxu0
      %v1626 = vadd.f32 0.0, %v1625
      %v1627 = vpop.f32.mrb[0].mxu0
      %v1628 = vadd.f32 0.0, %v1627
      %v1629 = vpop.f32.mrb[0].mxu0
      %v1630 = vpop.f32.mrb[0].mxu0
      %1631 = vdwg.mxu0
      %1632 = vmatprep.subr.bf16.mxu0 %v1577
      %1633 = vmatpush1.bf16.msra.mxu0 %v1574
      %1634 = vmatprep.subr.bf16.mxu0 0
      %1635 = vmatpush1.bf16.msra.mxu0 0
      %1636 = vmatprep.subr.bf16.mxu0 0
      %1637 = vmatpush1.bf16.msra.mxu0 0
      %1638 = vmatprep.subr.bf16.mxu0 0
      %1639 = vmatpush1.bf16.msra.mxu0 0
      %1640 = vmatprep.subr.bf16.mxu0 0
      %1641 = vmatpush1.bf16.msra.mxu0 0
      %1642 = vmatprep.subr.bf16.mxu0 0
      %1643 = vmatpush1.bf16.msra.mxu0 0
      %1644 = vmatprep.subr.bf16.mxu0 0
      %1645 = vmatpush1.bf16.msra.mxu0 0
      %1646 = vmatprep.subr.bf16.mxu0 0
      %1647 = vmatpush1.bf16.msra.mxu0 0
      %1648 = vmatprep.subr.bf16.mxu0 0
      %1649 = vmatpush1.bf16.msra.mxu0 0
      %1650 = vmatprep.subr.bf16.mxu0 0
      %1651 = vmatpush1.bf16.msra.mxu0 0
      %1652 = vmatprep.subr.bf16.mxu0 0
      %1653 = vmatpush1.bf16.msra.mxu0 0
      %1654 = vmatprep.subr.bf16.mxu0 0
      %1655 = vmatpush1.bf16.msra.mxu0 0
      %1656 = vmatprep.subr.bf16.mxu0 0
      %1657 = vmatpush1.bf16.msra.mxu0 0
      %1658 = vmatprep.subr.bf16.mxu0 0
      %1659 = vmatpush1.bf16.msra.mxu0 0
      %1660 = vmatprep.subr.bf16.mxu0 0
      %1661 = vmatpush1.bf16.msra.mxu0 0
      %1662 = vmatprep.subr.bf16.mxu0 0
      %1663 = vmatpush1.bf16.msra.mxu0 0
      %1664 = vmatprep.mubr.bf16.mxu0 0
      %1665 = vmatmul.mubr.bf16.gmra.mrb[0].mxu0 %v1565
      %v1666 = vpop.f32.mrb[0].mxu0
      %v1667 = vadd.f32 0.0, %v1666
      %v1668 = vpop.f32.mrb[0].mxu0
      %v1669 = vadd.f32 0.0, %v1668
      %v1670 = vpop.f32.mrb[0].mxu0
      %v1671 = vpop.f32.mrb[0].mxu0
      %1672 = vdwg.mxu0
      %1673 = vmatprep.subr.bf16.mxu0 %v1583
      %1674 = vmatpush1.bf16.msra.mxu0 %v1580
      %1675 = vmatprep.subr.bf16.mxu0 0
      %1676 = vmatpush1.bf16.msra.mxu0 0
      %1677 = vmatprep.subr.bf16.mxu0 0
      %1678 = vmatpush1.bf16.msra.mxu0 0
      %1679 = vmatprep.subr.bf16.mxu0 0
      %1680 = vmatpush1.bf16.msra.mxu0 0
      %1681 = vmatprep.subr.bf16.mxu0 0
      %1682 = vmatpush1.bf16.msra.mxu0 0
      %1683 = vmatprep.subr.bf16.mxu0 0
      %1684 = vmatpush1.bf16.msra.mxu0 0
      %1685 = vmatprep.subr.bf16.mxu0 0
      %1686 = vmatpush1.bf16.msra.mxu0 0
      %1687 = vmatprep.subr.bf16.mxu0 0
      %1688 = vmatpush1.bf16.msra.mxu0 0
      %1689 = vmatprep.subr.bf16.mxu0 0
      %1690 = vmatpush1.bf16.msra.mxu0 0
      %1691 = vmatprep.subr.bf16.mxu0 0
      %1692 = vmatpush1.bf16.msra.mxu0 0
      %1693 = vmatprep.subr.bf16.mxu0 0
      %1694 = vmatpush1.bf16.msra.mxu0 0
      %1695 = vmatprep.subr.bf16.mxu0 0
      %1696 = vmatpush1.bf16.msra.mxu0 0
      %1697 = vmatprep.subr.bf16.mxu0 0
      %1698 = vmatpush1.bf16.msra.mxu0 0
      %1699 = vmatprep.subr.bf16.mxu0 0
      %1700 = vmatpush1.bf16.msra.mxu0 0
      %1701 = vmatprep.subr.bf16.mxu0 0
      %1702 = vmatpush1.bf16.msra.mxu0 0
      %1703 = vmatprep.subr.bf16.mxu0 0
      %1704 = vmatpush1.bf16.msra.mxu0 0
      %1705 = vmatprep.mubr.bf16.mxu0 0
      %1706 = vmatmul.mubr.bf16.gmra.mrb[0].mxu0 %v1565
      %v1707 = vpop.f32.mrb[0].mxu0
      %v1708 = vadd.f32 0.0, %v1707
      %v1709 = vpop.f32.mrb[0].mxu0
      %v1710 = vadd.f32 0.0, %v1709
      %v1711 = vpop.f32.mrb[0].mxu0
      %v1712 = vpop.f32.mrb[0].mxu0
      %1713 = vdwg.mxu0
      %1714 = vmatprep.subr.bf16.mxu0 %v1589
      %1715 = vmatpush1.bf16.msra.mxu0 %v1586
      %1716 = vmatprep.subr.bf16.mxu0 0
      %1717 = vmatpush1.bf16.msra.mxu0 0
      %1718 = vmatprep.subr.bf16.mxu0 0
      %1719 = vmatpush1.bf16.msra.mxu0 0
      %1720 = vmatprep.subr.bf16.mxu0 0
      %1721 = vmatpush1.bf16.msra.mxu0 0
      %1722 = vmatprep.subr.bf16.mxu0 0
      %1723 = vmatpush1.bf16.msra.mxu0 0
      %1724 = vmatprep.subr.bf16.mxu0 0
      %1725 = vmatpush1.bf16.msra.mxu0 0
      %1726 = vmatprep.subr.bf16.mxu0 0
      %1727 = vmatpush1.bf16.msra.mxu0 0
      %1728 = vmatprep.subr.bf16.mxu0 0
      %1729 = vmatpush1.bf16.msra.mxu0 0
      %1730 = vmatprep.subr.bf16.mxu0 0
      %1731 = vmatpush1.bf16.msra.mxu0 0
      %1732 = vmatprep.subr.bf16.mxu0 0
      %1733 = vmatpush1.bf16.msra.mxu0 0
      %1734 = vmatprep.subr.bf16.mxu0 0
      %1735 = vmatpush1.bf16.msra.mxu0 0
      %1736 = vmatprep.subr.bf16.mxu0 0
      %1737 = vmatpush1.bf16.msra.mxu0 0
      %1738 = vmatprep.subr.bf16.mxu0 0
      %1739 = vmatpush1.bf16.msra.mxu0 0
      %1740 = vmatprep.subr.bf16.mxu0 0
      %1741 = vmatpush1.bf16.msra.mxu0 0
      %1742 = vmatprep.subr.bf16.mxu0 0
      %1743 = vmatpush1.bf16.msra.mxu0 0
      %1744 = vmatprep.subr.bf16.mxu0 0
      %1745 = vmatpush1.bf16.msra.mxu0 0
      %1746 = vmatprep.mubr.bf16.mxu0 0
      %1747 = vmatmul.mubr.bf16.gmra.mrb[0].mxu0 %v1565
      %v1748 = vpop.f32.mrb[0].mxu0
      %v1749 = vadd.f32 0.0, %v1748
      %v1750 = vpop.f32.mrb[0].mxu0
      %v1751 = vadd.f32 0.0, %v1750
      %v1752 = vpop.f32.mrb[0].mxu0
      %v1753 = vpop.f32.mrb[0].mxu0
      %1754 = vdwg.mxu0
      %v1755 = vadd.f32 %v1530, %v1626
      %v1756 = vadd.f32 %v1531, %v1628
      %v1757 = vadd.f32 %v1532, %v1667
      %v1758 = vadd.f32 %v1533, %v1669
      %v1759 = vadd.f32 %v1534, %v1708
      %v1760 = vadd.f32 %v1535, %v1710
      %v1761 = vadd.f32 %v1536, %v1749
      %v1762 = vadd.f32 %v1537, %v1751
      %v1763 = vld [vmem:[%s1 + $0x30] sm:$0xff]
      %v1764 = vpack.c.bf16 %v1763, %v1763
      %1765 = vrot.lane.b32.xlu0 %v434, 95
      %v1766 = vpop.permute.xlu0 %1765
      %1767 = vrot.lane.b32.xlu0 %v435, 95
      %v1768 = vpop.permute.xlu0 %1767
      %1769 = vrot.lane.b32.xlu0 %v436, 95
      %v1770 = vpop.permute.xlu0 %1769
      %1771 = vrot.lane.b32.xlu0 %v437, 95
      %v1772 = vpop.permute.xlu0 %1771
      %1773 = vrot.lane.b32.xlu0 %v438, 95
      %v1774 = vpop.permute.xlu0 %1773
      %1775 = vrot.lane.b32.xlu0 %v439, 95
      %v1776 = vpop.permute.xlu0 %1775
      %1777 = vrot.lane.b32.xlu0 %v440, 95
      %v1778 = vpop.permute.xlu0 %1777
      %1779 = vrot.lane.b32.xlu0 %v441, 95
      %v1780 = vpop.permute.xlu0 %1779
      %vm1781 = vcmask 777216
      %v1782 = vsel %vm1781, %v1766, %v1768
      %v1783 = vsel %vm1781, %v1768, %v1770
      %v1784 = vsel %vm1781, %v1770, %v1772
      %v1785 = vsel %vm1781, %v1772, %v1774
      %v1786 = vsel %vm1781, %v1774, %v1776
      %v1787 = vsel %vm1781, %v1776, %v1778
      %v1788 = vsel %vm1781, %v1778, %v1780
      %v1790 = vsel %vm476, %v1764, 0
      %v1793 = vand.u32 %v1782, %v483
      %v1796 = vand.u32 %v1783, %v483
      %v1799 = vand.u32 %v1784, %v483
      %v1802 = vand.u32 %v1785, %v483
      %v1805 = vand.u32 %v1786, %v483
      %v1808 = vand.u32 %v1787, %v483
      %v1811 = vand.u32 %v1788, %v483
      %v1814 = vand.u32 %v1780, %v483
      %1816 = vmatprep.subr.bf16.mxu0 %v1796
      %1817 = vmatpush1.bf16.msra.mxu0 %v1793
      %1818 = vmatprep.subr.bf16.mxu0 0
      %1819 = vmatpush1.bf16.msra.mxu0 0
      %1820 = vmatprep.subr.bf16.mxu0 0
      %1821 = vmatpush1.bf16.msra.mxu0 0
      %1822 = vmatprep.subr.bf16.mxu0 0
      %1823 = vmatpush1.bf16.msra.mxu0 0
      %1824 = vmatprep.subr.bf16.mxu0 0
      %1825 = vmatpush1.bf16.msra.mxu0 0
      %1826 = vmatprep.subr.bf16.mxu0 0
      %1827 = vmatpush1.bf16.msra.mxu0 0
      %1828 = vmatprep.subr.bf16.mxu0 0
      %1829 = vmatpush1.bf16.msra.mxu0 0
      %1830 = vmatprep.subr.bf16.mxu0 0
      %1831 = vmatpush1.bf16.msra.mxu0 0
      %1832 = vmatprep.subr.bf16.mxu0 0
      %1833 = vmatpush1.bf16.msra.mxu0 0
      %1834 = vmatprep.subr.bf16.mxu0 0
      %1835 = vmatpush1.bf16.msra.mxu0 0
      %1836 = vmatprep.subr.bf16.mxu0 0
      %1837 = vmatpush1.bf16.msra.mxu0 0
      %1838 = vmatprep.subr.bf16.mxu0 0
      %1839 = vmatpush1.bf16.msra.mxu0 0
      %1840 = vmatprep.subr.bf16.mxu0 0
      %1841 = vmatpush1.bf16.msra.mxu0 0
      %1842 = vmatprep.subr.bf16.mxu0 0
      %1843 = vmatpush1.bf16.msra.mxu0 0
      %1844 = vmatprep.subr.bf16.mxu0 0
      %1845 = vmatpush1.bf16.msra.mxu0 0
      %1846 = vmatprep.subr.bf16.mxu0 0
      %1847 = vmatpush1.bf16.msra.mxu0 0
      %1848 = vmatprep.mubr.bf16.mxu0 0
      %1849 = vmatmul.mubr.bf16.gmra.mrb[0].mxu0 %v1790
      %v1850 = vpop.f32.mrb[0].mxu0
      %v1851 = vadd.f32 0.0, %v1850
      %v1852 = vpop.f32.mrb[0].mxu0
      %v1853 = vadd.f32 0.0, %v1852
      %v1854 = vpop.f32.mrb[0].mxu0
      %v1855 = vpop.f32.mrb[0].mxu0
      %1856 = vdwg.mxu0
      %1857 = vmatprep.subr.bf16.mxu0 %v1802
      %1858 = vmatpush1.bf16.msra.mxu0 %v1799
      %1859 = vmatprep.subr.bf16.mxu0 0
      %1860 = vmatpush1.bf16.msra.mxu0 0
      %1861 = vmatprep.subr.bf16.mxu0 0
      %1862 = vmatpush1.bf16.msra.mxu0 0
      %1863 = vmatprep.subr.bf16.mxu0 0
      %1864 = vmatpush1.bf16.msra.mxu0 0
      %1865 = vmatprep.subr.bf16.mxu0 0
      %1866 = vmatpush1.bf16.msra.mxu0 0
      %1867 = vmatprep.subr.bf16.mxu0 0
      %1868 = vmatpush1.bf16.msra.mxu0 0
      %1869 = vmatprep.subr.bf16.mxu0 0
      %1870 = vmatpush1.bf16.msra.mxu0 0
      %1871 = vmatprep.subr.bf16.mxu0 0
      %1872 = vmatpush1.bf16.msra.mxu0 0
      %1873 = vmatprep.subr.bf16.mxu0 0
      %1874 = vmatpush1.bf16.msra.mxu0 0
      %1875 = vmatprep.subr.bf16.mxu0 0
      %1876 = vmatpush1.bf16.msra.mxu0 0
      %1877 = vmatprep.subr.bf16.mxu0 0
      %1878 = vmatpush1.bf16.msra.mxu0 0
      %1879 = vmatprep.subr.bf16.mxu0 0
      %1880 = vmatpush1.bf16.msra.mxu0 0
      %1881 = vmatprep.subr.bf16.mxu0 0
      %1882 = vmatpush1.bf16.msra.mxu0 0
      %1883 = vmatprep.subr.bf16.mxu0 0
      %1884 = vmatpush1.bf16.msra.mxu0 0
      %1885 = vmatprep.subr.bf16.mxu0 0
      %1886 = vmatpush1.bf16.msra.mxu0 0
      %1887 = vmatprep.subr.bf16.mxu0 0
      %1888 = vmatpush1.bf16.msra.mxu0 0
      %1889 = vmatprep.mubr.bf16.mxu0 0
      %1890 = vmatmul.mubr.bf16.gmra.mrb[0].mxu0 %v1790
      %v1891 = vpop.f32.mrb[0].mxu0
      %v1892 = vadd.f32 0.0, %v1891
      %v1893 = vpop.f32.mrb[0].mxu0
      %v1894 = vadd.f32 0.0, %v1893
      %v1895 = vpop.f32.mrb[0].mxu0
      %v1896 = vpop.f32.mrb[0].mxu0
      %1897 = vdwg.mxu0
      %1898 = vmatprep.subr.bf16.mxu0 %v1808
      %1899 = vmatpush1.bf16.msra.mxu0 %v1805
      %1900 = vmatprep.subr.bf16.mxu0 0
      %1901 = vmatpush1.bf16.msra.mxu0 0
      %1902 = vmatprep.subr.bf16.mxu0 0
      %1903 = vmatpush1.bf16.msra.mxu0 0
      %1904 = vmatprep.subr.bf16.mxu0 0
      %1905 = vmatpush1.bf16.msra.mxu0 0
      %1906 = vmatprep.subr.bf16.mxu0 0
      %1907 = vmatpush1.bf16.msra.mxu0 0
      %1908 = vmatprep.subr.bf16.mxu0 0
      %1909 = vmatpush1.bf16.msra.mxu0 0
      %1910 = vmatprep.subr.bf16.mxu0 0
      %1911 = vmatpush1.bf16.msra.mxu0 0
      %1912 = vmatprep.subr.bf16.mxu0 0
      %1913 = vmatpush1.bf16.msra.mxu0 0
      %1914 = vmatprep.subr.bf16.mxu0 0
      %1915 = vmatpush1.bf16.msra.mxu0 0
      %1916 = vmatprep.subr.bf16.mxu0 0
      %1917 = vmatpush1.bf16.msra.mxu0 0
      %1918 = vmatprep.subr.bf16.mxu0 0
      %1919 = vmatpush1.bf16.msra.mxu0 0
      %1920 = vmatprep.subr.bf16.mxu0 0
      %1921 = vmatpush1.bf16.msra.mxu0 0
      %1922 = vmatprep.subr.bf16.mxu0 0
      %1923 = vmatpush1.bf16.msra.mxu0 0
      %1924 = vmatprep.subr.bf16.mxu0 0
      %1925 = vmatpush1.bf16.msra.mxu0 0
      %1926 = vmatprep.subr.bf16.mxu0 0
      %1927 = vmatpush1.bf16.msra.mxu0 0
      %1928 = vmatprep.subr.bf16.mxu0 0
      %1929 = vmatpush1.bf16.msra.mxu0 0
      %1930 = vmatprep.mubr.bf16.mxu0 0
      %1931 = vmatmul.mubr.bf16.gmra.mrb[0].mxu0 %v1790
      %v1932 = vpop.f32.mrb[0].mxu0
      %v1933 = vadd.f32 0.0, %v1932
      %v1934 = vpop.f32.mrb[0].mxu0
      %v1935 = vadd.f32 0.0, %v1934
      %v1936 = vpop.f32.mrb[0].mxu0
      %v1937 = vpop.f32.mrb[0].mxu0
      %1938 = vdwg.mxu0
      %1939 = vmatprep.subr.bf16.mxu0 %v1814
      %1940 = vmatpush1.bf16.msra.mxu0 %v1811
      %1941 = vmatprep.subr.bf16.mxu0 0
      %1942 = vmatpush1.bf16.msra.mxu0 0
      %1943 = vmatprep.subr.bf16.mxu0 0
      %1944 = vmatpush1.bf16.msra.mxu0 0
      %1945 = vmatprep.subr.bf16.mxu0 0
      %1946 = vmatpush1.bf16.msra.mxu0 0
      %1947 = vmatprep.subr.bf16.mxu0 0
      %1948 = vmatpush1.bf16.msra.mxu0 0
      %1949 = vmatprep.subr.bf16.mxu0 0
      %1950 = vmatpush1.bf16.msra.mxu0 0
      %1951 = vmatprep.subr.bf16.mxu0 0
      %1952 = vmatpush1.bf16.msra.mxu0 0
      %1953 = vmatprep.subr.bf16.mxu0 0
      %1954 = vmatpush1.bf16.msra.mxu0 0
      %1955 = vmatprep.subr.bf16.mxu0 0
      %1956 = vmatpush1.bf16.msra.mxu0 0
      %1957 = vmatprep.subr.bf16.mxu0 0
      %1958 = vmatpush1.bf16.msra.mxu0 0
      %1959 = vmatprep.subr.bf16.mxu0 0
      %1960 = vmatpush1.bf16.msra.mxu0 0
      %1961 = vmatprep.subr.bf16.mxu0 0
      %1962 = vmatpush1.bf16.msra.mxu0 0
      %1963 = vmatprep.subr.bf16.mxu0 0
      %1964 = vmatpush1.bf16.msra.mxu0 0
      %1965 = vmatprep.subr.bf16.mxu0 0
      %1966 = vmatpush1.bf16.msra.mxu0 0
      %1967 = vmatprep.subr.bf16.mxu0 0
      %1968 = vmatpush1.bf16.msra.mxu0 0
      %1969 = vmatprep.subr.bf16.mxu0 0
      %1970 = vmatpush1.bf16.msra.mxu0 0
      %1971 = vmatprep.mubr.bf16.mxu0 0
      %1972 = vmatmul.mubr.bf16.gmra.mrb[0].mxu0 %v1790
      %v1973 = vpop.f32.mrb[0].mxu0
      %v1974 = vadd.f32 0.0, %v1973
      %v1975 = vpop.f32.mrb[0].mxu0
      %v1976 = vadd.f32 0.0, %v1975
      %v1977 = vpop.f32.mrb[0].mxu0
      %v1978 = vpop.f32.mrb[0].mxu0
      %1979 = vdwg.mxu0
      %v1980 = vadd.f32 %v1755, %v1851
      %v1981 = vadd.f32 %v1756, %v1853
      %v1982 = vadd.f32 %v1757, %v1892
      %v1983 = vadd.f32 %v1758, %v1894
      %v1984 = vadd.f32 %v1759, %v1933
      %v1985 = vadd.f32 %v1760, %v1935
      %v1986 = vadd.f32 %v1761, %v1974
      %v1987 = vadd.f32 %v1762, %v1976
      %v1988 = vld [vmem:[%s1 + $0x38] sm:$0xff]
      %v1989 = vpack.c.bf16 %v1988, %v1988
      %1990 = vrot.lane.b32.xlu0 %v434, 94
      %v1991 = vpop.permute.xlu0 %1990
      %1992 = vrot.lane.b32.xlu0 %v435, 94
      %v1993 = vpop.permute.xlu0 %1992
      %1994 = vrot.lane.b32.xlu0 %v436, 94
      %v1995 = vpop.permute.xlu0 %1994
      %1996 = vrot.lane.b32.xlu0 %v437, 94
      %v1997 = vpop.permute.xlu0 %1996
      %1998 = vrot.lane.b32.xlu0 %v438, 94
      %v1999 = vpop.permute.xlu0 %1998
      %2000 = vrot.lane.b32.xlu0 %v439, 94
      %v2001 = vpop.permute.xlu0 %2000
      %2002 = vrot.lane.b32.xlu0 %v440, 94
      %v2003 = vpop.permute.xlu0 %2002
      %2004 = vrot.lane.b32.xlu0 %v441, 94
      %v2005 = vpop.permute.xlu0 %2004
      %vm2006 = vcmask 769024
      %v2007 = vsel %vm2006, %v1991, %v1993
      %v2008 = vsel %vm2006, %v1993, %v1995
      %v2009 = vsel %vm2006, %v1995, %v1997
      %v2010 = vsel %vm2006, %v1997, %v1999
      %v2011 = vsel %vm2006, %v1999, %v2001
      %v2012 = vsel %vm2006, %v2001, %v2003
      %v2013 = vsel %vm2006, %v2003, %v2005
      %v2015 = vsel %vm476, %v1989, 0
      %v2018 = vand.u32 %v2007, %v483
      %v2021 = vand.u32 %v2008, %v483
      %v2024 = vand.u32 %v2009, %v483
      %v2027 = vand.u32 %v2010, %v483
      %v2030 = vand.u32 %v2011, %v483
      %v2033 = vand.u32 %v2012, %v483
      %v2036 = vand.u32 %v2013, %v483
      %v2039 = vand.u32 %v2005, %v483
      %2041 = vmatprep.subr.bf16.mxu0 %v2021
      %2042 = vmatpush1.bf16.msra.mxu0 %v2018
      %2043 = vmatprep.subr.bf16.mxu0 0
      %2044 = vmatpush1.bf16.msra.mxu0 0
      %2045 = vmatprep.subr.bf16.mxu0 0
      %2046 = vmatpush1.bf16.msra.mxu0 0
      %2047 = vmatprep.subr.bf16.mxu0 0
      %2048 = vmatpush1.bf16.msra.mxu0 0
      %2049 = vmatprep.subr.bf16.mxu0 0
      %2050 = vmatpush1.bf16.msra.mxu0 0
      %2051 = vmatprep.subr.bf16.mxu0 0
      %2052 = vmatpush1.bf16.msra.mxu0 0
      %2053 = vmatprep.subr.bf16.mxu0 0
      %2054 = vmatpush1.bf16.msra.mxu0 0
      %2055 = vmatprep.subr.bf16.mxu0 0
      %2056 = vmatpush1.bf16.msra.mxu0 0
      %2057 = vmatprep.subr.bf16.mxu0 0
      %2058 = vmatpush1.bf16.msra.mxu0 0
      %2059 = vmatprep.subr.bf16.mxu0 0
      %2060 = vmatpush1.bf16.msra.mxu0 0
      %2061 = vmatprep.subr.bf16.mxu0 0
      %2062 = vmatpush1.bf16.msra.mxu0 0
      %2063 = vmatprep.subr.bf16.mxu0 0
      %2064 = vmatpush1.bf16.msra.mxu0 0
      %2065 = vmatprep.subr.bf16.mxu0 0
      %2066 = vmatpush1.bf16.msra.mxu0 0
      %2067 = vmatprep.subr.bf16.mxu0 0
      %2068 = vmatpush1.bf16.msra.mxu0 0
      %2069 = vmatprep.subr.bf16.mxu0 0
      %2070 = vmatpush1.bf16.msra.mxu0 0
      %2071 = vmatprep.subr.bf16.mxu0 0
      %2072 = vmatpush1.bf16.msra.mxu0 0
      %2073 = vmatprep.mubr.bf16.mxu0 0
      %2074 = vmatmul.mubr.bf16.gmra.mrb[0].mxu0 %v2015
      %v2075 = vpop.f32.mrb[0].mxu0
      %v2076 = vadd.f32 0.0, %v2075
      %v2077 = vpop.f32.mrb[0].mxu0
      %v2078 = vadd.f32 0.0, %v2077
      %v2079 = vpop.f32.mrb[0].mxu0
      %v2080 = vpop.f32.mrb[0].mxu0
      %2081 = vdwg.mxu0
      %2082 = vmatprep.subr.bf16.mxu0 %v2027
      %2083 = vmatpush1.bf16.msra.mxu0 %v2024
      %2084 = vmatprep.subr.bf16.mxu0 0
      %2085 = vmatpush1.bf16.msra.mxu0 0
      %2086 = vmatprep.subr.bf16.mxu0 0
      %2087 = vmatpush1.bf16.msra.mxu0 0
      %2088 = vmatprep.subr.bf16.mxu0 0
      %2089 = vmatpush1.bf16.msra.mxu0 0
      %2090 = vmatprep.subr.bf16.mxu0 0
      %2091 = vmatpush1.bf16.msra.mxu0 0
      %2092 = vmatprep.subr.bf16.mxu0 0
      %2093 = vmatpush1.bf16.msra.mxu0 0
      %2094 = vmatprep.subr.bf16.mxu0 0
      %2095 = vmatpush1.bf16.msra.mxu0 0
      %2096 = vmatprep.subr.bf16.mxu0 0
      %2097 = vmatpush1.bf16.msra.mxu0 0
      %2098 = vmatprep.subr.bf16.mxu0 0
      %2099 = vmatpush1.bf16.msra.mxu0 0
      %2100 = vmatprep.subr.bf16.mxu0 0
      %2101 = vmatpush1.bf16.msra.mxu0 0
      %2102 = vmatprep.subr.bf16.mxu0 0
      %2103 = vmatpush1.bf16.msra.mxu0 0
      %2104 = vmatprep.subr.bf16.mxu0 0
      %2105 = vmatpush1.bf16.msra.mxu0 0
      %2106 = vmatprep.subr.bf16.mxu0 0
      %2107 = vmatpush1.bf16.msra.mxu0 0
      %2108 = vmatprep.subr.bf16.mxu0 0
      %2109 = vmatpush1.bf16.msra.mxu0 0
      %2110 = vmatprep.subr.bf16.mxu0 0
      %2111 = vmatpush1.bf16.msra.mxu0 0
      %2112 = vmatprep.subr.bf16.mxu0 0
      %2113 = vmatpush1.bf16.msra.mxu0 0
      %2114 = vmatprep.mubr.bf16.mxu0 0
      %2115 = vmatmul.mubr.bf16.gmra.mrb[0].mxu0 %v2015
      %v2116 = vpop.f32.mrb[0].mxu0
      %v2117 = vadd.f32 0.0, %v2116
      %v2118 = vpop.f32.mrb[0].mxu0
      %v2119 = vadd.f32 0.0, %v2118
      %v2120 = vpop.f32.mrb[0].mxu0
      %v2121 = vpop.f32.mrb[0].mxu0
      %2122 = vdwg.mxu0
      %2123 = vmatprep.subr.bf16.mxu0 %v2033
      %2124 = vmatpush1.bf16.msra.mxu0 %v2030
      %2125 = vmatprep.subr.bf16.mxu0 0
      %2126 = vmatpush1.bf16.msra.mxu0 0
      %2127 = vmatprep.subr.bf16.mxu0 0
      %2128 = vmatpush1.bf16.msra.mxu0 0
      %2129 = vmatprep.subr.bf16.mxu0 0
      %2130 = vmatpush1.bf16.msra.mxu0 0
      %2131 = vmatprep.subr.bf16.mxu0 0
      %2132 = vmatpush1.bf16.msra.mxu0 0
      %2133 = vmatprep.subr.bf16.mxu0 0
      %2134 = vmatpush1.bf16.msra.mxu0 0
      %2135 = vmatprep.subr.bf16.mxu0 0
      %2136 = vmatpush1.bf16.msra.mxu0 0
      %2137 = vmatprep.subr.bf16.mxu0 0
      %2138 = vmatpush1.bf16.msra.mxu0 0
      %2139 = vmatprep.subr.bf16.mxu0 0
      %2140 = vmatpush1.bf16.msra.mxu0 0
      %2141 = vmatprep.subr.bf16.mxu0 0
      %2142 = vmatpush1.bf16.msra.mxu0 0
      %2143 = vmatprep.subr.bf16.mxu0 0
      %2144 = vmatpush1.bf16.msra.mxu0 0
      %2145 = vmatprep.subr.bf16.mxu0 0
      %2146 = vmatpush1.bf16.msra.mxu0 0
      %2147 = vmatprep.subr.bf16.mxu0 0
      %2148 = vmatpush1.bf16.msra.mxu0 0
      %2149 = vmatprep.subr.bf16.mxu0 0
      %2150 = vmatpush1.bf16.msra.mxu0 0
      %2151 = vmatprep.subr.bf16.mxu0 0
      %2152 = vmatpush1.bf16.msra.mxu0 0
      %2153 = vmatprep.subr.bf16.mxu0 0
      %2154 = vmatpush1.bf16.msra.mxu0 0
      %2155 = vmatprep.mubr.bf16.mxu0 0
      %2156 = vmatmul.mubr.bf16.gmra.mrb[0].mxu0 %v2015
      %v2157 = vpop.f32.mrb[0].mxu0
      %v2158 = vadd.f32 0.0, %v2157
      %v2159 = vpop.f32.mrb[0].mxu0
      %v2160 = vadd.f32 0.0, %v2159
      %v2161 = vpop.f32.mrb[0].mxu0
      %v2162 = vpop.f32.mrb[0].mxu0
      %2163 = vdwg.mxu0
      %2164 = vmatprep.subr.bf16.mxu0 %v2039
      %2165 = vmatpush1.bf16.msra.mxu0 %v2036
      %2166 = vmatprep.subr.bf16.mxu0 0
      %2167 = vmatpush1.bf16.msra.mxu0 0
      %2168 = vmatprep.subr.bf16.mxu0 0
      %2169 = vmatpush1.bf16.msra.mxu0 0
      %2170 = vmatprep.subr.bf16.mxu0 0
      %2171 = vmatpush1.bf16.msra.mxu0 0
      %2172 = vmatprep.subr.bf16.mxu0 0
      %2173 = vmatpush1.bf16.msra.mxu0 0
      %2174 = vmatprep.subr.bf16.mxu0 0
      %2175 = vmatpush1.bf16.msra.mxu0 0
      %2176 = vmatprep.subr.bf16.mxu0 0
      %2177 = vmatpush1.bf16.msra.mxu0 0
      %2178 = vmatprep.subr.bf16.mxu0 0
      %2179 = vmatpush1.bf16.msra.mxu0 0
      %2180 = vmatprep.subr.bf16.mxu0 0
      %2181 = vmatpush1.bf16.msra.mxu0 0
      %2182 = vmatprep.subr.bf16.mxu0 0
      %2183 = vmatpush1.bf16.msra.mxu0 0
      %2184 = vmatprep.subr.bf16.mxu0 0
      %2185 = vmatpush1.bf16.msra.mxu0 0
      %2186 = vmatprep.subr.bf16.mxu0 0
      %2187 = vmatpush1.bf16.msra.mxu0 0
      %2188 = vmatprep.subr.bf16.mxu0 0
      %2189 = vmatpush1.bf16.msra.mxu0 0
      %2190 = vmatprep.subr.bf16.mxu0 0
      %2191 = vmatpush1.bf16.msra.mxu0 0
      %2192 = vmatprep.subr.bf16.mxu0 0
      %2193 = vmatpush1.bf16.msra.mxu0 0
      %2194 = vmatprep.subr.bf16.mxu0 0
      %2195 = vmatpush1.bf16.msra.mxu0 0
      %2196 = vmatprep.mubr.bf16.mxu0 0
      %2197 = vmatmul.mubr.bf16.gmra.mrb[0].mxu0 %v2015
      %v2198 = vpop.f32.mrb[0].mxu0
      %v2199 = vadd.f32 0.0, %v2198
      %v2200 = vpop.f32.mrb[0].mxu0
      %v2201 = vadd.f32 0.0, %v2200
      %v2202 = vpop.f32.mrb[0].mxu0
      %v2203 = vpop.f32.mrb[0].mxu0
      %2204 = vdwg.mxu0
      %v2205 = vadd.f32 %v1980, %v2076
      %v2206 = vadd.f32 %v1981, %v2078
      %v2207 = vadd.f32 %v1982, %v2117
      %v2208 = vadd.f32 %v1983, %v2119
      %v2209 = vadd.f32 %v1984, %v2158
      %v2210 = vadd.f32 %v1985, %v2160
      %v2211 = vadd.f32 %v1986, %v2199
      %v2212 = vadd.f32 %v1987, %v2201
      %v2213 = vld [vmem:[%s1 + $0x40] sm:$0xff]
      %v2214 = vpack.c.bf16 %v2213, %v2213
      %2215 = vrot.lane.b32.xlu0 %v434, 93
      %v2216 = vpop.permute.xlu0 %2215
      %2217 = vrot.lane.b32.xlu0 %v435, 93
      %v2218 = vpop.permute.xlu0 %2217
      %2219 = vrot.lane.b32.xlu0 %v436, 93
      %v2220 = vpop.permute.xlu0 %2219
      %2221 = vrot.lane.b32.xlu0 %v437, 93
      %v2222 = vpop.permute.xlu0 %2221
      %2223 = vrot.lane.b32.xlu0 %v438, 93
      %v2224 = vpop.permute.xlu0 %2223
      %2225 = vrot.lane.b32.xlu0 %v439, 93
      %v2226 = vpop.permute.xlu0 %2225
      %2227 = vrot.lane.b32.xlu0 %v440, 93
      %v2228 = vpop.permute.xlu0 %2227
      %2229 = vrot.lane.b32.xlu0 %v441, 93
      %v2230 = vpop.permute.xlu0 %2229
      %vm2231 = vcmask 760832
      %v2232 = vsel %vm2231, %v2216, %v2218
      %v2233 = vsel %vm2231, %v2218, %v2220
      %v2234 = vsel %vm2231, %v2220, %v2222
      %v2235 = vsel %vm2231, %v2222, %v2224
      %v2236 = vsel %vm2231, %v2224, %v2226
      %v2237 = vsel %vm2231, %v2226, %v2228
      %v2238 = vsel %vm2231, %v2228, %v2230
      %v2240 = vsel %vm476, %v2214, 0
      %v2243 = vand.u32 %v2232, %v483
      %v2246 = vand.u32 %v2233, %v483
      %v2249 = vand.u32 %v2234, %v483
      %v2252 = vand.u32 %v2235, %v483
      %v2255 = vand.u32 %v2236, %v483
      %v2258 = vand.u32 %v2237, %v483
      %v2261 = vand.u32 %v2238, %v483
      %v2264 = vand.u32 %v2230, %v483
      %2266 = vmatprep.subr.bf16.mxu0 %v2246
      %2267 = vmatpush1.bf16.msra.mxu0 %v2243
      %2268 = vmatprep.subr.bf16.mxu0 0
      %2269 = vmatpush1.bf16.msra.mxu0 0
      %2270 = vmatprep.subr.bf16.mxu0 0
      %2271 = vmatpush1.bf16.msra.mxu0 0
      %2272 = vmatprep.subr.bf16.mxu0 0
      %2273 = vmatpush1.bf16.msra.mxu0 0
      %2274 = vmatprep.subr.bf16.mxu0 0
      %2275 = vmatpush1.bf16.msra.mxu0 0
      %2276 = vmatprep.subr.bf16.mxu0 0
      %2277 = vmatpush1.bf16.msra.mxu0 0
      %2278 = vmatprep.subr.bf16.mxu0 0
      %2279 = vmatpush1.bf16.msra.mxu0 0
      %2280 = vmatprep.subr.bf16.mxu0 0
      %2281 = vmatpush1.bf16.msra.mxu0 0
      %2282 = vmatprep.subr.bf16.mxu0 0
      %2283 = vmatpush1.bf16.msra.mxu0 0
      %2284 = vmatprep.subr.bf16.mxu0 0
      %2285 = vmatpush1.bf16.msra.mxu0 0
      %2286 = vmatprep.subr.bf16.mxu0 0
      %2287 = vmatpush1.bf16.msra.mxu0 0
      %2288 = vmatprep.subr.bf16.mxu0 0
      %2289 = vmatpush1.bf16.msra.mxu0 0
      %2290 = vmatprep.subr.bf16.mxu0 0
      %2291 = vmatpush1.bf16.msra.mxu0 0
      %2292 = vmatprep.subr.bf16.mxu0 0
      %2293 = vmatpush1.bf16.msra.mxu0 0
      %2294 = vmatprep.subr.bf16.mxu0 0
      %2295 = vmatpush1.bf16.msra.mxu0 0
      %2296 = vmatprep.subr.bf16.mxu0 0
      %2297 = vmatpush1.bf16.msra.mxu0 0
      %2298 = vmatprep.mubr.bf16.mxu0 0
      %2299 = vmatmul.mubr.bf16.gmra.mrb[0].mxu0 %v2240
      %v2300 = vpop.f32.mrb[0].mxu0
      %v2301 = vadd.f32 0.0, %v2300
      %v2302 = vpop.f32.mrb[0].mxu0
      %v2303 = vadd.f32 0.0, %v2302
      %v2304 = vpop.f32.mrb[0].mxu0
      %v2305 = vpop.f32.mrb[0].mxu0
      %2306 = vdwg.mxu0
      %2307 = vmatprep.subr.bf16.mxu0 %v2252
      %2308 = vmatpush1.bf16.msra.mxu0 %v2249
      %2309 = vmatprep.subr.bf16.mxu0 0
      %2310 = vmatpush1.bf16.msra.mxu0 0
      %2311 = vmatprep.subr.bf16.mxu0 0
      %2312 = vmatpush1.bf16.msra.mxu0 0
      %2313 = vmatprep.subr.bf16.mxu0 0
      %2314 = vmatpush1.bf16.msra.mxu0 0
      %2315 = vmatprep.subr.bf16.mxu0 0
      %2316 = vmatpush1.bf16.msra.mxu0 0
      %2317 = vmatprep.subr.bf16.mxu0 0
      %2318 = vmatpush1.bf16.msra.mxu0 0
      %2319 = vmatprep.subr.bf16.mxu0 0
      %2320 = vmatpush1.bf16.msra.mxu0 0
      %2321 = vmatprep.subr.bf16.mxu0 0
      %2322 = vmatpush1.bf16.msra.mxu0 0
      %2323 = vmatprep.subr.bf16.mxu0 0
      %2324 = vmatpush1.bf16.msra.mxu0 0
      %2325 = vmatprep.subr.bf16.mxu0 0
      %2326 = vmatpush1.bf16.msra.mxu0 0
      %2327 = vmatprep.subr.bf16.mxu0 0
      %2328 = vmatpush1.bf16.msra.mxu0 0
      %2329 = vmatprep.subr.bf16.mxu0 0
      %2330 = vmatpush1.bf16.msra.mxu0 0
      %2331 = vmatprep.subr.bf16.mxu0 0
      %2332 = vmatpush1.bf16.msra.mxu0 0
      %2333 = vmatprep.subr.bf16.mxu0 0
      %2334 = vmatpush1.bf16.msra.mxu0 0
      %2335 = vmatprep.subr.bf16.mxu0 0
      %2336 = vmatpush1.bf16.msra.mxu0 0
      %2337 = vmatprep.subr.bf16.mxu0 0
      %2338 = vmatpush1.bf16.msra.mxu0 0
      %2339 = vmatprep.mubr.bf16.mxu0 0
      %2340 = vmatmul.mubr.bf16.gmra.mrb[0].mxu0 %v2240
      %v2341 = vpop.f32.mrb[0].mxu0
      %v2342 = vadd.f32 0.0, %v2341
      %v2343 = vpop.f32.mrb[0].mxu0
      %v2344 = vadd.f32 0.0, %v2343
      %v2345 = vpop.f32.mrb[0].mxu0
      %v2346 = vpop.f32.mrb[0].mxu0
      %2347 = vdwg.mxu0
      %2348 = vmatprep.subr.bf16.mxu0 %v2258
      %2349 = vmatpush1.bf16.msra.mxu0 %v2255
      %2350 = vmatprep.subr.bf16.mxu0 0
      %2351 = vmatpush1.bf16.msra.mxu0 0
      %2352 = vmatprep.subr.bf16.mxu0 0
      %2353 = vmatpush1.bf16.msra.mxu0 0
      %2354 = vmatprep.subr.bf16.mxu0 0
      %2355 = vmatpush1.bf16.msra.mxu0 0
      %2356 = vmatprep.subr.bf16.mxu0 0
      %2357 = vmatpush1.bf16.msra.mxu0 0
      %2358 = vmatprep.subr.bf16.mxu0 0
      %2359 = vmatpush1.bf16.msra.mxu0 0
      %2360 = vmatprep.subr.bf16.mxu0 0
      %2361 = vmatpush1.bf16.msra.mxu0 0
      %2362 = vmatprep.subr.bf16.mxu0 0
      %2363 = vmatpush1.bf16.msra.mxu0 0
      %2364 = vmatprep.subr.bf16.mxu0 0
      %2365 = vmatpush1.bf16.msra.mxu0 0
      %2366 = vmatprep.subr.bf16.mxu0 0
      %2367 = vmatpush1.bf16.msra.mxu0 0
      %2368 = vmatprep.subr.bf16.mxu0 0
      %2369 = vmatpush1.bf16.msra.mxu0 0
      %2370 = vmatprep.subr.bf16.mxu0 0
      %2371 = vmatpush1.bf16.msra.mxu0 0
      %2372 = vmatprep.subr.bf16.mxu0 0
      %2373 = vmatpush1.bf16.msra.mxu0 0
      %2374 = vmatprep.subr.bf16.mxu0 0
      %2375 = vmatpush1.bf16.msra.mxu0 0
      %2376 = vmatprep.subr.bf16.mxu0 0
      %2377 = vmatpush1.bf16.msra.mxu0 0
      %2378 = vmatprep.subr.bf16.mxu0 0
      %2379 = vmatpush1.bf16.msra.mxu0 0
      %2380 = vmatprep.mubr.bf16.mxu0 0
      %2381 = vmatmul.mubr.bf16.gmra.mrb[0].mxu0 %v2240
      %v2382 = vpop.f32.mrb[0].mxu0
      %v2383 = vadd.f32 0.0, %v2382
      %v2384 = vpop.f32.mrb[0].mxu0
      %v2385 = vadd.f32 0.0, %v2384
      %v2386 = vpop.f32.mrb[0].mxu0
      %v2387 = vpop.f32.mrb[0].mxu0
      %2388 = vdwg.mxu0
      %2389 = vmatprep.subr.bf16.mxu0 %v2264
      %2390 = vmatpush1.bf16.msra.mxu0 %v2261
      %2391 = vmatprep.subr.bf16.mxu0 0
      %2392 = vmatpush1.bf16.msra.mxu0 0
      %2393 = vmatprep.subr.bf16.mxu0 0
      %2394 = vmatpush1.bf16.msra.mxu0 0
      %2395 = vmatprep.subr.bf16.mxu0 0
      %2396 = vmatpush1.bf16.msra.mxu0 0
      %2397 = vmatprep.subr.bf16.mxu0 0
      %2398 = vmatpush1.bf16.msra.mxu0 0
      %2399 = vmatprep.subr.bf16.mxu0 0
      %2400 = vmatpush1.bf16.msra.mxu0 0
      %2401 = vmatprep.subr.bf16.mxu0 0
      %2402 = vmatpush1.bf16.msra.mxu0 0
      %2403 = vmatprep.subr.bf16.mxu0 0
      %2404 = vmatpush1.bf16.msra.mxu0 0
      %2405 = vmatprep.subr.bf16.mxu0 0
      %2406 = vmatpush1.bf16.msra.mxu0 0
      %2407 = vmatprep.subr.bf16.mxu0 0
      %2408 = vmatpush1.bf16.msra.mxu0 0
      %2409 = vmatprep.subr.bf16.mxu0 0
      %2410 = vmatpush1.bf16.msra.mxu0 0
      %2411 = vmatprep.subr.bf16.mxu0 0
      %2412 = vmatpush1.bf16.msra.mxu0 0
      %2413 = vmatprep.subr.bf16.mxu0 0
      %2414 = vmatpush1.bf16.msra.mxu0 0
      %2415 = vmatprep.subr.bf16.mxu0 0
      %2416 = vmatpush1.bf16.msra.mxu0 0
      %2417 = vmatprep.subr.bf16.mxu0 0
      %2418 = vmatpush1.bf16.msra.mxu0 0
      %2419 = vmatprep.subr.bf16.mxu0 0
      %2420 = vmatpush1.bf16.msra.mxu0 0
      %2421 = vmatprep.mubr.bf16.mxu0 0
      %2422 = vmatmul.mubr.bf16.gmra.mrb[0].mxu0 %v2240
      %v2423 = vpop.f32.mrb[0].mxu0
      %v2424 = vadd.f32 0.0, %v2423
      %v2425 = vpop.f32.mrb[0].mxu0
      %v2426 = vadd.f32 0.0, %v2425
      %v2427 = vpop.f32.mrb[0].mxu0
      %v2428 = vpop.f32.mrb[0].mxu0
      %2429 = vdwg.mxu0
      %v2430 = vadd.f32 %v2205, %v2301
      %v2431 = vadd.f32 %v2206, %v2303
      %v2432 = vadd.f32 %v2207, %v2342
      %v2433 = vadd.f32 %v2208, %v2344
      %v2434 = vadd.f32 %v2209, %v2383
      %v2435 = vadd.f32 %v2210, %v2385
      %v2436 = vadd.f32 %v2211, %v2424
      %v2437 = vadd.f32 %v2212, %v2426
      %v2438 = vld [vmem:[%s1 + $0x48] sm:$0xff]
      %v2439 = vpack.c.bf16 %v2438, %v2438
      %2440 = vrot.lane.b32.xlu0 %v434, 92
      %v2441 = vpop.permute.xlu0 %2440
      %2442 = vrot.lane.b32.xlu0 %v435, 92
      %v2443 = vpop.permute.xlu0 %2442
      %2444 = vrot.lane.b32.xlu0 %v436, 92
      %v2445 = vpop.permute.xlu0 %2444
      %2446 = vrot.lane.b32.xlu0 %v437, 92
      %v2447 = vpop.permute.xlu0 %2446
      %2448 = vrot.lane.b32.xlu0 %v438, 92
      %v2449 = vpop.permute.xlu0 %2448
      %2450 = vrot.lane.b32.xlu0 %v439, 92
      %v2451 = vpop.permute.xlu0 %2450
      %2452 = vrot.lane.b32.xlu0 %v440, 92
      %v2453 = vpop.permute.xlu0 %2452
      %2454 = vrot.lane.b32.xlu0 %v441, 92
      %v2455 = vpop.permute.xlu0 %2454
      %vm2456 = vcmask 752640
      %v2457 = vsel %vm2456, %v2441, %v2443
      %v2458 = vsel %vm2456, %v2443, %v2445
      %v2459 = vsel %vm2456, %v2445, %v2447
      %v2460 = vsel %vm2456, %v2447, %v2449
      %v2461 = vsel %vm2456, %v2449, %v2451
      %v2462 = vsel %vm2456, %v2451, %v2453
      %v2463 = vsel %vm2456, %v2453, %v2455
      %v2465 = vsel %vm476, %v2439, 0
      %v2468 = vand.u32 %v2457, %v483
      %v2471 = vand.u32 %v2458, %v483
      %v2474 = vand.u32 %v2459, %v483
      %v2477 = vand.u32 %v2460, %v483
      %v2480 = vand.u32 %v2461, %v483
      %v2483 = vand.u32 %v2462, %v483
      %v2486 = vand.u32 %v2463, %v483
      %v2489 = vand.u32 %v2455, %v483
      %2491 = vmatprep.subr.bf16.mxu0 %v2471
      %2492 = vmatpush1.bf16.msra.mxu0 %v2468
      %2493 = vmatprep.subr.bf16.mxu0 0
      %2494 = vmatpush1.bf16.msra.mxu0 0
      %2495 = vmatprep.subr.bf16.mxu0 0
      %2496 = vmatpush1.bf16.msra.mxu0 0
      %2497 = vmatprep.subr.bf16.mxu0 0
      %2498 = vmatpush1.bf16.msra.mxu0 0
      %2499 = vmatprep.subr.bf16.mxu0 0
      %2500 = vmatpush1.bf16.msra.mxu0 0
      %2501 = vmatprep.subr.bf16.mxu0 0
      %2502 = vmatpush1.bf16.msra.mxu0 0
      %2503 = vmatprep.subr.bf16.mxu0 0
      %2504 = vmatpush1.bf16.msra.mxu0 0
      %2505 = vmatprep.subr.bf16.mxu0 0
      %2506 = vmatpush1.bf16.msra.mxu0 0
      %2507 = vmatprep.subr.bf16.mxu0 0
      %2508 = vmatpush1.bf16.msra.mxu0 0
      %2509 = vmatprep.subr.bf16.mxu0 0
      %2510 = vmatpush1.bf16.msra.mxu0 0
      %2511 = vmatprep.subr.bf16.mxu0 0
      %2512 = vmatpush1.bf16.msra.mxu0 0
      %2513 = vmatprep.subr.bf16.mxu0 0
      %2514 = vmatpush1.bf16.msra.mxu0 0
      %2515 = vmatprep.subr.bf16.mxu0 0
      %2516 = vmatpush1.bf16.msra.mxu0 0
      %2517 = vmatprep.subr.bf16.mxu0 0
      %2518 = vmatpush1.bf16.msra.mxu0 0
      %2519 = vmatprep.subr.bf16.mxu0 0
      %2520 = vmatpush1.bf16.msra.mxu0 0
      %2521 = vmatprep.subr.bf16.mxu0 0
      %2522 = vmatpush1.bf16.msra.mxu0 0
      %2523 = vmatprep.mubr.bf16.mxu0 0
      %2524 = vmatmul.mubr.bf16.gmra.mrb[0].mxu0 %v2465
      %v2525 = vpop.f32.mrb[0].mxu0
      %v2526 = vadd.f32 0.0, %v2525
      %v2527 = vpop.f32.mrb[0].mxu0
      %v2528 = vadd.f32 0.0, %v2527
      %v2529 = vpop.f32.mrb[0].mxu0
      %v2530 = vpop.f32.mrb[0].mxu0
      %2531 = vdwg.mxu0
      %2532 = vmatprep.subr.bf16.mxu0 %v2477
      %2533 = vmatpush1.bf16.msra.mxu0 %v2474
      %2534 = vmatprep.subr.bf16.mxu0 0
      %2535 = vmatpush1.bf16.msra.mxu0 0
      %2536 = vmatprep.subr.bf16.mxu0 0
      %2537 = vmatpush1.bf16.msra.mxu0 0
      %2538 = vmatprep.subr.bf16.mxu0 0
      %2539 = vmatpush1.bf16.msra.mxu0 0
      %2540 = vmatprep.subr.bf16.mxu0 0
      %2541 = vmatpush1.bf16.msra.mxu0 0
      %2542 = vmatprep.subr.bf16.mxu0 0
      %2543 = vmatpush1.bf16.msra.mxu0 0
      %2544 = vmatprep.subr.bf16.mxu0 0
      %2545 = vmatpush1.bf16.msra.mxu0 0
      %2546 = vmatprep.subr.bf16.mxu0 0
      %2547 = vmatpush1.bf16.msra.mxu0 0
      %2548 = vmatprep.subr.bf16.mxu0 0
      %2549 = vmatpush1.bf16.msra.mxu0 0
      %2550 = vmatprep.subr.bf16.mxu0 0
      %2551 = vmatpush1.bf16.msra.mxu0 0
      %2552 = vmatprep.subr.bf16.mxu0 0
      %2553 = vmatpush1.bf16.msra.mxu0 0
      %2554 = vmatprep.subr.bf16.mxu0 0
      %2555 = vmatpush1.bf16.msra.mxu0 0
      %2556 = vmatprep.subr.bf16.mxu0 0
      %2557 = vmatpush1.bf16.msra.mxu0 0
      %2558 = vmatprep.subr.bf16.mxu0 0
      %2559 = vmatpush1.bf16.msra.mxu0 0
      %2560 = vmatprep.subr.bf16.mxu0 0
      %2561 = vmatpush1.bf16.msra.mxu0 0
      %2562 = vmatprep.subr.bf16.mxu0 0
      %2563 = vmatpush1.bf16.msra.mxu0 0
      %2564 = vmatprep.mubr.bf16.mxu0 0
      %2565 = vmatmul.mubr.bf16.gmra.mrb[0].mxu0 %v2465
      %v2566 = vpop.f32.mrb[0].mxu0
      %v2567 = vadd.f32 0.0, %v2566
      %v2568 = vpop.f32.mrb[0].mxu0
      %v2569 = vadd.f32 0.0, %v2568
      %v2570 = vpop.f32.mrb[0].mxu0
      %v2571 = vpop.f32.mrb[0].mxu0
      %2572 = vdwg.mxu0
      %2573 = vmatprep.subr.bf16.mxu0 %v2483
      %2574 = vmatpush1.bf16.msra.mxu0 %v2480
      %2575 = vmatprep.subr.bf16.mxu0 0
      %2576 = vmatpush1.bf16.msra.mxu0 0
      %2577 = vmatprep.subr.bf16.mxu0 0
      %2578 = vmatpush1.bf16.msra.mxu0 0
      %2579 = vmatprep.subr.bf16.mxu0 0
      %2580 = vmatpush1.bf16.msra.mxu0 0
      %2581 = vmatprep.subr.bf16.mxu0 0
      %2582 = vmatpush1.bf16.msra.mxu0 0
      %2583 = vmatprep.subr.bf16.mxu0 0
      %2584 = vmatpush1.bf16.msra.mxu0 0
      %2585 = vmatprep.subr.bf16.mxu0 0
      %2586 = vmatpush1.bf16.msra.mxu0 0
      %2587 = vmatprep.subr.bf16.mxu0 0
      %2588 = vmatpush1.bf16.msra.mxu0 0
      %2589 = vmatprep.subr.bf16.mxu0 0
      %2590 = vmatpush1.bf16.msra.mxu0 0
      %2591 = vmatprep.subr.bf16.mxu0 0
      %2592 = vmatpush1.bf16.msra.mxu0 0
      %2593 = vmatprep.subr.bf16.mxu0 0
      %2594 = vmatpush1.bf16.msra.mxu0 0
      %2595 = vmatprep.subr.bf16.mxu0 0
      %2596 = vmatpush1.bf16.msra.mxu0 0
      %2597 = vmatprep.subr.bf16.mxu0 0
      %2598 = vmatpush1.bf16.msra.mxu0 0
      %2599 = vmatprep.subr.bf16.mxu0 0
      %2600 = vmatpush1.bf16.msra.mxu0 0
      %2601 = vmatprep.subr.bf16.mxu0 0
      %2602 = vmatpush1.bf16.msra.mxu0 0
      %2603 = vmatprep.subr.bf16.mxu0 0
      %2604 = vmatpush1.bf16.msra.mxu0 0
      %2605 = vmatprep.mubr.bf16.mxu0 0
      %2606 = vmatmul.mubr.bf16.gmra.mrb[0].mxu0 %v2465
      %v2607 = vpop.f32.mrb[0].mxu0
      %v2608 = vadd.f32 0.0, %v2607
      %v2609 = vpop.f32.mrb[0].mxu0
      %v2610 = vadd.f32 0.0, %v2609
      %v2611 = vpop.f32.mrb[0].mxu0
      %v2612 = vpop.f32.mrb[0].mxu0
      %2613 = vdwg.mxu0
      %2614 = vmatprep.subr.bf16.mxu0 %v2489
      %2615 = vmatpush1.bf16.msra.mxu0 %v2486
      %2616 = vmatprep.subr.bf16.mxu0 0
      %2617 = vmatpush1.bf16.msra.mxu0 0
      %2618 = vmatprep.subr.bf16.mxu0 0
      %2619 = vmatpush1.bf16.msra.mxu0 0
      %2620 = vmatprep.subr.bf16.mxu0 0
      %2621 = vmatpush1.bf16.msra.mxu0 0
      %2622 = vmatprep.subr.bf16.mxu0 0
      %2623 = vmatpush1.bf16.msra.mxu0 0
      %2624 = vmatprep.subr.bf16.mxu0 0
      %2625 = vmatpush1.bf16.msra.mxu0 0
      %2626 = vmatprep.subr.bf16.mxu0 0
      %2627 = vmatpush1.bf16.msra.mxu0 0
      %2628 = vmatprep.subr.bf16.mxu0 0
      %2629 = vmatpush1.bf16.msra.mxu0 0
      %2630 = vmatprep.subr.bf16.mxu0 0
      %2631 = vmatpush1.bf16.msra.mxu0 0
      %2632 = vmatprep.subr.bf16.mxu0 0
      %2633 = vmatpush1.bf16.msra.mxu0 0
      %2634 = vmatprep.subr.bf16.mxu0 0
      %2635 = vmatpush1.bf16.msra.mxu0 0
      %2636 = vmatprep.subr.bf16.mxu0 0
      %2637 = vmatpush1.bf16.msra.mxu0 0
      %2638 = vmatprep.subr.bf16.mxu0 0
      %2639 = vmatpush1.bf16.msra.mxu0 0
      %2640 = vmatprep.subr.bf16.mxu0 0
      %2641 = vmatpush1.bf16.msra.mxu0 0
      %2642 = vmatprep.subr.bf16.mxu0 0
      %2643 = vmatpush1.bf16.msra.mxu0 0
      %2644 = vmatprep.subr.bf16.mxu0 0
      %2645 = vmatpush1.bf16.msra.mxu0 0
      %2646 = vmatprep.mubr.bf16.mxu0 0
      %2647 = vmatmul.mubr.bf16.gmra.mrb[0].mxu0 %v2465
      %v2648 = vpop.f32.mrb[0].mxu0
      %v2649 = vadd.f32 0.0, %v2648
      %v2650 = vpop.f32.mrb[0].mxu0
      %v2651 = vadd.f32 0.0, %v2650
      %v2652 = vpop.f32.mrb[0].mxu0
      %v2653 = vpop.f32.mrb[0].mxu0
      %2654 = vdwg.mxu0
      %v2655 = vadd.f32 %v2430, %v2526
      %v2656 = vadd.f32 %v2431, %v2528
      %v2657 = vadd.f32 %v2432, %v2567
      %v2658 = vadd.f32 %v2433, %v2569
      %v2659 = vadd.f32 %v2434, %v2608
      %v2660 = vadd.f32 %v2435, %v2610
      %v2661 = vadd.f32 %v2436, %v2649
      %v2662 = vadd.f32 %v2437, %v2651
      %v2663 = vld [vmem:[%s1 + $0x50] sm:$0xff]
      %v2664 = vpack.c.bf16 %v2663, %v2663
      %2665 = vrot.lane.b32.xlu0 %v434, 64
      %v2666 = vpop.permute.xlu0 %2665
      %2667 = vrot.lane.b32.xlu0 %v435, 64
      %v2668 = vpop.permute.xlu0 %2667
      %2669 = vrot.lane.b32.xlu0 %v436, 64
      %v2670 = vpop.permute.xlu0 %2669
      %2671 = vrot.lane.b32.xlu0 %v437, 64
      %v2672 = vpop.permute.xlu0 %2671
      %2673 = vrot.lane.b32.xlu0 %v438, 64
      %v2674 = vpop.permute.xlu0 %2673
      %2675 = vrot.lane.b32.xlu0 %v439, 64
      %v2676 = vpop.permute.xlu0 %2675
      %2677 = vrot.lane.b32.xlu0 %v440, 64
      %v2678 = vpop.permute.xlu0 %2677
      %2679 = vrot.lane.b32.xlu0 %v441, 64
      %v2680 = vpop.permute.xlu0 %2679
      %vm2681 = vcmask 523264
      %v2682 = vsel %vm2681, %v2666, %v2668
      %v2683 = vsel %vm2681, %v2668, %v2670
      %v2684 = vsel %vm2681, %v2670, %v2672
      %v2685 = vsel %vm2681, %v2672, %v2674
      %v2686 = vsel %vm2681, %v2674, %v2676
      %v2687 = vsel %vm2681, %v2676, %v2678
      %v2688 = vsel %vm2681, %v2678, %v2680
      %v2690 = vsel %vm476, %v2664, 0
      %v2693 = vand.u32 %v2682, %v483
      %v2696 = vand.u32 %v2683, %v483
      %v2699 = vand.u32 %v2684, %v483
      %v2702 = vand.u32 %v2685, %v483
      %v2705 = vand.u32 %v2686, %v483
      %v2708 = vand.u32 %v2687, %v483
      %v2711 = vand.u32 %v2688, %v483
      %v2714 = vand.u32 %v2680, %v483
      %2716 = vmatprep.subr.bf16.mxu0 %v2696
      %2717 = vmatpush1.bf16.msra.mxu0 %v2693
      %2718 = vmatprep.subr.bf16.mxu0 0
      %2719 = vmatpush1.bf16.msra.mxu0 0
      %2720 = vmatprep.subr.bf16.mxu0 0
      %2721 = vmatpush1.bf16.msra.mxu0 0
      %2722 = vmatprep.subr.bf16.mxu0 0
      %2723 = vmatpush1.bf16.msra.mxu0 0
      %2724 = vmatprep.subr.bf16.mxu0 0
      %2725 = vmatpush1.bf16.msra.mxu0 0
      %2726 = vmatprep.subr.bf16.mxu0 0
      %2727 = vmatpush1.bf16.msra.mxu0 0
      %2728 = vmatprep.subr.bf16.mxu0 0
      %2729 = vmatpush1.bf16.msra.mxu0 0
      %2730 = vmatprep.subr.bf16.mxu0 0
      %2731 = vmatpush1.bf16.msra.mxu0 0
      %2732 = vmatprep.subr.bf16.mxu0 0
      %2733 = vmatpush1.bf16.msra.mxu0 0
      %2734 = vmatprep.subr.bf16.mxu0 0
      %2735 = vmatpush1.bf16.msra.mxu0 0
      %2736 = vmatprep.subr.bf16.mxu0 0
      %2737 = vmatpush1.bf16.msra.mxu0 0
      %2738 = vmatprep.subr.bf16.mxu0 0
      %2739 = vmatpush1.bf16.msra.mxu0 0
      %2740 = vmatprep.subr.bf16.mxu0 0
      %2741 = vmatpush1.bf16.msra.mxu0 0
      %2742 = vmatprep.subr.bf16.mxu0 0
      %2743 = vmatpush1.bf16.msra.mxu0 0
      %2744 = vmatprep.subr.bf16.mxu0 0
      %2745 = vmatpush1.bf16.msra.mxu0 0
      %2746 = vmatprep.subr.bf16.mxu0 0
      %2747 = vmatpush1.bf16.msra.mxu0 0
      %2748 = vmatprep.mubr.bf16.mxu0 0
      %2749 = vmatmul.mubr.bf16.gmra.mrb[0].mxu0 %v2690
      %v2750 = vpop.f32.mrb[0].mxu0
      %v2751 = vadd.f32 0.0, %v2750
      %v2752 = vpop.f32.mrb[0].mxu0
      %v2753 = vadd.f32 0.0, %v2752
      %v2754 = vpop.f32.mrb[0].mxu0
      %v2755 = vpop.f32.mrb[0].mxu0
      %2756 = vdwg.mxu0
      %2757 = vmatprep.subr.bf16.mxu0 %v2702
      %2758 = vmatpush1.bf16.msra.mxu0 %v2699
      %2759 = vmatprep.subr.bf16.mxu0 0
      %2760 = vmatpush1.bf16.msra.mxu0 0
      %2761 = vmatprep.subr.bf16.mxu0 0
      %2762 = vmatpush1.bf16.msra.mxu0 0
      %2763 = vmatprep.subr.bf16.mxu0 0
      %2764 = vmatpush1.bf16.msra.mxu0 0
      %2765 = vmatprep.subr.bf16.mxu0 0
      %2766 = vmatpush1.bf16.msra.mxu0 0
      %2767 = vmatprep.subr.bf16.mxu0 0
      %2768 = vmatpush1.bf16.msra.mxu0 0
      %2769 = vmatprep.subr.bf16.mxu0 0
      %2770 = vmatpush1.bf16.msra.mxu0 0
      %2771 = vmatprep.subr.bf16.mxu0 0
      %2772 = vmatpush1.bf16.msra.mxu0 0
      %2773 = vmatprep.subr.bf16.mxu0 0
      %2774 = vmatpush1.bf16.msra.mxu0 0
      %2775 = vmatprep.subr.bf16.mxu0 0
      %2776 = vmatpush1.bf16.msra.mxu0 0
      %2777 = vmatprep.subr.bf16.mxu0 0
      %2778 = vmatpush1.bf16.msra.mxu0 0
      %2779 = vmatprep.subr.bf16.mxu0 0
      %2780 = vmatpush1.bf16.msra.mxu0 0
      %2781 = vmatprep.subr.bf16.mxu0 0
      %2782 = vmatpush1.bf16.msra.mxu0 0
      %2783 = vmatprep.subr.bf16.mxu0 0
      %2784 = vmatpush1.bf16.msra.mxu0 0
      %2785 = vmatprep.subr.bf16.mxu0 0
      %2786 = vmatpush1.bf16.msra.mxu0 0
      %2787 = vmatprep.subr.bf16.mxu0 0
      %2788 = vmatpush1.bf16.msra.mxu0 0
      %2789 = vmatprep.mubr.bf16.mxu0 0
      %2790 = vmatmul.mubr.bf16.gmra.mrb[0].mxu0 %v2690
      %v2791 = vpop.f32.mrb[0].mxu0
      %v2792 = vadd.f32 0.0, %v2791
      %v2793 = vpop.f32.mrb[0].mxu0
      %v2794 = vadd.f32 0.0, %v2793
      %v2795 = vpop.f32.mrb[0].mxu0
      %v2796 = vpop.f32.mrb[0].mxu0
      %2797 = vdwg.mxu0
      %2798 = vmatprep.subr.bf16.mxu0 %v2708
      %2799 = vmatpush1.bf16.msra.mxu0 %v2705
      %2800 = vmatprep.subr.bf16.mxu0 0
      %2801 = vmatpush1.bf16.msra.mxu0 0
      %2802 = vmatprep.subr.bf16.mxu0 0
      %2803 = vmatpush1.bf16.msra.mxu0 0
      %2804 = vmatprep.subr.bf16.mxu0 0
      %2805 = vmatpush1.bf16.msra.mxu0 0
      %2806 = vmatprep.subr.bf16.mxu0 0
      %2807 = vmatpush1.bf16.msra.mxu0 0
      %2808 = vmatprep.subr.bf16.mxu0 0
      %2809 = vmatpush1.bf16.msra.mxu0 0
      %2810 = vmatprep.subr.bf16.mxu0 0
      %2811 = vmatpush1.bf16.msra.mxu0 0
      %2812 = vmatprep.subr.bf16.mxu0 0
      %2813 = vmatpush1.bf16.msra.mxu0 0
      %2814 = vmatprep.subr.bf16.mxu0 0
      %2815 = vmatpush1.bf16.msra.mxu0 0
      %2816 = vmatprep.subr.bf16.mxu0 0
      %2817 = vmatpush1.bf16.msra.mxu0 0
      %2818 = vmatprep.subr.bf16.mxu0 0
      %2819 = vmatpush1.bf16.msra.mxu0 0
      %2820 = vmatprep.subr.bf16.mxu0 0
      %2821 = vmatpush1.bf16.msra.mxu0 0
      %2822 = vmatprep.subr.bf16.mxu0 0
      %2823 = vmatpush1.bf16.msra.mxu0 0
      %2824 = vmatprep.subr.bf16.mxu0 0
      %2825 = vmatpush1.bf16.msra.mxu0 0
      %2826 = vmatprep.subr.bf16.mxu0 0
      %2827 = vmatpush1.bf16.msra.mxu0 0
      %2828 = vmatprep.subr.bf16.mxu0 0
      %2829 = vmatpush1.bf16.msra.mxu0 0
      %2830 = vmatprep.mubr.bf16.mxu0 0
      %2831 = vmatmul.mubr.bf16.gmra.mrb[0].mxu0 %v2690
      %v2832 = vpop.f32.mrb[0].mxu0
      %v2833 = vadd.f32 0.0, %v2832
      %v2834 = vpop.f32.mrb[0].mxu0
      %v2835 = vadd.f32 0.0, %v2834
      %v2836 = vpop.f32.mrb[0].mxu0
      %v2837 = vpop.f32.mrb[0].mxu0
      %2838 = vdwg.mxu0
      %2839 = vmatprep.subr.bf16.mxu0 %v2714
      %2840 = vmatpush1.bf16.msra.mxu0 %v2711
      %2841 = vmatprep.subr.bf16.mxu0 0
      %2842 = vmatpush1.bf16.msra.mxu0 0
      %2843 = vmatprep.subr.bf16.mxu0 0
      %2844 = vmatpush1.bf16.msra.mxu0 0
      %2845 = vmatprep.subr.bf16.mxu0 0
      %2846 = vmatpush1.bf16.msra.mxu0 0
      %2847 = vmatprep.subr.bf16.mxu0 0
      %2848 = vmatpush1.bf16.msra.mxu0 0
      %2849 = vmatprep.subr.bf16.mxu0 0
      %2850 = vmatpush1.bf16.msra.mxu0 0
      %2851 = vmatprep.subr.bf16.mxu0 0
      %2852 = vmatpush1.bf16.msra.mxu0 0
      %2853 = vmatprep.subr.bf16.mxu0 0
      %2854 = vmatpush1.bf16.msra.mxu0 0
      %2855 = vmatprep.subr.bf16.mxu0 0
      %2856 = vmatpush1.bf16.msra.mxu0 0
      %2857 = vmatprep.subr.bf16.mxu0 0
      %2858 = vmatpush1.bf16.msra.mxu0 0
      %2859 = vmatprep.subr.bf16.mxu0 0
      %2860 = vmatpush1.bf16.msra.mxu0 0
      %2861 = vmatprep.subr.bf16.mxu0 0
      %2862 = vmatpush1.bf16.msra.mxu0 0
      %2863 = vmatprep.subr.bf16.mxu0 0
      %2864 = vmatpush1.bf16.msra.mxu0 0
      %2865 = vmatprep.subr.bf16.mxu0 0
      %2866 = vmatpush1.bf16.msra.mxu0 0
      %2867 = vmatprep.subr.bf16.mxu0 0
      %2868 = vmatpush1.bf16.msra.mxu0 0
      %2869 = vmatprep.subr.bf16.mxu0 0
      %2870 = vmatpush1.bf16.msra.mxu0 0
      %2871 = vmatprep.mubr.bf16.mxu0 0
      %2872 = vmatmul.mubr.bf16.gmra.mrb[0].mxu0 %v2690
      %v2873 = vpop.f32.mrb[0].mxu0
      %v2874 = vadd.f32 0.0, %v2873
      %v2875 = vpop.f32.mrb[0].mxu0
      %v2876 = vadd.f32 0.0, %v2875
      %v2877 = vpop.f32.mrb[0].mxu0
      %v2878 = vpop.f32.mrb[0].mxu0
      %2879 = vdwg.mxu0
      %v2880 = vadd.f32 %v2655, %v2751
      %v2881 = vadd.f32 %v2656, %v2753
      %v2882 = vadd.f32 %v2657, %v2792
      %v2883 = vadd.f32 %v2658, %v2794
      %v2884 = vadd.f32 %v2659, %v2833
      %v2885 = vadd.f32 %v2660, %v2835
      %v2886 = vadd.f32 %v2661, %v2874
      %v2887 = vadd.f32 %v2662, %v2876
      %v2888 = vld [vmem:[%s1 + $0x58] sm:$0xff]
      %v2889 = vpack.c.bf16 %v2888, %v2888
      %2890 = vrot.lane.b32.xlu0 %v434, 63
      %v2891 = vpop.permute.xlu0 %2890
      %2892 = vrot.lane.b32.xlu0 %v435, 63
      %v2893 = vpop.permute.xlu0 %2892
      %2894 = vrot.lane.b32.xlu0 %v436, 63
      %v2895 = vpop.permute.xlu0 %2894
      %2896 = vrot.lane.b32.xlu0 %v437, 63
      %v2897 = vpop.permute.xlu0 %2896
      %2898 = vrot.lane.b32.xlu0 %v438, 63
      %v2899 = vpop.permute.xlu0 %2898
      %2900 = vrot.lane.b32.xlu0 %v439, 63
      %v2901 = vpop.permute.xlu0 %2900
      %2902 = vrot.lane.b32.xlu0 %v440, 63
      %v2903 = vpop.permute.xlu0 %2902
      %2904 = vrot.lane.b32.xlu0 %v441, 63
      %v2905 = vpop.permute.xlu0 %2904
      %vm2906 = vcmask 515072
      %v2907 = vsel %vm2906, %v2891, %v2893
      %v2908 = vsel %vm2906, %v2893, %v2895
      %v2909 = vsel %vm2906, %v2895, %v2897
      %v2910 = vsel %vm2906, %v2897, %v2899
      %v2911 = vsel %vm2906, %v2899, %v2901
      %v2912 = vsel %vm2906, %v2901, %v2903
      %v2913 = vsel %vm2906, %v2903, %v2905
      %v2915 = vsel %vm476, %v2889, 0
      %v2918 = vand.u32 %v2907, %v483
      %v2921 = vand.u32 %v2908, %v483
      %v2924 = vand.u32 %v2909, %v483
      %v2927 = vand.u32 %v2910, %v483
      %v2930 = vand.u32 %v2911, %v483
      %v2933 = vand.u32 %v2912, %v483
      %v2936 = vand.u32 %v2913, %v483
      %v2939 = vand.u32 %v2905, %v483
      %2941 = vmatprep.subr.bf16.mxu0 %v2921
      %2942 = vmatpush1.bf16.msra.mxu0 %v2918
      %2943 = vmatprep.subr.bf16.mxu0 0
      %2944 = vmatpush1.bf16.msra.mxu0 0
      %2945 = vmatprep.subr.bf16.mxu0 0
      %2946 = vmatpush1.bf16.msra.mxu0 0
      %2947 = vmatprep.subr.bf16.mxu0 0
      %2948 = vmatpush1.bf16.msra.mxu0 0
      %2949 = vmatprep.subr.bf16.mxu0 0
      %2950 = vmatpush1.bf16.msra.mxu0 0
      %2951 = vmatprep.subr.bf16.mxu0 0
      %2952 = vmatpush1.bf16.msra.mxu0 0
      %2953 = vmatprep.subr.bf16.mxu0 0
      %2954 = vmatpush1.bf16.msra.mxu0 0
      %2955 = vmatprep.subr.bf16.mxu0 0
      %2956 = vmatpush1.bf16.msra.mxu0 0
      %2957 = vmatprep.subr.bf16.mxu0 0
      %2958 = vmatpush1.bf16.msra.mxu0 0
      %2959 = vmatprep.subr.bf16.mxu0 0
      %2960 = vmatpush1.bf16.msra.mxu0 0
      %2961 = vmatprep.subr.bf16.mxu0 0
      %2962 = vmatpush1.bf16.msra.mxu0 0
      %2963 = vmatprep.subr.bf16.mxu0 0
      %2964 = vmatpush1.bf16.msra.mxu0 0
      %2965 = vmatprep.subr.bf16.mxu0 0
      %2966 = vmatpush1.bf16.msra.mxu0 0
      %2967 = vmatprep.subr.bf16.mxu0 0
      %2968 = vmatpush1.bf16.msra.mxu0 0
      %2969 = vmatprep.subr.bf16.mxu0 0
      %2970 = vmatpush1.bf16.msra.mxu0 0
      %2971 = vmatprep.subr.bf16.mxu0 0
      %2972 = vmatpush1.bf16.msra.mxu0 0
      %2973 = vmatprep.mubr.bf16.mxu0 0
      %2974 = vmatmul.mubr.bf16.gmra.mrb[0].mxu0 %v2915
      %v2975 = vpop.f32.mrb[0].mxu0
      %v2976 = vadd.f32 0.0, %v2975
      %v2977 = vpop.f32.mrb[0].mxu0
      %v2978 = vadd.f32 0.0, %v2977
      %v2979 = vpop.f32.mrb[0].mxu0
      %v2980 = vpop.f32.mrb[0].mxu0
      %2981 = vdwg.mxu0
      %2982 = vmatprep.subr.bf16.mxu0 %v2927
      %2983 = vmatpush1.bf16.msra.mxu0 %v2924
      %2984 = vmatprep.subr.bf16.mxu0 0
      %2985 = vmatpush1.bf16.msra.mxu0 0
      %2986 = vmatprep.subr.bf16.mxu0 0
      %2987 = vmatpush1.bf16.msra.mxu0 0
      %2988 = vmatprep.subr.bf16.mxu0 0
      %2989 = vmatpush1.bf16.msra.mxu0 0
      %2990 = vmatprep.subr.bf16.mxu0 0
      %2991 = vmatpush1.bf16.msra.mxu0 0
      %2992 = vmatprep.subr.bf16.mxu0 0
      %2993 = vmatpush1.bf16.msra.mxu0 0
      %2994 = vmatprep.subr.bf16.mxu0 0
      %2995 = vmatpush1.bf16.msra.mxu0 0
      %2996 = vmatprep.subr.bf16.mxu0 0
      %2997 = vmatpush1.bf16.msra.mxu0 0
      %2998 = vmatprep.subr.bf16.mxu0 0
      %2999 = vmatpush1.bf16.msra.mxu0 0
      %3000 = vmatprep.subr.bf16.mxu0 0
      %3001 = vmatpush1.bf16.msra.mxu0 0
      %3002 = vmatprep.subr.bf16.mxu0 0
      %3003 = vmatpush1.bf16.msra.mxu0 0
      %3004 = vmatprep.subr.bf16.mxu0 0
      %3005 = vmatpush1.bf16.msra.mxu0 0
      %3006 = vmatprep.subr.bf16.mxu0 0
      %3007 = vmatpush1.bf16.msra.mxu0 0
      %3008 = vmatprep.subr.bf16.mxu0 0
      %3009 = vmatpush1.bf16.msra.mxu0 0
      %3010 = vmatprep.subr.bf16.mxu0 0
      %3011 = vmatpush1.bf16.msra.mxu0 0
      %3012 = vmatprep.subr.bf16.mxu0 0
      %3013 = vmatpush1.bf16.msra.mxu0 0
      %3014 = vmatprep.mubr.bf16.mxu0 0
      %3015 = vmatmul.mubr.bf16.gmra.mrb[0].mxu0 %v2915
      %v3016 = vpop.f32.mrb[0].mxu0
      %v3017 = vadd.f32 0.0, %v3016
      %v3018 = vpop.f32.mrb[0].mxu0
      %v3019 = vadd.f32 0.0, %v3018
      %v3020 = vpop.f32.mrb[0].mxu0
      %v3021 = vpop.f32.mrb[0].mxu0
      %3022 = vdwg.mxu0
      %3023 = vmatprep.subr.bf16.mxu0 %v2933
      %3024 = vmatpush1.bf16.msra.mxu0 %v2930
      %3025 = vmatprep.subr.bf16.mxu0 0
      %3026 = vmatpush1.bf16.msra.mxu0 0
      %3027 = vmatprep.subr.bf16.mxu0 0
      %3028 = vmatpush1.bf16.msra.mxu0 0
      %3029 = vmatprep.subr.bf16.mxu0 0
      %3030 = vmatpush1.bf16.msra.mxu0 0
      %3031 = vmatprep.subr.bf16.mxu0 0
      %3032 = vmatpush1.bf16.msra.mxu0 0
      %3033 = vmatprep.subr.bf16.mxu0 0
      %3034 = vmatpush1.bf16.msra.mxu0 0
      %3035 = vmatprep.subr.bf16.mxu0 0
      %3036 = vmatpush1.bf16.msra.mxu0 0
      %3037 = vmatprep.subr.bf16.mxu0 0
      %3038 = vmatpush1.bf16.msra.mxu0 0
      %3039 = vmatprep.subr.bf16.mxu0 0
      %3040 = vmatpush1.bf16.msra.mxu0 0
      %3041 = vmatprep.subr.bf16.mxu0 0
      %3042 = vmatpush1.bf16.msra.mxu0 0
      %3043 = vmatprep.subr.bf16.mxu0 0
      %3044 = vmatpush1.bf16.msra.mxu0 0
      %3045 = vmatprep.subr.bf16.mxu0 0
      %3046 = vmatpush1.bf16.msra.mxu0 0
      %3047 = vmatprep.subr.bf16.mxu0 0
      %3048 = vmatpush1.bf16.msra.mxu0 0
      %3049 = vmatprep.subr.bf16.mxu0 0
      %3050 = vmatpush1.bf16.msra.mxu0 0
      %3051 = vmatprep.subr.bf16.mxu0 0
      %3052 = vmatpush1.bf16.msra.mxu0 0
      %3053 = vmatprep.subr.bf16.mxu0 0
      %3054 = vmatpush1.bf16.msra.mxu0 0
      %3055 = vmatprep.mubr.bf16.mxu0 0
      %3056 = vmatmul.mubr.bf16.gmra.mrb[0].mxu0 %v2915
      %v3057 = vpop.f32.mrb[0].mxu0
      %v3058 = vadd.f32 0.0, %v3057
      %v3059 = vpop.f32.mrb[0].mxu0
      %v3060 = vadd.f32 0.0, %v3059
      %v3061 = vpop.f32.mrb[0].mxu0
      %v3062 = vpop.f32.mrb[0].mxu0
      %3063 = vdwg.mxu0
      %3064 = vmatprep.subr.bf16.mxu0 %v2939
      %3065 = vmatpush1.bf16.msra.mxu0 %v2936
      %3066 = vmatprep.subr.bf16.mxu0 0
      %3067 = vmatpush1.bf16.msra.mxu0 0
      %3068 = vmatprep.subr.bf16.mxu0 0
      %3069 = vmatpush1.bf16.msra.mxu0 0
      %3070 = vmatprep.subr.bf16.mxu0 0
      %3071 = vmatpush1.bf16.msra.mxu0 0
      %3072 = vmatprep.subr.bf16.mxu0 0
      %3073 = vmatpush1.bf16.msra.mxu0 0
      %3074 = vmatprep.subr.bf16.mxu0 0
      %3075 = vmatpush1.bf16.msra.mxu0 0
      %3076 = vmatprep.subr.bf16.mxu0 0
      %3077 = vmatpush1.bf16.msra.mxu0 0
      %3078 = vmatprep.subr.bf16.mxu0 0
      %3079 = vmatpush1.bf16.msra.mxu0 0
      %3080 = vmatprep.subr.bf16.mxu0 0
      %3081 = vmatpush1.bf16.msra.mxu0 0
      %3082 = vmatprep.subr.bf16.mxu0 0
      %3083 = vmatpush1.bf16.msra.mxu0 0
      %3084 = vmatprep.subr.bf16.mxu0 0
      %3085 = vmatpush1.bf16.msra.mxu0 0
      %3086 = vmatprep.subr.bf16.mxu0 0
      %3087 = vmatpush1.bf16.msra.mxu0 0
      %3088 = vmatprep.subr.bf16.mxu0 0
      %3089 = vmatpush1.bf16.msra.mxu0 0
      %3090 = vmatprep.subr.bf16.mxu0 0
      %3091 = vmatpush1.bf16.msra.mxu0 0
      %3092 = vmatprep.subr.bf16.mxu0 0
      %3093 = vmatpush1.bf16.msra.mxu0 0
      %3094 = vmatprep.subr.bf16.mxu0 0
      %3095 = vmatpush1.bf16.msra.mxu0 0
      %3096 = vmatprep.mubr.bf16.mxu0 0
      %3097 = vmatmul.mubr.bf16.gmra.mrb[0].mxu0 %v2915
      %v3098 = vpop.f32.mrb[0].mxu0
      %v3099 = vadd.f32 0.0, %v3098
      %v3100 = vpop.f32.mrb[0].mxu0
      %v3101 = vadd.f32 0.0, %v3100
      %v3102 = vpop.f32.mrb[0].mxu0
      %v3103 = vpop.f32.mrb[0].mxu0
      %3104 = vdwg.mxu0
      %v3105 = vadd.f32 %v2880, %v2976
      %v3106 = vadd.f32 %v2881, %v2978
      %v3107 = vadd.f32 %v2882, %v3017
      %v3108 = vadd.f32 %v2883, %v3019
      %v3109 = vadd.f32 %v2884, %v3058
      %v3110 = vadd.f32 %v2885, %v3060
      %v3111 = vadd.f32 %v2886, %v3099
      %v3112 = vadd.f32 %v2887, %v3101
      %v3113 = vld [vmem:[%s1 + $0x60] sm:$0xff]
      %v3114 = vpack.c.bf16 %v3113, %v3113
      %3115 = vrot.lane.b32.xlu0 %v434, 62
      %v3116 = vpop.permute.xlu0 %3115
      %3117 = vrot.lane.b32.xlu0 %v435, 62
      %v3118 = vpop.permute.xlu0 %3117
      %3119 = vrot.lane.b32.xlu0 %v436, 62
      %v3120 = vpop.permute.xlu0 %3119
      %3121 = vrot.lane.b32.xlu0 %v437, 62
      %v3122 = vpop.permute.xlu0 %3121
      %3123 = vrot.lane.b32.xlu0 %v438, 62
      %v3124 = vpop.permute.xlu0 %3123
      %3125 = vrot.lane.b32.xlu0 %v439, 62
      %v3126 = vpop.permute.xlu0 %3125
      %3127 = vrot.lane.b32.xlu0 %v440, 62
      %v3128 = vpop.permute.xlu0 %3127
      %3129 = vrot.lane.b32.xlu0 %v441, 62
      %v3130 = vpop.permute.xlu0 %3129
      %vm3131 = vcmask 506880
      %v3132 = vsel %vm3131, %v3116, %v3118
      %v3133 = vsel %vm3131, %v3118, %v3120
      %v3134 = vsel %vm3131, %v3120, %v3122
      %v3135 = vsel %vm3131, %v3122, %v3124
      %v3136 = vsel %vm3131, %v3124, %v3126
      %v3137 = vsel %vm3131, %v3126, %v3128
      %v3138 = vsel %vm3131, %v3128, %v3130
      %v3140 = vsel %vm476, %v3114, 0
      %v3143 = vand.u32 %v3132, %v483
      %v3146 = vand.u32 %v3133, %v483
      %v3149 = vand.u32 %v3134, %v483
      %v3152 = vand.u32 %v3135, %v483
      %v3155 = vand.u32 %v3136, %v483
      %v3158 = vand.u32 %v3137, %v483
      %v3161 = vand.u32 %v3138, %v483
      %v3164 = vand.u32 %v3130, %v483
      %3166 = vmatprep.subr.bf16.mxu0 %v3146
      %3167 = vmatpush1.bf16.msra.mxu0 %v3143
      %3168 = vmatprep.subr.bf16.mxu0 0
      %3169 = vmatpush1.bf16.msra.mxu0 0
      %3170 = vmatprep.subr.bf16.mxu0 0
      %3171 = vmatpush1.bf16.msra.mxu0 0
      %3172 = vmatprep.subr.bf16.mxu0 0
      %3173 = vmatpush1.bf16.msra.mxu0 0
      %3174 = vmatprep.subr.bf16.mxu0 0
      %3175 = vmatpush1.bf16.msra.mxu0 0
      %3176 = vmatprep.subr.bf16.mxu0 0
      %3177 = vmatpush1.bf16.msra.mxu0 0
      %3178 = vmatprep.subr.bf16.mxu0 0
      %3179 = vmatpush1.bf16.msra.mxu0 0
      %3180 = vmatprep.subr.bf16.mxu0 0
      %3181 = vmatpush1.bf16.msra.mxu0 0
      %3182 = vmatprep.subr.bf16.mxu0 0
      %3183 = vmatpush1.bf16.msra.mxu0 0
      %3184 = vmatprep.subr.bf16.mxu0 0
      %3185 = vmatpush1.bf16.msra.mxu0 0
      %3186 = vmatprep.subr.bf16.mxu0 0
      %3187 = vmatpush1.bf16.msra.mxu0 0
      %3188 = vmatprep.subr.bf16.mxu0 0
      %3189 = vmatpush1.bf16.msra.mxu0 0
      %3190 = vmatprep.subr.bf16.mxu0 0
      %3191 = vmatpush1.bf16.msra.mxu0 0
      %3192 = vmatprep.subr.bf16.mxu0 0
      %3193 = vmatpush1.bf16.msra.mxu0 0
      %3194 = vmatprep.subr.bf16.mxu0 0
      %3195 = vmatpush1.bf16.msra.mxu0 0
      %3196 = vmatprep.subr.bf16.mxu0 0
      %3197 = vmatpush1.bf16.msra.mxu0 0
      %3198 = vmatprep.mubr.bf16.mxu0 0
      %3199 = vmatmul.mubr.bf16.gmra.mrb[0].mxu0 %v3140
      %v3200 = vpop.f32.mrb[0].mxu0
      %v3201 = vadd.f32 0.0, %v3200
      %v3202 = vpop.f32.mrb[0].mxu0
      %v3203 = vadd.f32 0.0, %v3202
      %v3204 = vpop.f32.mrb[0].mxu0
      %v3205 = vpop.f32.mrb[0].mxu0
      %3206 = vdwg.mxu0
      %3207 = vmatprep.subr.bf16.mxu0 %v3152
      %3208 = vmatpush1.bf16.msra.mxu0 %v3149
      %3209 = vmatprep.subr.bf16.mxu0 0
      %3210 = vmatpush1.bf16.msra.mxu0 0
      %3211 = vmatprep.subr.bf16.mxu0 0
      %3212 = vmatpush1.bf16.msra.mxu0 0
      %3213 = vmatprep.subr.bf16.mxu0 0
      %3214 = vmatpush1.bf16.msra.mxu0 0
      %3215 = vmatprep.subr.bf16.mxu0 0
      %3216 = vmatpush1.bf16.msra.mxu0 0
      %3217 = vmatprep.subr.bf16.mxu0 0
      %3218 = vmatpush1.bf16.msra.mxu0 0
      %3219 = vmatprep.subr.bf16.mxu0 0
      %3220 = vmatpush1.bf16.msra.mxu0 0
      %3221 = vmatprep.subr.bf16.mxu0 0
      %3222 = vmatpush1.bf16.msra.mxu0 0
      %3223 = vmatprep.subr.bf16.mxu0 0
      %3224 = vmatpush1.bf16.msra.mxu0 0
      %3225 = vmatprep.subr.bf16.mxu0 0
      %3226 = vmatpush1.bf16.msra.mxu0 0
      %3227 = vmatprep.subr.bf16.mxu0 0
      %3228 = vmatpush1.bf16.msra.mxu0 0
      %3229 = vmatprep.subr.bf16.mxu0 0
      %3230 = vmatpush1.bf16.msra.mxu0 0
      %3231 = vmatprep.subr.bf16.mxu0 0
      %3232 = vmatpush1.bf16.msra.mxu0 0
      %3233 = vmatprep.subr.bf16.mxu0 0
      %3234 = vmatpush1.bf16.msra.mxu0 0
      %3235 = vmatprep.subr.bf16.mxu0 0
      %3236 = vmatpush1.bf16.msra.mxu0 0
      %3237 = vmatprep.subr.bf16.mxu0 0
      %3238 = vmatpush1.bf16.msra.mxu0 0
      %3239 = vmatprep.mubr.bf16.mxu0 0
      %3240 = vmatmul.mubr.bf16.gmra.mrb[0].mxu0 %v3140
      %v3241 = vpop.f32.mrb[0].mxu0
      %v3242 = vadd.f32 0.0, %v3241
      %v3243 = vpop.f32.mrb[0].mxu0
      %v3244 = vadd.f32 0.0, %v3243
      %v3245 = vpop.f32.mrb[0].mxu0
      %v3246 = vpop.f32.mrb[0].mxu0
      %3247 = vdwg.mxu0
      %3248 = vmatprep.subr.bf16.mxu0 %v3158
      %3249 = vmatpush1.bf16.msra.mxu0 %v3155
      %3250 = vmatprep.subr.bf16.mxu0 0
      %3251 = vmatpush1.bf16.msra.mxu0 0
      %3252 = vmatprep.subr.bf16.mxu0 0
      %3253 = vmatpush1.bf16.msra.mxu0 0
      %3254 = vmatprep.subr.bf16.mxu0 0
      %3255 = vmatpush1.bf16.msra.mxu0 0
      %3256 = vmatprep.subr.bf16.mxu0 0
      %3257 = vmatpush1.bf16.msra.mxu0 0
      %3258 = vmatprep.subr.bf16.mxu0 0
      %3259 = vmatpush1.bf16.msra.mxu0 0
      %3260 = vmatprep.subr.bf16.mxu0 0
      %3261 = vmatpush1.bf16.msra.mxu0 0
      %3262 = vmatprep.subr.bf16.mxu0 0
      %3263 = vmatpush1.bf16.msra.mxu0 0
      %3264 = vmatprep.subr.bf16.mxu0 0
      %3265 = vmatpush1.bf16.msra.mxu0 0
      %3266 = vmatprep.subr.bf16.mxu0 0
      %3267 = vmatpush1.bf16.msra.mxu0 0
      %3268 = vmatprep.subr.bf16.mxu0 0
      %3269 = vmatpush1.bf16.msra.mxu0 0
      %3270 = vmatprep.subr.bf16.mxu0 0
      %3271 = vmatpush1.bf16.msra.mxu0 0
      %3272 = vmatprep.subr.bf16.mxu0 0
      %3273 = vmatpush1.bf16.msra.mxu0 0
      %3274 = vmatprep.subr.bf16.mxu0 0
      %3275 = vmatpush1.bf16.msra.mxu0 0
      %3276 = vmatprep.subr.bf16.mxu0 0
      %3277 = vmatpush1.bf16.msra.mxu0 0
      %3278 = vmatprep.subr.bf16.mxu0 0
      %3279 = vmatpush1.bf16.msra.mxu0 0
      %3280 = vmatprep.mubr.bf16.mxu0 0
      %3281 = vmatmul.mubr.bf16.gmra.mrb[0].mxu0 %v3140
      %v3282 = vpop.f32.mrb[0].mxu0
      %v3283 = vadd.f32 0.0, %v3282
      %v3284 = vpop.f32.mrb[0].mxu0
      %v3285 = vadd.f32 0.0, %v3284
      %v3286 = vpop.f32.mrb[0].mxu0
      %v3287 = vpop.f32.mrb[0].mxu0
      %3288 = vdwg.mxu0
      %3289 = vmatprep.subr.bf16.mxu0 %v3164
      %3290 = vmatpush1.bf16.msra.mxu0 %v3161
      %3291 = vmatprep.subr.bf16.mxu0 0
      %3292 = vmatpush1.bf16.msra.mxu0 0
      %3293 = vmatprep.subr.bf16.mxu0 0
      %3294 = vmatpush1.bf16.msra.mxu0 0
      %3295 = vmatprep.subr.bf16.mxu0 0
      %3296 = vmatpush1.bf16.msra.mxu0 0
      %3297 = vmatprep.subr.bf16.mxu0 0
      %3298 = vmatpush1.bf16.msra.mxu0 0
      %3299 = vmatprep.subr.bf16.mxu0 0
      %3300 = vmatpush1.bf16.msra.mxu0 0
      %3301 = vmatprep.subr.bf16.mxu0 0
      %3302 = vmatpush1.bf16.msra.mxu0 0
      %3303 = vmatprep.subr.bf16.mxu0 0
      %3304 = vmatpush1.bf16.msra.mxu0 0
      %3305 = vmatprep.subr.bf16.mxu0 0
      %3306 = vmatpush1.bf16.msra.mxu0 0
      %3307 = vmatprep.subr.bf16.mxu0 0
      %3308 = vmatpush1.bf16.msra.mxu0 0
      %3309 = vmatprep.subr.bf16.mxu0 0
      %3310 = vmatpush1.bf16.msra.mxu0 0
      %3311 = vmatprep.subr.bf16.mxu0 0
      %3312 = vmatpush1.bf16.msra.mxu0 0
      %3313 = vmatprep.subr.bf16.mxu0 0
      %3314 = vmatpush1.bf16.msra.mxu0 0
      %3315 = vmatprep.subr.bf16.mxu0 0
      %3316 = vmatpush1.bf16.msra.mxu0 0
      %3317 = vmatprep.subr.bf16.mxu0 0
      %3318 = vmatpush1.bf16.msra.mxu0 0
      %3319 = vmatprep.subr.bf16.mxu0 0
      %3320 = vmatpush1.bf16.msra.mxu0 0
      %3321 = vmatprep.mubr.bf16.mxu0 0
      %3322 = vmatmul.mubr.bf16.gmra.mrb[0].mxu0 %v3140
      %v3323 = vpop.f32.mrb[0].mxu0
      %v3324 = vadd.f32 0.0, %v3323
      %v3325 = vpop.f32.mrb[0].mxu0
      %v3326 = vadd.f32 0.0, %v3325
      %v3327 = vpop.f32.mrb[0].mxu0
      %v3328 = vpop.f32.mrb[0].mxu0
      %3329 = vdwg.mxu0
      %v3330 = vadd.f32 %v3105, %v3201
      %v3331 = vadd.f32 %v3106, %v3203
      %v3332 = vadd.f32 %v3107, %v3242
      %v3333 = vadd.f32 %v3108, %v3244
      %v3334 = vadd.f32 %v3109, %v3283
      %v3335 = vadd.f32 %v3110, %v3285
      %v3336 = vadd.f32 %v3111, %v3324
      %v3337 = vadd.f32 %v3112, %v3326
      %v3338 = vld [vmem:[%s1 + $0x68] sm:$0xff]
      %v3339 = vpack.c.bf16 %v3338, %v3338
      %3340 = vrot.lane.b32.xlu0 %v434, 61
      %v3341 = vpop.permute.xlu0 %3340
      %3342 = vrot.lane.b32.xlu0 %v435, 61
      %v3343 = vpop.permute.xlu0 %3342
      %3344 = vrot.lane.b32.xlu0 %v436, 61
      %v3345 = vpop.permute.xlu0 %3344
      %3346 = vrot.lane.b32.xlu0 %v437, 61
      %v3347 = vpop.permute.xlu0 %3346
      %3348 = vrot.lane.b32.xlu0 %v438, 61
      %v3349 = vpop.permute.xlu0 %3348
      %3350 = vrot.lane.b32.xlu0 %v439, 61
      %v3351 = vpop.permute.xlu0 %3350
      %3352 = vrot.lane.b32.xlu0 %v440, 61
      %v3353 = vpop.permute.xlu0 %3352
      %3354 = vrot.lane.b32.xlu0 %v441, 61
      %v3355 = vpop.permute.xlu0 %3354
      %vm3356 = vcmask 498688
      %v3357 = vsel %vm3356, %v3341, %v3343
      %v3358 = vsel %vm3356, %v3343, %v3345
      %v3359 = vsel %vm3356, %v3345, %v3347
      %v3360 = vsel %vm3356, %v3347, %v3349
      %v3361 = vsel %vm3356, %v3349, %v3351
      %v3362 = vsel %vm3356, %v3351, %v3353
      %v3363 = vsel %vm3356, %v3353, %v3355
      %v3365 = vsel %vm476, %v3339, 0
      %v3368 = vand.u32 %v3357, %v483
      %v3371 = vand.u32 %v3358, %v483
      %v3374 = vand.u32 %v3359, %v483
      %v3377 = vand.u32 %v3360, %v483
      %v3380 = vand.u32 %v3361, %v483
      %v3383 = vand.u32 %v3362, %v483
      %v3386 = vand.u32 %v3363, %v483
      %v3389 = vand.u32 %v3355, %v483
      %3391 = vmatprep.subr.bf16.mxu0 %v3371
      %3392 = vmatpush1.bf16.msra.mxu0 %v3368
      %3393 = vmatprep.subr.bf16.mxu0 0
      %3394 = vmatpush1.bf16.msra.mxu0 0
      %3395 = vmatprep.subr.bf16.mxu0 0
      %3396 = vmatpush1.bf16.msra.mxu0 0
      %3397 = vmatprep.subr.bf16.mxu0 0
      %3398 = vmatpush1.bf16.msra.mxu0 0
      %3399 = vmatprep.subr.bf16.mxu0 0
      %3400 = vmatpush1.bf16.msra.mxu0 0
      %3401 = vmatprep.subr.bf16.mxu0 0
      %3402 = vmatpush1.bf16.msra.mxu0 0
      %3403 = vmatprep.subr.bf16.mxu0 0
      %3404 = vmatpush1.bf16.msra.mxu0 0
      %3405 = vmatprep.subr.bf16.mxu0 0
      %3406 = vmatpush1.bf16.msra.mxu0 0
      %3407 = vmatprep.subr.bf16.mxu0 0
      %3408 = vmatpush1.bf16.msra.mxu0 0
      %3409 = vmatprep.subr.bf16.mxu0 0
      %3410 = vmatpush1.bf16.msra.mxu0 0
      %3411 = vmatprep.subr.bf16.mxu0 0
      %3412 = vmatpush1.bf16.msra.mxu0 0
      %3413 = vmatprep.subr.bf16.mxu0 0
      %3414 = vmatpush1.bf16.msra.mxu0 0
      %3415 = vmatprep.subr.bf16.mxu0 0
      %3416 = vmatpush1.bf16.msra.mxu0 0
      %3417 = vmatprep.subr.bf16.mxu0 0
      %3418 = vmatpush1.bf16.msra.mxu0 0
      %3419 = vmatprep.subr.bf16.mxu0 0
      %3420 = vmatpush1.bf16.msra.mxu0 0
      %3421 = vmatprep.subr.bf16.mxu0 0
      %3422 = vmatpush1.bf16.msra.mxu0 0
      %3423 = vmatprep.mubr.bf16.mxu0 0
      %3424 = vmatmul.mubr.bf16.gmra.mrb[0].mxu0 %v3365
      %v3425 = vpop.f32.mrb[0].mxu0
      %v3426 = vadd.f32 0.0, %v3425
      %v3427 = vpop.f32.mrb[0].mxu0
      %v3428 = vadd.f32 0.0, %v3427
      %v3429 = vpop.f32.mrb[0].mxu0
      %v3430 = vpop.f32.mrb[0].mxu0
      %3431 = vdwg.mxu0
      %3432 = vmatprep.subr.bf16.mxu0 %v3377
      %3433 = vmatpush1.bf16.msra.mxu0 %v3374
      %3434 = vmatprep.subr.bf16.mxu0 0
      %3435 = vmatpush1.bf16.msra.mxu0 0
      %3436 = vmatprep.subr.bf16.mxu0 0
      %3437 = vmatpush1.bf16.msra.mxu0 0
      %3438 = vmatprep.subr.bf16.mxu0 0
      %3439 = vmatpush1.bf16.msra.mxu0 0
      %3440 = vmatprep.subr.bf16.mxu0 0
      %3441 = vmatpush1.bf16.msra.mxu0 0
      %3442 = vmatprep.subr.bf16.mxu0 0
      %3443 = vmatpush1.bf16.msra.mxu0 0
      %3444 = vmatprep.subr.bf16.mxu0 0
      %3445 = vmatpush1.bf16.msra.mxu0 0
      %3446 = vmatprep.subr.bf16.mxu0 0
      %3447 = vmatpush1.bf16.msra.mxu0 0
      %3448 = vmatprep.subr.bf16.mxu0 0
      %3449 = vmatpush1.bf16.msra.mxu0 0
      %3450 = vmatprep.subr.bf16.mxu0 0
      %3451 = vmatpush1.bf16.msra.mxu0 0
      %3452 = vmatprep.subr.bf16.mxu0 0
      %3453 = vmatpush1.bf16.msra.mxu0 0
      %3454 = vmatprep.subr.bf16.mxu0 0
      %3455 = vmatpush1.bf16.msra.mxu0 0
      %3456 = vmatprep.subr.bf16.mxu0 0
      %3457 = vmatpush1.bf16.msra.mxu0 0
      %3458 = vmatprep.subr.bf16.mxu0 0
      %3459 = vmatpush1.bf16.msra.mxu0 0
      %3460 = vmatprep.subr.bf16.mxu0 0
      %3461 = vmatpush1.bf16.msra.mxu0 0
      %3462 = vmatprep.subr.bf16.mxu0 0
      %3463 = vmatpush1.bf16.msra.mxu0 0
      %3464 = vmatprep.mubr.bf16.mxu0 0
      %3465 = vmatmul.mubr.bf16.gmra.mrb[0].mxu0 %v3365
      %v3466 = vpop.f32.mrb[0].mxu0
      %v3467 = vadd.f32 0.0, %v3466
      %v3468 = vpop.f32.mrb[0].mxu0
      %v3469 = vadd.f32 0.0, %v3468
      %v3470 = vpop.f32.mrb[0].mxu0
      %v3471 = vpop.f32.mrb[0].mxu0
      %3472 = vdwg.mxu0
      %3473 = vmatprep.subr.bf16.mxu0 %v3383
      %3474 = vmatpush1.bf16.msra.mxu0 %v3380
      %3475 = vmatprep.subr.bf16.mxu0 0
      %3476 = vmatpush1.bf16.msra.mxu0 0
      %3477 = vmatprep.subr.bf16.mxu0 0
      %3478 = vmatpush1.bf16.msra.mxu0 0
      %3479 = vmatprep.subr.bf16.mxu0 0
      %3480 = vmatpush1.bf16.msra.mxu0 0
      %3481 = vmatprep.subr.bf16.mxu0 0
      %3482 = vmatpush1.bf16.msra.mxu0 0
      %3483 = vmatprep.subr.bf16.mxu0 0
      %3484 = vmatpush1.bf16.msra.mxu0 0
      %3485 = vmatprep.subr.bf16.mxu0 0
      %3486 = vmatpush1.bf16.msra.mxu0 0
      %3487 = vmatprep.subr.bf16.mxu0 0
      %3488 = vmatpush1.bf16.msra.mxu0 0
      %3489 = vmatprep.subr.bf16.mxu0 0
      %3490 = vmatpush1.bf16.msra.mxu0 0
      %3491 = vmatprep.subr.bf16.mxu0 0
      %3492 = vmatpush1.bf16.msra.mxu0 0
      %3493 = vmatprep.subr.bf16.mxu0 0
      %3494 = vmatpush1.bf16.msra.mxu0 0
      %3495 = vmatprep.subr.bf16.mxu0 0
      %3496 = vmatpush1.bf16.msra.mxu0 0
      %3497 = vmatprep.subr.bf16.mxu0 0
      %3498 = vmatpush1.bf16.msra.mxu0 0
      %3499 = vmatprep.subr.bf16.mxu0 0
      %3500 = vmatpush1.bf16.msra.mxu0 0
      %3501 = vmatprep.subr.bf16.mxu0 0
      %3502 = vmatpush1.bf16.msra.mxu0 0
      %3503 = vmatprep.subr.bf16.mxu0 0
      %3504 = vmatpush1.bf16.msra.mxu0 0
      %3505 = vmatprep.mubr.bf16.mxu0 0
      %3506 = vmatmul.mubr.bf16.gmra.mrb[0].mxu0 %v3365
      %v3507 = vpop.f32.mrb[0].mxu0
      %v3508 = vadd.f32 0.0, %v3507
      %v3509 = vpop.f32.mrb[0].mxu0
      %v3510 = vadd.f32 0.0, %v3509
      %v3511 = vpop.f32.mrb[0].mxu0
      %v3512 = vpop.f32.mrb[0].mxu0
      %3513 = vdwg.mxu0
      %3514 = vmatprep.subr.bf16.mxu0 %v3389
      %3515 = vmatpush1.bf16.msra.mxu0 %v3386
      %3516 = vmatprep.subr.bf16.mxu0 0
      %3517 = vmatpush1.bf16.msra.mxu0 0
      %3518 = vmatprep.subr.bf16.mxu0 0
      %3519 = vmatpush1.bf16.msra.mxu0 0
      %3520 = vmatprep.subr.bf16.mxu0 0
      %3521 = vmatpush1.bf16.msra.mxu0 0
      %3522 = vmatprep.subr.bf16.mxu0 0
      %3523 = vmatpush1.bf16.msra.mxu0 0
      %3524 = vmatprep.subr.bf16.mxu0 0
      %3525 = vmatpush1.bf16.msra.mxu0 0
      %3526 = vmatprep.subr.bf16.mxu0 0
      %3527 = vmatpush1.bf16.msra.mxu0 0
      %3528 = vmatprep.subr.bf16.mxu0 0
      %3529 = vmatpush1.bf16.msra.mxu0 0
      %3530 = vmatprep.subr.bf16.mxu0 0
      %3531 = vmatpush1.bf16.msra.mxu0 0
      %3532 = vmatprep.subr.bf16.mxu0 0
      %3533 = vmatpush1.bf16.msra.mxu0 0
      %3534 = vmatprep.subr.bf16.mxu0 0
      %3535 = vmatpush1.bf16.msra.mxu0 0
      %3536 = vmatprep.subr.bf16.mxu0 0
      %3537 = vmatpush1.bf16.msra.mxu0 0
      %3538 = vmatprep.subr.bf16.mxu0 0
      %3539 = vmatpush1.bf16.msra.mxu0 0
      %3540 = vmatprep.subr.bf16.mxu0 0
      %3541 = vmatpush1.bf16.msra.mxu0 0
      %3542 = vmatprep.subr.bf16.mxu0 0
      %3543 = vmatpush1.bf16.msra.mxu0 0
      %3544 = vmatprep.subr.bf16.mxu0 0
      %3545 = vmatpush1.bf16.msra.mxu0 0
      %3546 = vmatprep.mubr.bf16.mxu0 0
      %3547 = vmatmul.mubr.bf16.gmra.mrb[0].mxu0 %v3365
      %v3548 = vpop.f32.mrb[0].mxu0
      %v3549 = vadd.f32 0.0, %v3548
      %v3550 = vpop.f32.mrb[0].mxu0
      %v3551 = vadd.f32 0.0, %v3550
      %v3552 = vpop.f32.mrb[0].mxu0
      %v3553 = vpop.f32.mrb[0].mxu0
      %3554 = vdwg.mxu0
      %v3555 = vadd.f32 %v3330, %v3426
      %v3556 = vadd.f32 %v3331, %v3428
      %v3557 = vadd.f32 %v3332, %v3467
      %v3558 = vadd.f32 %v3333, %v3469
      %v3559 = vadd.f32 %v3334, %v3508
      %v3560 = vadd.f32 %v3335, %v3510
      %v3561 = vadd.f32 %v3336, %v3549
      %v3562 = vadd.f32 %v3337, %v3551
      %v3563 = vld [vmem:[%s1 + $0x70] sm:$0xff]
      %v3564 = vpack.c.bf16 %v3563, %v3563
      %3565 = vrot.lane.b32.xlu0 %v434, 60
      %v3566 = vpop.permute.xlu0 %3565
      %3567 = vrot.lane.b32.xlu0 %v435, 60
      %v3568 = vpop.permute.xlu0 %3567
      %3569 = vrot.lane.b32.xlu0 %v436, 60
      %v3570 = vpop.permute.xlu0 %3569
      %3571 = vrot.lane.b32.xlu0 %v437, 60
      %v3572 = vpop.permute.xlu0 %3571
      %3573 = vrot.lane.b32.xlu0 %v438, 60
      %v3574 = vpop.permute.xlu0 %3573
      %3575 = vrot.lane.b32.xlu0 %v439, 60
      %v3576 = vpop.permute.xlu0 %3575
      %3577 = vrot.lane.b32.xlu0 %v440, 60
      %v3578 = vpop.permute.xlu0 %3577
      %3579 = vrot.lane.b32.xlu0 %v441, 60
      %v3580 = vpop.permute.xlu0 %3579
      %vm3581 = vcmask 490496
      %v3582 = vsel %vm3581, %v3566, %v3568
      %v3583 = vsel %vm3581, %v3568, %v3570
      %v3584 = vsel %vm3581, %v3570, %v3572
      %v3585 = vsel %vm3581, %v3572, %v3574
      %v3586 = vsel %vm3581, %v3574, %v3576
      %v3587 = vsel %vm3581, %v3576, %v3578
      %v3588 = vsel %vm3581, %v3578, %v3580
      %v3590 = vsel %vm476, %v3564, 0
      %v3593 = vand.u32 %v3582, %v483
      %v3596 = vand.u32 %v3583, %v483
      %v3599 = vand.u32 %v3584, %v483
      %v3602 = vand.u32 %v3585, %v483
      %v3605 = vand.u32 %v3586, %v483
      %v3608 = vand.u32 %v3587, %v483
      %v3611 = vand.u32 %v3588, %v483
      %v3614 = vand.u32 %v3580, %v483
      %3616 = vmatprep.subr.bf16.mxu0 %v3596
      %3617 = vmatpush1.bf16.msra.mxu0 %v3593
      %3618 = vmatprep.subr.bf16.mxu0 0
      %3619 = vmatpush1.bf16.msra.mxu0 0
      %3620 = vmatprep.subr.bf16.mxu0 0
      %3621 = vmatpush1.bf16.msra.mxu0 0
      %3622 = vmatprep.subr.bf16.mxu0 0
      %3623 = vmatpush1.bf16.msra.mxu0 0
      %3624 = vmatprep.subr.bf16.mxu0 0
      %3625 = vmatpush1.bf16.msra.mxu0 0
      %3626 = vmatprep.subr.bf16.mxu0 0
      %3627 = vmatpush1.bf16.msra.mxu0 0
      %3628 = vmatprep.subr.bf16.mxu0 0
      %3629 = vmatpush1.bf16.msra.mxu0 0
      %3630 = vmatprep.subr.bf16.mxu0 0
      %3631 = vmatpush1.bf16.msra.mxu0 0
      %3632 = vmatprep.subr.bf16.mxu0 0
      %3633 = vmatpush1.bf16.msra.mxu0 0
      %3634 = vmatprep.subr.bf16.mxu0 0
      %3635 = vmatpush1.bf16.msra.mxu0 0
      %3636 = vmatprep.subr.bf16.mxu0 0
      %3637 = vmatpush1.bf16.msra.mxu0 0
      %3638 = vmatprep.subr.bf16.mxu0 0
      %3639 = vmatpush1.bf16.msra.mxu0 0
      %3640 = vmatprep.subr.bf16.mxu0 0
      %3641 = vmatpush1.bf16.msra.mxu0 0
      %3642 = vmatprep.subr.bf16.mxu0 0
      %3643 = vmatpush1.bf16.msra.mxu0 0
      %3644 = vmatprep.subr.bf16.mxu0 0
      %3645 = vmatpush1.bf16.msra.mxu0 0
      %3646 = vmatprep.subr.bf16.mxu0 0
      %3647 = vmatpush1.bf16.msra.mxu0 0
      %3648 = vmatprep.mubr.bf16.mxu0 0
      %3649 = vmatmul.mubr.bf16.gmra.mrb[0].mxu0 %v3590
      %v3650 = vpop.f32.mrb[0].mxu0
      %v3651 = vadd.f32 0.0, %v3650
      %v3652 = vpop.f32.mrb[0].mxu0
      %v3653 = vadd.f32 0.0, %v3652
      %v3654 = vpop.f32.mrb[0].mxu0
      %v3655 = vpop.f32.mrb[0].mxu0
      %3656 = vdwg.mxu0
      %3657 = vmatprep.subr.bf16.mxu0 %v3602
      %3658 = vmatpush1.bf16.msra.mxu0 %v3599
      %3659 = vmatprep.subr.bf16.mxu0 0
      %3660 = vmatpush1.bf16.msra.mxu0 0
      %3661 = vmatprep.subr.bf16.mxu0 0
      %3662 = vmatpush1.bf16.msra.mxu0 0
      %3663 = vmatprep.subr.bf16.mxu0 0
      %3664 = vmatpush1.bf16.msra.mxu0 0
      %3665 = vmatprep.subr.bf16.mxu0 0
      %3666 = vmatpush1.bf16.msra.mxu0 0
      %3667 = vmatprep.subr.bf16.mxu0 0
      %3668 = vmatpush1.bf16.msra.mxu0 0
      %3669 = vmatprep.subr.bf16.mxu0 0
      %3670 = vmatpush1.bf16.msra.mxu0 0
      %3671 = vmatprep.subr.bf16.mxu0 0
      %3672 = vmatpush1.bf16.msra.mxu0 0
      %3673 = vmatprep.subr.bf16.mxu0 0
      %3674 = vmatpush1.bf16.msra.mxu0 0
      %3675 = vmatprep.subr.bf16.mxu0 0
      %3676 = vmatpush1.bf16.msra.mxu0 0
      %3677 = vmatprep.subr.bf16.mxu0 0
      %3678 = vmatpush1.bf16.msra.mxu0 0
      %3679 = vmatprep.subr.bf16.mxu0 0
      %3680 = vmatpush1.bf16.msra.mxu0 0
      %3681 = vmatprep.subr.bf16.mxu0 0
      %3682 = vmatpush1.bf16.msra.mxu0 0
      %3683 = vmatprep.subr.bf16.mxu0 0
      %3684 = vmatpush1.bf16.msra.mxu0 0
      %3685 = vmatprep.subr.bf16.mxu0 0
      %3686 = vmatpush1.bf16.msra.mxu0 0
      %3687 = vmatprep.subr.bf16.mxu0 0
      %3688 = vmatpush1.bf16.msra.mxu0 0
      %3689 = vmatprep.mubr.bf16.mxu0 0
      %3690 = vmatmul.mubr.bf16.gmra.mrb[0].mxu0 %v3590
      %v3691 = vpop.f32.mrb[0].mxu0
      %v3692 = vadd.f32 0.0, %v3691
      %v3693 = vpop.f32.mrb[0].mxu0
      %v3694 = vadd.f32 0.0, %v3693
      %v3695 = vpop.f32.mrb[0].mxu0
      %v3696 = vpop.f32.mrb[0].mxu0
      %3697 = vdwg.mxu0
      %3698 = vmatprep.subr.bf16.mxu0 %v3608
      %3699 = vmatpush1.bf16.msra.mxu0 %v3605
      %3700 = vmatprep.subr.bf16.mxu0 0
      %3701 = vmatpush1.bf16.msra.mxu0 0
      %3702 = vmatprep.subr.bf16.mxu0 0
      %3703 = vmatpush1.bf16.msra.mxu0 0
      %3704 = vmatprep.subr.bf16.mxu0 0
      %3705 = vmatpush1.bf16.msra.mxu0 0
      %3706 = vmatprep.subr.bf16.mxu0 0
      %3707 = vmatpush1.bf16.msra.mxu0 0
      %3708 = vmatprep.subr.bf16.mxu0 0
      %3709 = vmatpush1.bf16.msra.mxu0 0
      %3710 = vmatprep.subr.bf16.mxu0 0
      %3711 = vmatpush1.bf16.msra.mxu0 0
      %3712 = vmatprep.subr.bf16.mxu0 0
      %3713 = vmatpush1.bf16.msra.mxu0 0
      %3714 = vmatprep.subr.bf16.mxu0 0
      %3715 = vmatpush1.bf16.msra.mxu0 0
      %3716 = vmatprep.subr.bf16.mxu0 0
      %3717 = vmatpush1.bf16.msra.mxu0 0
      %3718 = vmatprep.subr.bf16.mxu0 0
      %3719 = vmatpush1.bf16.msra.mxu0 0
      %3720 = vmatprep.subr.bf16.mxu0 0
      %3721 = vmatpush1.bf16.msra.mxu0 0
      %3722 = vmatprep.subr.bf16.mxu0 0
      %3723 = vmatpush1.bf16.msra.mxu0 0
      %3724 = vmatprep.subr.bf16.mxu0 0
      %3725 = vmatpush1.bf16.msra.mxu0 0
      %3726 = vmatprep.subr.bf16.mxu0 0
      %3727 = vmatpush1.bf16.msra.mxu0 0
      %3728 = vmatprep.subr.bf16.mxu0 0
      %3729 = vmatpush1.bf16.msra.mxu0 0
      %3730 = vmatprep.mubr.bf16.mxu0 0
      %3731 = vmatmul.mubr.bf16.gmra.mrb[0].mxu0 %v3590
      %v3732 = vpop.f32.mrb[0].mxu0
      %v3733 = vadd.f32 0.0, %v3732
      %v3734 = vpop.f32.mrb[0].mxu0
      %v3735 = vadd.f32 0.0, %v3734
      %v3736 = vpop.f32.mrb[0].mxu0
      %v3737 = vpop.f32.mrb[0].mxu0
      %3738 = vdwg.mxu0
      %3739 = vmatprep.subr.bf16.mxu0 %v3614
      %3740 = vmatpush1.bf16.msra.mxu0 %v3611
      %3741 = vmatprep.subr.bf16.mxu0 0
      %3742 = vmatpush1.bf16.msra.mxu0 0
      %3743 = vmatprep.subr.bf16.mxu0 0
      %3744 = vmatpush1.bf16.msra.mxu0 0
      %3745 = vmatprep.subr.bf16.mxu0 0
      %3746 = vmatpush1.bf16.msra.mxu0 0
      %3747 = vmatprep.subr.bf16.mxu0 0
      %3748 = vmatpush1.bf16.msra.mxu0 0
      %3749 = vmatprep.subr.bf16.mxu0 0
      %3750 = vmatpush1.bf16.msra.mxu0 0
      %3751 = vmatprep.subr.bf16.mxu0 0
      %3752 = vmatpush1.bf16.msra.mxu0 0
      %3753 = vmatprep.subr.bf16.mxu0 0
      %3754 = vmatpush1.bf16.msra.mxu0 0
      %3755 = vmatprep.subr.bf16.mxu0 0
      %3756 = vmatpush1.bf16.msra.mxu0 0
      %3757 = vmatprep.subr.bf16.mxu0 0
      %3758 = vmatpush1.bf16.msra.mxu0 0
      %3759 = vmatprep.subr.bf16.mxu0 0
      %3760 = vmatpush1.bf16.msra.mxu0 0
      %3761 = vmatprep.subr.bf16.mxu0 0
      %3762 = vmatpush1.bf16.msra.mxu0 0
      %3763 = vmatprep.subr.bf16.mxu0 0
      %3764 = vmatpush1.bf16.msra.mxu0 0
      %3765 = vmatprep.subr.bf16.mxu0 0
      %3766 = vmatpush1.bf16.msra.mxu0 0
      %3767 = vmatprep.subr.bf16.mxu0 0
      %3768 = vmatpush1.bf16.msra.mxu0 0
      %3769 = vmatprep.subr.bf16.mxu0 0
      %3770 = vmatpush1.bf16.msra.mxu0 0
      %3771 = vmatprep.mubr.bf16.mxu0 0
      %3772 = vmatmul.mubr.bf16.gmra.mrb[0].mxu0 %v3590
      %v3773 = vpop.f32.mrb[0].mxu0
      %v3774 = vadd.f32 0.0, %v3773
      %v3775 = vpop.f32.mrb[0].mxu0
      %v3776 = vadd.f32 0.0, %v3775
      %v3777 = vpop.f32.mrb[0].mxu0
      %v3778 = vpop.f32.mrb[0].mxu0
      %3779 = vdwg.mxu0
      %v3780 = vadd.f32 %v3555, %v3651
      %v3781 = vadd.f32 %v3556, %v3653
      %v3782 = vadd.f32 %v3557, %v3692
      %v3783 = vadd.f32 %v3558, %v3694
      %v3784 = vadd.f32 %v3559, %v3733
      %v3785 = vadd.f32 %v3560, %v3735
      %v3786 = vadd.f32 %v3561, %v3774
      %v3787 = vadd.f32 %v3562, %v3776
      %v3788 = vld [vmem:[%s1 + $0x78] sm:$0xff]
      %v3789 = vpack.c.bf16 %v3788, %v3788
      %3790 = vrot.lane.b32.xlu0 %v434, 32
      %v3791 = vpop.permute.xlu0 %3790
      %3792 = vrot.lane.b32.xlu0 %v435, 32
      %v3793 = vpop.permute.xlu0 %3792
      %3794 = vrot.lane.b32.xlu0 %v436, 32
      %v3795 = vpop.permute.xlu0 %3794
      %3796 = vrot.lane.b32.xlu0 %v437, 32
      %v3797 = vpop.permute.xlu0 %3796
      %3798 = vrot.lane.b32.xlu0 %v438, 32
      %v3799 = vpop.permute.xlu0 %3798
      %3800 = vrot.lane.b32.xlu0 %v439, 32
      %v3801 = vpop.permute.xlu0 %3800
      %3802 = vrot.lane.b32.xlu0 %v440, 32
      %v3803 = vpop.permute.xlu0 %3802
      %3804 = vrot.lane.b32.xlu0 %v441, 32
      %v3805 = vpop.permute.xlu0 %3804
      %vm3806 = vcmask 261120
      %v3807 = vsel %vm3806, %v3791, %v3793
      %v3808 = vsel %vm3806, %v3793, %v3795
      %v3809 = vsel %vm3806, %v3795, %v3797
      %v3810 = vsel %vm3806, %v3797, %v3799
      %v3811 = vsel %vm3806, %v3799, %v3801
      %v3812 = vsel %vm3806, %v3801, %v3803
      %v3813 = vsel %vm3806, %v3803, %v3805
      %v3815 = vsel %vm476, %v3789, 0
      %v3818 = vand.u32 %v3807, %v483
      %v3821 = vand.u32 %v3808, %v483
      %v3824 = vand.u32 %v3809, %v483
      %v3827 = vand.u32 %v3810, %v483
      %v3830 = vand.u32 %v3811, %v483
      %v3833 = vand.u32 %v3812, %v483
      %v3836 = vand.u32 %v3813, %v483
      %v3839 = vand.u32 %v3805, %v483
      %3841 = vmatprep.subr.bf16.mxu0 %v3821
      %3842 = vmatpush1.bf16.msra.mxu0 %v3818
      %3843 = vmatprep.subr.bf16.mxu0 0
      %3844 = vmatpush1.bf16.msra.mxu0 0
      %3845 = vmatprep.subr.bf16.mxu0 0
      %3846 = vmatpush1.bf16.msra.mxu0 0
      %3847 = vmatprep.subr.bf16.mxu0 0
      %3848 = vmatpush1.bf16.msra.mxu0 0
      %3849 = vmatprep.subr.bf16.mxu0 0
      %3850 = vmatpush1.bf16.msra.mxu0 0
      %3851 = vmatprep.subr.bf16.mxu0 0
      %3852 = vmatpush1.bf16.msra.mxu0 0
      %3853 = vmatprep.subr.bf16.mxu0 0
      %3854 = vmatpush1.bf16.msra.mxu0 0
      %3855 = vmatprep.subr.bf16.mxu0 0
      %3856 = vmatpush1.bf16.msra.mxu0 0
      %3857 = vmatprep.subr.bf16.mxu0 0
      %3858 = vmatpush1.bf16.msra.mxu0 0
      %3859 = vmatprep.subr.bf16.mxu0 0
      %3860 = vmatpush1.bf16.msra.mxu0 0
      %3861 = vmatprep.subr.bf16.mxu0 0
      %3862 = vmatpush1.bf16.msra.mxu0 0
      %3863 = vmatprep.subr.bf16.mxu0 0
      %3864 = vmatpush1.bf16.msra.mxu0 0
      %3865 = vmatprep.subr.bf16.mxu0 0
      %3866 = vmatpush1.bf16.msra.mxu0 0
      %3867 = vmatprep.subr.bf16.mxu0 0
      %3868 = vmatpush1.bf16.msra.mxu0 0
      %3869 = vmatprep.subr.bf16.mxu0 0
      %3870 = vmatpush1.bf16.msra.mxu0 0
      %3871 = vmatprep.subr.bf16.mxu0 0
      %3872 = vmatpush1.bf16.msra.mxu0 0
      %3873 = vmatprep.mubr.bf16.mxu0 0
      %3874 = vmatmul.mubr.bf16.gmra.mrb[0].mxu0 %v3815
      %v3875 = vpop.f32.mrb[0].mxu0
      %v3876 = vadd.f32 0.0, %v3875
      %v3877 = vpop.f32.mrb[0].mxu0
      %v3878 = vadd.f32 0.0, %v3877
      %v3879 = vpop.f32.mrb[0].mxu0
      %v3880 = vpop.f32.mrb[0].mxu0
      %3881 = vdwg.mxu0
      %3882 = vmatprep.subr.bf16.mxu0 %v3827
      %3883 = vmatpush1.bf16.msra.mxu0 %v3824
      %3884 = vmatprep.subr.bf16.mxu0 0
      %3885 = vmatpush1.bf16.msra.mxu0 0
      %3886 = vmatprep.subr.bf16.mxu0 0
      %3887 = vmatpush1.bf16.msra.mxu0 0
      %3888 = vmatprep.subr.bf16.mxu0 0
      %3889 = vmatpush1.bf16.msra.mxu0 0
      %3890 = vmatprep.subr.bf16.mxu0 0
      %3891 = vmatpush1.bf16.msra.mxu0 0
      %3892 = vmatprep.subr.bf16.mxu0 0
      %3893 = vmatpush1.bf16.msra.mxu0 0
      %3894 = vmatprep.subr.bf16.mxu0 0
      %3895 = vmatpush1.bf16.msra.mxu0 0
      %3896 = vmatprep.subr.bf16.mxu0 0
      %3897 = vmatpush1.bf16.msra.mxu0 0
      %3898 = vmatprep.subr.bf16.mxu0 0
      %3899 = vmatpush1.bf16.msra.mxu0 0
      %3900 = vmatprep.subr.bf16.mxu0 0
      %3901 = vmatpush1.bf16.msra.mxu0 0
      %3902 = vmatprep.subr.bf16.mxu0 0
      %3903 = vmatpush1.bf16.msra.mxu0 0
      %3904 = vmatprep.subr.bf16.mxu0 0
      %3905 = vmatpush1.bf16.msra.mxu0 0
      %3906 = vmatprep.subr.bf16.mxu0 0
      %3907 = vmatpush1.bf16.msra.mxu0 0
      %3908 = vmatprep.subr.bf16.mxu0 0
      %3909 = vmatpush1.bf16.msra.mxu0 0
      %3910 = vmatprep.subr.bf16.mxu0 0
      %3911 = vmatpush1.bf16.msra.mxu0 0
      %3912 = vmatprep.subr.bf16.mxu0 0
      %3913 = vmatpush1.bf16.msra.mxu0 0
      %3914 = vmatprep.mubr.bf16.mxu0 0
      %3915 = vmatmul.mubr.bf16.gmra.mrb[0].mxu0 %v3815
      %v3916 = vpop.f32.mrb[0].mxu0
      %v3917 = vadd.f32 0.0, %v3916
      %v3918 = vpop.f32.mrb[0].mxu0
      %v3919 = vadd.f32 0.0, %v3918
      %v3920 = vpop.f32.mrb[0].mxu0
      %v3921 = vpop.f32.mrb[0].mxu0
      %3922 = vdwg.mxu0
      %3923 = vmatprep.subr.bf16.mxu0 %v3833
      %3924 = vmatpush1.bf16.msra.mxu0 %v3830
      %3925 = vmatprep.subr.bf16.mxu0 0
      %3926 = vmatpush1.bf16.msra.mxu0 0
      %3927 = vmatprep.subr.bf16.mxu0 0
      %3928 = vmatpush1.bf16.msra.mxu0 0
      %3929 = vmatprep.subr.bf16.mxu0 0
      %3930 = vmatpush1.bf16.msra.mxu0 0
      %3931 = vmatprep.subr.bf16.mxu0 0
      %3932 = vmatpush1.bf16.msra.mxu0 0
      %3933 = vmatprep.subr.bf16.mxu0 0
      %3934 = vmatpush1.bf16.msra.mxu0 0
      %3935 = vmatprep.subr.bf16.mxu0 0
      %3936 = vmatpush1.bf16.msra.mxu0 0
      %3937 = vmatprep.subr.bf16.mxu0 0
      %3938 = vmatpush1.bf16.msra.mxu0 0
      %3939 = vmatprep.subr.bf16.mxu0 0
      %3940 = vmatpush1.bf16.msra.mxu0 0
      %3941 = vmatprep.subr.bf16.mxu0 0
      %3942 = vmatpush1.bf16.msra.mxu0 0
      %3943 = vmatprep.subr.bf16.mxu0 0
      %3944 = vmatpush1.bf16.msra.mxu0 0
      %3945 = vmatprep.subr.bf16.mxu0 0
      %3946 = vmatpush1.bf16.msra.mxu0 0
      %3947 = vmatprep.subr.bf16.mxu0 0
      %3948 = vmatpush1.bf16.msra.mxu0 0
      %3949 = vmatprep.subr.bf16.mxu0 0
      %3950 = vmatpush1.bf16.msra.mxu0 0
      %3951 = vmatprep.subr.bf16.mxu0 0
      %3952 = vmatpush1.bf16.msra.mxu0 0
      %3953 = vmatprep.subr.bf16.mxu0 0
      %3954 = vmatpush1.bf16.msra.mxu0 0
      %3955 = vmatprep.mubr.bf16.mxu0 0
      %3956 = vmatmul.mubr.bf16.gmra.mrb[0].mxu0 %v3815
      %v3957 = vpop.f32.mrb[0].mxu0
      %v3958 = vadd.f32 0.0, %v3957
      %v3959 = vpop.f32.mrb[0].mxu0
      %v3960 = vadd.f32 0.0, %v3959
      %v3961 = vpop.f32.mrb[0].mxu0
      %v3962 = vpop.f32.mrb[0].mxu0
      %3963 = vdwg.mxu0
      %3964 = vmatprep.subr.bf16.mxu0 %v3839
      %3965 = vmatpush1.bf16.msra.mxu0 %v3836
      %3966 = vmatprep.subr.bf16.mxu0 0
      %3967 = vmatpush1.bf16.msra.mxu0 0
      %3968 = vmatprep.subr.bf16.mxu0 0
      %3969 = vmatpush1.bf16.msra.mxu0 0
      %3970 = vmatprep.subr.bf16.mxu0 0
      %3971 = vmatpush1.bf16.msra.mxu0 0
      %3972 = vmatprep.subr.bf16.mxu0 0
      %3973 = vmatpush1.bf16.msra.mxu0 0
      %3974 = vmatprep.subr.bf16.mxu0 0
      %3975 = vmatpush1.bf16.msra.mxu0 0
      %3976 = vmatprep.subr.bf16.mxu0 0
      %3977 = vmatpush1.bf16.msra.mxu0 0
      %3978 = vmatprep.subr.bf16.mxu0 0
      %3979 = vmatpush1.bf16.msra.mxu0 0
      %3980 = vmatprep.subr.bf16.mxu0 0
      %3981 = vmatpush1.bf16.msra.mxu0 0
      %3982 = vmatprep.subr.bf16.mxu0 0
      %3983 = vmatpush1.bf16.msra.mxu0 0
      %3984 = vmatprep.subr.bf16.mxu0 0
      %3985 = vmatpush1.bf16.msra.mxu0 0
      %3986 = vmatprep.subr.bf16.mxu0 0
      %3987 = vmatpush1.bf16.msra.mxu0 0
      %3988 = vmatprep.subr.bf16.mxu0 0
      %3989 = vmatpush1.bf16.msra.mxu0 0
      %3990 = vmatprep.subr.bf16.mxu0 0
      %3991 = vmatpush1.bf16.msra.mxu0 0
      %3992 = vmatprep.subr.bf16.mxu0 0
      %3993 = vmatpush1.bf16.msra.mxu0 0
      %3994 = vmatprep.subr.bf16.mxu0 0
      %3995 = vmatpush1.bf16.msra.mxu0 0
      %3996 = vmatprep.mubr.bf16.mxu0 0
      %3997 = vmatmul.mubr.bf16.gmra.mrb[0].mxu0 %v3815
      %v3998 = vpop.f32.mrb[0].mxu0
      %v3999 = vadd.f32 0.0, %v3998
      %v4000 = vpop.f32.mrb[0].mxu0
      %v4001 = vadd.f32 0.0, %v4000
      %v4002 = vpop.f32.mrb[0].mxu0
      %v4003 = vpop.f32.mrb[0].mxu0
      %4004 = vdwg.mxu0
      %v4005 = vadd.f32 %v3780, %v3876
      %v4006 = vadd.f32 %v3781, %v3878
      %v4007 = vadd.f32 %v3782, %v3917
      %v4008 = vadd.f32 %v3783, %v3919
      %v4009 = vadd.f32 %v3784, %v3958
      %v4010 = vadd.f32 %v3785, %v3960
      %v4011 = vadd.f32 %v3786, %v3999
      %v4012 = vadd.f32 %v3787, %v4001
      %v4013 = vld [vmem:[%s1 + $0x80] sm:$0xff]
      %v4014 = vpack.c.bf16 %v4013, %v4013
      %4015 = vrot.lane.b32.xlu0 %v434, 31
      %v4016 = vpop.permute.xlu0 %4015
      %4017 = vrot.lane.b32.xlu0 %v435, 31
      %v4018 = vpop.permute.xlu0 %4017
      %4019 = vrot.lane.b32.xlu0 %v436, 31
      %v4020 = vpop.permute.xlu0 %4019
      %4021 = vrot.lane.b32.xlu0 %v437, 31
      %v4022 = vpop.permute.xlu0 %4021
      %4023 = vrot.lane.b32.xlu0 %v438, 31
      %v4024 = vpop.permute.xlu0 %4023
      %4025 = vrot.lane.b32.xlu0 %v439, 31
      %v4026 = vpop.permute.xlu0 %4025
      %4027 = vrot.lane.b32.xlu0 %v440, 31
      %v4028 = vpop.permute.xlu0 %4027
      %4029 = vrot.lane.b32.xlu0 %v441, 31
      %v4030 = vpop.permute.xlu0 %4029
      %vm4031 = vcmask 252928
      %v4032 = vsel %vm4031, %v4016, %v4018
      %v4033 = vsel %vm4031, %v4018, %v4020
      %v4034 = vsel %vm4031, %v4020, %v4022
      %v4035 = vsel %vm4031, %v4022, %v4024
      %v4036 = vsel %vm4031, %v4024, %v4026
      %v4037 = vsel %vm4031, %v4026, %v4028
      %v4038 = vsel %vm4031, %v4028, %v4030
      %v4040 = vsel %vm476, %v4014, 0
      %v4043 = vand.u32 %v4032, %v483
      %v4046 = vand.u32 %v4033, %v483
      %v4049 = vand.u32 %v4034, %v483
      %v4052 = vand.u32 %v4035, %v483
      %v4055 = vand.u32 %v4036, %v483
      %v4058 = vand.u32 %v4037, %v483
      %v4061 = vand.u32 %v4038, %v483
      %v4064 = vand.u32 %v4030, %v483
      %4066 = vmatprep.subr.bf16.mxu0 %v4046
      %4067 = vmatpush1.bf16.msra.mxu0 %v4043
      %4068 = vmatprep.subr.bf16.mxu0 0
      %4069 = vmatpush1.bf16.msra.mxu0 0
      %4070 = vmatprep.subr.bf16.mxu0 0
      %4071 = vmatpush1.bf16.msra.mxu0 0
      %4072 = vmatprep.subr.bf16.mxu0 0
      %4073 = vmatpush1.bf16.msra.mxu0 0
      %4074 = vmatprep.subr.bf16.mxu0 0
      %4075 = vmatpush1.bf16.msra.mxu0 0
      %4076 = vmatprep.subr.bf16.mxu0 0
      %4077 = vmatpush1.bf16.msra.mxu0 0
      %4078 = vmatprep.subr.bf16.mxu0 0
      %4079 = vmatpush1.bf16.msra.mxu0 0
      %4080 = vmatprep.subr.bf16.mxu0 0
      %4081 = vmatpush1.bf16.msra.mxu0 0
      %4082 = vmatprep.subr.bf16.mxu0 0
      %4083 = vmatpush1.bf16.msra.mxu0 0
      %4084 = vmatprep.subr.bf16.mxu0 0
      %4085 = vmatpush1.bf16.msra.mxu0 0
      %4086 = vmatprep.subr.bf16.mxu0 0
      %4087 = vmatpush1.bf16.msra.mxu0 0
      %4088 = vmatprep.subr.bf16.mxu0 0
      %4089 = vmatpush1.bf16.msra.mxu0 0
      %4090 = vmatprep.subr.bf16.mxu0 0
      %4091 = vmatpush1.bf16.msra.mxu0 0
      %4092 = vmatprep.subr.bf16.mxu0 0
      %4093 = vmatpush1.bf16.msra.mxu0 0
      %4094 = vmatprep.subr.bf16.mxu0 0
      %4095 = vmatpush1.bf16.msra.mxu0 0
      %4096 = vmatprep.subr.bf16.mxu0 0
      %4097 = vmatpush1.bf16.msra.mxu0 0
      %4098 = vmatprep.mubr.bf16.mxu0 0
      %4099 = vmatmul.mubr.bf16.gmra.mrb[0].mxu0 %v4040
      %v4100 = vpop.f32.mrb[0].mxu0
      %v4101 = vadd.f32 0.0, %v4100
      %v4102 = vpop.f32.mrb[0].mxu0
      %v4103 = vadd.f32 0.0, %v4102
      %v4104 = vpop.f32.mrb[0].mxu0
      %v4105 = vpop.f32.mrb[0].mxu0
      %4106 = vdwg.mxu0
      %4107 = vmatprep.subr.bf16.mxu0 %v4052
      %4108 = vmatpush1.bf16.msra.mxu0 %v4049
      %4109 = vmatprep.subr.bf16.mxu0 0
      %4110 = vmatpush1.bf16.msra.mxu0 0
      %4111 = vmatprep.subr.bf16.mxu0 0
      %4112 = vmatpush1.bf16.msra.mxu0 0
      %4113 = vmatprep.subr.bf16.mxu0 0
      %4114 = vmatpush1.bf16.msra.mxu0 0
      %4115 = vmatprep.subr.bf16.mxu0 0
      %4116 = vmatpush1.bf16.msra.mxu0 0
      %4117 = vmatprep.subr.bf16.mxu0 0
      %4118 = vmatpush1.bf16.msra.mxu0 0
      %4119 = vmatprep.subr.bf16.mxu0 0
      %4120 = vmatpush1.bf16.msra.mxu0 0
      %4121 = vmatprep.subr.bf16.mxu0 0
      %4122 = vmatpush1.bf16.msra.mxu0 0
      %4123 = vmatprep.subr.bf16.mxu0 0
      %4124 = vmatpush1.bf16.msra.mxu0 0
      %4125 = vmatprep.subr.bf16.mxu0 0
      %4126 = vmatpush1.bf16.msra.mxu0 0
      %4127 = vmatprep.subr.bf16.mxu0 0
      %4128 = vmatpush1.bf16.msra.mxu0 0
      %4129 = vmatprep.subr.bf16.mxu0 0
      %4130 = vmatpush1.bf16.msra.mxu0 0
      %4131 = vmatprep.subr.bf16.mxu0 0
      %4132 = vmatpush1.bf16.msra.mxu0 0
      %4133 = vmatprep.subr.bf16.mxu0 0
      %4134 = vmatpush1.bf16.msra.mxu0 0
      %4135 = vmatprep.subr.bf16.mxu0 0
      %4136 = vmatpush1.bf16.msra.mxu0 0
      %4137 = vmatprep.subr.bf16.mxu0 0
      %4138 = vmatpush1.bf16.msra.mxu0 0
      %4139 = vmatprep.mubr.bf16.mxu0 0
      %4140 = vmatmul.mubr.bf16.gmra.mrb[0].mxu0 %v4040
      %v4141 = vpop.f32.mrb[0].mxu0
      %v4142 = vadd.f32 0.0, %v4141
      %v4143 = vpop.f32.mrb[0].mxu0
      %v4144 = vadd.f32 0.0, %v4143
      %v4145 = vpop.f32.mrb[0].mxu0
      %v4146 = vpop.f32.mrb[0].mxu0
      %4147 = vdwg.mxu0
      %4148 = vmatprep.subr.bf16.mxu0 %v4058
      %4149 = vmatpush1.bf16.msra.mxu0 %v4055
      %4150 = vmatprep.subr.bf16.mxu0 0
      %4151 = vmatpush1.bf16.msra.mxu0 0
      %4152 = vmatprep.subr.bf16.mxu0 0
      %4153 = vmatpush1.bf16.msra.mxu0 0
      %4154 = vmatprep.subr.bf16.mxu0 0
      %4155 = vmatpush1.bf16.msra.mxu0 0
      %4156 = vmatprep.subr.bf16.mxu0 0
      %4157 = vmatpush1.bf16.msra.mxu0 0
      %4158 = vmatprep.subr.bf16.mxu0 0
      %4159 = vmatpush1.bf16.msra.mxu0 0
      %4160 = vmatprep.subr.bf16.mxu0 0
      %4161 = vmatpush1.bf16.msra.mxu0 0
      %4162 = vmatprep.subr.bf16.mxu0 0
      %4163 = vmatpush1.bf16.msra.mxu0 0
      %4164 = vmatprep.subr.bf16.mxu0 0
      %4165 = vmatpush1.bf16.msra.mxu0 0
      %4166 = vmatprep.subr.bf16.mxu0 0
      %4167 = vmatpush1.bf16.msra.mxu0 0
      %4168 = vmatprep.subr.bf16.mxu0 0
      %4169 = vmatpush1.bf16.msra.mxu0 0
      %4170 = vmatprep.subr.bf16.mxu0 0
      %4171 = vmatpush1.bf16.msra.mxu0 0
      %4172 = vmatprep.subr.bf16.mxu0 0
      %4173 = vmatpush1.bf16.msra.mxu0 0
      %4174 = vmatprep.subr.bf16.mxu0 0
      %4175 = vmatpush1.bf16.msra.mxu0 0
      %4176 = vmatprep.subr.bf16.mxu0 0
      %4177 = vmatpush1.bf16.msra.mxu0 0
      %4178 = vmatprep.subr.bf16.mxu0 0
      %4179 = vmatpush1.bf16.msra.mxu0 0
      %4180 = vmatprep.mubr.bf16.mxu0 0
      %4181 = vmatmul.mubr.bf16.gmra.mrb[0].mxu0 %v4040
      %v4182 = vpop.f32.mrb[0].mxu0
      %v4183 = vadd.f32 0.0, %v4182
      %v4184 = vpop.f32.mrb[0].mxu0
      %v4185 = vadd.f32 0.0, %v4184
      %v4186 = vpop.f32.mrb[0].mxu0
      %v4187 = vpop.f32.mrb[0].mxu0
      %4188 = vdwg.mxu0
      %4189 = vmatprep.subr.bf16.mxu0 %v4064
      %4190 = vmatpush1.bf16.msra.mxu0 %v4061
      %4191 = vmatprep.subr.bf16.mxu0 0
      %4192 = vmatpush1.bf16.msra.mxu0 0
      %4193 = vmatprep.subr.bf16.mxu0 0
      %4194 = vmatpush1.bf16.msra.mxu0 0
      %4195 = vmatprep.subr.bf16.mxu0 0
      %4196 = vmatpush1.bf16.msra.mxu0 0
      %4197 = vmatprep.subr.bf16.mxu0 0
      %4198 = vmatpush1.bf16.msra.mxu0 0
      %4199 = vmatprep.subr.bf16.mxu0 0
      %4200 = vmatpush1.bf16.msra.mxu0 0
      %4201 = vmatprep.subr.bf16.mxu0 0
      %4202 = vmatpush1.bf16.msra.mxu0 0
      %4203 = vmatprep.subr.bf16.mxu0 0
      %4204 = vmatpush1.bf16.msra.mxu0 0
      %4205 = vmatprep.subr.bf16.mxu0 0
      %4206 = vmatpush1.bf16.msra.mxu0 0
      %4207 = vmatprep.subr.bf16.mxu0 0
      %4208 = vmatpush1.bf16.msra.mxu0 0
      %4209 = vmatprep.subr.bf16.mxu0 0
      %4210 = vmatpush1.bf16.msra.mxu0 0
      %4211 = vmatprep.subr.bf16.mxu0 0
      %4212 = vmatpush1.bf16.msra.mxu0 0
      %4213 = vmatprep.subr.bf16.mxu0 0
      %4214 = vmatpush1.bf16.msra.mxu0 0
      %4215 = vmatprep.subr.bf16.mxu0 0
      %4216 = vmatpush1.bf16.msra.mxu0 0
      %4217 = vmatprep.subr.bf16.mxu0 0
      %4218 = vmatpush1.bf16.msra.mxu0 0
      %4219 = vmatprep.subr.bf16.mxu0 0
      %4220 = vmatpush1.bf16.msra.mxu0 0
      %4221 = vmatprep.mubr.bf16.mxu0 0
      %4222 = vmatmul.mubr.bf16.gmra.mrb[0].mxu0 %v4040
      %v4223 = vpop.f32.mrb[0].mxu0
      %v4224 = vadd.f32 0.0, %v4223
      %v4225 = vpop.f32.mrb[0].mxu0
      %v4226 = vadd.f32 0.0, %v4225
      %v4227 = vpop.f32.mrb[0].mxu0
      %v4228 = vpop.f32.mrb[0].mxu0
      %4229 = vdwg.mxu0
      %v4230 = vadd.f32 %v4005, %v4101
      %v4231 = vadd.f32 %v4006, %v4103
      %v4232 = vadd.f32 %v4007, %v4142
      %v4233 = vadd.f32 %v4008, %v4144
      %v4234 = vadd.f32 %v4009, %v4183
      %v4235 = vadd.f32 %v4010, %v4185
      %v4236 = vadd.f32 %v4011, %v4224
      %v4237 = vadd.f32 %v4012, %v4226
      %v4238 = vld [vmem:[%s1 + $0x88] sm:$0xff]
      %v4239 = vpack.c.bf16 %v4238, %v4238
      %4240 = vrot.lane.b32.xlu0 %v434, 30
      %v4241 = vpop.permute.xlu0 %4240
      %4242 = vrot.lane.b32.xlu0 %v435, 30
      %v4243 = vpop.permute.xlu0 %4242
      %4244 = vrot.lane.b32.xlu0 %v436, 30
      %v4245 = vpop.permute.xlu0 %4244
      %4246 = vrot.lane.b32.xlu0 %v437, 30
      %v4247 = vpop.permute.xlu0 %4246
      %4248 = vrot.lane.b32.xlu0 %v438, 30
      %v4249 = vpop.permute.xlu0 %4248
      %4250 = vrot.lane.b32.xlu0 %v439, 30
      %v4251 = vpop.permute.xlu0 %4250
      %4252 = vrot.lane.b32.xlu0 %v440, 30
      %v4253 = vpop.permute.xlu0 %4252
      %4254 = vrot.lane.b32.xlu0 %v441, 30
      %v4255 = vpop.permute.xlu0 %4254
      %vm4256 = vcmask 244736
      %v4257 = vsel %vm4256, %v4241, %v4243
      %v4258 = vsel %vm4256, %v4243, %v4245
      %v4259 = vsel %vm4256, %v4245, %v4247
      %v4260 = vsel %vm4256, %v4247, %v4249
      %v4261 = vsel %vm4256, %v4249, %v4251
      %v4262 = vsel %vm4256, %v4251, %v4253
      %v4263 = vsel %vm4256, %v4253, %v4255
      %v4265 = vsel %vm476, %v4239, 0
      %v4268 = vand.u32 %v4257, %v483
      %v4271 = vand.u32 %v4258, %v483
      %v4274 = vand.u32 %v4259, %v483
      %v4277 = vand.u32 %v4260, %v483
      %v4280 = vand.u32 %v4261, %v483
      %v4283 = vand.u32 %v4262, %v483
      %v4286 = vand.u32 %v4263, %v483
      %v4289 = vand.u32 %v4255, %v483
      %4291 = vmatprep.subr.bf16.mxu0 %v4271
      %4292 = vmatpush1.bf16.msra.mxu0 %v4268
      %4293 = vmatprep.subr.bf16.mxu0 0
      %4294 = vmatpush1.bf16.msra.mxu0 0
      %4295 = vmatprep.subr.bf16.mxu0 0
      %4296 = vmatpush1.bf16.msra.mxu0 0
      %4297 = vmatprep.subr.bf16.mxu0 0
      %4298 = vmatpush1.bf16.msra.mxu0 0
      %4299 = vmatprep.subr.bf16.mxu0 0
      %4300 = vmatpush1.bf16.msra.mxu0 0
      %4301 = vmatprep.subr.bf16.mxu0 0
      %4302 = vmatpush1.bf16.msra.mxu0 0
      %4303 = vmatprep.subr.bf16.mxu0 0
      %4304 = vmatpush1.bf16.msra.mxu0 0
      %4305 = vmatprep.subr.bf16.mxu0 0
      %4306 = vmatpush1.bf16.msra.mxu0 0
      %4307 = vmatprep.subr.bf16.mxu0 0
      %4308 = vmatpush1.bf16.msra.mxu0 0
      %4309 = vmatprep.subr.bf16.mxu0 0
      %4310 = vmatpush1.bf16.msra.mxu0 0
      %4311 = vmatprep.subr.bf16.mxu0 0
      %4312 = vmatpush1.bf16.msra.mxu0 0
      %4313 = vmatprep.subr.bf16.mxu0 0
      %4314 = vmatpush1.bf16.msra.mxu0 0
      %4315 = vmatprep.subr.bf16.mxu0 0
      %4316 = vmatpush1.bf16.msra.mxu0 0
      %4317 = vmatprep.subr.bf16.mxu0 0
      %4318 = vmatpush1.bf16.msra.mxu0 0
      %4319 = vmatprep.subr.bf16.mxu0 0
      %4320 = vmatpush1.bf16.msra.mxu0 0
      %4321 = vmatprep.subr.bf16.mxu0 0
      %4322 = vmatpush1.bf16.msra.mxu0 0
      %4323 = vmatprep.mubr.bf16.mxu0 0
      %4324 = vmatmul.mubr.bf16.gmra.mrb[0].mxu0 %v4265
      %v4325 = vpop.f32.mrb[0].mxu0
      %v4326 = vadd.f32 0.0, %v4325
      %v4327 = vpop.f32.mrb[0].mxu0
      %v4328 = vadd.f32 0.0, %v4327
      %v4329 = vpop.f32.mrb[0].mxu0
      %v4330 = vpop.f32.mrb[0].mxu0
      %4331 = vdwg.mxu0
      %4332 = vmatprep.subr.bf16.mxu0 %v4277
      %4333 = vmatpush1.bf16.msra.mxu0 %v4274
      %4334 = vmatprep.subr.bf16.mxu0 0
      %4335 = vmatpush1.bf16.msra.mxu0 0
      %4336 = vmatprep.subr.bf16.mxu0 0
      %4337 = vmatpush1.bf16.msra.mxu0 0
      %4338 = vmatprep.subr.bf16.mxu0 0
      %4339 = vmatpush1.bf16.msra.mxu0 0
      %4340 = vmatprep.subr.bf16.mxu0 0
      %4341 = vmatpush1.bf16.msra.mxu0 0
      %4342 = vmatprep.subr.bf16.mxu0 0
      %4343 = vmatpush1.bf16.msra.mxu0 0
      %4344 = vmatprep.subr.bf16.mxu0 0
      %4345 = vmatpush1.bf16.msra.mxu0 0
      %4346 = vmatprep.subr.bf16.mxu0 0
      %4347 = vmatpush1.bf16.msra.mxu0 0
      %4348 = vmatprep.subr.bf16.mxu0 0
      %4349 = vmatpush1.bf16.msra.mxu0 0
      %4350 = vmatprep.subr.bf16.mxu0 0
      %4351 = vmatpush1.bf16.msra.mxu0 0
      %4352 = vmatprep.subr.bf16.mxu0 0
      %4353 = vmatpush1.bf16.msra.mxu0 0
      %4354 = vmatprep.subr.bf16.mxu0 0
      %4355 = vmatpush1.bf16.msra.mxu0 0
      %4356 = vmatprep.subr.bf16.mxu0 0
      %4357 = vmatpush1.bf16.msra.mxu0 0
      %4358 = vmatprep.subr.bf16.mxu0 0
      %4359 = vmatpush1.bf16.msra.mxu0 0
      %4360 = vmatprep.subr.bf16.mxu0 0
      %4361 = vmatpush1.bf16.msra.mxu0 0
      %4362 = vmatprep.subr.bf16.mxu0 0
      %4363 = vmatpush1.bf16.msra.mxu0 0
      %4364 = vmatprep.mubr.bf16.mxu0 0
      %4365 = vmatmul.mubr.bf16.gmra.mrb[0].mxu0 %v4265
      %v4366 = vpop.f32.mrb[0].mxu0
      %v4367 = vadd.f32 0.0, %v4366
      %v4368 = vpop.f32.mrb[0].mxu0
      %v4369 = vadd.f32 0.0, %v4368
      %v4370 = vpop.f32.mrb[0].mxu0
      %v4371 = vpop.f32.mrb[0].mxu0
      %4372 = vdwg.mxu0
      %4373 = vmatprep.subr.bf16.mxu0 %v4283
      %4374 = vmatpush1.bf16.msra.mxu0 %v4280
      %4375 = vmatprep.subr.bf16.mxu0 0
      %4376 = vmatpush1.bf16.msra.mxu0 0
      %4377 = vmatprep.subr.bf16.mxu0 0
      %4378 = vmatpush1.bf16.msra.mxu0 0
      %4379 = vmatprep.subr.bf16.mxu0 0
      %4380 = vmatpush1.bf16.msra.mxu0 0
      %4381 = vmatprep.subr.bf16.mxu0 0
      %4382 = vmatpush1.bf16.msra.mxu0 0
      %4383 = vmatprep.subr.bf16.mxu0 0
      %4384 = vmatpush1.bf16.msra.mxu0 0
      %4385 = vmatprep.subr.bf16.mxu0 0
      %4386 = vmatpush1.bf16.msra.mxu0 0
      %4387 = vmatprep.subr.bf16.mxu0 0
      %4388 = vmatpush1.bf16.msra.mxu0 0
      %4389 = vmatprep.subr.bf16.mxu0 0
      %4390 = vmatpush1.bf16.msra.mxu0 0
      %4391 = vmatprep.subr.bf16.mxu0 0
      %4392 = vmatpush1.bf16.msra.mxu0 0
      %4393 = vmatprep.subr.bf16.mxu0 0
      %4394 = vmatpush1.bf16.msra.mxu0 0
      %4395 = vmatprep.subr.bf16.mxu0 0
      %4396 = vmatpush1.bf16.msra.mxu0 0
      %4397 = vmatprep.subr.bf16.mxu0 0
      %4398 = vmatpush1.bf16.msra.mxu0 0
      %4399 = vmatprep.subr.bf16.mxu0 0
      %4400 = vmatpush1.bf16.msra.mxu0 0
      %4401 = vmatprep.subr.bf16.mxu0 0
      %4402 = vmatpush1.bf16.msra.mxu0 0
      %4403 = vmatprep.subr.bf16.mxu0 0
      %4404 = vmatpush1.bf16.msra.mxu0 0
      %4405 = vmatprep.mubr.bf16.mxu0 0
      %4406 = vmatmul.mubr.bf16.gmra.mrb[0].mxu0 %v4265
      %v4407 = vpop.f32.mrb[0].mxu0
      %v4408 = vadd.f32 0.0, %v4407
      %v4409 = vpop.f32.mrb[0].mxu0
      %v4410 = vadd.f32 0.0, %v4409
      %v4411 = vpop.f32.mrb[0].mxu0
      %v4412 = vpop.f32.mrb[0].mxu0
      %4413 = vdwg.mxu0
      %4414 = vmatprep.subr.bf16.mxu0 %v4289
      %4415 = vmatpush1.bf16.msra.mxu0 %v4286
      %4416 = vmatprep.subr.bf16.mxu0 0
      %4417 = vmatpush1.bf16.msra.mxu0 0
      %4418 = vmatprep.subr.bf16.mxu0 0
      %4419 = vmatpush1.bf16.msra.mxu0 0
      %4420 = vmatprep.subr.bf16.mxu0 0
      %4421 = vmatpush1.bf16.msra.mxu0 0
      %4422 = vmatprep.subr.bf16.mxu0 0
      %4423 = vmatpush1.bf16.msra.mxu0 0
      %4424 = vmatprep.subr.bf16.mxu0 0
      %4425 = vmatpush1.bf16.msra.mxu0 0
      %4426 = vmatprep.subr.bf16.mxu0 0
      %4427 = vmatpush1.bf16.msra.mxu0 0
      %4428 = vmatprep.subr.bf16.mxu0 0
      %4429 = vmatpush1.bf16.msra.mxu0 0
      %4430 = vmatprep.subr.bf16.mxu0 0
      %4431 = vmatpush1.bf16.msra.mxu0 0
      %4432 = vmatprep.subr.bf16.mxu0 0
      %4433 = vmatpush1.bf16.msra.mxu0 0
      %4434 = vmatprep.subr.bf16.mxu0 0
      %4435 = vmatpush1.bf16.msra.mxu0 0
      %4436 = vmatprep.subr.bf16.mxu0 0
      %4437 = vmatpush1.bf16.msra.mxu0 0
      %4438 = vmatprep.subr.bf16.mxu0 0
      %4439 = vmatpush1.bf16.msra.mxu0 0
      %4440 = vmatprep.subr.bf16.mxu0 0
      %4441 = vmatpush1.bf16.msra.mxu0 0
      %4442 = vmatprep.subr.bf16.mxu0 0
      %4443 = vmatpush1.bf16.msra.mxu0 0
      %4444 = vmatprep.subr.bf16.mxu0 0
      %4445 = vmatpush1.bf16.msra.mxu0 0
      %4446 = vmatprep.mubr.bf16.mxu0 0
      %4447 = vmatmul.mubr.bf16.gmra.mrb[0].mxu0 %v4265
      %v4448 = vpop.f32.mrb[0].mxu0
      %v4449 = vadd.f32 0.0, %v4448
      %v4450 = vpop.f32.mrb[0].mxu0
      %v4451 = vadd.f32 0.0, %v4450
      %v4452 = vpop.f32.mrb[0].mxu0
      %v4453 = vpop.f32.mrb[0].mxu0
      %4454 = vdwg.mxu0
      %v4455 = vadd.f32 %v4230, %v4326
      %v4456 = vadd.f32 %v4231, %v4328
      %v4457 = vadd.f32 %v4232, %v4367
      %v4458 = vadd.f32 %v4233, %v4369
      %v4459 = vadd.f32 %v4234, %v4408
      %v4460 = vadd.f32 %v4235, %v4410
      %v4461 = vadd.f32 %v4236, %v4449
      %v4462 = vadd.f32 %v4237, %v4451
      %v4463 = vld [vmem:[%s1 + $0x90] sm:$0xff]
      %v4464 = vpack.c.bf16 %v4463, %v4463
      %4465 = vrot.lane.b32.xlu0 %v434, 29
      %v4466 = vpop.permute.xlu0 %4465
      %4467 = vrot.lane.b32.xlu0 %v435, 29
      %v4468 = vpop.permute.xlu0 %4467
      %4469 = vrot.lane.b32.xlu0 %v436, 29
      %v4470 = vpop.permute.xlu0 %4469
      %4471 = vrot.lane.b32.xlu0 %v437, 29
      %v4472 = vpop.permute.xlu0 %4471
      %4473 = vrot.lane.b32.xlu0 %v438, 29
      %v4474 = vpop.permute.xlu0 %4473
      %4475 = vrot.lane.b32.xlu0 %v439, 29
      %v4476 = vpop.permute.xlu0 %4475
      %4477 = vrot.lane.b32.xlu0 %v440, 29
      %v4478 = vpop.permute.xlu0 %4477
      %4479 = vrot.lane.b32.xlu0 %v441, 29
      %v4480 = vpop.permute.xlu0 %4479
      %vm4481 = vcmask 236544
      %v4482 = vsel %vm4481, %v4466, %v4468
      %v4483 = vsel %vm4481, %v4468, %v4470
      %v4484 = vsel %vm4481, %v4470, %v4472
      %v4485 = vsel %vm4481, %v4472, %v4474
      %v4486 = vsel %vm4481, %v4474, %v4476
      %v4487 = vsel %vm4481, %v4476, %v4478
      %v4488 = vsel %vm4481, %v4478, %v4480
      %v4490 = vsel %vm476, %v4464, 0
      %v4493 = vand.u32 %v4482, %v483
      %v4496 = vand.u32 %v4483, %v483
      %v4499 = vand.u32 %v4484, %v483
      %v4502 = vand.u32 %v4485, %v483
      %v4505 = vand.u32 %v4486, %v483
      %v4508 = vand.u32 %v4487, %v483
      %v4511 = vand.u32 %v4488, %v483
      %v4514 = vand.u32 %v4480, %v483
      %4516 = vmatprep.subr.bf16.mxu0 %v4496
      %4517 = vmatpush1.bf16.msra.mxu0 %v4493
      %4518 = vmatprep.subr.bf16.mxu0 0
      %4519 = vmatpush1.bf16.msra.mxu0 0
      %4520 = vmatprep.subr.bf16.mxu0 0
      %4521 = vmatpush1.bf16.msra.mxu0 0
      %4522 = vmatprep.subr.bf16.mxu0 0
      %4523 = vmatpush1.bf16.msra.mxu0 0
      %4524 = vmatprep.subr.bf16.mxu0 0
      %4525 = vmatpush1.bf16.msra.mxu0 0
      %4526 = vmatprep.subr.bf16.mxu0 0
      %4527 = vmatpush1.bf16.msra.mxu0 0
      %4528 = vmatprep.subr.bf16.mxu0 0
      %4529 = vmatpush1.bf16.msra.mxu0 0
      %4530 = vmatprep.subr.bf16.mxu0 0
      %4531 = vmatpush1.bf16.msra.mxu0 0
      %4532 = vmatprep.subr.bf16.mxu0 0
      %4533 = vmatpush1.bf16.msra.mxu0 0
      %4534 = vmatprep.subr.bf16.mxu0 0
      %4535 = vmatpush1.bf16.msra.mxu0 0
      %4536 = vmatprep.subr.bf16.mxu0 0
      %4537 = vmatpush1.bf16.msra.mxu0 0
      %4538 = vmatprep.subr.bf16.mxu0 0
      %4539 = vmatpush1.bf16.msra.mxu0 0
      %4540 = vmatprep.subr.bf16.mxu0 0
      %4541 = vmatpush1.bf16.msra.mxu0 0
      %4542 = vmatprep.subr.bf16.mxu0 0
      %4543 = vmatpush1.bf16.msra.mxu0 0
      %4544 = vmatprep.subr.bf16.mxu0 0
      %4545 = vmatpush1.bf16.msra.mxu0 0
      %4546 = vmatprep.subr.bf16.mxu0 0
      %4547 = vmatpush1.bf16.msra.mxu0 0
      %4548 = vmatprep.mubr.bf16.mxu0 0
      %4549 = vmatmul.mubr.bf16.gmra.mrb[0].mxu0 %v4490
      %v4550 = vpop.f32.mrb[0].mxu0
      %v4551 = vadd.f32 0.0, %v4550
      %v4552 = vpop.f32.mrb[0].mxu0
      %v4553 = vadd.f32 0.0, %v4552
      %v4554 = vpop.f32.mrb[0].mxu0
      %v4555 = vpop.f32.mrb[0].mxu0
      %4556 = vdwg.mxu0
      %4557 = vmatprep.subr.bf16.mxu0 %v4502
      %4558 = vmatpush1.bf16.msra.mxu0 %v4499
      %4559 = vmatprep.subr.bf16.mxu0 0
      %4560 = vmatpush1.bf16.msra.mxu0 0
      %4561 = vmatprep.subr.bf16.mxu0 0
      %4562 = vmatpush1.bf16.msra.mxu0 0
      %4563 = vmatprep.subr.bf16.mxu0 0
      %4564 = vmatpush1.bf16.msra.mxu0 0
      %4565 = vmatprep.subr.bf16.mxu0 0
      %4566 = vmatpush1.bf16.msra.mxu0 0
      %4567 = vmatprep.subr.bf16.mxu0 0
      %4568 = vmatpush1.bf16.msra.mxu0 0
      %4569 = vmatprep.subr.bf16.mxu0 0
      %4570 = vmatpush1.bf16.msra.mxu0 0
      %4571 = vmatprep.subr.bf16.mxu0 0
      %4572 = vmatpush1.bf16.msra.mxu0 0
      %4573 = vmatprep.subr.bf16.mxu0 0
      %4574 = vmatpush1.bf16.msra.mxu0 0
      %4575 = vmatprep.subr.bf16.mxu0 0
      %4576 = vmatpush1.bf16.msra.mxu0 0
      %4577 = vmatprep.subr.bf16.mxu0 0
      %4578 = vmatpush1.bf16.msra.mxu0 0
      %4579 = vmatprep.subr.bf16.mxu0 0
      %4580 = vmatpush1.bf16.msra.mxu0 0
      %4581 = vmatprep.subr.bf16.mxu0 0
      %4582 = vmatpush1.bf16.msra.mxu0 0
      %4583 = vmatprep.subr.bf16.mxu0 0
      %4584 = vmatpush1.bf16.msra.mxu0 0
      %4585 = vmatprep.subr.bf16.mxu0 0
      %4586 = vmatpush1.bf16.msra.mxu0 0
      %4587 = vmatprep.subr.bf16.mxu0 0
      %4588 = vmatpush1.bf16.msra.mxu0 0
      %4589 = vmatprep.mubr.bf16.mxu0 0
      %4590 = vmatmul.mubr.bf16.gmra.mrb[0].mxu0 %v4490
      %v4591 = vpop.f32.mrb[0].mxu0
      %v4592 = vadd.f32 0.0, %v4591
      %v4593 = vpop.f32.mrb[0].mxu0
      %v4594 = vadd.f32 0.0, %v4593
      %v4595 = vpop.f32.mrb[0].mxu0
      %v4596 = vpop.f32.mrb[0].mxu0
      %4597 = vdwg.mxu0
      %4598 = vmatprep.subr.bf16.mxu0 %v4508
      %4599 = vmatpush1.bf16.msra.mxu0 %v4505
      %4600 = vmatprep.subr.bf16.mxu0 0
      %4601 = vmatpush1.bf16.msra.mxu0 0
      %4602 = vmatprep.subr.bf16.mxu0 0
      %4603 = vmatpush1.bf16.msra.mxu0 0
      %4604 = vmatprep.subr.bf16.mxu0 0
      %4605 = vmatpush1.bf16.msra.mxu0 0
      %4606 = vmatprep.subr.bf16.mxu0 0
      %4607 = vmatpush1.bf16.msra.mxu0 0
      %4608 = vmatprep.subr.bf16.mxu0 0
      %4609 = vmatpush1.bf16.msra.mxu0 0
      %4610 = vmatprep.subr.bf16.mxu0 0
      %4611 = vmatpush1.bf16.msra.mxu0 0
      %4612 = vmatprep.subr.bf16.mxu0 0
      %4613 = vmatpush1.bf16.msra.mxu0 0
      %4614 = vmatprep.subr.bf16.mxu0 0
      %4615 = vmatpush1.bf16.msra.mxu0 0
      %4616 = vmatprep.subr.bf16.mxu0 0
      %4617 = vmatpush1.bf16.msra.mxu0 0
      %4618 = vmatprep.subr.bf16.mxu0 0
      %4619 = vmatpush1.bf16.msra.mxu0 0
      %4620 = vmatprep.subr.bf16.mxu0 0
      %4621 = vmatpush1.bf16.msra.mxu0 0
      %4622 = vmatprep.subr.bf16.mxu0 0
      %4623 = vmatpush1.bf16.msra.mxu0 0
      %4624 = vmatprep.subr.bf16.mxu0 0
      %4625 = vmatpush1.bf16.msra.mxu0 0
      %4626 = vmatprep.subr.bf16.mxu0 0
      %4627 = vmatpush1.bf16.msra.mxu0 0
      %4628 = vmatprep.subr.bf16.mxu0 0
      %4629 = vmatpush1.bf16.msra.mxu0 0
      %4630 = vmatprep.mubr.bf16.mxu0 0
      %4631 = vmatmul.mubr.bf16.gmra.mrb[0].mxu0 %v4490
      %v4632 = vpop.f32.mrb[0].mxu0
      %v4633 = vadd.f32 0.0, %v4632
      %v4634 = vpop.f32.mrb[0].mxu0
      %v4635 = vadd.f32 0.0, %v4634
      %v4636 = vpop.f32.mrb[0].mxu0
      %v4637 = vpop.f32.mrb[0].mxu0
      %4638 = vdwg.mxu0
      %4639 = vmatprep.subr.bf16.mxu0 %v4514
      %4640 = vmatpush1.bf16.msra.mxu0 %v4511
      %4641 = vmatprep.subr.bf16.mxu0 0
      %4642 = vmatpush1.bf16.msra.mxu0 0
      %4643 = vmatprep.subr.bf16.mxu0 0
      %4644 = vmatpush1.bf16.msra.mxu0 0
      %4645 = vmatprep.subr.bf16.mxu0 0
      %4646 = vmatpush1.bf16.msra.mxu0 0
      %4647 = vmatprep.subr.bf16.mxu0 0
      %4648 = vmatpush1.bf16.msra.mxu0 0
      %4649 = vmatprep.subr.bf16.mxu0 0
      %4650 = vmatpush1.bf16.msra.mxu0 0
      %4651 = vmatprep.subr.bf16.mxu0 0
      %4652 = vmatpush1.bf16.msra.mxu0 0
      %4653 = vmatprep.subr.bf16.mxu0 0
      %4654 = vmatpush1.bf16.msra.mxu0 0
      %4655 = vmatprep.subr.bf16.mxu0 0
      %4656 = vmatpush1.bf16.msra.mxu0 0
      %4657 = vmatprep.subr.bf16.mxu0 0
      %4658 = vmatpush1.bf16.msra.mxu0 0
      %4659 = vmatprep.subr.bf16.mxu0 0
      %4660 = vmatpush1.bf16.msra.mxu0 0
      %4661 = vmatprep.subr.bf16.mxu0 0
      %4662 = vmatpush1.bf16.msra.mxu0 0
      %4663 = vmatprep.subr.bf16.mxu0 0
      %4664 = vmatpush1.bf16.msra.mxu0 0
      %4665 = vmatprep.subr.bf16.mxu0 0
      %4666 = vmatpush1.bf16.msra.mxu0 0
      %4667 = vmatprep.subr.bf16.mxu0 0
      %4668 = vmatpush1.bf16.msra.mxu0 0
      %4669 = vmatprep.subr.bf16.mxu0 0
      %4670 = vmatpush1.bf16.msra.mxu0 0
      %4671 = vmatprep.mubr.bf16.mxu0 0
      %4672 = vmatmul.mubr.bf16.gmra.mrb[0].mxu0 %v4490
      %v4673 = vpop.f32.mrb[0].mxu0
      %v4674 = vadd.f32 0.0, %v4673
      %v4675 = vpop.f32.mrb[0].mxu0
      %v4676 = vadd.f32 0.0, %v4675
      %v4677 = vpop.f32.mrb[0].mxu0
      %v4678 = vpop.f32.mrb[0].mxu0
      %4679 = vdwg.mxu0
      %v4680 = vadd.f32 %v4455, %v4551
      %v4681 = vadd.f32 %v4456, %v4553
      %v4682 = vadd.f32 %v4457, %v4592
      %v4683 = vadd.f32 %v4458, %v4594
      %v4684 = vadd.f32 %v4459, %v4633
      %v4685 = vadd.f32 %v4460, %v4635
      %v4686 = vadd.f32 %v4461, %v4674
      %v4687 = vadd.f32 %v4462, %v4676
      %v4688 = vld [vmem:[%s1 + $0x98] sm:$0xff]
      %v4689 = vpack.c.bf16 %v4688, %v4688
      %4690 = vrot.lane.b32.xlu0 %v434, 28
      %v4691 = vpop.permute.xlu0 %4690
      %4692 = vrot.lane.b32.xlu0 %v435, 28
      %v4693 = vpop.permute.xlu0 %4692
      %4694 = vrot.lane.b32.xlu0 %v436, 28
      %v4695 = vpop.permute.xlu0 %4694
      %4696 = vrot.lane.b32.xlu0 %v437, 28
      %v4697 = vpop.permute.xlu0 %4696
      %4698 = vrot.lane.b32.xlu0 %v438, 28
      %v4699 = vpop.permute.xlu0 %4698
      %4700 = vrot.lane.b32.xlu0 %v439, 28
      %v4701 = vpop.permute.xlu0 %4700
      %4702 = vrot.lane.b32.xlu0 %v440, 28
      %v4703 = vpop.permute.xlu0 %4702
      %4704 = vrot.lane.b32.xlu0 %v441, 28
      %v4705 = vpop.permute.xlu0 %4704
      %vm4706 = vcmask 228352
      %v4707 = vsel %vm4706, %v4691, %v4693
      %v4708 = vsel %vm4706, %v4693, %v4695
      %v4709 = vsel %vm4706, %v4695, %v4697
      %v4710 = vsel %vm4706, %v4697, %v4699
      %v4711 = vsel %vm4706, %v4699, %v4701
      %v4712 = vsel %vm4706, %v4701, %v4703
      %v4713 = vsel %vm4706, %v4703, %v4705
      %v4715 = vsel %vm476, %v4689, 0
      %v4718 = vand.u32 %v4707, %v483
      %v4721 = vand.u32 %v4708, %v483
      %v4724 = vand.u32 %v4709, %v483
      %v4727 = vand.u32 %v4710, %v483
      %v4730 = vand.u32 %v4711, %v483
      %v4733 = vand.u32 %v4712, %v483
      %v4736 = vand.u32 %v4713, %v483
      %v4739 = vand.u32 %v4705, %v483
      %4741 = vmatprep.subr.bf16.mxu0 %v4721
      %4742 = vmatpush1.bf16.msra.mxu0 %v4718
      %4743 = vmatprep.subr.bf16.mxu0 0
      %4744 = vmatpush1.bf16.msra.mxu0 0
      %4745 = vmatprep.subr.bf16.mxu0 0
      %4746 = vmatpush1.bf16.msra.mxu0 0
      %4747 = vmatprep.subr.bf16.mxu0 0
      %4748 = vmatpush1.bf16.msra.mxu0 0
      %4749 = vmatprep.subr.bf16.mxu0 0
      %4750 = vmatpush1.bf16.msra.mxu0 0
      %4751 = vmatprep.subr.bf16.mxu0 0
      %4752 = vmatpush1.bf16.msra.mxu0 0
      %4753 = vmatprep.subr.bf16.mxu0 0
      %4754 = vmatpush1.bf16.msra.mxu0 0
      %4755 = vmatprep.subr.bf16.mxu0 0
      %4756 = vmatpush1.bf16.msra.mxu0 0
      %4757 = vmatprep.subr.bf16.mxu0 0
      %4758 = vmatpush1.bf16.msra.mxu0 0
      %4759 = vmatprep.subr.bf16.mxu0 0
      %4760 = vmatpush1.bf16.msra.mxu0 0
      %4761 = vmatprep.subr.bf16.mxu0 0
      %4762 = vmatpush1.bf16.msra.mxu0 0
      %4763 = vmatprep.subr.bf16.mxu0 0
      %4764 = vmatpush1.bf16.msra.mxu0 0
      %4765 = vmatprep.subr.bf16.mxu0 0
      %4766 = vmatpush1.bf16.msra.mxu0 0
      %4767 = vmatprep.subr.bf16.mxu0 0
      %4768 = vmatpush1.bf16.msra.mxu0 0
      %4769 = vmatprep.subr.bf16.mxu0 0
      %4770 = vmatpush1.bf16.msra.mxu0 0
      %4771 = vmatprep.subr.bf16.mxu0 0
      %4772 = vmatpush1.bf16.msra.mxu0 0
      %4773 = vmatprep.mubr.bf16.mxu0 0
      %4774 = vmatmul.mubr.bf16.gmra.mrb[0].mxu0 %v4715
      %v4775 = vpop.f32.mrb[0].mxu0
      %v4776 = vadd.f32 0.0, %v4775
      %v4777 = vpop.f32.mrb[0].mxu0
      %v4778 = vadd.f32 0.0, %v4777
      %v4779 = vpop.f32.mrb[0].mxu0
      %v4780 = vpop.f32.mrb[0].mxu0
      %4781 = vdwg.mxu0
      %4782 = vmatprep.subr.bf16.mxu0 %v4727
      %4783 = vmatpush1.bf16.msra.mxu0 %v4724
      %4784 = vmatprep.subr.bf16.mxu0 0
      %4785 = vmatpush1.bf16.msra.mxu0 0
      %4786 = vmatprep.subr.bf16.mxu0 0
      %4787 = vmatpush1.bf16.msra.mxu0 0
      %4788 = vmatprep.subr.bf16.mxu0 0
      %4789 = vmatpush1.bf16.msra.mxu0 0
      %4790 = vmatprep.subr.bf16.mxu0 0
      %4791 = vmatpush1.bf16.msra.mxu0 0
      %4792 = vmatprep.subr.bf16.mxu0 0
      %4793 = vmatpush1.bf16.msra.mxu0 0
      %4794 = vmatprep.subr.bf16.mxu0 0
      %4795 = vmatpush1.bf16.msra.mxu0 0
      %4796 = vmatprep.subr.bf16.mxu0 0
      %4797 = vmatpush1.bf16.msra.mxu0 0
      %4798 = vmatprep.subr.bf16.mxu0 0
      %4799 = vmatpush1.bf16.msra.mxu0 0
      %4800 = vmatprep.subr.bf16.mxu0 0
      %4801 = vmatpush1.bf16.msra.mxu0 0
      %4802 = vmatprep.subr.bf16.mxu0 0
      %4803 = vmatpush1.bf16.msra.mxu0 0
      %4804 = vmatprep.subr.bf16.mxu0 0
      %4805 = vmatpush1.bf16.msra.mxu0 0
      %4806 = vmatprep.subr.bf16.mxu0 0
      %4807 = vmatpush1.bf16.msra.mxu0 0
      %4808 = vmatprep.subr.bf16.mxu0 0
      %4809 = vmatpush1.bf16.msra.mxu0 0
      %4810 = vmatprep.subr.bf16.mxu0 0
      %4811 = vmatpush1.bf16.msra.mxu0 0
      %4812 = vmatprep.subr.bf16.mxu0 0
      %4813 = vmatpush1.bf16.msra.mxu0 0
      %4814 = vmatprep.mubr.bf16.mxu0 0
      %4815 = vmatmul.mubr.bf16.gmra.mrb[0].mxu0 %v4715
      %v4816 = vpop.f32.mrb[0].mxu0
      %v4817 = vadd.f32 0.0, %v4816
      %v4818 = vpop.f32.mrb[0].mxu0
      %v4819 = vadd.f32 0.0, %v4818
      %v4820 = vpop.f32.mrb[0].mxu0
      %v4821 = vpop.f32.mrb[0].mxu0
      %4822 = vdwg.mxu0
      %4823 = vmatprep.subr.bf16.mxu0 %v4733
      %4824 = vmatpush1.bf16.msra.mxu0 %v4730
      %4825 = vmatprep.subr.bf16.mxu0 0
      %4826 = vmatpush1.bf16.msra.mxu0 0
      %4827 = vmatprep.subr.bf16.mxu0 0
      %4828 = vmatpush1.bf16.msra.mxu0 0
      %4829 = vmatprep.subr.bf16.mxu0 0
      %4830 = vmatpush1.bf16.msra.mxu0 0
      %4831 = vmatprep.subr.bf16.mxu0 0
      %4832 = vmatpush1.bf16.msra.mxu0 0
      %4833 = vmatprep.subr.bf16.mxu0 0
      %4834 = vmatpush1.bf16.msra.mxu0 0
      %4835 = vmatprep.subr.bf16.mxu0 0
      %4836 = vmatpush1.bf16.msra.mxu0 0
      %4837 = vmatprep.subr.bf16.mxu0 0
      %4838 = vmatpush1.bf16.msra.mxu0 0
      %4839 = vmatprep.subr.bf16.mxu0 0
      %4840 = vmatpush1.bf16.msra.mxu0 0
      %4841 = vmatprep.subr.bf16.mxu0 0
      %4842 = vmatpush1.bf16.msra.mxu0 0
      %4843 = vmatprep.subr.bf16.mxu0 0
      %4844 = vmatpush1.bf16.msra.mxu0 0
      %4845 = vmatprep.subr.bf16.mxu0 0
      %4846 = vmatpush1.bf16.msra.mxu0 0
      %4847 = vmatprep.subr.bf16.mxu0 0
      %4848 = vmatpush1.bf16.msra.mxu0 0
      %4849 = vmatprep.subr.bf16.mxu0 0
      %4850 = vmatpush1.bf16.msra.mxu0 0
      %4851 = vmatprep.subr.bf16.mxu0 0
      %4852 = vmatpush1.bf16.msra.mxu0 0
      %4853 = vmatprep.subr.bf16.mxu0 0
      %4854 = vmatpush1.bf16.msra.mxu0 0
      %4855 = vmatprep.mubr.bf16.mxu0 0
      %4856 = vmatmul.mubr.bf16.gmra.mrb[0].mxu0 %v4715
      %v4857 = vpop.f32.mrb[0].mxu0
      %v4858 = vadd.f32 0.0, %v4857
      %v4859 = vpop.f32.mrb[0].mxu0
      %v4860 = vadd.f32 0.0, %v4859
      %v4861 = vpop.f32.mrb[0].mxu0
      %v4862 = vpop.f32.mrb[0].mxu0
      %4863 = vdwg.mxu0
      %4864 = vmatprep.subr.bf16.mxu0 %v4739
      %4865 = vmatpush1.bf16.msra.mxu0 %v4736
      %4866 = vmatprep.subr.bf16.mxu0 0
      %4867 = vmatpush1.bf16.msra.mxu0 0
      %4868 = vmatprep.subr.bf16.mxu0 0
      %4869 = vmatpush1.bf16.msra.mxu0 0
      %4870 = vmatprep.subr.bf16.mxu0 0
      %4871 = vmatpush1.bf16.msra.mxu0 0
      %4872 = vmatprep.subr.bf16.mxu0 0
      %4873 = vmatpush1.bf16.msra.mxu0 0
      %4874 = vmatprep.subr.bf16.mxu0 0
      %4875 = vmatpush1.bf16.msra.mxu0 0
      %4876 = vmatprep.subr.bf16.mxu0 0
      %4877 = vmatpush1.bf16.msra.mxu0 0
      %4878 = vmatprep.subr.bf16.mxu0 0
      %4879 = vmatpush1.bf16.msra.mxu0 0
      %4880 = vmatprep.subr.bf16.mxu0 0
      %4881 = vmatpush1.bf16.msra.mxu0 0
      %4882 = vmatprep.subr.bf16.mxu0 0
      %4883 = vmatpush1.bf16.msra.mxu0 0
      %4884 = vmatprep.subr.bf16.mxu0 0
      %4885 = vmatpush1.bf16.msra.mxu0 0
      %4886 = vmatprep.subr.bf16.mxu0 0
      %4887 = vmatpush1.bf16.msra.mxu0 0
      %4888 = vmatprep.subr.bf16.mxu0 0
      %4889 = vmatpush1.bf16.msra.mxu0 0
      %4890 = vmatprep.subr.bf16.mxu0 0
      %4891 = vmatpush1.bf16.msra.mxu0 0
      %4892 = vmatprep.subr.bf16.mxu0 0
      %4893 = vmatpush1.bf16.msra.mxu0 0
      %4894 = vmatprep.subr.bf16.mxu0 0
      %4895 = vmatpush1.bf16.msra.mxu0 0
      %4896 = vmatprep.mubr.bf16.mxu0 0
      %4897 = vmatmul.mubr.bf16.gmra.mrb[0].mxu0 %v4715
      %v4898 = vpop.f32.mrb[0].mxu0
      %v4899 = vadd.f32 0.0, %v4898
      %v4900 = vpop.f32.mrb[0].mxu0
      %v4901 = vadd.f32 0.0, %v4900
      %v4902 = vpop.f32.mrb[0].mxu0
      %v4903 = vpop.f32.mrb[0].mxu0
      %4904 = vdwg.mxu0
      %v4905 = vadd.f32 %v4680, %v4776
      %v4906 = vadd.f32 %v4681, %v4778
      %v4907 = vadd.f32 %v4682, %v4817
      %v4908 = vadd.f32 %v4683, %v4819
      %v4909 = vadd.f32 %v4684, %v4858
      %v4910 = vadd.f32 %v4685, %v4860
      %v4911 = vadd.f32 %v4686, %v4899
      %v4912 = vadd.f32 %v4687, %v4901
      %v4913 = vld [vmem:[%s1 + $0xa0] sm:$0xff]
      %v4914 = vpack.c.bf16 %v4913, %v4913
      %v4916 = vpack.c.bf16 %v419, %v419
      %v4918 = vsel %vm476, %v4914, 0
      %v4921 = vand.u32 %v4916, %v483
      %4923 = vmatprep.subr.bf16.mxu0 %v682
      %4924 = vmatpush1.bf16.msra.mxu0 %v679
      %4925 = vmatprep.subr.bf16.mxu0 0
      %4926 = vmatpush1.bf16.msra.mxu0 0
      %4927 = vmatprep.subr.bf16.mxu0 0
      %4928 = vmatpush1.bf16.msra.mxu0 0
      %4929 = vmatprep.subr.bf16.mxu0 0
      %4930 = vmatpush1.bf16.msra.mxu0 0
      %4931 = vmatprep.subr.bf16.mxu0 0
      %4932 = vmatpush1.bf16.msra.mxu0 0
      %4933 = vmatprep.subr.bf16.mxu0 0
      %4934 = vmatpush1.bf16.msra.mxu0 0
      %4935 = vmatprep.subr.bf16.mxu0 0
      %4936 = vmatpush1.bf16.msra.mxu0 0
      %4937 = vmatprep.subr.bf16.mxu0 0
      %4938 = vmatpush1.bf16.msra.mxu0 0
      %4939 = vmatprep.subr.bf16.mxu0 0
      %4940 = vmatpush1.bf16.msra.mxu0 0
      %4941 = vmatprep.subr.bf16.mxu0 0
      %4942 = vmatpush1.bf16.msra.mxu0 0
      %4943 = vmatprep.subr.bf16.mxu0 0
      %4944 = vmatpush1.bf16.msra.mxu0 0
      %4945 = vmatprep.subr.bf16.mxu0 0
      %4946 = vmatpush1.bf16.msra.mxu0 0
      %4947 = vmatprep.subr.bf16.mxu0 0
      %4948 = vmatpush1.bf16.msra.mxu0 0
      %4949 = vmatprep.subr.bf16.mxu0 0
      %4950 = vmatpush1.bf16.msra.mxu0 0
      %4951 = vmatprep.subr.bf16.mxu0 0
      %4952 = vmatpush1.bf16.msra.mxu0 0
      %4953 = vmatprep.subr.bf16.mxu0 0
      %4954 = vmatpush1.bf16.msra.mxu0 0
      %4955 = vmatprep.mubr.bf16.mxu0 0
      %4956 = vmatmul.mubr.bf16.gmra.mrb[0].mxu0 %v4918
      %v4957 = vpop.f32.mrb[0].mxu0
      %v4958 = vadd.f32 0.0, %v4957
      %v4959 = vpop.f32.mrb[0].mxu0
      %v4960 = vadd.f32 0.0, %v4959
      %v4961 = vpop.f32.mrb[0].mxu0
      %v4962 = vpop.f32.mrb[0].mxu0
      %4963 = vdwg.mxu0
      %4964 = vmatprep.subr.bf16.mxu0 %v688
      %4965 = vmatpush1.bf16.msra.mxu0 %v685
      %4966 = vmatprep.subr.bf16.mxu0 0
      %4967 = vmatpush1.bf16.msra.mxu0 0
      %4968 = vmatprep.subr.bf16.mxu0 0
      %4969 = vmatpush1.bf16.msra.mxu0 0
      %4970 = vmatprep.subr.bf16.mxu0 0
      %4971 = vmatpush1.bf16.msra.mxu0 0
      %4972 = vmatprep.subr.bf16.mxu0 0
      %4973 = vmatpush1.bf16.msra.mxu0 0
      %4974 = vmatprep.subr.bf16.mxu0 0
      %4975 = vmatpush1.bf16.msra.mxu0 0
      %4976 = vmatprep.subr.bf16.mxu0 0
      %4977 = vmatpush1.bf16.msra.mxu0 0
      %4978 = vmatprep.subr.bf16.mxu0 0
      %4979 = vmatpush1.bf16.msra.mxu0 0
      %4980 = vmatprep.subr.bf16.mxu0 0
      %4981 = vmatpush1.bf16.msra.mxu0 0
      %4982 = vmatprep.subr.bf16.mxu0 0
      %4983 = vmatpush1.bf16.msra.mxu0 0
      %4984 = vmatprep.subr.bf16.mxu0 0
      %4985 = vmatpush1.bf16.msra.mxu0 0
      %4986 = vmatprep.subr.bf16.mxu0 0
      %4987 = vmatpush1.bf16.msra.mxu0 0
      %4988 = vmatprep.subr.bf16.mxu0 0
      %4989 = vmatpush1.bf16.msra.mxu0 0
      %4990 = vmatprep.subr.bf16.mxu0 0
      %4991 = vmatpush1.bf16.msra.mxu0 0
      %4992 = vmatprep.subr.bf16.mxu0 0
      %4993 = vmatpush1.bf16.msra.mxu0 0
      %4994 = vmatprep.subr.bf16.mxu0 0
      %4995 = vmatpush1.bf16.msra.mxu0 0
      %4996 = vmatprep.mubr.bf16.mxu0 0
      %4997 = vmatmul.mubr.bf16.gmra.mrb[0].mxu0 %v4918
      %v4998 = vpop.f32.mrb[0].mxu0
      %v4999 = vadd.f32 0.0, %v4998
      %v5000 = vpop.f32.mrb[0].mxu0
      %v5001 = vadd.f32 0.0, %v5000
      %v5002 = vpop.f32.mrb[0].mxu0
      %v5003 = vpop.f32.mrb[0].mxu0
      %5004 = vdwg.mxu0
      %5005 = vmatprep.subr.bf16.mxu0 %v694
      %5006 = vmatpush1.bf16.msra.mxu0 %v691
      %5007 = vmatprep.subr.bf16.mxu0 0
      %5008 = vmatpush1.bf16.msra.mxu0 0
      %5009 = vmatprep.subr.bf16.mxu0 0
      %5010 = vmatpush1.bf16.msra.mxu0 0
      %5011 = vmatprep.subr.bf16.mxu0 0
      %5012 = vmatpush1.bf16.msra.mxu0 0
      %5013 = vmatprep.subr.bf16.mxu0 0
      %5014 = vmatpush1.bf16.msra.mxu0 0
      %5015 = vmatprep.subr.bf16.mxu0 0
      %5016 = vmatpush1.bf16.msra.mxu0 0
      %5017 = vmatprep.subr.bf16.mxu0 0
      %5018 = vmatpush1.bf16.msra.mxu0 0
      %5019 = vmatprep.subr.bf16.mxu0 0
      %5020 = vmatpush1.bf16.msra.mxu0 0
      %5021 = vmatprep.subr.bf16.mxu0 0
      %5022 = vmatpush1.bf16.msra.mxu0 0
      %5023 = vmatprep.subr.bf16.mxu0 0
      %5024 = vmatpush1.bf16.msra.mxu0 0
      %5025 = vmatprep.subr.bf16.mxu0 0
      %5026 = vmatpush1.bf16.msra.mxu0 0
      %5027 = vmatprep.subr.bf16.mxu0 0
      %5028 = vmatpush1.bf16.msra.mxu0 0
      %5029 = vmatprep.subr.bf16.mxu0 0
      %5030 = vmatpush1.bf16.msra.mxu0 0
      %5031 = vmatprep.subr.bf16.mxu0 0
      %5032 = vmatpush1.bf16.msra.mxu0 0
      %5033 = vmatprep.subr.bf16.mxu0 0
      %5034 = vmatpush1.bf16.msra.mxu0 0
      %5035 = vmatprep.subr.bf16.mxu0 0
      %5036 = vmatpush1.bf16.msra.mxu0 0
      %5037 = vmatprep.mubr.bf16.mxu0 0
      %5038 = vmatmul.mubr.bf16.gmra.mrb[0].mxu0 %v4918
      %v5039 = vpop.f32.mrb[0].mxu0
      %v5040 = vadd.f32 0.0, %v5039
      %v5041 = vpop.f32.mrb[0].mxu0
      %v5042 = vadd.f32 0.0, %v5041
      %v5043 = vpop.f32.mrb[0].mxu0
      %v5044 = vpop.f32.mrb[0].mxu0
      %5045 = vdwg.mxu0
      %5046 = vmatprep.subr.bf16.mxu0 %v4921
      %5047 = vmatpush1.bf16.msra.mxu0 %v697
      %5048 = vmatprep.subr.bf16.mxu0 0
      %5049 = vmatpush1.bf16.msra.mxu0 0
      %5050 = vmatprep.subr.bf16.mxu0 0
      %5051 = vmatpush1.bf16.msra.mxu0 0
      %5052 = vmatprep.subr.bf16.mxu0 0
      %5053 = vmatpush1.bf16.msra.mxu0 0
      %5054 = vmatprep.subr.bf16.mxu0 0
      %5055 = vmatpush1.bf16.msra.mxu0 0
      %5056 = vmatprep.subr.bf16.mxu0 0
      %5057 = vmatpush1.bf16.msra.mxu0 0
      %5058 = vmatprep.subr.bf16.mxu0 0
      %5059 = vmatpush1.bf16.msra.mxu0 0
      %5060 = vmatprep.subr.bf16.mxu0 0
      %5061 = vmatpush1.bf16.msra.mxu0 0
      %5062 = vmatprep.subr.bf16.mxu0 0
      %5063 = vmatpush1.bf16.msra.mxu0 0
      %5064 = vmatprep.subr.bf16.mxu0 0
      %5065 = vmatpush1.bf16.msra.mxu0 0
      %5066 = vmatprep.subr.bf16.mxu0 0
      %5067 = vmatpush1.bf16.msra.mxu0 0
      %5068 = vmatprep.subr.bf16.mxu0 0
      %5069 = vmatpush1.bf16.msra.mxu0 0
      %5070 = vmatprep.subr.bf16.mxu0 0
      %5071 = vmatpush1.bf16.msra.mxu0 0
      %5072 = vmatprep.subr.bf16.mxu0 0
      %5073 = vmatpush1.bf16.msra.mxu0 0
      %5074 = vmatprep.subr.bf16.mxu0 0
      %5075 = vmatpush1.bf16.msra.mxu0 0
      %5076 = vmatprep.subr.bf16.mxu0 0
      %5077 = vmatpush1.bf16.msra.mxu0 0
      %5078 = vmatprep.mubr.bf16.mxu0 0
      %5079 = vmatmul.mubr.bf16.gmra.mrb[0].mxu0 %v4918
      %v5080 = vpop.f32.mrb[0].mxu0
      %v5081 = vadd.f32 0.0, %v5080
      %v5082 = vpop.f32.mrb[0].mxu0
      %v5083 = vadd.f32 0.0, %v5082
      %v5084 = vpop.f32.mrb[0].mxu0
      %v5085 = vpop.f32.mrb[0].mxu0
      %5086 = vdwg.mxu0
      %v5087 = vadd.f32 %v4905, %v4958
      %v5088 = vadd.f32 %v4906, %v4960
      %v5089 = vadd.f32 %v4907, %v4999
      %v5090 = vadd.f32 %v4908, %v5001
      %v5091 = vadd.f32 %v4909, %v5040
      %v5092 = vadd.f32 %v4910, %v5042
      %v5093 = vadd.f32 %v4911, %v5081
      %v5094 = vadd.f32 %v4912, %v5083
      %v5095 = vld [vmem:[%s1 + $0xa8] sm:$0xff]
      %v5096 = vpack.c.bf16 %v5095, %v5095
      %5097 = vrot.lane.b32.xlu0 %v426, 127
      %v5098 = vpop.permute.xlu0 %5097
      %5099 = vrot.lane.b32.xlu0 %v416, 127
      %v5100 = vpop.permute.xlu0 %5099
      %5101 = vrot.lane.b32.xlu0 %v427, 127
      %v5102 = vpop.permute.xlu0 %5101
      %5103 = vrot.lane.b32.xlu0 %v417, 127
      %v5104 = vpop.permute.xlu0 %5103
      %5105 = vrot.lane.b32.xlu0 %v428, 127
      %v5106 = vpop.permute.xlu0 %5105
      %5107 = vrot.lane.b32.xlu0 %v418, 127
      %v5108 = vpop.permute.xlu0 %5107
      %5109 = vrot.lane.b32.xlu0 %v429, 127
      %v5110 = vpop.permute.xlu0 %5109
      %5111 = vrot.lane.b32.xlu0 %v419, 127
      %v5112 = vpop.permute.xlu0 %5111
      %vm5113 = vcmask 1039360
      %v5114 = vsel %vm5113, %v5098, %v5100
      %v5115 = vsel %vm5113, %v5100, %v5102
      %v5116 = vsel %vm5113, %v5102, %v5104
      %v5117 = vsel %vm5113, %v5104, %v5106
      %v5118 = vsel %vm5113, %v5106, %v5108
      %v5119 = vsel %vm5113, %v5108, %v5110
      %v5120 = vsel %vm5113, %v5110, %v5112
      %v5129 = vpack.c.bf16 %v5114, %v5114
      %v5130 = vpack.c.bf16 %v5115, %v5115
      %v5131 = vpack.c.bf16 %v5116, %v5116
      %v5132 = vpack.c.bf16 %v5117, %v5117
      %v5133 = vpack.c.bf16 %v5118, %v5118
      %v5134 = vpack.c.bf16 %v5119, %v5119
      %v5135 = vpack.c.bf16 %v5120, %v5120
      %v5136 = vpack.c.bf16 %v5112, %v5112
      %v5138 = vsel %vm476, %v5096, 0
      %v5141 = vand.u32 %v5129, %v483
      %v5144 = vand.u32 %v5130, %v483
      %v5147 = vand.u32 %v5131, %v483
      %v5150 = vand.u32 %v5132, %v483
      %v5153 = vand.u32 %v5133, %v483
      %v5156 = vand.u32 %v5134, %v483
      %v5159 = vand.u32 %v5135, %v483
      %v5162 = vand.u32 %v5136, %v483
      %5164 = vmatprep.subr.bf16.mxu0 %v5144
      %5165 = vmatpush1.bf16.msra.mxu0 %v5141
      %5166 = vmatprep.subr.bf16.mxu0 0
      %5167 = vmatpush1.bf16.msra.mxu0 0
      %5168 = vmatprep.subr.bf16.mxu0 0
      %5169 = vmatpush1.bf16.msra.mxu0 0
      %5170 = vmatprep.subr.bf16.mxu0 0
      %5171 = vmatpush1.bf16.msra.mxu0 0
      %5172 = vmatprep.subr.bf16.mxu0 0
      %5173 = vmatpush1.bf16.msra.mxu0 0
      %5174 = vmatprep.subr.bf16.mxu0 0
      %5175 = vmatpush1.bf16.msra.mxu0 0
      %5176 = vmatprep.subr.bf16.mxu0 0
      %5177 = vmatpush1.bf16.msra.mxu0 0
      %5178 = vmatprep.subr.bf16.mxu0 0
      %5179 = vmatpush1.bf16.msra.mxu0 0
      %5180 = vmatprep.subr.bf16.mxu0 0
      %5181 = vmatpush1.bf16.msra.mxu0 0
      %5182 = vmatprep.subr.bf16.mxu0 0
      %5183 = vmatpush1.bf16.msra.mxu0 0
      %5184 = vmatprep.subr.bf16.mxu0 0
      %5185 = vmatpush1.bf16.msra.mxu0 0
      %5186 = vmatprep.subr.bf16.mxu0 0
      %5187 = vmatpush1.bf16.msra.mxu0 0
      %5188 = vmatprep.subr.bf16.mxu0 0
      %5189 = vmatpush1.bf16.msra.mxu0 0
      %5190 = vmatprep.subr.bf16.mxu0 0
      %5191 = vmatpush1.bf16.msra.mxu0 0
      %5192 = vmatprep.subr.bf16.mxu0 0
      %5193 = vmatpush1.bf16.msra.mxu0 0
      %5194 = vmatprep.subr.bf16.mxu0 0
      %5195 = vmatpush1.bf16.msra.mxu0 0
      %5196 = vmatprep.mubr.bf16.mxu0 0
      %5197 = vmatmul.mubr.bf16.gmra.mrb[0].mxu0 %v5138
      %v5198 = vpop.f32.mrb[0].mxu0
      %v5199 = vadd.f32 0.0, %v5198
      %v5200 = vpop.f32.mrb[0].mxu0
      %v5201 = vadd.f32 0.0, %v5200
      %v5202 = vpop.f32.mrb[0].mxu0
      %v5203 = vpop.f32.mrb[0].mxu0
      %5204 = vdwg.mxu0
      %5205 = vmatprep.subr.bf16.mxu0 %v5150
      %5206 = vmatpush1.bf16.msra.mxu0 %v5147
      %5207 = vmatprep.subr.bf16.mxu0 0
      %5208 = vmatpush1.bf16.msra.mxu0 0
      %5209 = vmatprep.subr.bf16.mxu0 0
      %5210 = vmatpush1.bf16.msra.mxu0 0
      %5211 = vmatprep.subr.bf16.mxu0 0
      %5212 = vmatpush1.bf16.msra.mxu0 0
      %5213 = vmatprep.subr.bf16.mxu0 0
      %5214 = vmatpush1.bf16.msra.mxu0 0
      %5215 = vmatprep.subr.bf16.mxu0 0
      %5216 = vmatpush1.bf16.msra.mxu0 0
      %5217 = vmatprep.subr.bf16.mxu0 0
      %5218 = vmatpush1.bf16.msra.mxu0 0
      %5219 = vmatprep.subr.bf16.mxu0 0
      %5220 = vmatpush1.bf16.msra.mxu0 0
      %5221 = vmatprep.subr.bf16.mxu0 0
      %5222 = vmatpush1.bf16.msra.mxu0 0
      %5223 = vmatprep.subr.bf16.mxu0 0
      %5224 = vmatpush1.bf16.msra.mxu0 0
      %5225 = vmatprep.subr.bf16.mxu0 0
      %5226 = vmatpush1.bf16.msra.mxu0 0
      %5227 = vmatprep.subr.bf16.mxu0 0
      %5228 = vmatpush1.bf16.msra.mxu0 0
      %5229 = vmatprep.subr.bf16.mxu0 0
      %5230 = vmatpush1.bf16.msra.mxu0 0
      %5231 = vmatprep.subr.bf16.mxu0 0
      %5232 = vmatpush1.bf16.msra.mxu0 0
      %5233 = vmatprep.subr.bf16.mxu0 0
      %5234 = vmatpush1.bf16.msra.mxu0 0
      %5235 = vmatprep.subr.bf16.mxu0 0
      %5236 = vmatpush1.bf16.msra.mxu0 0
      %5237 = vmatprep.mubr.bf16.mxu0 0
      %5238 = vmatmul.mubr.bf16.gmra.mrb[0].mxu0 %v5138
      %v5239 = vpop.f32.mrb[0].mxu0
      %v5240 = vadd.f32 0.0, %v5239
      %v5241 = vpop.f32.mrb[0].mxu0
      %v5242 = vadd.f32 0.0, %v5241
      %v5243 = vpop.f32.mrb[0].mxu0
      %v5244 = vpop.f32.mrb[0].mxu0
      %5245 = vdwg.mxu0
      %5246 = vmatprep.subr.bf16.mxu0 %v5156
      %5247 = vmatpush1.bf16.msra.mxu0 %v5153
      %5248 = vmatprep.subr.bf16.mxu0 0
      %5249 = vmatpush1.bf16.msra.mxu0 0
      %5250 = vmatprep.subr.bf16.mxu0 0
      %5251 = vmatpush1.bf16.msra.mxu0 0
      %5252 = vmatprep.subr.bf16.mxu0 0
      %5253 = vmatpush1.bf16.msra.mxu0 0
      %5254 = vmatprep.subr.bf16.mxu0 0
      %5255 = vmatpush1.bf16.msra.mxu0 0
      %5256 = vmatprep.subr.bf16.mxu0 0
      %5257 = vmatpush1.bf16.msra.mxu0 0
      %5258 = vmatprep.subr.bf16.mxu0 0
      %5259 = vmatpush1.bf16.msra.mxu0 0
      %5260 = vmatprep.subr.bf16.mxu0 0
      %5261 = vmatpush1.bf16.msra.mxu0 0
      %5262 = vmatprep.subr.bf16.mxu0 0
      %5263 = vmatpush1.bf16.msra.mxu0 0
      %5264 = vmatprep.subr.bf16.mxu0 0
      %5265 = vmatpush1.bf16.msra.mxu0 0
      %5266 = vmatprep.subr.bf16.mxu0 0
      %5267 = vmatpush1.bf16.msra.mxu0 0
      %5268 = vmatprep.subr.bf16.mxu0 0
      %5269 = vmatpush1.bf16.msra.mxu0 0
      %5270 = vmatprep.subr.bf16.mxu0 0
      %5271 = vmatpush1.bf16.msra.mxu0 0
      %5272 = vmatprep.subr.bf16.mxu0 0
      %5273 = vmatpush1.bf16.msra.mxu0 0
      %5274 = vmatprep.subr.bf16.mxu0 0
      %5275 = vmatpush1.bf16.msra.mxu0 0
      %5276 = vmatprep.subr.bf16.mxu0 0
      %5277 = vmatpush1.bf16.msra.mxu0 0
      %5278 = vmatprep.mubr.bf16.mxu0 0
      %5279 = vmatmul.mubr.bf16.gmra.mrb[0].mxu0 %v5138
      %v5280 = vpop.f32.mrb[0].mxu0
      %v5281 = vadd.f32 0.0, %v5280
      %v5282 = vpop.f32.mrb[0].mxu0
      %v5283 = vadd.f32 0.0, %v5282
      %v5284 = vpop.f32.mrb[0].mxu0
      %v5285 = vpop.f32.mrb[0].mxu0
      %5286 = vdwg.mxu0
      %5287 = vmatprep.subr.bf16.mxu0 %v5162
      %5288 = vmatpush1.bf16.msra.mxu0 %v5159
      %5289 = vmatprep.subr.bf16.mxu0 0
      %5290 = vmatpush1.bf16.msra.mxu0 0
      %5291 = vmatprep.subr.bf16.mxu0 0
      %5292 = vmatpush1.bf16.msra.mxu0 0
      %5293 = vmatprep.subr.bf16.mxu0 0
      %5294 = vmatpush1.bf16.msra.mxu0 0
      %5295 = vmatprep.subr.bf16.mxu0 0
      %5296 = vmatpush1.bf16.msra.mxu0 0
      %5297 = vmatprep.subr.bf16.mxu0 0
      %5298 = vmatpush1.bf16.msra.mxu0 0
      %5299 = vmatprep.subr.bf16.mxu0 0
      %5300 = vmatpush1.bf16.msra.mxu0 0
      %5301 = vmatprep.subr.bf16.mxu0 0
      %5302 = vmatpush1.bf16.msra.mxu0 0
      %5303 = vmatprep.subr.bf16.mxu0 0
      %5304 = vmatpush1.bf16.msra.mxu0 0
      %5305 = vmatprep.subr.bf16.mxu0 0
      %5306 = vmatpush1.bf16.msra.mxu0 0
      %5307 = vmatprep.subr.bf16.mxu0 0
      %5308 = vmatpush1.bf16.msra.mxu0 0
      %5309 = vmatprep.subr.bf16.mxu0 0
      %5310 = vmatpush1.bf16.msra.mxu0 0
      %5311 = vmatprep.subr.bf16.mxu0 0
      %5312 = vmatpush1.bf16.msra.mxu0 0
      %5313 = vmatprep.subr.bf16.mxu0 0
      %5314 = vmatpush1.bf16.msra.mxu0 0
      %5315 = vmatprep.subr.bf16.mxu0 0
      %5316 = vmatpush1.bf16.msra.mxu0 0
      %5317 = vmatprep.subr.bf16.mxu0 0
      %5318 = vmatpush1.bf16.msra.mxu0 0
      %5319 = vmatprep.mubr.bf16.mxu0 0
      %5320 = vmatmul.mubr.bf16.gmra.mrb[0].mxu0 %v5138
      %v5321 = vpop.f32.mrb[0].mxu0
      %v5322 = vadd.f32 0.0, %v5321
      %v5323 = vpop.f32.mrb[0].mxu0
      %v5324 = vadd.f32 0.0, %v5323
      %v5325 = vpop.f32.mrb[0].mxu0
      %v5326 = vpop.f32.mrb[0].mxu0
      %5327 = vdwg.mxu0
      %v5328 = vadd.f32 %v5087, %v5199
      %v5329 = vadd.f32 %v5088, %v5201
      %v5330 = vadd.f32 %v5089, %v5240
      %v5331 = vadd.f32 %v5090, %v5242
      %v5332 = vadd.f32 %v5091, %v5281
      %v5333 = vadd.f32 %v5092, %v5283
      %v5334 = vadd.f32 %v5093, %v5322
      %v5335 = vadd.f32 %v5094, %v5324
      %v5336 = vld [vmem:[%s1 + $0xb0] sm:$0xff]
      %v5337 = vpack.c.bf16 %v5336, %v5336
      %5338 = vrot.lane.b32.xlu0 %v426, 126
      %v5339 = vpop.permute.xlu0 %5338
      %5340 = vrot.lane.b32.xlu0 %v416, 126
      %v5341 = vpop.permute.xlu0 %5340
      %5342 = vrot.lane.b32.xlu0 %v427, 126
      %v5343 = vpop.permute.xlu0 %5342
      %5344 = vrot.lane.b32.xlu0 %v417, 126
      %v5345 = vpop.permute.xlu0 %5344
      %5346 = vrot.lane.b32.xlu0 %v428, 126
      %v5347 = vpop.permute.xlu0 %5346
      %5348 = vrot.lane.b32.xlu0 %v418, 126
      %v5349 = vpop.permute.xlu0 %5348
      %5350 = vrot.lane.b32.xlu0 %v429, 126
      %v5351 = vpop.permute.xlu0 %5350
      %5352 = vrot.lane.b32.xlu0 %v419, 126
      %v5353 = vpop.permute.xlu0 %5352
      %vm5354 = vcmask 1031168
      %v5355 = vsel %vm5354, %v5339, %v5341
      %v5356 = vsel %vm5354, %v5341, %v5343
      %v5357 = vsel %vm5354, %v5343, %v5345
      %v5358 = vsel %vm5354, %v5345, %v5347
      %v5359 = vsel %vm5354, %v5347, %v5349
      %v5360 = vsel %vm5354, %v5349, %v5351
      %v5361 = vsel %vm5354, %v5351, %v5353
      %v5370 = vpack.c.bf16 %v5355, %v5355
      %v5371 = vpack.c.bf16 %v5356, %v5356
      %v5372 = vpack.c.bf16 %v5357, %v5357
      %v5373 = vpack.c.bf16 %v5358, %v5358
      %v5374 = vpack.c.bf16 %v5359, %v5359
      %v5375 = vpack.c.bf16 %v5360, %v5360
      %v5376 = vpack.c.bf16 %v5361, %v5361
      %v5377 = vpack.c.bf16 %v5353, %v5353
      %v5379 = vsel %vm476, %v5337, 0
      %v5382 = vand.u32 %v5370, %v483
      %v5385 = vand.u32 %v5371, %v483
      %v5388 = vand.u32 %v5372, %v483
      %v5391 = vand.u32 %v5373, %v483
      %v5394 = vand.u32 %v5374, %v483
      %v5397 = vand.u32 %v5375, %v483
      %v5400 = vand.u32 %v5376, %v483
      %v5403 = vand.u32 %v5377, %v483
      %5405 = vmatprep.subr.bf16.mxu0 %v5385
      %5406 = vmatpush1.bf16.msra.mxu0 %v5382
      %5407 = vmatprep.subr.bf16.mxu0 0
      %5408 = vmatpush1.bf16.msra.mxu0 0
      %5409 = vmatprep.subr.bf16.mxu0 0
      %5410 = vmatpush1.bf16.msra.mxu0 0
      %5411 = vmatprep.subr.bf16.mxu0 0
      %5412 = vmatpush1.bf16.msra.mxu0 0
      %5413 = vmatprep.subr.bf16.mxu0 0
      %5414 = vmatpush1.bf16.msra.mxu0 0
      %5415 = vmatprep.subr.bf16.mxu0 0
      %5416 = vmatpush1.bf16.msra.mxu0 0
      %5417 = vmatprep.subr.bf16.mxu0 0
      %5418 = vmatpush1.bf16.msra.mxu0 0
      %5419 = vmatprep.subr.bf16.mxu0 0
      %5420 = vmatpush1.bf16.msra.mxu0 0
      %5421 = vmatprep.subr.bf16.mxu0 0
      %5422 = vmatpush1.bf16.msra.mxu0 0
      %5423 = vmatprep.subr.bf16.mxu0 0
      %5424 = vmatpush1.bf16.msra.mxu0 0
      %5425 = vmatprep.subr.bf16.mxu0 0
      %5426 = vmatpush1.bf16.msra.mxu0 0
      %5427 = vmatprep.subr.bf16.mxu0 0
      %5428 = vmatpush1.bf16.msra.mxu0 0
      %5429 = vmatprep.subr.bf16.mxu0 0
      %5430 = vmatpush1.bf16.msra.mxu0 0
      %5431 = vmatprep.subr.bf16.mxu0 0
      %5432 = vmatpush1.bf16.msra.mxu0 0
      %5433 = vmatprep.subr.bf16.mxu0 0
      %5434 = vmatpush1.bf16.msra.mxu0 0
      %5435 = vmatprep.subr.bf16.mxu0 0
      %5436 = vmatpush1.bf16.msra.mxu0 0
      %5437 = vmatprep.mubr.bf16.mxu0 0
      %5438 = vmatmul.mubr.bf16.gmra.mrb[0].mxu0 %v5379
      %v5439 = vpop.f32.mrb[0].mxu0
      %v5440 = vadd.f32 0.0, %v5439
      %v5441 = vpop.f32.mrb[0].mxu0
      %v5442 = vadd.f32 0.0, %v5441
      %v5443 = vpop.f32.mrb[0].mxu0
      %v5444 = vpop.f32.mrb[0].mxu0
      %5445 = vdwg.mxu0
      %5446 = vmatprep.subr.bf16.mxu0 %v5391
      %5447 = vmatpush1.bf16.msra.mxu0 %v5388
      %5448 = vmatprep.subr.bf16.mxu0 0
      %5449 = vmatpush1.bf16.msra.mxu0 0
      %5450 = vmatprep.subr.bf16.mxu0 0
      %5451 = vmatpush1.bf16.msra.mxu0 0
      %5452 = vmatprep.subr.bf16.mxu0 0
      %5453 = vmatpush1.bf16.msra.mxu0 0
      %5454 = vmatprep.subr.bf16.mxu0 0
      %5455 = vmatpush1.bf16.msra.mxu0 0
      %5456 = vmatprep.subr.bf16.mxu0 0
      %5457 = vmatpush1.bf16.msra.mxu0 0
      %5458 = vmatprep.subr.bf16.mxu0 0
      %5459 = vmatpush1.bf16.msra.mxu0 0
      %5460 = vmatprep.subr.bf16.mxu0 0
      %5461 = vmatpush1.bf16.msra.mxu0 0
      %5462 = vmatprep.subr.bf16.mxu0 0
      %5463 = vmatpush1.bf16.msra.mxu0 0
      %5464 = vmatprep.subr.bf16.mxu0 0
      %5465 = vmatpush1.bf16.msra.mxu0 0
      %5466 = vmatprep.subr.bf16.mxu0 0
      %5467 = vmatpush1.bf16.msra.mxu0 0
      %5468 = vmatprep.subr.bf16.mxu0 0
      %5469 = vmatpush1.bf16.msra.mxu0 0
      %5470 = vmatprep.subr.bf16.mxu0 0
      %5471 = vmatpush1.bf16.msra.mxu0 0
      %5472 = vmatprep.subr.bf16.mxu0 0
      %5473 = vmatpush1.bf16.msra.mxu0 0
      %5474 = vmatprep.subr.bf16.mxu0 0
      %5475 = vmatpush1.bf16.msra.mxu0 0
      %5476 = vmatprep.subr.bf16.mxu0 0
      %5477 = vmatpush1.bf16.msra.mxu0 0
      %5478 = vmatprep.mubr.bf16.mxu0 0
      %5479 = vmatmul.mubr.bf16.gmra.mrb[0].mxu0 %v5379
      %v5480 = vpop.f32.mrb[0].mxu0
      %v5481 = vadd.f32 0.0, %v5480
      %v5482 = vpop.f32.mrb[0].mxu0
      %v5483 = vadd.f32 0.0, %v5482
      %v5484 = vpop.f32.mrb[0].mxu0
      %v5485 = vpop.f32.mrb[0].mxu0
      %5486 = vdwg.mxu0
      %5487 = vmatprep.subr.bf16.mxu0 %v5397
      %5488 = vmatpush1.bf16.msra.mxu0 %v5394
      %5489 = vmatprep.subr.bf16.mxu0 0
      %5490 = vmatpush1.bf16.msra.mxu0 0
      %5491 = vmatprep.subr.bf16.mxu0 0
      %5492 = vmatpush1.bf16.msra.mxu0 0
      %5493 = vmatprep.subr.bf16.mxu0 0
      %5494 = vmatpush1.bf16.msra.mxu0 0
      %5495 = vmatprep.subr.bf16.mxu0 0
      %5496 = vmatpush1.bf16.msra.mxu0 0
      %5497 = vmatprep.subr.bf16.mxu0 0
      %5498 = vmatpush1.bf16.msra.mxu0 0
      %5499 = vmatprep.subr.bf16.mxu0 0
      %5500 = vmatpush1.bf16.msra.mxu0 0
      %5501 = vmatprep.subr.bf16.mxu0 0
      %5502 = vmatpush1.bf16.msra.mxu0 0
      %5503 = vmatprep.subr.bf16.mxu0 0
      %5504 = vmatpush1.bf16.msra.mxu0 0
      %5505 = vmatprep.subr.bf16.mxu0 0
      %5506 = vmatpush1.bf16.msra.mxu0 0
      %5507 = vmatprep.subr.bf16.mxu0 0
      %5508 = vmatpush1.bf16.msra.mxu0 0
      %5509 = vmatprep.subr.bf16.mxu0 0
      %5510 = vmatpush1.bf16.msra.mxu0 0
      %5511 = vmatprep.subr.bf16.mxu0 0
      %5512 = vmatpush1.bf16.msra.mxu0 0
      %5513 = vmatprep.subr.bf16.mxu0 0
      %5514 = vmatpush1.bf16.msra.mxu0 0
      %5515 = vmatprep.subr.bf16.mxu0 0
      %5516 = vmatpush1.bf16.msra.mxu0 0
      %5517 = vmatprep.subr.bf16.mxu0 0
      %5518 = vmatpush1.bf16.msra.mxu0 0
      %5519 = vmatprep.mubr.bf16.mxu0 0
      %5520 = vmatmul.mubr.bf16.gmra.mrb[0].mxu0 %v5379
      %v5521 = vpop.f32.mrb[0].mxu0
      %v5522 = vadd.f32 0.0, %v5521
      %v5523 = vpop.f32.mrb[0].mxu0
      %v5524 = vadd.f32 0.0, %v5523
      %v5525 = vpop.f32.mrb[0].mxu0
      %v5526 = vpop.f32.mrb[0].mxu0
      %5527 = vdwg.mxu0
      %5528 = vmatprep.subr.bf16.mxu0 %v5403
      %5529 = vmatpush1.bf16.msra.mxu0 %v5400
      %5530 = vmatprep.subr.bf16.mxu0 0
      %5531 = vmatpush1.bf16.msra.mxu0 0
      %5532 = vmatprep.subr.bf16.mxu0 0
      %5533 = vmatpush1.bf16.msra.mxu0 0
      %5534 = vmatprep.subr.bf16.mxu0 0
      %5535 = vmatpush1.bf16.msra.mxu0 0
      %5536 = vmatprep.subr.bf16.mxu0 0
      %5537 = vmatpush1.bf16.msra.mxu0 0
      %5538 = vmatprep.subr.bf16.mxu0 0
      %5539 = vmatpush1.bf16.msra.mxu0 0
      %5540 = vmatprep.subr.bf16.mxu0 0
      %5541 = vmatpush1.bf16.msra.mxu0 0
      %5542 = vmatprep.subr.bf16.mxu0 0
      %5543 = vmatpush1.bf16.msra.mxu0 0
      %5544 = vmatprep.subr.bf16.mxu0 0
      %5545 = vmatpush1.bf16.msra.mxu0 0
      %5546 = vmatprep.subr.bf16.mxu0 0
      %5547 = vmatpush1.bf16.msra.mxu0 0
      %5548 = vmatprep.subr.bf16.mxu0 0
      %5549 = vmatpush1.bf16.msra.mxu0 0
      %5550 = vmatprep.subr.bf16.mxu0 0
      %5551 = vmatpush1.bf16.msra.mxu0 0
      %5552 = vmatprep.subr.bf16.mxu0 0
      %5553 = vmatpush1.bf16.msra.mxu0 0
      %5554 = vmatprep.subr.bf16.mxu0 0
      %5555 = vmatpush1.bf16.msra.mxu0 0
      %5556 = vmatprep.subr.bf16.mxu0 0
      %5557 = vmatpush1.bf16.msra.mxu0 0
      %5558 = vmatprep.subr.bf16.mxu0 0
      %5559 = vmatpush1.bf16.msra.mxu0 0
      %5560 = vmatprep.mubr.bf16.mxu0 0
      %5561 = vmatmul.mubr.bf16.gmra.mrb[0].mxu0 %v5379
      %v5562 = vpop.f32.mrb[0].mxu0
      %v5563 = vadd.f32 0.0, %v5562
      %v5564 = vpop.f32.mrb[0].mxu0
      %v5565 = vadd.f32 0.0, %v5564
      %v5566 = vpop.f32.mrb[0].mxu0
      %v5567 = vpop.f32.mrb[0].mxu0
      %5568 = vdwg.mxu0
      %v5569 = vadd.f32 %v5328, %v5440
      %v5570 = vadd.f32 %v5329, %v5442
      %v5571 = vadd.f32 %v5330, %v5481
      %v5572 = vadd.f32 %v5331, %v5483
      %v5573 = vadd.f32 %v5332, %v5522
      %v5574 = vadd.f32 %v5333, %v5524
      %v5575 = vadd.f32 %v5334, %v5563
      %v5576 = vadd.f32 %v5335, %v5565
      %v5577 = vld [vmem:[%s1 + $0xb8] sm:$0xff]
      %v5578 = vpack.c.bf16 %v5577, %v5577
      %5579 = vrot.lane.b32.xlu0 %v426, 125
      %v5580 = vpop.permute.xlu0 %5579
      %5581 = vrot.lane.b32.xlu0 %v416, 125
      %v5582 = vpop.permute.xlu0 %5581
      %5583 = vrot.lane.b32.xlu0 %v427, 125
      %v5584 = vpop.permute.xlu0 %5583
      %5585 = vrot.lane.b32.xlu0 %v417, 125
      %v5586 = vpop.permute.xlu0 %5585
      %5587 = vrot.lane.b32.xlu0 %v428, 125
      %v5588 = vpop.permute.xlu0 %5587
      %5589 = vrot.lane.b32.xlu0 %v418, 125
      %v5590 = vpop.permute.xlu0 %5589
      %5591 = vrot.lane.b32.xlu0 %v429, 125
      %v5592 = vpop.permute.xlu0 %5591
      %5593 = vrot.lane.b32.xlu0 %v419, 125
      %v5594 = vpop.permute.xlu0 %5593
      %vm5595 = vcmask 1022976
      %v5596 = vsel %vm5595, %v5580, %v5582
      %v5597 = vsel %vm5595, %v5582, %v5584
      %v5598 = vsel %vm5595, %v5584, %v5586
      %v5599 = vsel %vm5595, %v5586, %v5588
      %v5600 = vsel %vm5595, %v5588, %v5590
      %v5601 = vsel %vm5595, %v5590, %v5592
      %v5602 = vsel %vm5595, %v5592, %v5594
      %v5611 = vpack.c.bf16 %v5596, %v5596
      %v5612 = vpack.c.bf16 %v5597, %v5597
      %v5613 = vpack.c.bf16 %v5598, %v5598
      %v5614 = vpack.c.bf16 %v5599, %v5599
      %v5615 = vpack.c.bf16 %v5600, %v5600
      %v5616 = vpack.c.bf16 %v5601, %v5601
      %v5617 = vpack.c.bf16 %v5602, %v5602
      %v5618 = vpack.c.bf16 %v5594, %v5594
      %v5620 = vsel %vm476, %v5578, 0
      %v5623 = vand.u32 %v5611, %v483
      %v5626 = vand.u32 %v5612, %v483
      %v5629 = vand.u32 %v5613, %v483
      %v5632 = vand.u32 %v5614, %v483
      %v5635 = vand.u32 %v5615, %v483
      %v5638 = vand.u32 %v5616, %v483
      %v5641 = vand.u32 %v5617, %v483
      %v5644 = vand.u32 %v5618, %v483
      %5646 = vmatprep.subr.bf16.mxu0 %v5626
      %5647 = vmatpush1.bf16.msra.mxu0 %v5623
      %5648 = vmatprep.subr.bf16.mxu0 0
      %5649 = vmatpush1.bf16.msra.mxu0 0
      %5650 = vmatprep.subr.bf16.mxu0 0
      %5651 = vmatpush1.bf16.msra.mxu0 0
      %5652 = vmatprep.subr.bf16.mxu0 0
      %5653 = vmatpush1.bf16.msra.mxu0 0
      %5654 = vmatprep.subr.bf16.mxu0 0
      %5655 = vmatpush1.bf16.msra.mxu0 0
      %5656 = vmatprep.subr.bf16.mxu0 0
      %5657 = vmatpush1.bf16.msra.mxu0 0
      %5658 = vmatprep.subr.bf16.mxu0 0
      %5659 = vmatpush1.bf16.msra.mxu0 0
      %5660 = vmatprep.subr.bf16.mxu0 0
      %5661 = vmatpush1.bf16.msra.mxu0 0
      %5662 = vmatprep.subr.bf16.mxu0 0
      %5663 = vmatpush1.bf16.msra.mxu0 0
      %5664 = vmatprep.subr.bf16.mxu0 0
      %5665 = vmatpush1.bf16.msra.mxu0 0
      %5666 = vmatprep.subr.bf16.mxu0 0
      %5667 = vmatpush1.bf16.msra.mxu0 0
      %5668 = vmatprep.subr.bf16.mxu0 0
      %5669 = vmatpush1.bf16.msra.mxu0 0
      %5670 = vmatprep.subr.bf16.mxu0 0
      %5671 = vmatpush1.bf16.msra.mxu0 0
      %5672 = vmatprep.subr.bf16.mxu0 0
      %5673 = vmatpush1.bf16.msra.mxu0 0
      %5674 = vmatprep.subr.bf16.mxu0 0
      %5675 = vmatpush1.bf16.msra.mxu0 0
      %5676 = vmatprep.subr.bf16.mxu0 0
      %5677 = vmatpush1.bf16.msra.mxu0 0
      %5678 = vmatprep.mubr.bf16.mxu0 0
      %5679 = vmatmul.mubr.bf16.gmra.mrb[0].mxu0 %v5620
      %v5680 = vpop.f32.mrb[0].mxu0
      %v5681 = vadd.f32 0.0, %v5680
      %v5682 = vpop.f32.mrb[0].mxu0
      %v5683 = vadd.f32 0.0, %v5682
      %v5684 = vpop.f32.mrb[0].mxu0
      %v5685 = vpop.f32.mrb[0].mxu0
      %5686 = vdwg.mxu0
      %5687 = vmatprep.subr.bf16.mxu0 %v5632
      %5688 = vmatpush1.bf16.msra.mxu0 %v5629
      %5689 = vmatprep.subr.bf16.mxu0 0
      %5690 = vmatpush1.bf16.msra.mxu0 0
      %5691 = vmatprep.subr.bf16.mxu0 0
      %5692 = vmatpush1.bf16.msra.mxu0 0
      %5693 = vmatprep.subr.bf16.mxu0 0
      %5694 = vmatpush1.bf16.msra.mxu0 0
      %5695 = vmatprep.subr.bf16.mxu0 0
      %5696 = vmatpush1.bf16.msra.mxu0 0
      %5697 = vmatprep.subr.bf16.mxu0 0
      %5698 = vmatpush1.bf16.msra.mxu0 0
      %5699 = vmatprep.subr.bf16.mxu0 0
      %5700 = vmatpush1.bf16.msra.mxu0 0
      %5701 = vmatprep.subr.bf16.mxu0 0
      %5702 = vmatpush1.bf16.msra.mxu0 0
      %5703 = vmatprep.subr.bf16.mxu0 0
      %5704 = vmatpush1.bf16.msra.mxu0 0
      %5705 = vmatprep.subr.bf16.mxu0 0
      %5706 = vmatpush1.bf16.msra.mxu0 0
      %5707 = vmatprep.subr.bf16.mxu0 0
      %5708 = vmatpush1.bf16.msra.mxu0 0
      %5709 = vmatprep.subr.bf16.mxu0 0
      %5710 = vmatpush1.bf16.msra.mxu0 0
      %5711 = vmatprep.subr.bf16.mxu0 0
      %5712 = vmatpush1.bf16.msra.mxu0 0
      %5713 = vmatprep.subr.bf16.mxu0 0
      %5714 = vmatpush1.bf16.msra.mxu0 0
      %5715 = vmatprep.subr.bf16.mxu0 0
      %5716 = vmatpush1.bf16.msra.mxu0 0
      %5717 = vmatprep.subr.bf16.mxu0 0
      %5718 = vmatpush1.bf16.msra.mxu0 0
      %5719 = vmatprep.mubr.bf16.mxu0 0
      %5720 = vmatmul.mubr.bf16.gmra.mrb[0].mxu0 %v5620
      %v5721 = vpop.f32.mrb[0].mxu0
      %v5722 = vadd.f32 0.0, %v5721
      %v5723 = vpop.f32.mrb[0].mxu0
      %v5724 = vadd.f32 0.0, %v5723
      %v5725 = vpop.f32.mrb[0].mxu0
      %v5726 = vpop.f32.mrb[0].mxu0
      %5727 = vdwg.mxu0
      %5728 = vmatprep.subr.bf16.mxu0 %v5638
      %5729 = vmatpush1.bf16.msra.mxu0 %v5635
      %5730 = vmatprep.subr.bf16.mxu0 0
      %5731 = vmatpush1.bf16.msra.mxu0 0
      %5732 = vmatprep.subr.bf16.mxu0 0
      %5733 = vmatpush1.bf16.msra.mxu0 0
      %5734 = vmatprep.subr.bf16.mxu0 0
      %5735 = vmatpush1.bf16.msra.mxu0 0
      %5736 = vmatprep.subr.bf16.mxu0 0
      %5737 = vmatpush1.bf16.msra.mxu0 0
      %5738 = vmatprep.subr.bf16.mxu0 0
      %5739 = vmatpush1.bf16.msra.mxu0 0
      %5740 = vmatprep.subr.bf16.mxu0 0
      %5741 = vmatpush1.bf16.msra.mxu0 0
      %5742 = vmatprep.subr.bf16.mxu0 0
      %5743 = vmatpush1.bf16.msra.mxu0 0
      %5744 = vmatprep.subr.bf16.mxu0 0
      %5745 = vmatpush1.bf16.msra.mxu0 0
      %5746 = vmatprep.subr.bf16.mxu0 0
      %5747 = vmatpush1.bf16.msra.mxu0 0
      %5748 = vmatprep.subr.bf16.mxu0 0
      %5749 = vmatpush1.bf16.msra.mxu0 0
      %5750 = vmatprep.subr.bf16.mxu0 0
      %5751 = vmatpush1.bf16.msra.mxu0 0
      %5752 = vmatprep.subr.bf16.mxu0 0
      %5753 = vmatpush1.bf16.msra.mxu0 0
      %5754 = vmatprep.subr.bf16.mxu0 0
      %5755 = vmatpush1.bf16.msra.mxu0 0
      %5756 = vmatprep.subr.bf16.mxu0 0
      %5757 = vmatpush1.bf16.msra.mxu0 0
      %5758 = vmatprep.subr.bf16.mxu0 0
      %5759 = vmatpush1.bf16.msra.mxu0 0
      %5760 = vmatprep.mubr.bf16.mxu0 0
      %5761 = vmatmul.mubr.bf16.gmra.mrb[0].mxu0 %v5620
      %v5762 = vpop.f32.mrb[0].mxu0
      %v5763 = vadd.f32 0.0, %v5762
      %v5764 = vpop.f32.mrb[0].mxu0
      %v5765 = vadd.f32 0.0, %v5764
      %v5766 = vpop.f32.mrb[0].mxu0
      %v5767 = vpop.f32.mrb[0].mxu0
      %5768 = vdwg.mxu0
      %5769 = vmatprep.subr.bf16.mxu0 %v5644
      %5770 = vmatpush1.bf16.msra.mxu0 %v5641
      %5771 = vmatprep.subr.bf16.mxu0 0
      %5772 = vmatpush1.bf16.msra.mxu0 0
      %5773 = vmatprep.subr.bf16.mxu0 0
      %5774 = vmatpush1.bf16.msra.mxu0 0
      %5775 = vmatprep.subr.bf16.mxu0 0
      %5776 = vmatpush1.bf16.msra.mxu0 0
      %5777 = vmatprep.subr.bf16.mxu0 0
      %5778 = vmatpush1.bf16.msra.mxu0 0
      %5779 = vmatprep.subr.bf16.mxu0 0
      %5780 = vmatpush1.bf16.msra.mxu0 0
      %5781 = vmatprep.subr.bf16.mxu0 0
      %5782 = vmatpush1.bf16.msra.mxu0 0
      %5783 = vmatprep.subr.bf16.mxu0 0
      %5784 = vmatpush1.bf16.msra.mxu0 0
      %5785 = vmatprep.subr.bf16.mxu0 0
      %5786 = vmatpush1.bf16.msra.mxu0 0
      %5787 = vmatprep.subr.bf16.mxu0 0
      %5788 = vmatpush1.bf16.msra.mxu0 0
      %5789 = vmatprep.subr.bf16.mxu0 0
      %5790 = vmatpush1.bf16.msra.mxu0 0
      %5791 = vmatprep.subr.bf16.mxu0 0
      %5792 = vmatpush1.bf16.msra.mxu0 0
      %5793 = vmatprep.subr.bf16.mxu0 0
      %5794 = vmatpush1.bf16.msra.mxu0 0
      %5795 = vmatprep.subr.bf16.mxu0 0
      %5796 = vmatpush1.bf16.msra.mxu0 0
      %5797 = vmatprep.subr.bf16.mxu0 0
      %5798 = vmatpush1.bf16.msra.mxu0 0
      %5799 = vmatprep.subr.bf16.mxu0 0
      %5800 = vmatpush1.bf16.msra.mxu0 0
      %5801 = vmatprep.mubr.bf16.mxu0 0
      %5802 = vmatmul.mubr.bf16.gmra.mrb[0].mxu0 %v5620
      %v5803 = vpop.f32.mrb[0].mxu0
      %v5804 = vadd.f32 0.0, %v5803
      %v5805 = vpop.f32.mrb[0].mxu0
      %v5806 = vadd.f32 0.0, %v5805
      %v5807 = vpop.f32.mrb[0].mxu0
      %v5808 = vpop.f32.mrb[0].mxu0
      %5809 = vdwg.mxu0
      %v5810 = vadd.f32 %v5569, %v5681
      %v5811 = vadd.f32 %v5570, %v5683
      %v5812 = vadd.f32 %v5571, %v5722
      %v5813 = vadd.f32 %v5572, %v5724
      %v5814 = vadd.f32 %v5573, %v5763
      %v5815 = vadd.f32 %v5574, %v5765
      %v5816 = vadd.f32 %v5575, %v5804
      %v5817 = vadd.f32 %v5576, %v5806
      %v5818 = vld [vmem:[%s1 + $0xc0] sm:$0xff]
      %v5819 = vpack.c.bf16 %v5818, %v5818
      %5820 = vrot.lane.b32.xlu0 %v426, 124
      %v5821 = vpop.permute.xlu0 %5820
      %5822 = vrot.lane.b32.xlu0 %v416, 124
      %v5823 = vpop.permute.xlu0 %5822
      %5824 = vrot.lane.b32.xlu0 %v427, 124
      %v5825 = vpop.permute.xlu0 %5824
      %5826 = vrot.lane.b32.xlu0 %v417, 124
      %v5827 = vpop.permute.xlu0 %5826
      %5828 = vrot.lane.b32.xlu0 %v428, 124
      %v5829 = vpop.permute.xlu0 %5828
      %5830 = vrot.lane.b32.xlu0 %v418, 124
      %v5831 = vpop.permute.xlu0 %5830
      %5832 = vrot.lane.b32.xlu0 %v429, 124
      %v5833 = vpop.permute.xlu0 %5832
      %5834 = vrot.lane.b32.xlu0 %v419, 124
      %v5835 = vpop.permute.xlu0 %5834
      %vm5836 = vcmask 1014784
      %v5837 = vsel %vm5836, %v5821, %v5823
      %v5838 = vsel %vm5836, %v5823, %v5825
      %v5839 = vsel %vm5836, %v5825, %v5827
      %v5840 = vsel %vm5836, %v5827, %v5829
      %v5841 = vsel %vm5836, %v5829, %v5831
      %v5842 = vsel %vm5836, %v5831, %v5833
      %v5843 = vsel %vm5836, %v5833, %v5835
      %v5852 = vpack.c.bf16 %v5837, %v5837
      %v5853 = vpack.c.bf16 %v5838, %v5838
      %v5854 = vpack.c.bf16 %v5839, %v5839
      %v5855 = vpack.c.bf16 %v5840, %v5840
      %v5856 = vpack.c.bf16 %v5841, %v5841
      %v5857 = vpack.c.bf16 %v5842, %v5842
      %v5858 = vpack.c.bf16 %v5843, %v5843
      %v5859 = vpack.c.bf16 %v5835, %v5835
      %v5861 = vsel %vm476, %v5819, 0
      %v5864 = vand.u32 %v5852, %v483
      %v5867 = vand.u32 %v5853, %v483
      %v5870 = vand.u32 %v5854, %v483
      %v5873 = vand.u32 %v5855, %v483
      %v5876 = vand.u32 %v5856, %v483
      %v5879 = vand.u32 %v5857, %v483
      %v5882 = vand.u32 %v5858, %v483
      %v5885 = vand.u32 %v5859, %v483
      %5887 = vmatprep.subr.bf16.mxu0 %v5867
      %5888 = vmatpush1.bf16.msra.mxu0 %v5864
      %5889 = vmatprep.subr.bf16.mxu0 0
      %5890 = vmatpush1.bf16.msra.mxu0 0
      %5891 = vmatprep.subr.bf16.mxu0 0
      %5892 = vmatpush1.bf16.msra.mxu0 0
      %5893 = vmatprep.subr.bf16.mxu0 0
      %5894 = vmatpush1.bf16.msra.mxu0 0
      %5895 = vmatprep.subr.bf16.mxu0 0
      %5896 = vmatpush1.bf16.msra.mxu0 0
      %5897 = vmatprep.subr.bf16.mxu0 0
      %5898 = vmatpush1.bf16.msra.mxu0 0
      %5899 = vmatprep.subr.bf16.mxu0 0
      %5900 = vmatpush1.bf16.msra.mxu0 0
      %5901 = vmatprep.subr.bf16.mxu0 0
      %5902 = vmatpush1.bf16.msra.mxu0 0
      %5903 = vmatprep.subr.bf16.mxu0 0
      %5904 = vmatpush1.bf16.msra.mxu0 0
      %5905 = vmatprep.subr.bf16.mxu0 0
      %5906 = vmatpush1.bf16.msra.mxu0 0
      %5907 = vmatprep.subr.bf16.mxu0 0
      %5908 = vmatpush1.bf16.msra.mxu0 0
      %5909 = vmatprep.subr.bf16.mxu0 0
      %5910 = vmatpush1.bf16.msra.mxu0 0
      %5911 = vmatprep.subr.bf16.mxu0 0
      %5912 = vmatpush1.bf16.msra.mxu0 0
      %5913 = vmatprep.subr.bf16.mxu0 0
      %5914 = vmatpush1.bf16.msra.mxu0 0
      %5915 = vmatprep.subr.bf16.mxu0 0
      %5916 = vmatpush1.bf16.msra.mxu0 0
      %5917 = vmatprep.subr.bf16.mxu0 0
      %5918 = vmatpush1.bf16.msra.mxu0 0
      %5919 = vmatprep.mubr.bf16.mxu0 0
      %5920 = vmatmul.mubr.bf16.gmra.mrb[0].mxu0 %v5861
      %v5921 = vpop.f32.mrb[0].mxu0
      %v5922 = vadd.f32 0.0, %v5921
      %v5923 = vpop.f32.mrb[0].mxu0
      %v5924 = vadd.f32 0.0, %v5923
      %v5925 = vpop.f32.mrb[0].mxu0
      %v5926 = vpop.f32.mrb[0].mxu0
      %5927 = vdwg.mxu0
      %5928 = vmatprep.subr.bf16.mxu0 %v5873
      %5929 = vmatpush1.bf16.msra.mxu0 %v5870
      %5930 = vmatprep.subr.bf16.mxu0 0
      %5931 = vmatpush1.bf16.msra.mxu0 0
      %5932 = vmatprep.subr.bf16.mxu0 0
      %5933 = vmatpush1.bf16.msra.mxu0 0
      %5934 = vmatprep.subr.bf16.mxu0 0
      %5935 = vmatpush1.bf16.msra.mxu0 0
      %5936 = vmatprep.subr.bf16.mxu0 0
      %5937 = vmatpush1.bf16.msra.mxu0 0
      %5938 = vmatprep.subr.bf16.mxu0 0
      %5939 = vmatpush1.bf16.msra.mxu0 0
      %5940 = vmatprep.subr.bf16.mxu0 0
      %5941 = vmatpush1.bf16.msra.mxu0 0
      %5942 = vmatprep.subr.bf16.mxu0 0
      %5943 = vmatpush1.bf16.msra.mxu0 0
      %5944 = vmatprep.subr.bf16.mxu0 0
      %5945 = vmatpush1.bf16.msra.mxu0 0
      %5946 = vmatprep.subr.bf16.mxu0 0
      %5947 = vmatpush1.bf16.msra.mxu0 0
      %5948 = vmatprep.subr.bf16.mxu0 0
      %5949 = vmatpush1.bf16.msra.mxu0 0
      %5950 = vmatprep.subr.bf16.mxu0 0
      %5951 = vmatpush1.bf16.msra.mxu0 0
      %5952 = vmatprep.subr.bf16.mxu0 0
      %5953 = vmatpush1.bf16.msra.mxu0 0
      %5954 = vmatprep.subr.bf16.mxu0 0
      %5955 = vmatpush1.bf16.msra.mxu0 0
      %5956 = vmatprep.subr.bf16.mxu0 0
      %5957 = vmatpush1.bf16.msra.mxu0 0
      %5958 = vmatprep.subr.bf16.mxu0 0
      %5959 = vmatpush1.bf16.msra.mxu0 0
      %5960 = vmatprep.mubr.bf16.mxu0 0
      %5961 = vmatmul.mubr.bf16.gmra.mrb[0].mxu0 %v5861
      %v5962 = vpop.f32.mrb[0].mxu0
      %v5963 = vadd.f32 0.0, %v5962
      %v5964 = vpop.f32.mrb[0].mxu0
      %v5965 = vadd.f32 0.0, %v5964
      %v5966 = vpop.f32.mrb[0].mxu0
      %v5967 = vpop.f32.mrb[0].mxu0
      %5968 = vdwg.mxu0
      %5969 = vmatprep.subr.bf16.mxu0 %v5879
      %5970 = vmatpush1.bf16.msra.mxu0 %v5876
      %5971 = vmatprep.subr.bf16.mxu0 0
      %5972 = vmatpush1.bf16.msra.mxu0 0
      %5973 = vmatprep.subr.bf16.mxu0 0
      %5974 = vmatpush1.bf16.msra.mxu0 0
      %5975 = vmatprep.subr.bf16.mxu0 0
      %5976 = vmatpush1.bf16.msra.mxu0 0
      %5977 = vmatprep.subr.bf16.mxu0 0
      %5978 = vmatpush1.bf16.msra.mxu0 0
      %5979 = vmatprep.subr.bf16.mxu0 0
      %5980 = vmatpush1.bf16.msra.mxu0 0
      %5981 = vmatprep.subr.bf16.mxu0 0
      %5982 = vmatpush1.bf16.msra.mxu0 0
      %5983 = vmatprep.subr.bf16.mxu0 0
      %5984 = vmatpush1.bf16.msra.mxu0 0
      %5985 = vmatprep.subr.bf16.mxu0 0
      %5986 = vmatpush1.bf16.msra.mxu0 0
      %5987 = vmatprep.subr.bf16.mxu0 0
      %5988 = vmatpush1.bf16.msra.mxu0 0
      %5989 = vmatprep.subr.bf16.mxu0 0
      %5990 = vmatpush1.bf16.msra.mxu0 0
      %5991 = vmatprep.subr.bf16.mxu0 0
      %5992 = vmatpush1.bf16.msra.mxu0 0
      %5993 = vmatprep.subr.bf16.mxu0 0
      %5994 = vmatpush1.bf16.msra.mxu0 0
      %5995 = vmatprep.subr.bf16.mxu0 0
      %5996 = vmatpush1.bf16.msra.mxu0 0
      %5997 = vmatprep.subr.bf16.mxu0 0
      %5998 = vmatpush1.bf16.msra.mxu0 0
      %5999 = vmatprep.subr.bf16.mxu0 0
      %6000 = vmatpush1.bf16.msra.mxu0 0
      %6001 = vmatprep.mubr.bf16.mxu0 0
      %6002 = vmatmul.mubr.bf16.gmra.mrb[0].mxu0 %v5861
      %v6003 = vpop.f32.mrb[0].mxu0
      %v6004 = vadd.f32 0.0, %v6003
      %v6005 = vpop.f32.mrb[0].mxu0
      %v6006 = vadd.f32 0.0, %v6005
      %v6007 = vpop.f32.mrb[0].mxu0
      %v6008 = vpop.f32.mrb[0].mxu0
      %6009 = vdwg.mxu0
      %6010 = vmatprep.subr.bf16.mxu0 %v5885
      %6011 = vmatpush1.bf16.msra.mxu0 %v5882
      %6012 = vmatprep.subr.bf16.mxu0 0
      %6013 = vmatpush1.bf16.msra.mxu0 0
      %6014 = vmatprep.subr.bf16.mxu0 0
      %6015 = vmatpush1.bf16.msra.mxu0 0
      %6016 = vmatprep.subr.bf16.mxu0 0
      %6017 = vmatpush1.bf16.msra.mxu0 0
      %6018 = vmatprep.subr.bf16.mxu0 0
      %6019 = vmatpush1.bf16.msra.mxu0 0
      %6020 = vmatprep.subr.bf16.mxu0 0
      %6021 = vmatpush1.bf16.msra.mxu0 0
      %6022 = vmatprep.subr.bf16.mxu0 0
      %6023 = vmatpush1.bf16.msra.mxu0 0
      %6024 = vmatprep.subr.bf16.mxu0 0
      %6025 = vmatpush1.bf16.msra.mxu0 0
      %6026 = vmatprep.subr.bf16.mxu0 0
      %6027 = vmatpush1.bf16.msra.mxu0 0
      %6028 = vmatprep.subr.bf16.mxu0 0
      %6029 = vmatpush1.bf16.msra.mxu0 0
      %6030 = vmatprep.subr.bf16.mxu0 0
      %6031 = vmatpush1.bf16.msra.mxu0 0
      %6032 = vmatprep.subr.bf16.mxu0 0
      %6033 = vmatpush1.bf16.msra.mxu0 0
      %6034 = vmatprep.subr.bf16.mxu0 0
      %6035 = vmatpush1.bf16.msra.mxu0 0
      %6036 = vmatprep.subr.bf16.mxu0 0
      %6037 = vmatpush1.bf16.msra.mxu0 0
      %6038 = vmatprep.subr.bf16.mxu0 0
      %6039 = vmatpush1.bf16.msra.mxu0 0
      %6040 = vmatprep.subr.bf16.mxu0 0
      %6041 = vmatpush1.bf16.msra.mxu0 0
      %6042 = vmatprep.mubr.bf16.mxu0 0
      %6043 = vmatmul.mubr.bf16.gmra.mrb[0].mxu0 %v5861
      %v6044 = vpop.f32.mrb[0].mxu0
      %v6045 = vadd.f32 0.0, %v6044
      %v6046 = vpop.f32.mrb[0].mxu0
      %v6047 = vadd.f32 0.0, %v6046
      %v6048 = vpop.f32.mrb[0].mxu0
      %v6049 = vpop.f32.mrb[0].mxu0
      %6050 = vdwg.mxu0
      %v6051 = vadd.f32 %v5810, %v5922
      %v6052 = vadd.f32 %v5811, %v5924
      %v6053 = vadd.f32 %v5812, %v5963
      %v6054 = vadd.f32 %v5813, %v5965
      %v6055 = vadd.f32 %v5814, %v6004
      %v6056 = vadd.f32 %v5815, %v6006
      %v6057 = vadd.f32 %v5816, %v6045
      %v6058 = vadd.f32 %v5817, %v6047
      %v6059 = vld [vmem:[%s2] sm:$0xff]
      %6061 = vset.pattern.permute.xlu0 0
      %6062 = vperm.xlu0 %6061, %v6059
      %v6063 = vpop.permute.xlu0 %6062
      %v6065 = vadd.f32 %v6051, %v6063
      %v6066 = vadd.f32 %v6052, %v6063
      %v6067 = vadd.f32 %v6053, %v6063
      %v6068 = vadd.f32 %v6054, %v6063
      %v6069 = vadd.f32 %v6055, %v6063
      %v6070 = vadd.f32 %v6056, %v6063
      %v6071 = vadd.f32 %v6057, %v6063
      %v6072 = vadd.f32 %v6058, %v6063
      %v6073 = vmax.f32 %v6065, 0.0
      %v6074 = vmax.f32 %v6066, 0.0
      %v6075 = vmax.f32 %v6067, 0.0
      %v6076 = vmax.f32 %v6068, 0.0
      %v6077 = vmax.f32 %v6069, 0.0
      %v6078 = vmax.f32 %v6070, 0.0
      %v6079 = vmax.f32 %v6071, 0.0
      %v6080 = vmax.f32 %v6072, 0.0
      %6088 = vrot.lane.b32.xlu0 %v6073, 127
      %v6089 = vpop.permute.xlu0 %6088
      %6090 = vrot.lane.b32.xlu0 %v6074, 127
      %v6091 = vpop.permute.xlu0 %6090
      %6092 = vrot.lane.b32.xlu0 %v6075, 127
      %v6093 = vpop.permute.xlu0 %6092
      %6094 = vrot.lane.b32.xlu0 %v6076, 127
      %v6095 = vpop.permute.xlu0 %6094
      %6096 = vrot.lane.b32.xlu0 %v6077, 127
      %v6097 = vpop.permute.xlu0 %6096
      %6098 = vrot.lane.b32.xlu0 %v6078, 127
      %v6099 = vpop.permute.xlu0 %6098
      %6100 = vrot.lane.b32.xlu0 %v6079, 127
      %v6101 = vpop.permute.xlu0 %6100
      %v6102 = vsel %vm5113, %v6089, %v6091
      %v6103 = vsel %vm5113, %v6091, %v6093
      %v6104 = vsel %vm5113, %v6093, %v6095
      %v6105 = vsel %vm5113, %v6095, %v6097
      %v6106 = vsel %vm5113, %v6097, %v6099
      %v6107 = vsel %vm5113, %v6099, %v6101
      %v6115 = vmax.f32 %v6073, %v6102
      %v6116 = vmax.f32 %v6074, %v6103
      %v6117 = vmax.f32 %v6075, %v6104
      %v6118 = vmax.f32 %v6076, %v6105
      %v6119 = vmax.f32 %v6077, %v6106
      %v6120 = vmax.f32 %v6078, %v6107
      %v6121 = vmax.f32 %v6079, %v6101
      %6123 = vrot.lane.b32.xlu0 %v6080, 127
      %v6124 = vpop.permute.xlu0 %6123
      %v6125 = vsel %vm5113, %v6101, %v6124
      %v6127 = vmax.f32 %v6079, %v6125
      %6135 = vrot.lane.b32.xlu0 %v6115, 96
      %v6136 = vpop.permute.xlu0 %6135
      %6137 = vrot.lane.b32.xlu0 %v6116, 96
      %v6138 = vpop.permute.xlu0 %6137
      %6139 = vrot.lane.b32.xlu0 %v6117, 96
      %v6140 = vpop.permute.xlu0 %6139
      %6141 = vrot.lane.b32.xlu0 %v6118, 96
      %v6142 = vpop.permute.xlu0 %6141
      %6143 = vrot.lane.b32.xlu0 %v6119, 96
      %v6144 = vpop.permute.xlu0 %6143
      %6145 = vrot.lane.b32.xlu0 %v6120, 96
      %v6146 = vpop.permute.xlu0 %6145
      %6147 = vrot.lane.b32.xlu0 %v6127, 96
      %v6148 = vpop.permute.xlu0 %6147
      %vm6149 = vcmask 785408
      %v6150 = vsel %vm6149, %v6136, %v6138
      %v6151 = vsel %vm6149, %v6138, %v6140
      %v6152 = vsel %vm6149, %v6140, %v6142
      %v6153 = vsel %vm6149, %v6142, %v6144
      %v6154 = vsel %vm6149, %v6144, %v6146
      %v6155 = vsel %vm6149, %v6146, %v6148
      %v6163 = vmax.f32 %v6115, %v6150
      %v6164 = vmax.f32 %v6116, %v6151
      %v6165 = vmax.f32 %v6117, %v6152
      %v6166 = vmax.f32 %v6118, %v6153
      %v6167 = vmax.f32 %v6119, %v6154
      %v6168 = vmax.f32 %v6120, %v6155
      %v6169 = vmax.f32 %v6121, %v6148
      %v6170 = vpack.c.bf16 %v6163, %v6163
      %v6171 = vpack.c.bf16 %v6164, %v6164
      %v6172 = vpack.c.bf16 %v6165, %v6165
      %v6173 = vpack.c.bf16 %v6166, %v6166
      %v6174 = vpack.c.bf16 %v6167, %v6167
      %v6175 = vpack.c.bf16 %v6168, %v6168
      %v6176 = vpack.c.bf16 %v6169, %v6169
      %v6177 = vld [vmem:[%s5] sm:$0xff]
      %v6178 = vld [vmem:[%s5 + $0x8] sm:$0xff]
      %v6179 = vld [vmem:[%s5 + $0x10] sm:$0xff]
      %v6180 = vld [vmem:[%s5 + $0x18] sm:$0xff]
      %v6181 = vld [vmem:[%s5 + $0x20] sm:$0xff]
      %v6182 = vld [vmem:[%s5 + $0x28] sm:$0xff]
      %v6183 = vld [vmem:[%s5 + $0x30] sm:$0xff]
      %v6184 = vld [vmem:[%s5 + $0x38] sm:$0xff]
      %v6185 = vld [vmem:[%s5 + $0x40] sm:$0xff]
      %v6186 = vld [vmem:[%s5 + $0x48] sm:$0xff]
      %v6187 = vld [vmem:[%s5 + $0x50] sm:$0xff]
      %v6188 = vld [vmem:[%s5 + $0x58] sm:$0xff]
      %v6189 = vld [vmem:[%s5 + $0x60] sm:$0xff]
      %v6190 = vld [vmem:[%s5 + $0x68] sm:$0xff]
      %v6191 = vld [vmem:[%s5 + $0x70] sm:$0xff]
      %v6192 = vld [vmem:[%s5 + $0x78] sm:$0xff]
      %v6193 = vld [vmem:[%s5 + $0x80] sm:$0xff]
      %v6194 = vld [vmem:[%s5 + $0x88] sm:$0xff]
      %v6195 = vld [vmem:[%s5 + $0x90] sm:$0xff]
      %v6196 = vld [vmem:[%s5 + $0x98] sm:$0xff]
      %v6197 = vld [vmem:[%s5 + $0xa0] sm:$0xff]
      %v6198 = vld [vmem:[%s5 + $0xa8] sm:$0xff]
      %v6199 = vld [vmem:[%s5 + $0xb0] sm:$0xff]
      %v6200 = vld [vmem:[%s5 + $0xb8] sm:$0xff]
      %v6201 = vld [vmem:[%s5 + $0xc0] sm:$0xff]
      %v6202 = vld [vmem:[%s5 + $0xc8] sm:$0xff]
      %v6203 = vld [vmem:[%s5 + $0xd0] sm:$0xff]
      %v6204 = vld [vmem:[%s5 + $0xd8] sm:$0xff]
      %v6205 = vld [vmem:[%s5 + $0xe0] sm:$0xff]
      %v6206 = vld [vmem:[%s5 + $0xe8] sm:$0xff]
      %v6207 = vld [vmem:[%s5 + $0xf0] sm:$0xff]
      %v6208 = vld [vmem:[%s5 + $0xf8] sm:$0xff]
      %v6209 = vld [vmem:[%s5 + $0x100] sm:$0xff]
      %v6210 = vld [vmem:[%s5 + $0x108] sm:$0xff]
      %v6211 = vld [vmem:[%s5 + $0x110] sm:$0xff]
      %v6212 = vld [vmem:[%s5 + $0x118] sm:$0xff]
      %v6213 = vld [vmem:[%s5 + $0x120] sm:$0xff]
      %v6214 = vld [vmem:[%s5 + $0x128] sm:$0xff]
      %v6215 = vld [vmem:[%s5 + $0x130] sm:$0xff]
      %v6216 = vld [vmem:[%s5 + $0x138] sm:$0xff]
      %v6217 = vld [vmem:[%s5 + $0x140] sm:$0xff]
      %v6218 = vld [vmem:[%s5 + $0x148] sm:$0xff]
      %v6219 = vld [vmem:[%s5 + $0x150] sm:$0xff]
      %v6220 = vld [vmem:[%s5 + $0x158] sm:$0xff]
      %v6221 = vld [vmem:[%s5 + $0x160] sm:$0xff]
      %v6222 = vld [vmem:[%s5 + $0x168] sm:$0xff]
      %v6223 = vld [vmem:[%s5 + $0x170] sm:$0xff]
      %v6224 = vld [vmem:[%s5 + $0x178] sm:$0xff]
      %v6225 = vld [vmem:[%s5 + $0x180] sm:$0xff]
      %v6226 = vld [vmem:[%s5 + $0x188] sm:$0xff]
      %v6227 = vld [vmem:[%s5 + $0x190] sm:$0xff]
      %v6228 = vld [vmem:[%s5 + $0x198] sm:$0xff]
      %v6229 = vld [vmem:[%s5 + $0x1a0] sm:$0xff]
      %v6230 = vld [vmem:[%s5 + $0x1a8] sm:$0xff]
      %v6231 = vld [vmem:[%s5 + $0x1b0] sm:$0xff]
      %v6232 = vld [vmem:[%s5 + $0x1b8] sm:$0xff]
      %v6233 = vld [vmem:[%s5 + $0x1c0] sm:$0xff]
      %v6234 = vld [vmem:[%s5 + $0x1c8] sm:$0xff]
      %v6235 = vld [vmem:[%s5 + $0x1d0] sm:$0xff]
      %v6236 = vld [vmem:[%s5 + $0x1d8] sm:$0xff]
      %v6237 = vld [vmem:[%s5 + $0x1e0] sm:$0xff]
      %v6238 = vld [vmem:[%s5 + $0x1e8] sm:$0xff]
      %v6239 = vld [vmem:[%s5 + $0x1f0] sm:$0xff]
      %v6240 = vld [vmem:[%s5 + $0x1f8] sm:$0xff]
      %v6241 = vld [vmem:[%s5 + $0x200] sm:$0xff]
      %v6242 = vld [vmem:[%s5 + $0x208] sm:$0xff]
      %v6243 = vld [vmem:[%s5 + $0x210] sm:$0xff]
      %v6244 = vld [vmem:[%s5 + $0x218] sm:$0xff]
      %v6245 = vld [vmem:[%s5 + $0x220] sm:$0xff]
      %v6246 = vld [vmem:[%s5 + $0x228] sm:$0xff]
      %v6247 = vld [vmem:[%s5 + $0x230] sm:$0xff]
      %v6248 = vld [vmem:[%s5 + $0x238] sm:$0xff]
      %v6249 = vld [vmem:[%s5 + $0x240] sm:$0xff]
      %v6250 = vld [vmem:[%s5 + $0x248] sm:$0xff]
      %v6251 = vld [vmem:[%s5 + $0x250] sm:$0xff]
      %v6252 = vld [vmem:[%s5 + $0x258] sm:$0xff]
      %v6253 = vld [vmem:[%s5 + $0x260] sm:$0xff]
      %v6254 = vld [vmem:[%s5 + $0x268] sm:$0xff]
      %v6255 = vld [vmem:[%s5 + $0x270] sm:$0xff]
      %v6256 = vld [vmem:[%s5 + $0x278] sm:$0xff]
      %v6257 = vld [vmem:[%s5 + $0x280] sm:$0xff]
      %v6258 = vld [vmem:[%s5 + $0x288] sm:$0xff]
      %v6259 = vld [vmem:[%s5 + $0x290] sm:$0xff]
      %v6260 = vld [vmem:[%s5 + $0x298] sm:$0xff]
      %v6261 = vld [vmem:[%s5 + $0x2a0] sm:$0xff]
      %v6262 = vld [vmem:[%s5 + $0x2a8] sm:$0xff]
      %v6263 = vld [vmem:[%s5 + $0x2b0] sm:$0xff]
      %v6264 = vld [vmem:[%s5 + $0x2b8] sm:$0xff]
      %v6265 = vld [vmem:[%s5 + $0x2c0] sm:$0xff]
      %v6266 = vld [vmem:[%s5 + $0x2c8] sm:$0xff]
      %v6267 = vld [vmem:[%s5 + $0x2d0] sm:$0xff]
      %v6268 = vld [vmem:[%s5 + $0x2d8] sm:$0xff]
      %v6269 = vld [vmem:[%s5 + $0x2e0] sm:$0xff]
      %v6270 = vld [vmem:[%s5 + $0x2e8] sm:$0xff]
      %v6271 = vld [vmem:[%s5 + $0x2f0] sm:$0xff]
      %v6272 = vld [vmem:[%s5 + $0x2f8] sm:$0xff]
      %v6273 = vld [vmem:[%s5 + $0x300] sm:$0xff]
      %v6274 = vld [vmem:[%s5 + $0x308] sm:$0xff]
      %v6275 = vld [vmem:[%s5 + $0x310] sm:$0xff]
      %v6276 = vld [vmem:[%s5 + $0x318] sm:$0xff]
      %v6277 = vld [vmem:[%s5 + $0x320] sm:$0xff]
      %v6278 = vld [vmem:[%s5 + $0x328] sm:$0xff]
      %v6279 = vld [vmem:[%s5 + $0x330] sm:$0xff]
      %v6280 = vld [vmem:[%s5 + $0x338] sm:$0xff]
      %v6281 = vld [vmem:[%s5 + $0x340] sm:$0xff]
      %v6282 = vld [vmem:[%s5 + $0x348] sm:$0xff]
      %v6283 = vld [vmem:[%s5 + $0x350] sm:$0xff]
      %v6284 = vld [vmem:[%s5 + $0x358] sm:$0xff]
      %v6393 = vunpack.c.l.b16 %v6177
      %v6394 = vunpack.c.h.b16 %v6177
      %v6395 = vunpack.c.l.b16 %v6178
      %v6396 = vunpack.c.h.b16 %v6178
      %v6397 = vunpack.c.l.b16 %v6179
      %v6398 = vunpack.c.h.b16 %v6179
      %v6399 = vunpack.c.l.b16 %v6180
      %v6400 = vunpack.c.h.b16 %v6180
      %v6401 = vunpack.c.l.b16 %v6181
      %v6402 = vunpack.c.h.b16 %v6181
      %v6403 = vunpack.c.l.b16 %v6182
      %v6404 = vunpack.c.h.b16 %v6182
      %v6405 = vunpack.c.l.b16 %v6183
      %v6406 = vunpack.c.h.b16 %v6183
      %v6407 = vunpack.c.l.b16 %v6184
      %v6408 = vunpack.c.h.b16 %v6184
      %v6409 = vunpack.c.l.b16 %v6185
      %v6410 = vunpack.c.h.b16 %v6185
      %v6411 = vunpack.c.l.b16 %v6186
      %v6412 = vunpack.c.h.b16 %v6186
      %v6413 = vunpack.c.l.b16 %v6187
      %v6414 = vunpack.c.h.b16 %v6187
      %v6415 = vunpack.c.l.b16 %v6188
      %v6416 = vunpack.c.h.b16 %v6188
      %v6417 = vunpack.c.l.b16 %v6189
      %v6418 = vunpack.c.h.b16 %v6189
      %v6419 = vunpack.c.l.b16 %v6190
      %v6420 = vunpack.c.h.b16 %v6190
      %v6421 = vunpack.c.l.b16 %v6191
      %v6422 = vunpack.c.h.b16 %v6191
      %v6423 = vunpack.c.l.b16 %v6192
      %v6424 = vunpack.c.h.b16 %v6192
      %v6425 = vunpack.c.l.b16 %v6193
      %v6426 = vunpack.c.h.b16 %v6193
      %v6427 = vunpack.c.l.b16 %v6194
      %v6428 = vunpack.c.h.b16 %v6194
      %v6429 = vunpack.c.l.b16 %v6195
      %v6430 = vunpack.c.h.b16 %v6195
      %v6431 = vunpack.c.l.b16 %v6196
      %v6432 = vunpack.c.h.b16 %v6196
      %v6433 = vunpack.c.l.b16 %v6197
      %v6434 = vunpack.c.h.b16 %v6197
      %v6435 = vunpack.c.l.b16 %v6198
      %v6436 = vunpack.c.h.b16 %v6198
      %v6437 = vunpack.c.l.b16 %v6199
      %v6438 = vunpack.c.h.b16 %v6199
      %v6439 = vunpack.c.l.b16 %v6200
      %v6440 = vunpack.c.h.b16 %v6200
      %v6441 = vunpack.c.l.b16 %v6201
      %v6442 = vunpack.c.h.b16 %v6201
      %v6443 = vunpack.c.l.b16 %v6202
      %v6444 = vunpack.c.h.b16 %v6202
      %v6445 = vunpack.c.l.b16 %v6203
      %v6446 = vunpack.c.h.b16 %v6203
      %v6447 = vunpack.c.l.b16 %v6204
      %v6448 = vunpack.c.h.b16 %v6204
      %v6449 = vunpack.c.l.b16 %v6205
      %v6450 = vunpack.c.h.b16 %v6205
      %v6451 = vunpack.c.l.b16 %v6206
      %v6452 = vunpack.c.h.b16 %v6206
      %v6453 = vunpack.c.l.b16 %v6207
      %v6454 = vunpack.c.h.b16 %v6207
      %v6455 = vunpack.c.l.b16 %v6208
      %v6456 = vunpack.c.h.b16 %v6208
      %v6457 = vunpack.c.l.b16 %v6209
      %v6458 = vunpack.c.h.b16 %v6209
      %v6459 = vunpack.c.l.b16 %v6210
      %v6460 = vunpack.c.h.b16 %v6210
      %v6461 = vunpack.c.l.b16 %v6211
      %v6462 = vunpack.c.h.b16 %v6211
      %v6463 = vunpack.c.l.b16 %v6212
      %v6464 = vunpack.c.h.b16 %v6212
      %v6465 = vunpack.c.l.b16 %v6213
      %v6466 = vunpack.c.h.b16 %v6213
      %v6467 = vunpack.c.l.b16 %v6214
      %v6468 = vunpack.c.h.b16 %v6214
      %v6469 = vunpack.c.l.b16 %v6215
      %v6470 = vunpack.c.h.b16 %v6215
      %v6471 = vunpack.c.l.b16 %v6216
      %v6472 = vunpack.c.h.b16 %v6216
      %v6473 = vunpack.c.l.b16 %v6217
      %v6474 = vunpack.c.h.b16 %v6217
      %v6475 = vunpack.c.l.b16 %v6218
      %v6476 = vunpack.c.h.b16 %v6218
      %v6477 = vunpack.c.l.b16 %v6219
      %v6478 = vunpack.c.h.b16 %v6219
      %v6479 = vunpack.c.l.b16 %v6220
      %v6480 = vunpack.c.h.b16 %v6220
      %v6481 = vunpack.c.l.b16 %v6221
      %v6482 = vunpack.c.h.b16 %v6221
      %v6483 = vunpack.c.l.b16 %v6222
      %v6484 = vunpack.c.h.b16 %v6222
      %v6485 = vunpack.c.l.b16 %v6223
      %v6486 = vunpack.c.h.b16 %v6223
      %v6487 = vunpack.c.l.b16 %v6224
      %v6488 = vunpack.c.h.b16 %v6224
      %v6489 = vunpack.c.l.b16 %v6225
      %v6490 = vunpack.c.h.b16 %v6225
      %v6491 = vunpack.c.l.b16 %v6226
      %v6492 = vunpack.c.h.b16 %v6226
      %v6493 = vunpack.c.l.b16 %v6227
      %v6494 = vunpack.c.h.b16 %v6227
      %v6495 = vunpack.c.l.b16 %v6228
      %v6496 = vunpack.c.h.b16 %v6228
      %v6497 = vunpack.c.l.b16 %v6229
      %v6498 = vunpack.c.h.b16 %v6229
      %v6499 = vunpack.c.l.b16 %v6230
      %v6500 = vunpack.c.h.b16 %v6230
      %v6501 = vunpack.c.l.b16 %v6231
      %v6502 = vunpack.c.h.b16 %v6231
      %v6503 = vunpack.c.l.b16 %v6232
      %v6504 = vunpack.c.h.b16 %v6232
      %v6505 = vunpack.c.l.b16 %v6233
      %v6506 = vunpack.c.h.b16 %v6233
      %v6507 = vunpack.c.l.b16 %v6234
      %v6508 = vunpack.c.h.b16 %v6234
      %v6509 = vunpack.c.l.b16 %v6235
      %v6510 = vunpack.c.h.b16 %v6235
      %v6511 = vunpack.c.l.b16 %v6236
      %v6512 = vunpack.c.h.b16 %v6236
      %v6513 = vunpack.c.l.b16 %v6237
      %v6514 = vunpack.c.h.b16 %v6237
      %v6515 = vunpack.c.l.b16 %v6238
      %v6516 = vunpack.c.h.b16 %v6238
      %v6517 = vunpack.c.l.b16 %v6239
      %v6518 = vunpack.c.h.b16 %v6239
      %v6519 = vunpack.c.l.b16 %v6240
      %v6520 = vunpack.c.h.b16 %v6240
      %v6521 = vunpack.c.l.b16 %v6241
      %v6522 = vunpack.c.h.b16 %v6241
      %v6523 = vunpack.c.l.b16 %v6242
      %v6524 = vunpack.c.h.b16 %v6242
      %v6525 = vunpack.c.l.b16 %v6243
      %v6526 = vunpack.c.h.b16 %v6243
      %v6527 = vunpack.c.l.b16 %v6244
      %v6528 = vunpack.c.h.b16 %v6244
      %v6529 = vunpack.c.l.b16 %v6245
      %v6530 = vunpack.c.h.b16 %v6245
      %v6531 = vunpack.c.l.b16 %v6246
      %v6532 = vunpack.c.h.b16 %v6246
      %v6533 = vunpack.c.l.b16 %v6247
      %v6534 = vunpack.c.h.b16 %v6247
      %v6535 = vunpack.c.l.b16 %v6248
      %v6536 = vunpack.c.h.b16 %v6248
      %v6537 = vunpack.c.l.b16 %v6249
      %v6538 = vunpack.c.h.b16 %v6249
      %v6539 = vunpack.c.l.b16 %v6250
      %v6540 = vunpack.c.h.b16 %v6250
      %v6541 = vunpack.c.l.b16 %v6251
      %v6542 = vunpack.c.h.b16 %v6251
      %v6543 = vunpack.c.l.b16 %v6252
      %v6544 = vunpack.c.h.b16 %v6252
      %v6545 = vunpack.c.l.b16 %v6253
      %v6546 = vunpack.c.h.b16 %v6253
      %v6547 = vunpack.c.l.b16 %v6254
      %v6548 = vunpack.c.h.b16 %v6254
      %v6549 = vunpack.c.l.b16 %v6255
      %v6550 = vunpack.c.h.b16 %v6255
      %v6551 = vunpack.c.l.b16 %v6256
      %v6552 = vunpack.c.h.b16 %v6256
      %v6553 = vunpack.c.l.b16 %v6257
      %v6554 = vunpack.c.h.b16 %v6257
      %v6555 = vunpack.c.l.b16 %v6258
      %v6556 = vunpack.c.h.b16 %v6258
      %v6557 = vunpack.c.l.b16 %v6259
      %v6558 = vunpack.c.h.b16 %v6259
      %v6559 = vunpack.c.l.b16 %v6260
      %v6560 = vunpack.c.h.b16 %v6260
      %v6561 = vunpack.c.l.b16 %v6261
      %v6562 = vunpack.c.h.b16 %v6261
      %v6563 = vunpack.c.l.b16 %v6262
      %v6564 = vunpack.c.h.b16 %v6262
      %v6565 = vunpack.c.l.b16 %v6263
      %v6566 = vunpack.c.h.b16 %v6263
      %v6567 = vunpack.c.l.b16 %v6264
      %v6568 = vunpack.c.h.b16 %v6264
      %v6569 = vunpack.c.l.b16 %v6265
      %v6570 = vunpack.c.h.b16 %v6265
      %v6571 = vunpack.c.l.b16 %v6266
      %v6572 = vunpack.c.h.b16 %v6266
      %v6573 = vunpack.c.l.b16 %v6267
      %v6574 = vunpack.c.h.b16 %v6267
      %v6575 = vunpack.c.l.b16 %v6268
      %v6576 = vunpack.c.h.b16 %v6268
      %v6577 = vunpack.c.l.b16 %v6269
      %v6578 = vunpack.c.h.b16 %v6269
      %v6579 = vunpack.c.l.b16 %v6270
      %v6580 = vunpack.c.h.b16 %v6270
      %v6581 = vunpack.c.l.b16 %v6271
      %v6582 = vunpack.c.h.b16 %v6271
      %v6583 = vunpack.c.l.b16 %v6272
      %v6584 = vunpack.c.h.b16 %v6272
      %v6585 = vunpack.c.l.b16 %v6273
      %v6586 = vunpack.c.h.b16 %v6273
      %v6587 = vunpack.c.l.b16 %v6274
      %v6588 = vunpack.c.h.b16 %v6274
      %v6589 = vunpack.c.l.b16 %v6275
      %v6590 = vunpack.c.h.b16 %v6275
      %v6591 = vunpack.c.l.b16 %v6276
      %v6592 = vunpack.c.h.b16 %v6276
      %v6593 = vunpack.c.l.b16 %v6277
      %v6594 = vunpack.c.h.b16 %v6277
      %v6595 = vunpack.c.l.b16 %v6278
      %v6596 = vunpack.c.h.b16 %v6278
      %v6597 = vunpack.c.l.b16 %v6279
      %v6598 = vunpack.c.h.b16 %v6279
      %v6599 = vunpack.c.l.b16 %v6280
      %v6600 = vunpack.c.h.b16 %v6280
      %v6601 = vunpack.c.l.b16 %v6281
      %v6602 = vunpack.c.h.b16 %v6281
      %v6603 = vunpack.c.l.b16 %v6282
      %v6604 = vunpack.c.h.b16 %v6282
      %v6605 = vunpack.c.l.b16 %v6283
      %v6606 = vunpack.c.h.b16 %v6283
      %v6607 = vunpack.c.l.b16 %v6284
      %v6608 = vunpack.c.h.b16 %v6284
      %v6609 = vpack.c.b16 %v6395, %v6393
      %v6610 = vpack.c.b16 %v6396, %v6394
      %v6611 = vpack.c.b16 %v6399, %v6397
      %v6612 = vpack.c.b16 %v6400, %v6398
      %v6613 = vpack.c.b16 %v6403, %v6401
      %v6614 = vpack.c.b16 %v6404, %v6402
      %v6615 = vpack.c.b16 %v6407, %v6405
      %v6616 = vpack.c.b16 %v6408, %v6406
      %v6617 = vpack.c.b16 %v6411, %v6409
      %v6618 = vpack.c.b16 %v6412, %v6410
      %v6619 = vpack.c.b16 %v6415, %v6413
      %v6620 = vpack.c.b16 %v6416, %v6414
      %v6621 = vpack.c.b16 %v6419, %v6417
      %v6622 = vpack.c.b16 %v6420, %v6418
      %v6623 = vpack.c.b16 %v6423, %v6421
      %v6624 = vpack.c.b16 %v6424, %v6422
      %v6625 = vpack.c.b16 %v6427, %v6425
      %v6626 = vpack.c.b16 %v6428, %v6426
      %v6627 = vpack.c.b16 %v6431, %v6429
      %v6628 = vpack.c.b16 %v6432, %v6430
      %v6629 = vpack.c.b16 %v6435, %v6433
      %v6630 = vpack.c.b16 %v6436, %v6434
      %v6631 = vpack.c.b16 %v6439, %v6437
      %v6632 = vpack.c.b16 %v6440, %v6438
      %v6633 = vpack.c.b16 %v6443, %v6441
      %v6634 = vpack.c.b16 %v6444, %v6442
      %v6635 = vpack.c.b16 %v6447, %v6445
      %v6636 = vpack.c.b16 %v6448, %v6446
      %v6637 = vpack.c.b16 %v6451, %v6449
      %v6638 = vpack.c.b16 %v6452, %v6450
      %v6639 = vpack.c.b16 %v6455, %v6453
      %v6640 = vpack.c.b16 %v6456, %v6454
      %v6641 = vpack.c.b16 %v6459, %v6457
      %v6642 = vpack.c.b16 %v6460, %v6458
      %v6643 = vpack.c.b16 %v6463, %v6461
      %v6644 = vpack.c.b16 %v6464, %v6462
      %v6645 = vpack.c.b16 %v6467, %v6465
      %v6646 = vpack.c.b16 %v6468, %v6466
      %v6647 = vpack.c.b16 %v6471, %v6469
      %v6648 = vpack.c.b16 %v6472, %v6470
      %v6649 = vpack.c.b16 %v6475, %v6473
      %v6650 = vpack.c.b16 %v6476, %v6474
      %v6651 = vpack.c.b16 %v6479, %v6477
      %v6652 = vpack.c.b16 %v6480, %v6478
      %v6653 = vpack.c.b16 %v6483, %v6481
      %v6654 = vpack.c.b16 %v6484, %v6482
      %v6655 = vpack.c.b16 %v6487, %v6485
      %v6656 = vpack.c.b16 %v6488, %v6486
      %v6657 = vpack.c.b16 %v6491, %v6489
      %v6658 = vpack.c.b16 %v6492, %v6490
      %v6659 = vpack.c.b16 %v6495, %v6493
      %v6660 = vpack.c.b16 %v6496, %v6494
      %v6661 = vpack.c.b16 %v6499, %v6497
      %v6662 = vpack.c.b16 %v6500, %v6498
      %v6663 = vpack.c.b16 %v6503, %v6501
      %v6664 = vpack.c.b16 %v6504, %v6502
      %v6665 = vpack.c.b16 %v6507, %v6505
      %v6666 = vpack.c.b16 %v6508, %v6506
      %v6667 = vpack.c.b16 %v6511, %v6509
      %v6668 = vpack.c.b16 %v6512, %v6510
      %v6669 = vpack.c.b16 %v6515, %v6513
      %v6670 = vpack.c.b16 %v6516, %v6514
      %v6671 = vpack.c.b16 %v6519, %v6517
      %v6672 = vpack.c.b16 %v6520, %v6518
      %v6673 = vpack.c.b16 %v6523, %v6521
      %v6674 = vpack.c.b16 %v6524, %v6522
      %v6675 = vpack.c.b16 %v6527, %v6525
      %v6676 = vpack.c.b16 %v6528, %v6526
      %v6677 = vpack.c.b16 %v6531, %v6529
      %v6678 = vpack.c.b16 %v6532, %v6530
      %v6679 = vpack.c.b16 %v6535, %v6533
      %v6680 = vpack.c.b16 %v6536, %v6534
      %v6681 = vpack.c.b16 %v6539, %v6537
      %v6682 = vpack.c.b16 %v6540, %v6538
      %v6683 = vpack.c.b16 %v6543, %v6541
      %v6684 = vpack.c.b16 %v6544, %v6542
      %v6685 = vpack.c.b16 %v6547, %v6545
      %v6686 = vpack.c.b16 %v6548, %v6546
      %v6687 = vpack.c.b16 %v6551, %v6549
      %v6688 = vpack.c.b16 %v6552, %v6550
      %v6689 = vpack.c.b16 %v6555, %v6553
      %v6690 = vpack.c.b16 %v6556, %v6554
      %v6691 = vpack.c.b16 %v6559, %v6557
      %v6692 = vpack.c.b16 %v6560, %v6558
      %v6693 = vpack.c.b16 %v6563, %v6561
      %v6694 = vpack.c.b16 %v6564, %v6562
      %v6695 = vpack.c.b16 %v6567, %v6565
      %v6696 = vpack.c.b16 %v6568, %v6566
      %v6697 = vpack.c.b16 %v6571, %v6569
      %v6698 = vpack.c.b16 %v6572, %v6570
      %v6699 = vpack.c.b16 %v6575, %v6573
      %v6700 = vpack.c.b16 %v6576, %v6574
      %v6701 = vpack.c.b16 %v6579, %v6577
      %v6702 = vpack.c.b16 %v6580, %v6578
      %v6703 = vpack.c.b16 %v6583, %v6581
      %v6704 = vpack.c.b16 %v6584, %v6582
      %v6705 = vpack.c.b16 %v6587, %v6585
      %v6706 = vpack.c.b16 %v6588, %v6586
      %v6707 = vpack.c.b16 %v6591, %v6589
      %v6708 = vpack.c.b16 %v6592, %v6590
      %v6709 = vpack.c.b16 %v6595, %v6593
      %v6710 = vpack.c.b16 %v6596, %v6594
      %v6711 = vpack.c.b16 %v6599, %v6597
      %v6712 = vpack.c.b16 %v6600, %v6598
      %v6713 = vpack.c.b16 %v6603, %v6601
      %v6714 = vpack.c.b16 %v6604, %v6602
      %v6715 = vpack.c.b16 %v6607, %v6605
      %v6716 = vpack.c.b16 %v6608, %v6606
      %v6826 = vsel %vm6149, %v6176, 0
      %6828 = vmatprep.subr.bf16.mxu0 %v6610
      %6829 = vmatpush1.bf16.msra.mxu0 %v6609
      %6830 = vmatprep.subr.bf16.mxu0 %v6612
      %6831 = vmatpush1.bf16.msra.mxu0 %v6611
      %6832 = vmatprep.subr.bf16.mxu0 %v6614
      %6833 = vmatpush1.bf16.msra.mxu0 %v6613
      %6834 = vmatprep.subr.bf16.mxu0 %v6616
      %6835 = vmatpush1.bf16.msra.mxu0 %v6615
      %6836 = vmatprep.subr.bf16.mxu0 %v6618
      %6837 = vmatpush1.bf16.msra.mxu0 %v6617
      %6838 = vmatprep.subr.bf16.mxu0 %v6620
      %6839 = vmatpush1.bf16.msra.mxu0 %v6619
      %6840 = vmatprep.subr.bf16.mxu0 %v6622
      %6841 = vmatpush1.bf16.msra.mxu0 %v6621
      %6842 = vmatprep.subr.bf16.mxu0 %v6624
      %6843 = vmatpush1.bf16.msra.mxu0 %v6623
      %6844 = vmatprep.subr.bf16.mxu0 %v6626
      %6845 = vmatpush1.bf16.msra.mxu0 %v6625
      %6846 = vmatprep.subr.bf16.mxu0 %v6628
      %6847 = vmatpush1.bf16.msra.mxu0 %v6627
      %6848 = vmatprep.subr.bf16.mxu0 %v6630
      %6849 = vmatpush1.bf16.msra.mxu0 %v6629
      %6850 = vmatprep.subr.bf16.mxu0 %v6632
      %6851 = vmatpush1.bf16.msra.mxu0 %v6631
      %6852 = vmatprep.subr.bf16.mxu0 %v6634
      %6853 = vmatpush1.bf16.msra.mxu0 %v6633
      %6854 = vmatprep.subr.bf16.mxu0 %v6636
      %6855 = vmatpush1.bf16.msra.mxu0 %v6635
      %6856 = vmatprep.subr.bf16.mxu0 %v6638
      %6857 = vmatpush1.bf16.msra.mxu0 %v6637
      %6858 = vmatprep.subr.bf16.mxu0 %v6640
      %6859 = vmatpush1.bf16.msra.mxu0 %v6639
      %6860 = vmatprep.mubr.bf16.mxu0 %v6171
      %6861 = vmatmul.mubr.bf16.gmra.mrb[0].mxu0 %v6170
      %v6862 = vpop.f32.mrb[0].mxu0
      %v6863 = vadd.f32 0.0, %v6862
      %v6864 = vpop.f32.mrb[0].mxu0
      %v6865 = vadd.f32 0.0, %v6864
      %v6866 = vpop.f32.mrb[0].mxu0
      %v6867 = vpop.f32.mrb[0].mxu0
      %6868 = vdwg.mxu0
      %6869 = vmatprep.subr.bf16.mxu0 %v6642
      %6870 = vmatpush1.bf16.msra.mxu0 %v6641
      %6871 = vmatprep.subr.bf16.mxu0 %v6644
      %6872 = vmatpush1.bf16.msra.mxu0 %v6643
      %6873 = vmatprep.subr.bf16.mxu0 %v6646
      %6874 = vmatpush1.bf16.msra.mxu0 %v6645
      %6875 = vmatprep.subr.bf16.mxu0 %v6648
      %6876 = vmatpush1.bf16.msra.mxu0 %v6647
      %6877 = vmatprep.subr.bf16.mxu0 %v6650
      %6878 = vmatpush1.bf16.msra.mxu0 %v6649
      %6879 = vmatprep.subr.bf16.mxu0 %v6652
      %6880 = vmatpush1.bf16.msra.mxu0 %v6651
      %6881 = vmatprep.subr.bf16.mxu0 %v6654
      %6882 = vmatpush1.bf16.msra.mxu0 %v6653
      %6883 = vmatprep.subr.bf16.mxu0 %v6656
      %6884 = vmatpush1.bf16.msra.mxu0 %v6655
      %6885 = vmatprep.subr.bf16.mxu0 %v6658
      %6886 = vmatpush1.bf16.msra.mxu0 %v6657
      %6887 = vmatprep.subr.bf16.mxu0 %v6660
      %6888 = vmatpush1.bf16.msra.mxu0 %v6659
      %6889 = vmatprep.subr.bf16.mxu0 %v6662
      %6890 = vmatpush1.bf16.msra.mxu0 %v6661
      %6891 = vmatprep.subr.bf16.mxu0 %v6664
      %6892 = vmatpush1.bf16.msra.mxu0 %v6663
      %6893 = vmatprep.subr.bf16.mxu0 %v6666
      %6894 = vmatpush1.bf16.msra.mxu0 %v6665
      %6895 = vmatprep.subr.bf16.mxu0 %v6668
      %6896 = vmatpush1.bf16.msra.mxu0 %v6667
      %6897 = vmatprep.subr.bf16.mxu0 %v6670
      %6898 = vmatpush1.bf16.msra.mxu0 %v6669
      %6899 = vmatprep.subr.bf16.mxu0 %v6672
      %6900 = vmatpush1.bf16.msra.mxu0 %v6671
      %6901 = vmatprep.mubr.bf16.mxu0 %v6173
      %6902 = vmatmul.mubr.bf16.gmra.mrb[0].mxu0 %v6172
      %v6903 = vpop.f32.mrb[0].mxu0
      %v6904 = vadd.f32 %v6863, %v6903
      %v6905 = vpop.f32.mrb[0].mxu0
      %v6906 = vadd.f32 %v6865, %v6905
      %v6907 = vpop.f32.mrb[0].mxu0
      %v6908 = vpop.f32.mrb[0].mxu0
      %6909 = vdwg.mxu0
      %6910 = vmatprep.subr.bf16.mxu0 %v6674
      %6911 = vmatpush1.bf16.msra.mxu0 %v6673
      %6912 = vmatprep.subr.bf16.mxu0 %v6676
      %6913 = vmatpush1.bf16.msra.mxu0 %v6675
      %6914 = vmatprep.subr.bf16.mxu0 %v6678
      %6915 = vmatpush1.bf16.msra.mxu0 %v6677
      %6916 = vmatprep.subr.bf16.mxu0 %v6680
      %6917 = vmatpush1.bf16.msra.mxu0 %v6679
      %6918 = vmatprep.subr.bf16.mxu0 %v6682
      %6919 = vmatpush1.bf16.msra.mxu0 %v6681
      %6920 = vmatprep.subr.bf16.mxu0 %v6684
      %6921 = vmatpush1.bf16.msra.mxu0 %v6683
      %6922 = vmatprep.subr.bf16.mxu0 %v6686
      %6923 = vmatpush1.bf16.msra.mxu0 %v6685
      %6924 = vmatprep.subr.bf16.mxu0 %v6688
      %6925 = vmatpush1.bf16.msra.mxu0 %v6687
      %6926 = vmatprep.subr.bf16.mxu0 %v6690
      %6927 = vmatpush1.bf16.msra.mxu0 %v6689
      %6928 = vmatprep.subr.bf16.mxu0 %v6692
      %6929 = vmatpush1.bf16.msra.mxu0 %v6691
      %6930 = vmatprep.subr.bf16.mxu0 %v6694
      %6931 = vmatpush1.bf16.msra.mxu0 %v6693
      %6932 = vmatprep.subr.bf16.mxu0 %v6696
      %6933 = vmatpush1.bf16.msra.mxu0 %v6695
      %6934 = vmatprep.subr.bf16.mxu0 %v6698
      %6935 = vmatpush1.bf16.msra.mxu0 %v6697
      %6936 = vmatprep.subr.bf16.mxu0 %v6700
      %6937 = vmatpush1.bf16.msra.mxu0 %v6699
      %6938 = vmatprep.subr.bf16.mxu0 %v6702
      %6939 = vmatpush1.bf16.msra.mxu0 %v6701
      %6940 = vmatprep.subr.bf16.mxu0 %v6704
      %6941 = vmatpush1.bf16.msra.mxu0 %v6703
      %6942 = vmatprep.mubr.bf16.mxu0 %v6175
      %6943 = vmatmul.mubr.bf16.gmra.mrb[0].mxu0 %v6174
      %v6944 = vpop.f32.mrb[0].mxu0
      %v6945 = vadd.f32 %v6904, %v6944
      %v6946 = vpop.f32.mrb[0].mxu0
      %v6947 = vadd.f32 %v6906, %v6946
      %v6948 = vpop.f32.mrb[0].mxu0
      %v6949 = vpop.f32.mrb[0].mxu0
      %6950 = vdwg.mxu0
      %6951 = vmatprep.subr.bf16.mxu0 %v6706
      %6952 = vmatpush1.bf16.msra.mxu0 %v6705
      %6953 = vmatprep.subr.bf16.mxu0 %v6708
      %6954 = vmatpush1.bf16.msra.mxu0 %v6707
      %6955 = vmatprep.subr.bf16.mxu0 %v6710
      %6956 = vmatpush1.bf16.msra.mxu0 %v6709
      %6957 = vmatprep.subr.bf16.mxu0 %v6712
      %6958 = vmatpush1.bf16.msra.mxu0 %v6711
      %6959 = vmatprep.subr.bf16.mxu0 %v6714
      %6960 = vmatpush1.bf16.msra.mxu0 %v6713
      %6961 = vmatprep.subr.bf16.mxu0 %v6716
      %6962 = vmatpush1.bf16.msra.mxu0 %v6715
      %6963 = vmatprep.subr.bf16.mxu0 0
      %6964 = vmatpush1.bf16.msra.mxu0 0
      %6965 = vmatprep.subr.bf16.mxu0 0
      %6966 = vmatpush1.bf16.msra.mxu0 0
      %6967 = vmatprep.subr.bf16.mxu0 0
      %6968 = vmatpush1.bf16.msra.mxu0 0
      %6969 = vmatprep.subr.bf16.mxu0 0
      %6970 = vmatpush1.bf16.msra.mxu0 0
      %6971 = vmatprep.subr.bf16.mxu0 0
      %6972 = vmatpush1.bf16.msra.mxu0 0
      %6973 = vmatprep.subr.bf16.mxu0 0
      %6974 = vmatpush1.bf16.msra.mxu0 0
      %6975 = vmatprep.subr.bf16.mxu0 0
      %6976 = vmatpush1.bf16.msra.mxu0 0
      %6977 = vmatprep.subr.bf16.mxu0 0
      %6978 = vmatpush1.bf16.msra.mxu0 0
      %6979 = vmatprep.subr.bf16.mxu0 0
      %6980 = vmatpush1.bf16.msra.mxu0 0
      %6981 = vmatprep.subr.bf16.mxu0 0
      %6982 = vmatpush1.bf16.msra.mxu0 0
      %6983 = vmatprep.mubr.bf16.mxu0 0
      %6984 = vmatmul.mubr.bf16.gmra.mrb[0].mxu0 %v6826
      %v6985 = vpop.f32.mrb[0].mxu0
      %v6986 = vadd.f32 %v6945, %v6985
      %v6987 = vpop.f32.mrb[0].mxu0
      %v6988 = vadd.f32 %v6947, %v6987
      %v6989 = vpop.f32.mrb[0].mxu0
      %v6990 = vpop.f32.mrb[0].mxu0
      %6991 = vdwg.mxu0
      %v6992 = vld [vmem:[%s3] sm:$0xff]
      %v6993 = vld [vmem:[%s3 + $0x8] sm:$0xff]
      %v6994 = vpack.c.bf16 %v6993, %v6992
      %v6995 = vpack.c.bf16 %v6986, %v6986
      %v6996 = vpack.c.bf16 %v6988, %v6988
      %v6997 = vld [vmem:[%s3 + $0x10] sm:$0xff]
      %v6998 = vld [vmem:[%s3 + $0x18] sm:$0xff]
      %v6999 = vpack.c.bf16 %v6998, %v6997
      %7002 = vrot.lane.b32.xlu0 %v6995, 127
      %v7003 = vpop.permute.xlu0 %7002
      %7004 = vrot.lane.b32.xlu0 %v6996, 127
      %v7005 = vpop.permute.xlu0 %7004
      %v7006 = vsel %vm468, %v7003, %v7005
      %vm7007 = vcmask 64512
      %v7009 = vsel %vm7007, %v6999, 0
      %vm7011 = vcmask 1043456
      %v7013 = vsel %vm7011, %v7006, 0
      %v7016 = vsel %vm7011, %v7005, 0
      %7018 = vmatprep.subr.bf16.mxu0 %v7016
      %7019 = vmatpush1.bf16.msra.mxu0 %v7013
      %7020 = vmatprep.subr.bf16.mxu0 0
      %7021 = vmatpush1.bf16.msra.mxu0 0
      %7022 = vmatprep.subr.bf16.mxu0 0
      %7023 = vmatpush1.bf16.msra.mxu0 0
      %7024 = vmatprep.subr.bf16.mxu0 0
      %7025 = vmatpush1.bf16.msra.mxu0 0
      %7026 = vmatprep.subr.bf16.mxu0 0
      %7027 = vmatpush1.bf16.msra.mxu0 0
      %7028 = vmatprep.subr.bf16.mxu0 0
      %7029 = vmatpush1.bf16.msra.mxu0 0
      %7030 = vmatprep.subr.bf16.mxu0 0
      %7031 = vmatpush1.bf16.msra.mxu0 0
      %7032 = vmatprep.subr.bf16.mxu0 0
      %7033 = vmatpush1.bf16.msra.mxu0 0
      %7034 = vmatprep.subr.bf16.mxu0 0
      %7035 = vmatpush1.bf16.msra.mxu0 0
      %7036 = vmatprep.subr.bf16.mxu0 0
      %7037 = vmatpush1.bf16.msra.mxu0 0
      %7038 = vmatprep.subr.bf16.mxu0 0
      %7039 = vmatpush1.bf16.msra.mxu0 0
      %7040 = vmatprep.subr.bf16.mxu0 0
      %7041 = vmatpush1.bf16.msra.mxu0 0
      %7042 = vmatprep.subr.bf16.mxu0 0
      %7043 = vmatpush1.bf16.msra.mxu0 0
      %7044 = vmatprep.subr.bf16.mxu0 0
      %7045 = vmatpush1.bf16.msra.mxu0 0
      %7046 = vmatprep.subr.bf16.mxu0 0
      %7047 = vmatpush1.bf16.msra.mxu0 0
      %7048 = vmatprep.subr.bf16.mxu0 0
      %7049 = vmatpush1.bf16.msra.mxu0 0
      %7050 = vmatprep.mubr.bf16.mxu0 0
      %7051 = vmatmul.mubr.bf16.gmra.mrb[0].mxu0 %v7009
      %v7052 = vpop.f32.mrb[0].mxu0
      %v7053 = vadd.f32 0.0, %v7052
      %v7054 = vpop.f32.mrb[0].mxu0
      %v7055 = vadd.f32 0.0, %v7054
      %v7056 = vpop.f32.mrb[0].mxu0
      %v7057 = vadd.f32 0.0, %v7056
      %v7058 = vpop.f32.mrb[0].mxu0
      %v7059 = vadd.f32 0.0, %v7058
      %7060 = vdwg.mxu0
      %v7062 = vsel %vm7007, %v6994, 0
      %v7065 = vsel %vm7011, %v6995, 0
      %v7068 = vsel %vm7011, %v6996, 0
      %7070 = vmatprep.subr.bf16.mxu0 %v7068
      %7071 = vmatpush1.bf16.msra.mxu0 %v7065
      %7072 = vmatprep.subr.bf16.mxu0 0
      %7073 = vmatpush1.bf16.msra.mxu0 0
      %7074 = vmatprep.subr.bf16.mxu0 0
      %7075 = vmatpush1.bf16.msra.mxu0 0
      %7076 = vmatprep.subr.bf16.mxu0 0
      %7077 = vmatpush1.bf16.msra.mxu0 0
      %7078 = vmatprep.subr.bf16.mxu0 0
      %7079 = vmatpush1.bf16.msra.mxu0 0
      %7080 = vmatprep.subr.bf16.mxu0 0
      %7081 = vmatpush1.bf16.msra.mxu0 0
      %7082 = vmatprep.subr.bf16.mxu0 0
      %7083 = vmatpush1.bf16.msra.mxu0 0
      %7084 = vmatprep.subr.bf16.mxu0 0
      %7085 = vmatpush1.bf16.msra.mxu0 0
      %7086 = vmatprep.subr.bf16.mxu0 0
      %7087 = vmatpush1.bf16.msra.mxu0 0
      %7088 = vmatprep.subr.bf16.mxu0 0
      %7089 = vmatpush1.bf16.msra.mxu0 0
      %7090 = vmatprep.subr.bf16.mxu0 0
      %7091 = vmatpush1.bf16.msra.mxu0 0
      %7092 = vmatprep.subr.bf16.mxu0 0
      %7093 = vmatpush1.bf16.msra.mxu0 0
      %7094 = vmatprep.subr.bf16.mxu0 0
      %7095 = vmatpush1.bf16.msra.mxu0 0
      %7096 = vmatprep.subr.bf16.mxu0 0
      %7097 = vmatpush1.bf16.msra.mxu0 0
      %7098 = vmatprep.subr.bf16.mxu0 0
      %7099 = vmatpush1.bf16.msra.mxu0 0
      %7100 = vmatprep.subr.bf16.mxu0 0
      %7101 = vmatpush1.bf16.msra.mxu0 0
      %7102 = vmatprep.mubr.bf16.mxu0 0
      %7103 = vmatmul.mubr.bf16.gmra.mrb[0].mxu0 %v7062
      %v7104 = vpop.f32.mrb[0].mxu0
      %v7105 = vadd.f32 %v7053, %v7104
      %v7106 = vpop.f32.mrb[0].mxu0
      %v7107 = vadd.f32 %v7055, %v7106
      %v7108 = vpop.f32.mrb[0].mxu0
      %v7109 = vadd.f32 %v7057, %v7108
      %v7110 = vpop.f32.mrb[0].mxu0
      %v7111 = vadd.f32 %v7059, %v7110
      %7112 = vdwg.mxu0
      %v7113 = vld [vmem:[%s3 + $0x20] sm:$0xff]
      %v7114 = vld [vmem:[%s3 + $0x28] sm:$0xff]
      %v7115 = vpack.c.bf16 %v7114, %v7113
      %7116 = vrot.lane.b32.xlu0 %v6995, 126
      %v7117 = vpop.permute.xlu0 %7116
      %7118 = vrot.lane.b32.xlu0 %v6996, 126
      %v7119 = vpop.permute.xlu0 %7118
      %v7120 = vsel %vm881, %v7117, %v7119
      %v7122 = vsel %vm7007, %v7115, 0
      %v7125 = vsel %vm7011, %v7120, 0
      %v7128 = vsel %vm7011, %v7119, 0
      %7130 = vmatprep.subr.bf16.mxu0 %v7128
      %7131 = vmatpush1.bf16.msra.mxu0 %v7125
      %7132 = vmatprep.subr.bf16.mxu0 0
      %7133 = vmatpush1.bf16.msra.mxu0 0
      %7134 = vmatprep.subr.bf16.mxu0 0
      %7135 = vmatpush1.bf16.msra.mxu0 0
      %7136 = vmatprep.subr.bf16.mxu0 0
      %7137 = vmatpush1.bf16.msra.mxu0 0
      %7138 = vmatprep.subr.bf16.mxu0 0
      %7139 = vmatpush1.bf16.msra.mxu0 0
      %7140 = vmatprep.subr.bf16.mxu0 0
      %7141 = vmatpush1.bf16.msra.mxu0 0
      %7142 = vmatprep.subr.bf16.mxu0 0
      %7143 = vmatpush1.bf16.msra.mxu0 0
      %7144 = vmatprep.subr.bf16.mxu0 0
      %7145 = vmatpush1.bf16.msra.mxu0 0
      %7146 = vmatprep.subr.bf16.mxu0 0
      %7147 = vmatpush1.bf16.msra.mxu0 0
      %7148 = vmatprep.subr.bf16.mxu0 0
      %7149 = vmatpush1.bf16.msra.mxu0 0
      %7150 = vmatprep.subr.bf16.mxu0 0
      %7151 = vmatpush1.bf16.msra.mxu0 0
      %7152 = vmatprep.subr.bf16.mxu0 0
      %7153 = vmatpush1.bf16.msra.mxu0 0
      %7154 = vmatprep.subr.bf16.mxu0 0
      %7155 = vmatpush1.bf16.msra.mxu0 0
      %7156 = vmatprep.subr.bf16.mxu0 0
      %7157 = vmatpush1.bf16.msra.mxu0 0
      %7158 = vmatprep.subr.bf16.mxu0 0
      %7159 = vmatpush1.bf16.msra.mxu0 0
      %7160 = vmatprep.subr.bf16.mxu0 0
      %7161 = vmatpush1.bf16.msra.mxu0 0
      %7162 = vmatprep.mubr.bf16.mxu0 0
      %7163 = vmatmul.mubr.bf16.gmra.mrb[0].mxu0 %v7122
      %v7164 = vpop.f32.mrb[0].mxu0
      %v7165 = vadd.f32 0.0, %v7164
      %v7166 = vpop.f32.mrb[0].mxu0
      %v7167 = vadd.f32 0.0, %v7166
      %v7168 = vpop.f32.mrb[0].mxu0
      %v7169 = vadd.f32 0.0, %v7168
      %v7170 = vpop.f32.mrb[0].mxu0
      %v7171 = vadd.f32 0.0, %v7170
      %7172 = vdwg.mxu0
      %v7173 = vadd.f32 %v7105, %v7165
      %v7174 = vadd.f32 %v7107, %v7167
      %v7175 = vadd.f32 %v7109, %v7169
      %v7176 = vadd.f32 %v7111, %v7171
      %v7177 = vld [vmem:[%s3 + $0x30] sm:$0xff]
      %v7178 = vld [vmem:[%s3 + $0x38] sm:$0xff]
      %v7179 = vpack.c.bf16 %v7178, %v7177
      %7180 = vrot.lane.b32.xlu0 %v6995, 125
      %v7181 = vpop.permute.xlu0 %7180
      %7182 = vrot.lane.b32.xlu0 %v6996, 125
      %v7183 = vpop.permute.xlu0 %7182
      %v7184 = vsel %vm1106, %v7181, %v7183
      %v7186 = vsel %vm7007, %v7179, 0
      %v7189 = vsel %vm7011, %v7184, 0
      %v7192 = vsel %vm7011, %v7183, 0
      %7194 = vmatprep.subr.bf16.mxu0 %v7192
      %7195 = vmatpush1.bf16.msra.mxu0 %v7189
      %7196 = vmatprep.subr.bf16.mxu0 0
      %7197 = vmatpush1.bf16.msra.mxu0 0
      %7198 = vmatprep.subr.bf16.mxu0 0
      %7199 = vmatpush1.bf16.msra.mxu0 0
      %7200 = vmatprep.subr.bf16.mxu0 0
      %7201 = vmatpush1.bf16.msra.mxu0 0
      %7202 = vmatprep.subr.bf16.mxu0 0
      %7203 = vmatpush1.bf16.msra.mxu0 0
      %7204 = vmatprep.subr.bf16.mxu0 0
      %7205 = vmatpush1.bf16.msra.mxu0 0
      %7206 = vmatprep.subr.bf16.mxu0 0
      %7207 = vmatpush1.bf16.msra.mxu0 0
      %7208 = vmatprep.subr.bf16.mxu0 0
      %7209 = vmatpush1.bf16.msra.mxu0 0
      %7210 = vmatprep.subr.bf16.mxu0 0
      %7211 = vmatpush1.bf16.msra.mxu0 0
      %7212 = vmatprep.subr.bf16.mxu0 0
      %7213 = vmatpush1.bf16.msra.mxu0 0
      %7214 = vmatprep.subr.bf16.mxu0 0
      %7215 = vmatpush1.bf16.msra.mxu0 0
      %7216 = vmatprep.subr.bf16.mxu0 0
      %7217 = vmatpush1.bf16.msra.mxu0 0
      %7218 = vmatprep.subr.bf16.mxu0 0
      %7219 = vmatpush1.bf16.msra.mxu0 0
      %7220 = vmatprep.subr.bf16.mxu0 0
      %7221 = vmatpush1.bf16.msra.mxu0 0
      %7222 = vmatprep.subr.bf16.mxu0 0
      %7223 = vmatpush1.bf16.msra.mxu0 0
      %7224 = vmatprep.subr.bf16.mxu0 0
      %7225 = vmatpush1.bf16.msra.mxu0 0
      %7226 = vmatprep.mubr.bf16.mxu0 0
      %7227 = vmatmul.mubr.bf16.gmra.mrb[0].mxu0 %v7186
      %v7228 = vpop.f32.mrb[0].mxu0
      %v7229 = vadd.f32 0.0, %v7228
      %v7230 = vpop.f32.mrb[0].mxu0
      %v7231 = vadd.f32 0.0, %v7230
      %v7232 = vpop.f32.mrb[0].mxu0
      %v7233 = vadd.f32 0.0, %v7232
      %v7234 = vpop.f32.mrb[0].mxu0
      %v7235 = vadd.f32 0.0, %v7234
      %7236 = vdwg.mxu0
      %v7237 = vadd.f32 %v7173, %v7229
      %v7238 = vadd.f32 %v7174, %v7231
      %v7239 = vadd.f32 %v7175, %v7233
      %v7240 = vadd.f32 %v7176, %v7235
      %v7241 = vld [vmem:[%s3 + $0x40] sm:$0xff]
      %v7242 = vld [vmem:[%s3 + $0x48] sm:$0xff]
      %v7243 = vpack.c.bf16 %v7242, %v7241
      %7244 = vrot.lane.b32.xlu0 %v6995, 124
      %v7245 = vpop.permute.xlu0 %7244
      %7246 = vrot.lane.b32.xlu0 %v6996, 124
      %v7247 = vpop.permute.xlu0 %7246
      %v7248 = vsel %vm1331, %v7245, %v7247
      %v7250 = vsel %vm7007, %v7243, 0
      %v7253 = vsel %vm7011, %v7248, 0
      %v7256 = vsel %vm7011, %v7247, 0
      %7258 = vmatprep.subr.bf16.mxu0 %v7256
      %7259 = vmatpush1.bf16.msra.mxu0 %v7253
      %7260 = vmatprep.subr.bf16.mxu0 0
      %7261 = vmatpush1.bf16.msra.mxu0 0
      %7262 = vmatprep.subr.bf16.mxu0 0
      %7263 = vmatpush1.bf16.msra.mxu0 0
      %7264 = vmatprep.subr.bf16.mxu0 0
      %7265 = vmatpush1.bf16.msra.mxu0 0
      %7266 = vmatprep.subr.bf16.mxu0 0
      %7267 = vmatpush1.bf16.msra.mxu0 0
      %7268 = vmatprep.subr.bf16.mxu0 0
      %7269 = vmatpush1.bf16.msra.mxu0 0
      %7270 = vmatprep.subr.bf16.mxu0 0
      %7271 = vmatpush1.bf16.msra.mxu0 0
      %7272 = vmatprep.subr.bf16.mxu0 0
      %7273 = vmatpush1.bf16.msra.mxu0 0
      %7274 = vmatprep.subr.bf16.mxu0 0
      %7275 = vmatpush1.bf16.msra.mxu0 0
      %7276 = vmatprep.subr.bf16.mxu0 0
      %7277 = vmatpush1.bf16.msra.mxu0 0
      %7278 = vmatprep.subr.bf16.mxu0 0
      %7279 = vmatpush1.bf16.msra.mxu0 0
      %7280 = vmatprep.subr.bf16.mxu0 0
      %7281 = vmatpush1.bf16.msra.mxu0 0
      %7282 = vmatprep.subr.bf16.mxu0 0
      %7283 = vmatpush1.bf16.msra.mxu0 0
      %7284 = vmatprep.subr.bf16.mxu0 0
      %7285 = vmatpush1.bf16.msra.mxu0 0
      %7286 = vmatprep.subr.bf16.mxu0 0
      %7287 = vmatpush1.bf16.msra.mxu0 0
      %7288 = vmatprep.subr.bf16.mxu0 0
      %7289 = vmatpush1.bf16.msra.mxu0 0
      %7290 = vmatprep.mubr.bf16.mxu0 0
      %7291 = vmatmul.mubr.bf16.gmra.mrb[0].mxu0 %v7250
      %v7292 = vpop.f32.mrb[0].mxu0
      %v7293 = vadd.f32 0.0, %v7292
      %v7294 = vpop.f32.mrb[0].mxu0
      %v7295 = vadd.f32 0.0, %v7294
      %v7296 = vpop.f32.mrb[0].mxu0
      %v7297 = vadd.f32 0.0, %v7296
      %v7298 = vpop.f32.mrb[0].mxu0
      %v7299 = vadd.f32 0.0, %v7298
      %7300 = vdwg.mxu0
      %v7301 = vadd.f32 %v7237, %v7293
      %v7302 = vadd.f32 %v7238, %v7295
      %v7303 = vadd.f32 %v7239, %v7297
      %v7304 = vadd.f32 %v7240, %v7299
      %v7305 = vld [vmem:[%s3 + $0x50] sm:$0xff]
      %v7306 = vld [vmem:[%s3 + $0x58] sm:$0xff]
      %v7307 = vpack.c.bf16 %v7306, %v7305
      %7308 = vrot.lane.b32.xlu0 %v6995, 112
      %v7309 = vpop.permute.xlu0 %7308
      %7310 = vrot.lane.b32.xlu0 %v6996, 112
      %v7311 = vpop.permute.xlu0 %7310
      %vm7312 = vcmask 916480
      %v7313 = vsel %vm7312, %v7309, %v7311
      %v7315 = vsel %vm7007, %v7307, 0
      %v7318 = vsel %vm7011, %v7313, 0
      %v7321 = vsel %vm7011, %v7311, 0
      %7323 = vmatprep.subr.bf16.mxu0 %v7321
      %7324 = vmatpush1.bf16.msra.mxu0 %v7318
      %7325 = vmatprep.subr.bf16.mxu0 0
      %7326 = vmatpush1.bf16.msra.mxu0 0
      %7327 = vmatprep.subr.bf16.mxu0 0
      %7328 = vmatpush1.bf16.msra.mxu0 0
      %7329 = vmatprep.subr.bf16.mxu0 0
      %7330 = vmatpush1.bf16.msra.mxu0 0
      %7331 = vmatprep.subr.bf16.mxu0 0
      %7332 = vmatpush1.bf16.msra.mxu0 0
      %7333 = vmatprep.subr.bf16.mxu0 0
      %7334 = vmatpush1.bf16.msra.mxu0 0
      %7335 = vmatprep.subr.bf16.mxu0 0
      %7336 = vmatpush1.bf16.msra.mxu0 0
      %7337 = vmatprep.subr.bf16.mxu0 0
      %7338 = vmatpush1.bf16.msra.mxu0 0
      %7339 = vmatprep.subr.bf16.mxu0 0
      %7340 = vmatpush1.bf16.msra.mxu0 0
      %7341 = vmatprep.subr.bf16.mxu0 0
      %7342 = vmatpush1.bf16.msra.mxu0 0
      %7343 = vmatprep.subr.bf16.mxu0 0
      %7344 = vmatpush1.bf16.msra.mxu0 0
      %7345 = vmatprep.subr.bf16.mxu0 0
      %7346 = vmatpush1.bf16.msra.mxu0 0
      %7347 = vmatprep.subr.bf16.mxu0 0
      %7348 = vmatpush1.bf16.msra.mxu0 0
      %7349 = vmatprep.subr.bf16.mxu0 0
      %7350 = vmatpush1.bf16.msra.mxu0 0
      %7351 = vmatprep.subr.bf16.mxu0 0
      %7352 = vmatpush1.bf16.msra.mxu0 0
      %7353 = vmatprep.subr.bf16.mxu0 0
      %7354 = vmatpush1.bf16.msra.mxu0 0
      %7355 = vmatprep.mubr.bf16.mxu0 0
      %7356 = vmatmul.mubr.bf16.gmra.mrb[0].mxu0 %v7315
      %v7357 = vpop.f32.mrb[0].mxu0
      %v7358 = vadd.f32 0.0, %v7357
      %v7359 = vpop.f32.mrb[0].mxu0
      %v7360 = vadd.f32 0.0, %v7359
      %v7361 = vpop.f32.mrb[0].mxu0
      %v7362 = vadd.f32 0.0, %v7361
      %v7363 = vpop.f32.mrb[0].mxu0
      %v7364 = vadd.f32 0.0, %v7363
      %7365 = vdwg.mxu0
      %v7366 = vadd.f32 %v7301, %v7358
      %v7367 = vadd.f32 %v7302, %v7360
      %v7368 = vadd.f32 %v7303, %v7362
      %v7369 = vadd.f32 %v7304, %v7364
      %v7370 = vld [vmem:[%s3 + $0x60] sm:$0xff]
      %v7371 = vld [vmem:[%s3 + $0x68] sm:$0xff]
      %v7372 = vpack.c.bf16 %v7371, %v7370
      %7373 = vrot.lane.b32.xlu0 %v6995, 111
      %v7374 = vpop.permute.xlu0 %7373
      %7375 = vrot.lane.b32.xlu0 %v6996, 111
      %v7376 = vpop.permute.xlu0 %7375
      %vm7377 = vcmask 908288
      %v7378 = vsel %vm7377, %v7374, %v7376
      %v7380 = vsel %vm7007, %v7372, 0
      %v7383 = vsel %vm7011, %v7378, 0
      %v7386 = vsel %vm7011, %v7376, 0
      %7388 = vmatprep.subr.bf16.mxu0 %v7386
      %7389 = vmatpush1.bf16.msra.mxu0 %v7383
      %7390 = vmatprep.subr.bf16.mxu0 0
      %7391 = vmatpush1.bf16.msra.mxu0 0
      %7392 = vmatprep.subr.bf16.mxu0 0
      %7393 = vmatpush1.bf16.msra.mxu0 0
      %7394 = vmatprep.subr.bf16.mxu0 0
      %7395 = vmatpush1.bf16.msra.mxu0 0
      %7396 = vmatprep.subr.bf16.mxu0 0
      %7397 = vmatpush1.bf16.msra.mxu0 0
      %7398 = vmatprep.subr.bf16.mxu0 0
      %7399 = vmatpush1.bf16.msra.mxu0 0
      %7400 = vmatprep.subr.bf16.mxu0 0
      %7401 = vmatpush1.bf16.msra.mxu0 0
      %7402 = vmatprep.subr.bf16.mxu0 0
      %7403 = vmatpush1.bf16.msra.mxu0 0
      %7404 = vmatprep.subr.bf16.mxu0 0
      %7405 = vmatpush1.bf16.msra.mxu0 0
      %7406 = vmatprep.subr.bf16.mxu0 0
      %7407 = vmatpush1.bf16.msra.mxu0 0
      %7408 = vmatprep.subr.bf16.mxu0 0
      %7409 = vmatpush1.bf16.msra.mxu0 0
      %7410 = vmatprep.subr.bf16.mxu0 0
      %7411 = vmatpush1.bf16.msra.mxu0 0
      %7412 = vmatprep.subr.bf16.mxu0 0
      %7413 = vmatpush1.bf16.msra.mxu0 0
      %7414 = vmatprep.subr.bf16.mxu0 0
      %7415 = vmatpush1.bf16.msra.mxu0 0
      %7416 = vmatprep.subr.bf16.mxu0 0
      %7417 = vmatpush1.bf16.msra.mxu0 0
      %7418 = vmatprep.subr.bf16.mxu0 0
      %7419 = vmatpush1.bf16.msra.mxu0 0
      %7420 = vmatprep.mubr.bf16.mxu0 0
      %7421 = vmatmul.mubr.bf16.gmra.mrb[0].mxu0 %v7380
      %v7422 = vpop.f32.mrb[0].mxu0
      %v7423 = vadd.f32 0.0, %v7422
      %v7424 = vpop.f32.mrb[0].mxu0
      %v7425 = vadd.f32 0.0, %v7424
      %v7426 = vpop.f32.mrb[0].mxu0
      %v7427 = vadd.f32 0.0, %v7426
      %v7428 = vpop.f32.mrb[0].mxu0
      %v7429 = vadd.f32 0.0, %v7428
      %7430 = vdwg.mxu0
      %v7431 = vadd.f32 %v7366, %v7423
      %v7432 = vadd.f32 %v7367, %v7425
      %v7433 = vadd.f32 %v7368, %v7427
      %v7434 = vadd.f32 %v7369, %v7429
      %v7435 = vld [vmem:[%s3 + $0x70] sm:$0xff]
      %v7436 = vld [vmem:[%s3 + $0x78] sm:$0xff]
      %v7437 = vpack.c.bf16 %v7436, %v7435
      %7438 = vrot.lane.b32.xlu0 %v6995, 110
      %v7439 = vpop.permute.xlu0 %7438
      %7440 = vrot.lane.b32.xlu0 %v6996, 110
      %v7441 = vpop.permute.xlu0 %7440
      %vm7442 = vcmask 900096
      %v7443 = vsel %vm7442, %v7439, %v7441
      %v7445 = vsel %vm7007, %v7437, 0
      %v7448 = vsel %vm7011, %v7443, 0
      %v7451 = vsel %vm7011, %v7441, 0
      %7453 = vmatprep.subr.bf16.mxu0 %v7451
      %7454 = vmatpush1.bf16.msra.mxu0 %v7448
      %7455 = vmatprep.subr.bf16.mxu0 0
      %7456 = vmatpush1.bf16.msra.mxu0 0
      %7457 = vmatprep.subr.bf16.mxu0 0
      %7458 = vmatpush1.bf16.msra.mxu0 0
      %7459 = vmatprep.subr.bf16.mxu0 0
      %7460 = vmatpush1.bf16.msra.mxu0 0
      %7461 = vmatprep.subr.bf16.mxu0 0
      %7462 = vmatpush1.bf16.msra.mxu0 0
      %7463 = vmatprep.subr.bf16.mxu0 0
      %7464 = vmatpush1.bf16.msra.mxu0 0
      %7465 = vmatprep.subr.bf16.mxu0 0
      %7466 = vmatpush1.bf16.msra.mxu0 0
      %7467 = vmatprep.subr.bf16.mxu0 0
      %7468 = vmatpush1.bf16.msra.mxu0 0
      %7469 = vmatprep.subr.bf16.mxu0 0
      %7470 = vmatpush1.bf16.msra.mxu0 0
      %7471 = vmatprep.subr.bf16.mxu0 0
      %7472 = vmatpush1.bf16.msra.mxu0 0
      %7473 = vmatprep.subr.bf16.mxu0 0
      %7474 = vmatpush1.bf16.msra.mxu0 0
      %7475 = vmatprep.subr.bf16.mxu0 0
      %7476 = vmatpush1.bf16.msra.mxu0 0
      %7477 = vmatprep.subr.bf16.mxu0 0
      %7478 = vmatpush1.bf16.msra.mxu0 0
      %7479 = vmatprep.subr.bf16.mxu0 0
      %7480 = vmatpush1.bf16.msra.mxu0 0
      %7481 = vmatprep.subr.bf16.mxu0 0
      %7482 = vmatpush1.bf16.msra.mxu0 0
      %7483 = vmatprep.subr.bf16.mxu0 0
      %7484 = vmatpush1.bf16.msra.mxu0 0
      %7485 = vmatprep.mubr.bf16.mxu0 0
      %7486 = vmatmul.mubr.bf16.gmra.mrb[0].mxu0 %v7445
      %v7487 = vpop.f32.mrb[0].mxu0
      %v7488 = vadd.f32 0.0, %v7487
      %v7489 = vpop.f32.mrb[0].mxu0
      %v7490 = vadd.f32 0.0, %v7489
      %v7491 = vpop.f32.mrb[0].mxu0
      %v7492 = vadd.f32 0.0, %v7491
      %v7493 = vpop.f32.mrb[0].mxu0
      %v7494 = vadd.f32 0.0, %v7493
      %7495 = vdwg.mxu0
      %v7496 = vadd.f32 %v7431, %v7488
      %v7497 = vadd.f32 %v7432, %v7490
      %v7498 = vadd.f32 %v7433, %v7492
      %v7499 = vadd.f32 %v7434, %v7494
      %v7500 = vld [vmem:[%s3 + $0x80] sm:$0xff]
      %v7501 = vld [vmem:[%s3 + $0x88] sm:$0xff]
      %v7502 = vpack.c.bf16 %v7501, %v7500
      %7503 = vrot.lane.b32.xlu0 %v6995, 109
      %v7504 = vpop.permute.xlu0 %7503
      %7505 = vrot.lane.b32.xlu0 %v6996, 109
      %v7506 = vpop.permute.xlu0 %7505
      %vm7507 = vcmask 891904
      %v7508 = vsel %vm7507, %v7504, %v7506
      %v7510 = vsel %vm7007, %v7502, 0
      %v7513 = vsel %vm7011, %v7508, 0
      %v7516 = vsel %vm7011, %v7506, 0
      %7518 = vmatprep.subr.bf16.mxu0 %v7516
      %7519 = vmatpush1.bf16.msra.mxu0 %v7513
      %7520 = vmatprep.subr.bf16.mxu0 0
      %7521 = vmatpush1.bf16.msra.mxu0 0
      %7522 = vmatprep.subr.bf16.mxu0 0
      %7523 = vmatpush1.bf16.msra.mxu0 0
      %7524 = vmatprep.subr.bf16.mxu0 0
      %7525 = vmatpush1.bf16.msra.mxu0 0
      %7526 = vmatprep.subr.bf16.mxu0 0
      %7527 = vmatpush1.bf16.msra.mxu0 0
      %7528 = vmatprep.subr.bf16.mxu0 0
      %7529 = vmatpush1.bf16.msra.mxu0 0
      %7530 = vmatprep.subr.bf16.mxu0 0
      %7531 = vmatpush1.bf16.msra.mxu0 0
      %7532 = vmatprep.subr.bf16.mxu0 0
      %7533 = vmatpush1.bf16.msra.mxu0 0
      %7534 = vmatprep.subr.bf16.mxu0 0
      %7535 = vmatpush1.bf16.msra.mxu0 0
      %7536 = vmatprep.subr.bf16.mxu0 0
      %7537 = vmatpush1.bf16.msra.mxu0 0
      %7538 = vmatprep.subr.bf16.mxu0 0
      %7539 = vmatpush1.bf16.msra.mxu0 0
      %7540 = vmatprep.subr.bf16.mxu0 0
      %7541 = vmatpush1.bf16.msra.mxu0 0
      %7542 = vmatprep.subr.bf16.mxu0 0
      %7543 = vmatpush1.bf16.msra.mxu0 0
      %7544 = vmatprep.subr.bf16.mxu0 0
      %7545 = vmatpush1.bf16.msra.mxu0 0
      %7546 = vmatprep.subr.bf16.mxu0 0
      %7547 = vmatpush1.bf16.msra.mxu0 0
      %7548 = vmatprep.subr.bf16.mxu0 0
      %7549 = vmatpush1.bf16.msra.mxu0 0
      %7550 = vmatprep.mubr.bf16.mxu0 0
      %7551 = vmatmul.mubr.bf16.gmra.mrb[0].mxu0 %v7510
      %v7552 = vpop.f32.mrb[0].mxu0
      %v7553 = vadd.f32 0.0, %v7552
      %v7554 = vpop.f32.mrb[0].mxu0
      %v7555 = vadd.f32 0.0, %v7554
      %v7556 = vpop.f32.mrb[0].mxu0
      %v7557 = vadd.f32 0.0, %v7556
      %v7558 = vpop.f32.mrb[0].mxu0
      %v7559 = vadd.f32 0.0, %v7558
      %7560 = vdwg.mxu0
      %v7561 = vadd.f32 %v7496, %v7553
      %v7562 = vadd.f32 %v7497, %v7555
      %v7563 = vadd.f32 %v7498, %v7557
      %v7564 = vadd.f32 %v7499, %v7559
      %v7565 = vld [vmem:[%s3 + $0x90] sm:$0xff]
      %v7566 = vld [vmem:[%s3 + $0x98] sm:$0xff]
      %v7567 = vpack.c.bf16 %v7566, %v7565
      %7568 = vrot.lane.b32.xlu0 %v6995, 108
      %v7569 = vpop.permute.xlu0 %7568
      %7570 = vrot.lane.b32.xlu0 %v6996, 108
      %v7571 = vpop.permute.xlu0 %7570
      %vm7572 = vcmask 883712
      %v7573 = vsel %vm7572, %v7569, %v7571
      %v7575 = vsel %vm7007, %v7567, 0
      %v7578 = vsel %vm7011, %v7573, 0
      %v7581 = vsel %vm7011, %v7571, 0
      %7583 = vmatprep.subr.bf16.mxu0 %v7581
      %7584 = vmatpush1.bf16.msra.mxu0 %v7578
      %7585 = vmatprep.subr.bf16.mxu0 0
      %7586 = vmatpush1.bf16.msra.mxu0 0
      %7587 = vmatprep.subr.bf16.mxu0 0
      %7588 = vmatpush1.bf16.msra.mxu0 0
      %7589 = vmatprep.subr.bf16.mxu0 0
      %7590 = vmatpush1.bf16.msra.mxu0 0
      %7591 = vmatprep.subr.bf16.mxu0 0
      %7592 = vmatpush1.bf16.msra.mxu0 0
      %7593 = vmatprep.subr.bf16.mxu0 0
      %7594 = vmatpush1.bf16.msra.mxu0 0
      %7595 = vmatprep.subr.bf16.mxu0 0
      %7596 = vmatpush1.bf16.msra.mxu0 0
      %7597 = vmatprep.subr.bf16.mxu0 0
      %7598 = vmatpush1.bf16.msra.mxu0 0
      %7599 = vmatprep.subr.bf16.mxu0 0
      %7600 = vmatpush1.bf16.msra.mxu0 0
      %7601 = vmatprep.subr.bf16.mxu0 0
      %7602 = vmatpush1.bf16.msra.mxu0 0
      %7603 = vmatprep.subr.bf16.mxu0 0
      %7604 = vmatpush1.bf16.msra.mxu0 0
      %7605 = vmatprep.subr.bf16.mxu0 0
      %7606 = vmatpush1.bf16.msra.mxu0 0
      %7607 = vmatprep.subr.bf16.mxu0 0
      %7608 = vmatpush1.bf16.msra.mxu0 0
      %7609 = vmatprep.subr.bf16.mxu0 0
      %7610 = vmatpush1.bf16.msra.mxu0 0
      %7611 = vmatprep.subr.bf16.mxu0 0
      %7612 = vmatpush1.bf16.msra.mxu0 0
      %7613 = vmatprep.subr.bf16.mxu0 0
      %7614 = vmatpush1.bf16.msra.mxu0 0
      %7615 = vmatprep.mubr.bf16.mxu0 0
      %7616 = vmatmul.mubr.bf16.gmra.mrb[0].mxu0 %v7575
      %v7617 = vpop.f32.mrb[0].mxu0
      %v7618 = vadd.f32 0.0, %v7617
      %v7619 = vpop.f32.mrb[0].mxu0
      %v7620 = vadd.f32 0.0, %v7619
      %v7621 = vpop.f32.mrb[0].mxu0
      %v7622 = vadd.f32 0.0, %v7621
      %v7623 = vpop.f32.mrb[0].mxu0
      %v7624 = vadd.f32 0.0, %v7623
      %7625 = vdwg.mxu0
      %v7626 = vadd.f32 %v7561, %v7618
      %v7627 = vadd.f32 %v7562, %v7620
      %v7628 = vadd.f32 %v7563, %v7622
      %v7629 = vadd.f32 %v7564, %v7624
      %v7630 = vld [vmem:[%s3 + $0xa0] sm:$0xff]
      %v7631 = vld [vmem:[%s3 + $0xa8] sm:$0xff]
      %v7632 = vpack.c.bf16 %v7631, %v7630
      %7633 = vrot.lane.b32.xlu0 %v6995, 96
      %v7634 = vpop.permute.xlu0 %7633
      %7635 = vrot.lane.b32.xlu0 %v6996, 96
      %v7636 = vpop.permute.xlu0 %7635
      %v7637 = vsel %vm1556, %v7634, %v7636
      %v7639 = vsel %vm7007, %v7632, 0
      %v7642 = vsel %vm7011, %v7637, 0
      %v7645 = vsel %vm7011, %v7636, 0
      %7647 = vmatprep.subr.bf16.mxu0 %v7645
      %7648 = vmatpush1.bf16.msra.mxu0 %v7642
      %7649 = vmatprep.subr.bf16.mxu0 0
      %7650 = vmatpush1.bf16.msra.mxu0 0
      %7651 = vmatprep.subr.bf16.mxu0 0
      %7652 = vmatpush1.bf16.msra.mxu0 0
      %7653 = vmatprep.subr.bf16.mxu0 0
      %7654 = vmatpush1.bf16.msra.mxu0 0
      %7655 = vmatprep.subr.bf16.mxu0 0
      %7656 = vmatpush1.bf16.msra.mxu0 0
      %7657 = vmatprep.subr.bf16.mxu0 0
      %7658 = vmatpush1.bf16.msra.mxu0 0
      %7659 = vmatprep.subr.bf16.mxu0 0
      %7660 = vmatpush1.bf16.msra.mxu0 0
      %7661 = vmatprep.subr.bf16.mxu0 0
      %7662 = vmatpush1.bf16.msra.mxu0 0
      %7663 = vmatprep.subr.bf16.mxu0 0
      %7664 = vmatpush1.bf16.msra.mxu0 0
      %7665 = vmatprep.subr.bf16.mxu0 0
      %7666 = vmatpush1.bf16.msra.mxu0 0
      %7667 = vmatprep.subr.bf16.mxu0 0
      %7668 = vmatpush1.bf16.msra.mxu0 0
      %7669 = vmatprep.subr.bf16.mxu0 0
      %7670 = vmatpush1.bf16.msra.mxu0 0
      %7671 = vmatprep.subr.bf16.mxu0 0
      %7672 = vmatpush1.bf16.msra.mxu0 0
      %7673 = vmatprep.subr.bf16.mxu0 0
      %7674 = vmatpush1.bf16.msra.mxu0 0
      %7675 = vmatprep.subr.bf16.mxu0 0
      %7676 = vmatpush1.bf16.msra.mxu0 0
      %7677 = vmatprep.subr.bf16.mxu0 0
      %7678 = vmatpush1.bf16.msra.mxu0 0
      %7679 = vmatprep.mubr.bf16.mxu0 0
      %7680 = vmatmul.mubr.bf16.gmra.mrb[0].mxu0 %v7639
      %v7681 = vpop.f32.mrb[0].mxu0
      %v7682 = vadd.f32 0.0, %v7681
      %v7683 = vpop.f32.mrb[0].mxu0
      %v7684 = vadd.f32 0.0, %v7683
      %v7685 = vpop.f32.mrb[0].mxu0
      %v7686 = vadd.f32 0.0, %v7685
      %v7687 = vpop.f32.mrb[0].mxu0
      %v7688 = vadd.f32 0.0, %v7687
      %7689 = vdwg.mxu0
      %v7690 = vadd.f32 %v7626, %v7682
      %v7691 = vadd.f32 %v7627, %v7684
      %v7692 = vadd.f32 %v7628, %v7686
      %v7693 = vadd.f32 %v7629, %v7688
      %v7694 = vld [vmem:[%s3 + $0xb0] sm:$0xff]
      %v7695 = vld [vmem:[%s3 + $0xb8] sm:$0xff]
      %v7696 = vpack.c.bf16 %v7695, %v7694
      %7697 = vrot.lane.b32.xlu0 %v6995, 95
      %v7698 = vpop.permute.xlu0 %7697
      %7699 = vrot.lane.b32.xlu0 %v6996, 95
      %v7700 = vpop.permute.xlu0 %7699
      %v7701 = vsel %vm1781, %v7698, %v7700
      %v7703 = vsel %vm7007, %v7696, 0
      %v7706 = vsel %vm7011, %v7701, 0
      %v7709 = vsel %vm7011, %v7700, 0
      %7711 = vmatprep.subr.bf16.mxu0 %v7709
      %7712 = vmatpush1.bf16.msra.mxu0 %v7706
      %7713 = vmatprep.subr.bf16.mxu0 0
      %7714 = vmatpush1.bf16.msra.mxu0 0
      %7715 = vmatprep.subr.bf16.mxu0 0
      %7716 = vmatpush1.bf16.msra.mxu0 0
      %7717 = vmatprep.subr.bf16.mxu0 0
      %7718 = vmatpush1.bf16.msra.mxu0 0
      %7719 = vmatprep.subr.bf16.mxu0 0
      %7720 = vmatpush1.bf16.msra.mxu0 0
      %7721 = vmatprep.subr.bf16.mxu0 0
      %7722 = vmatpush1.bf16.msra.mxu0 0
      %7723 = vmatprep.subr.bf16.mxu0 0
      %7724 = vmatpush1.bf16.msra.mxu0 0
      %7725 = vmatprep.subr.bf16.mxu0 0
      %7726 = vmatpush1.bf16.msra.mxu0 0
      %7727 = vmatprep.subr.bf16.mxu0 0
      %7728 = vmatpush1.bf16.msra.mxu0 0
      %7729 = vmatprep.subr.bf16.mxu0 0
      %7730 = vmatpush1.bf16.msra.mxu0 0
      %7731 = vmatprep.subr.bf16.mxu0 0
      %7732 = vmatpush1.bf16.msra.mxu0 0
      %7733 = vmatprep.subr.bf16.mxu0 0
      %7734 = vmatpush1.bf16.msra.mxu0 0
      %7735 = vmatprep.subr.bf16.mxu0 0
      %7736 = vmatpush1.bf16.msra.mxu0 0
      %7737 = vmatprep.subr.bf16.mxu0 0
      %7738 = vmatpush1.bf16.msra.mxu0 0
      %7739 = vmatprep.subr.bf16.mxu0 0
      %7740 = vmatpush1.bf16.msra.mxu0 0
      %7741 = vmatprep.subr.bf16.mxu0 0
      %7742 = vmatpush1.bf16.msra.mxu0 0
      %7743 = vmatprep.mubr.bf16.mxu0 0
      %7744 = vmatmul.mubr.bf16.gmra.mrb[0].mxu0 %v7703
      %v7745 = vpop.f32.mrb[0].mxu0
      %v7746 = vadd.f32 0.0, %v7745
      %v7747 = vpop.f32.mrb[0].mxu0
      %v7748 = vadd.f32 0.0, %v7747
      %v7749 = vpop.f32.mrb[0].mxu0
      %v7750 = vadd.f32 0.0, %v7749
      %v7751 = vpop.f32.mrb[0].mxu0
      %v7752 = vadd.f32 0.0, %v7751
      %7753 = vdwg.mxu0
      %v7754 = vadd.f32 %v7690, %v7746
      %v7755 = vadd.f32 %v7691, %v7748
      %v7756 = vadd.f32 %v7692, %v7750
      %v7757 = vadd.f32 %v7693, %v7752
      %v7758 = vld [vmem:[%s3 + $0xc0] sm:$0xff]
      %v7759 = vld [vmem:[%s3 + $0xc8] sm:$0xff]
      %v7760 = vpack.c.bf16 %v7759, %v7758
      %7761 = vrot.lane.b32.xlu0 %v6995, 94
      %v7762 = vpop.permute.xlu0 %7761
      %7763 = vrot.lane.b32.xlu0 %v6996, 94
      %v7764 = vpop.permute.xlu0 %7763
      %v7765 = vsel %vm2006, %v7762, %v7764
      %v7767 = vsel %vm7007, %v7760, 0
      %v7770 = vsel %vm7011, %v7765, 0
      %v7773 = vsel %vm7011, %v7764, 0
      %7775 = vmatprep.subr.bf16.mxu0 %v7773
      %7776 = vmatpush1.bf16.msra.mxu0 %v7770
      %7777 = vmatprep.subr.bf16.mxu0 0
      %7778 = vmatpush1.bf16.msra.mxu0 0
      %7779 = vmatprep.subr.bf16.mxu0 0
      %7780 = vmatpush1.bf16.msra.mxu0 0
      %7781 = vmatprep.subr.bf16.mxu0 0
      %7782 = vmatpush1.bf16.msra.mxu0 0
      %7783 = vmatprep.subr.bf16.mxu0 0
      %7784 = vmatpush1.bf16.msra.mxu0 0
      %7785 = vmatprep.subr.bf16.mxu0 0
      %7786 = vmatpush1.bf16.msra.mxu0 0
      %7787 = vmatprep.subr.bf16.mxu0 0
      %7788 = vmatpush1.bf16.msra.mxu0 0
      %7789 = vmatprep.subr.bf16.mxu0 0
      %7790 = vmatpush1.bf16.msra.mxu0 0
      %7791 = vmatprep.subr.bf16.mxu0 0
      %7792 = vmatpush1.bf16.msra.mxu0 0
      %7793 = vmatprep.subr.bf16.mxu0 0
      %7794 = vmatpush1.bf16.msra.mxu0 0
      %7795 = vmatprep.subr.bf16.mxu0 0
      %7796 = vmatpush1.bf16.msra.mxu0 0
      %7797 = vmatprep.subr.bf16.mxu0 0
      %7798 = vmatpush1.bf16.msra.mxu0 0
      %7799 = vmatprep.subr.bf16.mxu0 0
      %7800 = vmatpush1.bf16.msra.mxu0 0
      %7801 = vmatprep.subr.bf16.mxu0 0
      %7802 = vmatpush1.bf16.msra.mxu0 0
      %7803 = vmatprep.subr.bf16.mxu0 0
      %7804 = vmatpush1.bf16.msra.mxu0 0
      %7805 = vmatprep.subr.bf16.mxu0 0
      %7806 = vmatpush1.bf16.msra.mxu0 0
      %7807 = vmatprep.mubr.bf16.mxu0 0
      %7808 = vmatmul.mubr.bf16.gmra.mrb[0].mxu0 %v7767
      %v7809 = vpop.f32.mrb[0].mxu0
      %v7810 = vadd.f32 0.0, %v7809
      %v7811 = vpop.f32.mrb[0].mxu0
      %v7812 = vadd.f32 0.0, %v7811
      %v7813 = vpop.f32.mrb[0].mxu0
      %v7814 = vadd.f32 0.0, %v7813
      %v7815 = vpop.f32.mrb[0].mxu0
      %v7816 = vadd.f32 0.0, %v7815
      %7817 = vdwg.mxu0
      %v7818 = vadd.f32 %v7754, %v7810
      %v7819 = vadd.f32 %v7755, %v7812
      %v7820 = vadd.f32 %v7756, %v7814
      %v7821 = vadd.f32 %v7757, %v7816
      %v7822 = vld [vmem:[%s3 + $0xd0] sm:$0xff]
      %v7823 = vld [vmem:[%s3 + $0xd8] sm:$0xff]
      %v7824 = vpack.c.bf16 %v7823, %v7822
      %7825 = vrot.lane.b32.xlu0 %v6995, 93
      %v7826 = vpop.permute.xlu0 %7825
      %7827 = vrot.lane.b32.xlu0 %v6996, 93
      %v7828 = vpop.permute.xlu0 %7827
      %v7829 = vsel %vm2231, %v7826, %v7828
      %v7831 = vsel %vm7007, %v7824, 0
      %v7834 = vsel %vm7011, %v7829, 0
      %v7837 = vsel %vm7011, %v7828, 0
      %7839 = vmatprep.subr.bf16.mxu0 %v7837
      %7840 = vmatpush1.bf16.msra.mxu0 %v7834
      %7841 = vmatprep.subr.bf16.mxu0 0
      %7842 = vmatpush1.bf16.msra.mxu0 0
      %7843 = vmatprep.subr.bf16.mxu0 0
      %7844 = vmatpush1.bf16.msra.mxu0 0
      %7845 = vmatprep.subr.bf16.mxu0 0
      %7846 = vmatpush1.bf16.msra.mxu0 0
      %7847 = vmatprep.subr.bf16.mxu0 0
      %7848 = vmatpush1.bf16.msra.mxu0 0
      %7849 = vmatprep.subr.bf16.mxu0 0
      %7850 = vmatpush1.bf16.msra.mxu0 0
      %7851 = vmatprep.subr.bf16.mxu0 0
      %7852 = vmatpush1.bf16.msra.mxu0 0
      %7853 = vmatprep.subr.bf16.mxu0 0
      %7854 = vmatpush1.bf16.msra.mxu0 0
      %7855 = vmatprep.subr.bf16.mxu0 0
      %7856 = vmatpush1.bf16.msra.mxu0 0
      %7857 = vmatprep.subr.bf16.mxu0 0
      %7858 = vmatpush1.bf16.msra.mxu0 0
      %7859 = vmatprep.subr.bf16.mxu0 0
      %7860 = vmatpush1.bf16.msra.mxu0 0
      %7861 = vmatprep.subr.bf16.mxu0 0
      %7862 = vmatpush1.bf16.msra.mxu0 0
      %7863 = vmatprep.subr.bf16.mxu0 0
      %7864 = vmatpush1.bf16.msra.mxu0 0
      %7865 = vmatprep.subr.bf16.mxu0 0
      %7866 = vmatpush1.bf16.msra.mxu0 0
      %7867 = vmatprep.subr.bf16.mxu0 0
      %7868 = vmatpush1.bf16.msra.mxu0 0
      %7869 = vmatprep.subr.bf16.mxu0 0
      %7870 = vmatpush1.bf16.msra.mxu0 0
      %7871 = vmatprep.mubr.bf16.mxu0 0
      %7872 = vmatmul.mubr.bf16.gmra.mrb[0].mxu0 %v7831
      %v7873 = vpop.f32.mrb[0].mxu0
      %v7874 = vadd.f32 0.0, %v7873
      %v7875 = vpop.f32.mrb[0].mxu0
      %v7876 = vadd.f32 0.0, %v7875
      %v7877 = vpop.f32.mrb[0].mxu0
      %v7878 = vadd.f32 0.0, %v7877
      %v7879 = vpop.f32.mrb[0].mxu0
      %v7880 = vadd.f32 0.0, %v7879
      %7881 = vdwg.mxu0
      %v7882 = vadd.f32 %v7818, %v7874
      %v7883 = vadd.f32 %v7819, %v7876
      %v7884 = vadd.f32 %v7820, %v7878
      %v7885 = vadd.f32 %v7821, %v7880
      %v7886 = vld [vmem:[%s3 + $0xe0] sm:$0xff]
      %v7887 = vld [vmem:[%s3 + $0xe8] sm:$0xff]
      %v7888 = vpack.c.bf16 %v7887, %v7886
      %7889 = vrot.lane.b32.xlu0 %v6995, 92
      %v7890 = vpop.permute.xlu0 %7889
      %7891 = vrot.lane.b32.xlu0 %v6996, 92
      %v7892 = vpop.permute.xlu0 %7891
      %v7893 = vsel %vm2456, %v7890, %v7892
      %v7895 = vsel %vm7007, %v7888, 0
      %v7898 = vsel %vm7011, %v7893, 0
      %v7901 = vsel %vm7011, %v7892, 0
      %7903 = vmatprep.subr.bf16.mxu0 %v7901
      %7904 = vmatpush1.bf16.msra.mxu0 %v7898
      %7905 = vmatprep.subr.bf16.mxu0 0
      %7906 = vmatpush1.bf16.msra.mxu0 0
      %7907 = vmatprep.subr.bf16.mxu0 0
      %7908 = vmatpush1.bf16.msra.mxu0 0
      %7909 = vmatprep.subr.bf16.mxu0 0
      %7910 = vmatpush1.bf16.msra.mxu0 0
      %7911 = vmatprep.subr.bf16.mxu0 0
      %7912 = vmatpush1.bf16.msra.mxu0 0
      %7913 = vmatprep.subr.bf16.mxu0 0
      %7914 = vmatpush1.bf16.msra.mxu0 0
      %7915 = vmatprep.subr.bf16.mxu0 0
      %7916 = vmatpush1.bf16.msra.mxu0 0
      %7917 = vmatprep.subr.bf16.mxu0 0
      %7918 = vmatpush1.bf16.msra.mxu0 0
      %7919 = vmatprep.subr.bf16.mxu0 0
      %7920 = vmatpush1.bf16.msra.mxu0 0
      %7921 = vmatprep.subr.bf16.mxu0 0
      %7922 = vmatpush1.bf16.msra.mxu0 0
      %7923 = vmatprep.subr.bf16.mxu0 0
      %7924 = vmatpush1.bf16.msra.mxu0 0
      %7925 = vmatprep.subr.bf16.mxu0 0
      %7926 = vmatpush1.bf16.msra.mxu0 0
      %7927 = vmatprep.subr.bf16.mxu0 0
      %7928 = vmatpush1.bf16.msra.mxu0 0
      %7929 = vmatprep.subr.bf16.mxu0 0
      %7930 = vmatpush1.bf16.msra.mxu0 0
      %7931 = vmatprep.subr.bf16.mxu0 0
      %7932 = vmatpush1.bf16.msra.mxu0 0
      %7933 = vmatprep.subr.bf16.mxu0 0
      %7934 = vmatpush1.bf16.msra.mxu0 0
      %7935 = vmatprep.mubr.bf16.mxu0 0
      %7936 = vmatmul.mubr.bf16.gmra.mrb[0].mxu0 %v7895
      %v7937 = vpop.f32.mrb[0].mxu0
      %v7938 = vadd.f32 0.0, %v7937
      %v7939 = vpop.f32.mrb[0].mxu0
      %v7940 = vadd.f32 0.0, %v7939
      %v7941 = vpop.f32.mrb[0].mxu0
      %v7942 = vadd.f32 0.0, %v7941
      %v7943 = vpop.f32.mrb[0].mxu0
      %v7944 = vadd.f32 0.0, %v7943
      %7945 = vdwg.mxu0
      %v7946 = vadd.f32 %v7882, %v7938
      %v7947 = vadd.f32 %v7883, %v7940
      %v7948 = vadd.f32 %v7884, %v7942
      %v7949 = vadd.f32 %v7885, %v7944
      %v7950 = vld [vmem:[%s3 + $0xf0] sm:$0xff]
      %v7951 = vld [vmem:[%s3 + $0xf8] sm:$0xff]
      %v7952 = vpack.c.bf16 %v7951, %v7950
      %7953 = vrot.lane.b32.xlu0 %v6995, 80
      %v7954 = vpop.permute.xlu0 %7953
      %7955 = vrot.lane.b32.xlu0 %v6996, 80
      %v7956 = vpop.permute.xlu0 %7955
      %vm7957 = vcmask 654336
      %v7958 = vsel %vm7957, %v7954, %v7956
      %v7960 = vsel %vm7007, %v7952, 0
      %v7963 = vsel %vm7011, %v7958, 0
      %v7966 = vsel %vm7011, %v7956, 0
      %7968 = vmatprep.subr.bf16.mxu0 %v7966
      %7969 = vmatpush1.bf16.msra.mxu0 %v7963
      %7970 = vmatprep.subr.bf16.mxu0 0
      %7971 = vmatpush1.bf16.msra.mxu0 0
      %7972 = vmatprep.subr.bf16.mxu0 0
      %7973 = vmatpush1.bf16.msra.mxu0 0
      %7974 = vmatprep.subr.bf16.mxu0 0
      %7975 = vmatpush1.bf16.msra.mxu0 0
      %7976 = vmatprep.subr.bf16.mxu0 0
      %7977 = vmatpush1.bf16.msra.mxu0 0
      %7978 = vmatprep.subr.bf16.mxu0 0
      %7979 = vmatpush1.bf16.msra.mxu0 0
      %7980 = vmatprep.subr.bf16.mxu0 0
      %7981 = vmatpush1.bf16.msra.mxu0 0
      %7982 = vmatprep.subr.bf16.mxu0 0
      %7983 = vmatpush1.bf16.msra.mxu0 0
      %7984 = vmatprep.subr.bf16.mxu0 0
      %7985 = vmatpush1.bf16.msra.mxu0 0
      %7986 = vmatprep.subr.bf16.mxu0 0
      %7987 = vmatpush1.bf16.msra.mxu0 0
      %7988 = vmatprep.subr.bf16.mxu0 0
      %7989 = vmatpush1.bf16.msra.mxu0 0
      %7990 = vmatprep.subr.bf16.mxu0 0
      %7991 = vmatpush1.bf16.msra.mxu0 0
      %7992 = vmatprep.subr.bf16.mxu0 0
      %7993 = vmatpush1.bf16.msra.mxu0 0
      %7994 = vmatprep.subr.bf16.mxu0 0
      %7995 = vmatpush1.bf16.msra.mxu0 0
      %7996 = vmatprep.subr.bf16.mxu0 0
      %7997 = vmatpush1.bf16.msra.mxu0 0
      %7998 = vmatprep.subr.bf16.mxu0 0
      %7999 = vmatpush1.bf16.msra.mxu0 0
      %8000 = vmatprep.mubr.bf16.mxu0 0
      %8001 = vmatmul.mubr.bf16.gmra.mrb[0].mxu0 %v7960
      %v8002 = vpop.f32.mrb[0].mxu0
      %v8003 = vadd.f32 0.0, %v8002
      %v8004 = vpop.f32.mrb[0].mxu0
      %v8005 = vadd.f32 0.0, %v8004
      %v8006 = vpop.f32.mrb[0].mxu0
      %v8007 = vadd.f32 0.0, %v8006
      %v8008 = vpop.f32.mrb[0].mxu0
      %v8009 = vadd.f32 0.0, %v8008
      %8010 = vdwg.mxu0
      %v8011 = vadd.f32 %v7946, %v8003
      %v8012 = vadd.f32 %v7947, %v8005
      %v8013 = vadd.f32 %v7948, %v8007
      %v8014 = vadd.f32 %v7949, %v8009
      %v8015 = vld [vmem:[%s3 + $0x100] sm:$0xff]
      %v8016 = vld [vmem:[%s3 + $0x108] sm:$0xff]
      %v8017 = vpack.c.bf16 %v8016, %v8015
      %8018 = vrot.lane.b32.xlu0 %v6995, 79
      %v8019 = vpop.permute.xlu0 %8018
      %8020 = vrot.lane.b32.xlu0 %v6996, 79
      %v8021 = vpop.permute.xlu0 %8020
      %vm8022 = vcmask 646144
      %v8023 = vsel %vm8022, %v8019, %v8021
      %v8025 = vsel %vm7007, %v8017, 0
      %v8028 = vsel %vm7011, %v8023, 0
      %v8031 = vsel %vm7011, %v8021, 0
      %8033 = vmatprep.subr.bf16.mxu0 %v8031
      %8034 = vmatpush1.bf16.msra.mxu0 %v8028
      %8035 = vmatprep.subr.bf16.mxu0 0
      %8036 = vmatpush1.bf16.msra.mxu0 0
      %8037 = vmatprep.subr.bf16.mxu0 0
      %8038 = vmatpush1.bf16.msra.mxu0 0
      %8039 = vmatprep.subr.bf16.mxu0 0
      %8040 = vmatpush1.bf16.msra.mxu0 0
      %8041 = vmatprep.subr.bf16.mxu0 0
      %8042 = vmatpush1.bf16.msra.mxu0 0
      %8043 = vmatprep.subr.bf16.mxu0 0
      %8044 = vmatpush1.bf16.msra.mxu0 0
      %8045 = vmatprep.subr.bf16.mxu0 0
      %8046 = vmatpush1.bf16.msra.mxu0 0
      %8047 = vmatprep.subr.bf16.mxu0 0
      %8048 = vmatpush1.bf16.msra.mxu0 0
      %8049 = vmatprep.subr.bf16.mxu0 0
      %8050 = vmatpush1.bf16.msra.mxu0 0
      %8051 = vmatprep.subr.bf16.mxu0 0
      %8052 = vmatpush1.bf16.msra.mxu0 0
      %8053 = vmatprep.subr.bf16.mxu0 0
      %8054 = vmatpush1.bf16.msra.mxu0 0
      %8055 = vmatprep.subr.bf16.mxu0 0
      %8056 = vmatpush1.bf16.msra.mxu0 0
      %8057 = vmatprep.subr.bf16.mxu0 0
      %8058 = vmatpush1.bf16.msra.mxu0 0
      %8059 = vmatprep.subr.bf16.mxu0 0
      %8060 = vmatpush1.bf16.msra.mxu0 0
      %8061 = vmatprep.subr.bf16.mxu0 0
      %8062 = vmatpush1.bf16.msra.mxu0 0
      %8063 = vmatprep.subr.bf16.mxu0 0
      %8064 = vmatpush1.bf16.msra.mxu0 0
      %8065 = vmatprep.mubr.bf16.mxu0 0
      %8066 = vmatmul.mubr.bf16.gmra.mrb[0].mxu0 %v8025
      %v8067 = vpop.f32.mrb[0].mxu0
      %v8068 = vadd.f32 0.0, %v8067
      %v8069 = vpop.f32.mrb[0].mxu0
      %v8070 = vadd.f32 0.0, %v8069
      %v8071 = vpop.f32.mrb[0].mxu0
      %v8072 = vadd.f32 0.0, %v8071
      %v8073 = vpop.f32.mrb[0].mxu0
      %v8074 = vadd.f32 0.0, %v8073
      %8075 = vdwg.mxu0
      %v8076 = vadd.f32 %v8011, %v8068
      %v8077 = vadd.f32 %v8012, %v8070
      %v8078 = vadd.f32 %v8013, %v8072
      %v8079 = vadd.f32 %v8014, %v8074
      %v8080 = vld [vmem:[%s3 + $0x110] sm:$0xff]
      %v8081 = vld [vmem:[%s3 + $0x118] sm:$0xff]
      %v8082 = vpack.c.bf16 %v8081, %v8080
      %8083 = vrot.lane.b32.xlu0 %v6995, 78
      %v8084 = vpop.permute.xlu0 %8083
      %8085 = vrot.lane.b32.xlu0 %v6996, 78
      %v8086 = vpop.permute.xlu0 %8085
      %vm8087 = vcmask 637952
      %v8088 = vsel %vm8087, %v8084, %v8086
      %v8090 = vsel %vm7007, %v8082, 0
      %v8093 = vsel %vm7011, %v8088, 0
      %v8096 = vsel %vm7011, %v8086, 0
      %8098 = vmatprep.subr.bf16.mxu0 %v8096
      %8099 = vmatpush1.bf16.msra.mxu0 %v8093
      %8100 = vmatprep.subr.bf16.mxu0 0
      %8101 = vmatpush1.bf16.msra.mxu0 0
      %8102 = vmatprep.subr.bf16.mxu0 0
      %8103 = vmatpush1.bf16.msra.mxu0 0
      %8104 = vmatprep.subr.bf16.mxu0 0
      %8105 = vmatpush1.bf16.msra.mxu0 0
      %8106 = vmatprep.subr.bf16.mxu0 0
      %8107 = vmatpush1.bf16.msra.mxu0 0
      %8108 = vmatprep.subr.bf16.mxu0 0
      %8109 = vmatpush1.bf16.msra.mxu0 0
      %8110 = vmatprep.subr.bf16.mxu0 0
      %8111 = vmatpush1.bf16.msra.mxu0 0
      %8112 = vmatprep.subr.bf16.mxu0 0
      %8113 = vmatpush1.bf16.msra.mxu0 0
      %8114 = vmatprep.subr.bf16.mxu0 0
      %8115 = vmatpush1.bf16.msra.mxu0 0
      %8116 = vmatprep.subr.bf16.mxu0 0
      %8117 = vmatpush1.bf16.msra.mxu0 0
      %8118 = vmatprep.subr.bf16.mxu0 0
      %8119 = vmatpush1.bf16.msra.mxu0 0
      %8120 = vmatprep.subr.bf16.mxu0 0
      %8121 = vmatpush1.bf16.msra.mxu0 0
      %8122 = vmatprep.subr.bf16.mxu0 0
      %8123 = vmatpush1.bf16.msra.mxu0 0
      %8124 = vmatprep.subr.bf16.mxu0 0
      %8125 = vmatpush1.bf16.msra.mxu0 0
      %8126 = vmatprep.subr.bf16.mxu0 0
      %8127 = vmatpush1.bf16.msra.mxu0 0
      %8128 = vmatprep.subr.bf16.mxu0 0
      %8129 = vmatpush1.bf16.msra.mxu0 0
      %8130 = vmatprep.mubr.bf16.mxu0 0
      %8131 = vmatmul.mubr.bf16.gmra.mrb[0].mxu0 %v8090
      %v8132 = vpop.f32.mrb[0].mxu0
      %v8133 = vadd.f32 0.0, %v8132
      %v8134 = vpop.f32.mrb[0].mxu0
      %v8135 = vadd.f32 0.0, %v8134
      %v8136 = vpop.f32.mrb[0].mxu0
      %v8137 = vadd.f32 0.0, %v8136
      %v8138 = vpop.f32.mrb[0].mxu0
      %v8139 = vadd.f32 0.0, %v8138
      %8140 = vdwg.mxu0
      %v8141 = vadd.f32 %v8076, %v8133
      %v8142 = vadd.f32 %v8077, %v8135
      %v8143 = vadd.f32 %v8078, %v8137
      %v8144 = vadd.f32 %v8079, %v8139
      %v8145 = vld [vmem:[%s3 + $0x120] sm:$0xff]
      %v8146 = vld [vmem:[%s3 + $0x128] sm:$0xff]
      %v8147 = vpack.c.bf16 %v8146, %v8145
      %8148 = vrot.lane.b32.xlu0 %v6995, 77
      %v8149 = vpop.permute.xlu0 %8148
      %8150 = vrot.lane.b32.xlu0 %v6996, 77
      %v8151 = vpop.permute.xlu0 %8150
      %vm8152 = vcmask 629760
      %v8153 = vsel %vm8152, %v8149, %v8151
      %v8155 = vsel %vm7007, %v8147, 0
      %v8158 = vsel %vm7011, %v8153, 0
      %v8161 = vsel %vm7011, %v8151, 0
      %8163 = vmatprep.subr.bf16.mxu0 %v8161
      %8164 = vmatpush1.bf16.msra.mxu0 %v8158
      %8165 = vmatprep.subr.bf16.mxu0 0
      %8166 = vmatpush1.bf16.msra.mxu0 0
      %8167 = vmatprep.subr.bf16.mxu0 0
      %8168 = vmatpush1.bf16.msra.mxu0 0
      %8169 = vmatprep.subr.bf16.mxu0 0
      %8170 = vmatpush1.bf16.msra.mxu0 0
      %8171 = vmatprep.subr.bf16.mxu0 0
      %8172 = vmatpush1.bf16.msra.mxu0 0
      %8173 = vmatprep.subr.bf16.mxu0 0
      %8174 = vmatpush1.bf16.msra.mxu0 0
      %8175 = vmatprep.subr.bf16.mxu0 0
      %8176 = vmatpush1.bf16.msra.mxu0 0
      %8177 = vmatprep.subr.bf16.mxu0 0
      %8178 = vmatpush1.bf16.msra.mxu0 0
      %8179 = vmatprep.subr.bf16.mxu0 0
      %8180 = vmatpush1.bf16.msra.mxu0 0
      %8181 = vmatprep.subr.bf16.mxu0 0
      %8182 = vmatpush1.bf16.msra.mxu0 0
      %8183 = vmatprep.subr.bf16.mxu0 0
      %8184 = vmatpush1.bf16.msra.mxu0 0
      %8185 = vmatprep.subr.bf16.mxu0 0
      %8186 = vmatpush1.bf16.msra.mxu0 0
      %8187 = vmatprep.subr.bf16.mxu0 0
      %8188 = vmatpush1.bf16.msra.mxu0 0
      %8189 = vmatprep.subr.bf16.mxu0 0
      %8190 = vmatpush1.bf16.msra.mxu0 0
      %8191 = vmatprep.subr.bf16.mxu0 0
      %8192 = vmatpush1.bf16.msra.mxu0 0
      %8193 = vmatprep.subr.bf16.mxu0 0
      %8194 = vmatpush1.bf16.msra.mxu0 0
      %8195 = vmatprep.mubr.bf16.mxu0 0
      %8196 = vmatmul.mubr.bf16.gmra.mrb[0].mxu0 %v8155
      %v8197 = vpop.f32.mrb[0].mxu0
      %v8198 = vadd.f32 0.0, %v8197
      %v8199 = vpop.f32.mrb[0].mxu0
      %v8200 = vadd.f32 0.0, %v8199
      %v8201 = vpop.f32.mrb[0].mxu0
      %v8202 = vadd.f32 0.0, %v8201
      %v8203 = vpop.f32.mrb[0].mxu0
      %v8204 = vadd.f32 0.0, %v8203
      %8205 = vdwg.mxu0
      %v8206 = vadd.f32 %v8141, %v8198
      %v8207 = vadd.f32 %v8142, %v8200
      %v8208 = vadd.f32 %v8143, %v8202
      %v8209 = vadd.f32 %v8144, %v8204
      %v8210 = vld [vmem:[%s3 + $0x130] sm:$0xff]
      %v8211 = vld [vmem:[%s3 + $0x138] sm:$0xff]
      %v8212 = vpack.c.bf16 %v8211, %v8210
      %8213 = vrot.lane.b32.xlu0 %v6995, 76
      %v8214 = vpop.permute.xlu0 %8213
      %8215 = vrot.lane.b32.xlu0 %v6996, 76
      %v8216 = vpop.permute.xlu0 %8215
      %vm8217 = vcmask 621568
      %v8218 = vsel %vm8217, %v8214, %v8216
      %v8220 = vsel %vm7007, %v8212, 0
      %v8223 = vsel %vm7011, %v8218, 0
      %v8226 = vsel %vm7011, %v8216, 0
      %8228 = vmatprep.subr.bf16.mxu0 %v8226
      %8229 = vmatpush1.bf16.msra.mxu0 %v8223
      %8230 = vmatprep.subr.bf16.mxu0 0
      %8231 = vmatpush1.bf16.msra.mxu0 0
      %8232 = vmatprep.subr.bf16.mxu0 0
      %8233 = vmatpush1.bf16.msra.mxu0 0
      %8234 = vmatprep.subr.bf16.mxu0 0
      %8235 = vmatpush1.bf16.msra.mxu0 0
      %8236 = vmatprep.subr.bf16.mxu0 0
      %8237 = vmatpush1.bf16.msra.mxu0 0
      %8238 = vmatprep.subr.bf16.mxu0 0
      %8239 = vmatpush1.bf16.msra.mxu0 0
      %8240 = vmatprep.subr.bf16.mxu0 0
      %8241 = vmatpush1.bf16.msra.mxu0 0
      %8242 = vmatprep.subr.bf16.mxu0 0
      %8243 = vmatpush1.bf16.msra.mxu0 0
      %8244 = vmatprep.subr.bf16.mxu0 0
      %8245 = vmatpush1.bf16.msra.mxu0 0
      %8246 = vmatprep.subr.bf16.mxu0 0
      %8247 = vmatpush1.bf16.msra.mxu0 0
      %8248 = vmatprep.subr.bf16.mxu0 0
      %8249 = vmatpush1.bf16.msra.mxu0 0
      %8250 = vmatprep.subr.bf16.mxu0 0
      %8251 = vmatpush1.bf16.msra.mxu0 0
      %8252 = vmatprep.subr.bf16.mxu0 0
      %8253 = vmatpush1.bf16.msra.mxu0 0
      %8254 = vmatprep.subr.bf16.mxu0 0
      %8255 = vmatpush1.bf16.msra.mxu0 0
      %8256 = vmatprep.subr.bf16.mxu0 0
      %8257 = vmatpush1.bf16.msra.mxu0 0
      %8258 = vmatprep.subr.bf16.mxu0 0
      %8259 = vmatpush1.bf16.msra.mxu0 0
      %8260 = vmatprep.mubr.bf16.mxu0 0
      %8261 = vmatmul.mubr.bf16.gmra.mrb[0].mxu0 %v8220
      %v8262 = vpop.f32.mrb[0].mxu0
      %v8263 = vadd.f32 0.0, %v8262
      %v8264 = vpop.f32.mrb[0].mxu0
      %v8265 = vadd.f32 0.0, %v8264
      %v8266 = vpop.f32.mrb[0].mxu0
      %v8267 = vadd.f32 0.0, %v8266
      %v8268 = vpop.f32.mrb[0].mxu0
      %v8269 = vadd.f32 0.0, %v8268
      %8270 = vdwg.mxu0
      %v8271 = vadd.f32 %v8206, %v8263
      %v8272 = vadd.f32 %v8207, %v8265
      %v8273 = vadd.f32 %v8208, %v8267
      %v8274 = vadd.f32 %v8209, %v8269
      %v8275 = vld [vmem:[%s3 + $0x140] sm:$0xff]
      %v8276 = vld [vmem:[%s3 + $0x148] sm:$0xff]
      %v8277 = vpack.c.bf16 %v8276, %v8275
      %8278 = vrot.lane.b32.xlu0 %v6995, 64
      %v8279 = vpop.permute.xlu0 %8278
      %8280 = vrot.lane.b32.xlu0 %v6996, 64
      %v8281 = vpop.permute.xlu0 %8280
      %v8282 = vsel %vm2681, %v8279, %v8281
      %v8284 = vsel %vm7007, %v8277, 0
      %v8287 = vsel %vm7011, %v8282, 0
      %v8290 = vsel %vm7011, %v8281, 0
      %8292 = vmatprep.subr.bf16.mxu0 %v8290
      %8293 = vmatpush1.bf16.msra.mxu0 %v8287
      %8294 = vmatprep.subr.bf16.mxu0 0
      %8295 = vmatpush1.bf16.msra.mxu0 0
      %8296 = vmatprep.subr.bf16.mxu0 0
      %8297 = vmatpush1.bf16.msra.mxu0 0
      %8298 = vmatprep.subr.bf16.mxu0 0
      %8299 = vmatpush1.bf16.msra.mxu0 0
      %8300 = vmatprep.subr.bf16.mxu0 0
      %8301 = vmatpush1.bf16.msra.mxu0 0
      %8302 = vmatprep.subr.bf16.mxu0 0
      %8303 = vmatpush1.bf16.msra.mxu0 0
      %8304 = vmatprep.subr.bf16.mxu0 0
      %8305 = vmatpush1.bf16.msra.mxu0 0
      %8306 = vmatprep.subr.bf16.mxu0 0
      %8307 = vmatpush1.bf16.msra.mxu0 0
      %8308 = vmatprep.subr.bf16.mxu0 0
      %8309 = vmatpush1.bf16.msra.mxu0 0
      %8310 = vmatprep.subr.bf16.mxu0 0
      %8311 = vmatpush1.bf16.msra.mxu0 0
      %8312 = vmatprep.subr.bf16.mxu0 0
      %8313 = vmatpush1.bf16.msra.mxu0 0
      %8314 = vmatprep.subr.bf16.mxu0 0
      %8315 = vmatpush1.bf16.msra.mxu0 0
      %8316 = vmatprep.subr.bf16.mxu0 0
      %8317 = vmatpush1.bf16.msra.mxu0 0
      %8318 = vmatprep.subr.bf16.mxu0 0
      %8319 = vmatpush1.bf16.msra.mxu0 0
      %8320 = vmatprep.subr.bf16.mxu0 0
      %8321 = vmatpush1.bf16.msra.mxu0 0
      %8322 = vmatprep.subr.bf16.mxu0 0
      %8323 = vmatpush1.bf16.msra.mxu0 0
      %8324 = vmatprep.mubr.bf16.mxu0 0
      %8325 = vmatmul.mubr.bf16.gmra.mrb[0].mxu0 %v8284
      %v8326 = vpop.f32.mrb[0].mxu0
      %v8327 = vadd.f32 0.0, %v8326
      %v8328 = vpop.f32.mrb[0].mxu0
      %v8329 = vadd.f32 0.0, %v8328
      %v8330 = vpop.f32.mrb[0].mxu0
      %v8331 = vadd.f32 0.0, %v8330
      %v8332 = vpop.f32.mrb[0].mxu0
      %v8333 = vadd.f32 0.0, %v8332
      %8334 = vdwg.mxu0
      %v8335 = vadd.f32 %v8271, %v8327
      %v8336 = vadd.f32 %v8272, %v8329
      %v8337 = vadd.f32 %v8273, %v8331
      %v8338 = vadd.f32 %v8274, %v8333
      %v8339 = vld [vmem:[%s3 + $0x150] sm:$0xff]
      %v8340 = vld [vmem:[%s3 + $0x158] sm:$0xff]
      %v8341 = vpack.c.bf16 %v8340, %v8339
      %8342 = vrot.lane.b32.xlu0 %v6995, 63
      %v8343 = vpop.permute.xlu0 %8342
      %8344 = vrot.lane.b32.xlu0 %v6996, 63
      %v8345 = vpop.permute.xlu0 %8344
      %v8346 = vsel %vm2906, %v8343, %v8345
      %v8348 = vsel %vm7007, %v8341, 0
      %v8351 = vsel %vm7011, %v8346, 0
      %v8354 = vsel %vm7011, %v8345, 0
      %8356 = vmatprep.subr.bf16.mxu0 %v8354
      %8357 = vmatpush1.bf16.msra.mxu0 %v8351
      %8358 = vmatprep.subr.bf16.mxu0 0
      %8359 = vmatpush1.bf16.msra.mxu0 0
      %8360 = vmatprep.subr.bf16.mxu0 0
      %8361 = vmatpush1.bf16.msra.mxu0 0
      %8362 = vmatprep.subr.bf16.mxu0 0
      %8363 = vmatpush1.bf16.msra.mxu0 0
      %8364 = vmatprep.subr.bf16.mxu0 0
      %8365 = vmatpush1.bf16.msra.mxu0 0
      %8366 = vmatprep.subr.bf16.mxu0 0
      %8367 = vmatpush1.bf16.msra.mxu0 0
      %8368 = vmatprep.subr.bf16.mxu0 0
      %8369 = vmatpush1.bf16.msra.mxu0 0
      %8370 = vmatprep.subr.bf16.mxu0 0
      %8371 = vmatpush1.bf16.msra.mxu0 0
      %8372 = vmatprep.subr.bf16.mxu0 0
      %8373 = vmatpush1.bf16.msra.mxu0 0
      %8374 = vmatprep.subr.bf16.mxu0 0
      %8375 = vmatpush1.bf16.msra.mxu0 0
      %8376 = vmatprep.subr.bf16.mxu0 0
      %8377 = vmatpush1.bf16.msra.mxu0 0
      %8378 = vmatprep.subr.bf16.mxu0 0
      %8379 = vmatpush1.bf16.msra.mxu0 0
      %8380 = vmatprep.subr.bf16.mxu0 0
      %8381 = vmatpush1.bf16.msra.mxu0 0
      %8382 = vmatprep.subr.bf16.mxu0 0
      %8383 = vmatpush1.bf16.msra.mxu0 0
      %8384 = vmatprep.subr.bf16.mxu0 0
      %8385 = vmatpush1.bf16.msra.mxu0 0
      %8386 = vmatprep.subr.bf16.mxu0 0
      %8387 = vmatpush1.bf16.msra.mxu0 0
      %8388 = vmatprep.mubr.bf16.mxu0 0
      %8389 = vmatmul.mubr.bf16.gmra.mrb[0].mxu0 %v8348
      %v8390 = vpop.f32.mrb[0].mxu0
      %v8391 = vadd.f32 0.0, %v8390
      %v8392 = vpop.f32.mrb[0].mxu0
      %v8393 = vadd.f32 0.0, %v8392
      %v8394 = vpop.f32.mrb[0].mxu0
      %v8395 = vadd.f32 0.0, %v8394
      %v8396 = vpop.f32.mrb[0].mxu0
      %v8397 = vadd.f32 0.0, %v8396
      %8398 = vdwg.mxu0
      %v8399 = vadd.f32 %v8335, %v8391
      %v8400 = vadd.f32 %v8336, %v8393
      %v8401 = vadd.f32 %v8337, %v8395
      %v8402 = vadd.f32 %v8338, %v8397
      %v8403 = vld [vmem:[%s3 + $0x160] sm:$0xff]
      %v8404 = vld [vmem:[%s3 + $0x168] sm:$0xff]
      %v8405 = vpack.c.bf16 %v8404, %v8403
      %8406 = vrot.lane.b32.xlu0 %v6995, 62
      %v8407 = vpop.permute.xlu0 %8406
      %8408 = vrot.lane.b32.xlu0 %v6996, 62
      %v8409 = vpop.permute.xlu0 %8408
      %v8410 = vsel %vm3131, %v8407, %v8409
      %v8412 = vsel %vm7007, %v8405, 0
      %v8415 = vsel %vm7011, %v8410, 0
      %v8418 = vsel %vm7011, %v8409, 0
      %8420 = vmatprep.subr.bf16.mxu0 %v8418
      %8421 = vmatpush1.bf16.msra.mxu0 %v8415
      %8422 = vmatprep.subr.bf16.mxu0 0
      %8423 = vmatpush1.bf16.msra.mxu0 0
      %8424 = vmatprep.subr.bf16.mxu0 0
      %8425 = vmatpush1.bf16.msra.mxu0 0
      %8426 = vmatprep.subr.bf16.mxu0 0
      %8427 = vmatpush1.bf16.msra.mxu0 0
      %8428 = vmatprep.subr.bf16.mxu0 0
      %8429 = vmatpush1.bf16.msra.mxu0 0
      %8430 = vmatprep.subr.bf16.mxu0 0
      %8431 = vmatpush1.bf16.msra.mxu0 0
      %8432 = vmatprep.subr.bf16.mxu0 0
      %8433 = vmatpush1.bf16.msra.mxu0 0
      %8434 = vmatprep.subr.bf16.mxu0 0
      %8435 = vmatpush1.bf16.msra.mxu0 0
      %8436 = vmatprep.subr.bf16.mxu0 0
      %8437 = vmatpush1.bf16.msra.mxu0 0
      %8438 = vmatprep.subr.bf16.mxu0 0
      %8439 = vmatpush1.bf16.msra.mxu0 0
      %8440 = vmatprep.subr.bf16.mxu0 0
      %8441 = vmatpush1.bf16.msra.mxu0 0
      %8442 = vmatprep.subr.bf16.mxu0 0
      %8443 = vmatpush1.bf16.msra.mxu0 0
      %8444 = vmatprep.subr.bf16.mxu0 0
      %8445 = vmatpush1.bf16.msra.mxu0 0
      %8446 = vmatprep.subr.bf16.mxu0 0
      %8447 = vmatpush1.bf16.msra.mxu0 0
      %8448 = vmatprep.subr.bf16.mxu0 0
      %8449 = vmatpush1.bf16.msra.mxu0 0
      %8450 = vmatprep.subr.bf16.mxu0 0
      %8451 = vmatpush1.bf16.msra.mxu0 0
      %8452 = vmatprep.mubr.bf16.mxu0 0
      %8453 = vmatmul.mubr.bf16.gmra.mrb[0].mxu0 %v8412
      %v8454 = vpop.f32.mrb[0].mxu0
      %v8455 = vadd.f32 0.0, %v8454
      %v8456 = vpop.f32.mrb[0].mxu0
      %v8457 = vadd.f32 0.0, %v8456
      %v8458 = vpop.f32.mrb[0].mxu0
      %v8459 = vadd.f32 0.0, %v8458
      %v8460 = vpop.f32.mrb[0].mxu0
      %v8461 = vadd.f32 0.0, %v8460
      %8462 = vdwg.mxu0
      %v8463 = vadd.f32 %v8399, %v8455
      %v8464 = vadd.f32 %v8400, %v8457
      %v8465 = vadd.f32 %v8401, %v8459
      %v8466 = vadd.f32 %v8402, %v8461
      %v8467 = vld [vmem:[%s3 + $0x170] sm:$0xff]
      %v8468 = vld [vmem:[%s3 + $0x178] sm:$0xff]
      %v8469 = vpack.c.bf16 %v8468, %v8467
      %8470 = vrot.lane.b32.xlu0 %v6995, 61
      %v8471 = vpop.permute.xlu0 %8470
      %8472 = vrot.lane.b32.xlu0 %v6996, 61
      %v8473 = vpop.permute.xlu0 %8472
      %v8474 = vsel %vm3356, %v8471, %v8473
      %v8476 = vsel %vm7007, %v8469, 0
      %v8479 = vsel %vm7011, %v8474, 0
      %v8482 = vsel %vm7011, %v8473, 0
      %8484 = vmatprep.subr.bf16.mxu0 %v8482
      %8485 = vmatpush1.bf16.msra.mxu0 %v8479
      %8486 = vmatprep.subr.bf16.mxu0 0
      %8487 = vmatpush1.bf16.msra.mxu0 0
      %8488 = vmatprep.subr.bf16.mxu0 0
      %8489 = vmatpush1.bf16.msra.mxu0 0
      %8490 = vmatprep.subr.bf16.mxu0 0
      %8491 = vmatpush1.bf16.msra.mxu0 0
      %8492 = vmatprep.subr.bf16.mxu0 0
      %8493 = vmatpush1.bf16.msra.mxu0 0
      %8494 = vmatprep.subr.bf16.mxu0 0
      %8495 = vmatpush1.bf16.msra.mxu0 0
      %8496 = vmatprep.subr.bf16.mxu0 0
      %8497 = vmatpush1.bf16.msra.mxu0 0
      %8498 = vmatprep.subr.bf16.mxu0 0
      %8499 = vmatpush1.bf16.msra.mxu0 0
      %8500 = vmatprep.subr.bf16.mxu0 0
      %8501 = vmatpush1.bf16.msra.mxu0 0
      %8502 = vmatprep.subr.bf16.mxu0 0
      %8503 = vmatpush1.bf16.msra.mxu0 0
      %8504 = vmatprep.subr.bf16.mxu0 0
      %8505 = vmatpush1.bf16.msra.mxu0 0
      %8506 = vmatprep.subr.bf16.mxu0 0
      %8507 = vmatpush1.bf16.msra.mxu0 0
      %8508 = vmatprep.subr.bf16.mxu0 0
      %8509 = vmatpush1.bf16.msra.mxu0 0
      %8510 = vmatprep.subr.bf16.mxu0 0
      %8511 = vmatpush1.bf16.msra.mxu0 0
      %8512 = vmatprep.subr.bf16.mxu0 0
      %8513 = vmatpush1.bf16.msra.mxu0 0
      %8514 = vmatprep.subr.bf16.mxu0 0
      %8515 = vmatpush1.bf16.msra.mxu0 0
      %8516 = vmatprep.mubr.bf16.mxu0 0
      %8517 = vmatmul.mubr.bf16.gmra.mrb[0].mxu0 %v8476
      %v8518 = vpop.f32.mrb[0].mxu0
      %v8519 = vadd.f32 0.0, %v8518
      %v8520 = vpop.f32.mrb[0].mxu0
      %v8521 = vadd.f32 0.0, %v8520
      %v8522 = vpop.f32.mrb[0].mxu0
      %v8523 = vadd.f32 0.0, %v8522
      %v8524 = vpop.f32.mrb[0].mxu0
      %v8525 = vadd.f32 0.0, %v8524
      %8526 = vdwg.mxu0
      %v8527 = vadd.f32 %v8463, %v8519
      %v8528 = vadd.f32 %v8464, %v8521
      %v8529 = vadd.f32 %v8465, %v8523
      %v8530 = vadd.f32 %v8466, %v8525
      %v8531 = vld [vmem:[%s3 + $0x180] sm:$0xff]
      %v8532 = vld [vmem:[%s3 + $0x188] sm:$0xff]
      %v8533 = vpack.c.bf16 %v8532, %v8531
      %8534 = vrot.lane.b32.xlu0 %v6995, 60
      %v8535 = vpop.permute.xlu0 %8534
      %8536 = vrot.lane.b32.xlu0 %v6996, 60
      %v8537 = vpop.permute.xlu0 %8536
      %v8538 = vsel %vm3581, %v8535, %v8537
      %v8540 = vsel %vm7007, %v8533, 0
      %v8543 = vsel %vm7011, %v8538, 0
      %v8546 = vsel %vm7011, %v8537, 0
      %8548 = vmatprep.subr.bf16.mxu0 %v8546
      %8549 = vmatpush1.bf16.msra.mxu0 %v8543
      %8550 = vmatprep.subr.bf16.mxu0 0
      %8551 = vmatpush1.bf16.msra.mxu0 0
      %8552 = vmatprep.subr.bf16.mxu0 0
      %8553 = vmatpush1.bf16.msra.mxu0 0
      %8554 = vmatprep.subr.bf16.mxu0 0
      %8555 = vmatpush1.bf16.msra.mxu0 0
      %8556 = vmatprep.subr.bf16.mxu0 0
      %8557 = vmatpush1.bf16.msra.mxu0 0
      %8558 = vmatprep.subr.bf16.mxu0 0
      %8559 = vmatpush1.bf16.msra.mxu0 0
      %8560 = vmatprep.subr.bf16.mxu0 0
      %8561 = vmatpush1.bf16.msra.mxu0 0
      %8562 = vmatprep.subr.bf16.mxu0 0
      %8563 = vmatpush1.bf16.msra.mxu0 0
      %8564 = vmatprep.subr.bf16.mxu0 0
      %8565 = vmatpush1.bf16.msra.mxu0 0
      %8566 = vmatprep.subr.bf16.mxu0 0
      %8567 = vmatpush1.bf16.msra.mxu0 0
      %8568 = vmatprep.subr.bf16.mxu0 0
      %8569 = vmatpush1.bf16.msra.mxu0 0
      %8570 = vmatprep.subr.bf16.mxu0 0
      %8571 = vmatpush1.bf16.msra.mxu0 0
      %8572 = vmatprep.subr.bf16.mxu0 0
      %8573 = vmatpush1.bf16.msra.mxu0 0
      %8574 = vmatprep.subr.bf16.mxu0 0
      %8575 = vmatpush1.bf16.msra.mxu0 0
      %8576 = vmatprep.subr.bf16.mxu0 0
      %8577 = vmatpush1.bf16.msra.mxu0 0
      %8578 = vmatprep.subr.bf16.mxu0 0
      %8579 = vmatpush1.bf16.msra.mxu0 0
      %8580 = vmatprep.mubr.bf16.mxu0 0
      %8581 = vmatmul.mubr.bf16.gmra.mrb[0].mxu0 %v8540
      %v8582 = vpop.f32.mrb[0].mxu0
      %v8583 = vadd.f32 0.0, %v8582
      %v8584 = vpop.f32.mrb[0].mxu0
      %v8585 = vadd.f32 0.0, %v8584
      %v8586 = vpop.f32.mrb[0].mxu0
      %v8587 = vadd.f32 0.0, %v8586
      %v8588 = vpop.f32.mrb[0].mxu0
      %v8589 = vadd.f32 0.0, %v8588
      %8590 = vdwg.mxu0
      %v8591 = vadd.f32 %v8527, %v8583
      %v8592 = vadd.f32 %v8528, %v8585
      %v8593 = vadd.f32 %v8529, %v8587
      %v8594 = vadd.f32 %v8530, %v8589
      %v8595 = vld [vmem:[%s4] sm:$0xff]
      %v8596 = vld [vmem:[%s4 + $0x8] sm:$0xff]
      %8598 = vset.pattern.permute.xlu0 0
      %8599 = vperm.xlu0 %8598, %v8595
      %v8600 = vpop.permute.xlu0 %8599
      %8603 = vset.pattern.permute.xlu0 0
      %8604 = vperm.xlu0 %8603, %v8596
      %v8605 = vpop.permute.xlu0 %8604
      %v8607 = vadd.f32 %v8591, %v8600
      %v8608 = vadd.f32 %v8592, %v8600
      %v8609 = vadd.f32 %v8593, %v8605
      %v8610 = vadd.f32 %v8594, %v8605
      %v8611 = vmax.f32 %v8607, 0.0
      %v8612 = vmax.f32 %v8608, 0.0
      %v8613 = vmax.f32 %v8609, 0.0
      %v8614 = vmax.f32 %v8610, 0.0
      %8619 = vrot.lane.b32.xlu0 %v8611, 127
      %v8620 = vpop.permute.xlu0 %8619
      %8621 = vrot.lane.b32.xlu0 %v8612, 127
      %v8622 = vpop.permute.xlu0 %8621
      %8623 = vrot.lane.b32.xlu0 %v8613, 127
      %v8624 = vpop.permute.xlu0 %8623
      %8625 = vrot.lane.b32.xlu0 %v8614, 127
      %v8626 = vpop.permute.xlu0 %8625
      %v8627 = vsel %vm5113, %v8620, %v8622
      %v8628 = vsel %vm5113, %v8624, %v8626
      %v8633 = vmax.f32 %v8611, %v8627
      %v8634 = vmax.f32 %v8612, %v8622
      %v8635 = vmax.f32 %v8613, %v8628
      %v8636 = vmax.f32 %v8614, %v8626
      %8641 = vrot.lane.b32.xlu0 %v8633, 112
      %v8642 = vpop.permute.xlu0 %8641
      %8643 = vrot.lane.b32.xlu0 %v8634, 112
      %v8644 = vpop.permute.xlu0 %8643
      %8645 = vrot.lane.b32.xlu0 %v8635, 112
      %v8646 = vpop.permute.xlu0 %8645
      %8647 = vrot.lane.b32.xlu0 %v8636, 112
      %v8648 = vpop.permute.xlu0 %8647
      %vm8649 = vcmask 916480
      %v8650 = vsel %vm8649, %v8642, %v8644
      %v8651 = vsel %vm8649, %v8646, %v8648
      %v8656 = vmax.f32 %v8633, %v8650
      %v8657 = vmax.f32 %v8634, %v8644
      %v8658 = vmax.f32 %v8635, %v8651
      %v8659 = vmax.f32 %v8636, %v8648
      %8662 = vrot.lane.b32.xlu0 %v8656, 126
      %v8663 = vpop.permute.xlu0 %8662
      %8664 = vrot.lane.b32.xlu0 %v8658, 126
      %v8665 = vpop.permute.xlu0 %8664
      %8668 = vrot.lane.b32.xlu0 %v8656, 124
      %v8669 = vpop.permute.xlu0 %8668
      %8670 = vrot.lane.b32.xlu0 %v8658, 124
      %v8671 = vpop.permute.xlu0 %8670
      %8674 = vrot.lane.b32.xlu0 %v8656, 122
      %v8675 = vpop.permute.xlu0 %8674
      %8676 = vrot.lane.b32.xlu0 %v8658, 122
      %v8677 = vpop.permute.xlu0 %8676
      %8680 = vrot.lane.b32.xlu0 %v8656, 120
      %v8681 = vpop.permute.xlu0 %8680
      %8682 = vrot.lane.b32.xlu0 %v8658, 120
      %v8683 = vpop.permute.xlu0 %8682
      %8686 = vrot.lane.b32.xlu0 %v8656, 96
      %v8687 = vpop.permute.xlu0 %8686
      %8688 = vrot.lane.b32.xlu0 %v8658, 96
      %v8689 = vpop.permute.xlu0 %8688
      %8692 = vrot.lane.b32.xlu0 %v8656, 94
      %v8693 = vpop.permute.xlu0 %8692
      %8694 = vrot.lane.b32.xlu0 %v8658, 94
      %v8695 = vpop.permute.xlu0 %8694
      %8698 = vrot.lane.b32.xlu0 %v8656, 92
      %v8699 = vpop.permute.xlu0 %8698
      %8700 = vrot.lane.b32.xlu0 %v8658, 92
      %v8701 = vpop.permute.xlu0 %8700
      %8704 = vrot.lane.b32.xlu0 %v8656, 90
      %v8705 = vpop.permute.xlu0 %8704
      %8706 = vrot.lane.b32.xlu0 %v8658, 90
      %v8707 = vpop.permute.xlu0 %8706
      %8710 = vrot.lane.b32.xlu0 %v8656, 88
      %v8711 = vpop.permute.xlu0 %8710
      %8712 = vrot.lane.b32.xlu0 %v8658, 88
      %v8713 = vpop.permute.xlu0 %8712
      %8716 = vrot.lane.b32.xlu0 %v8656, 64
      %v8717 = vpop.permute.xlu0 %8716
      %8718 = vrot.lane.b32.xlu0 %v8658, 64
      %v8719 = vpop.permute.xlu0 %8718
      %8722 = vrot.lane.b32.xlu0 %v8656, 62
      %v8723 = vpop.permute.xlu0 %8722
      %8724 = vrot.lane.b32.xlu0 %v8658, 62
      %v8725 = vpop.permute.xlu0 %8724
      %8728 = vrot.lane.b32.xlu0 %v8656, 60
      %v8729 = vpop.permute.xlu0 %8728
      %8730 = vrot.lane.b32.xlu0 %v8658, 60
      %v8731 = vpop.permute.xlu0 %8730
      %8734 = vrot.lane.b32.xlu0 %v8656, 58
      %v8735 = vpop.permute.xlu0 %8734
      %8736 = vrot.lane.b32.xlu0 %v8658, 58
      %v8737 = vpop.permute.xlu0 %8736
      %8740 = vrot.lane.b32.xlu0 %v8656, 56
      %v8741 = vpop.permute.xlu0 %8740
      %8742 = vrot.lane.b32.xlu0 %v8658, 56
      %v8743 = vpop.permute.xlu0 %8742
      %8746 = vrot.lane.b32.xlu0 %v8656, 32
      %v8747 = vpop.permute.xlu0 %8746
      %8748 = vrot.lane.b32.xlu0 %v8658, 32
      %v8749 = vpop.permute.xlu0 %8748
      %8754 = vrot.lane.b32.xlu0 %v8657, 98
      %v8755 = vpop.permute.xlu0 %8754
      %8756 = vrot.lane.b32.xlu0 %v8659, 98
      %v8757 = vpop.permute.xlu0 %8756
      %8758 = vrot.lane.b32.xlu0 %v8657, 96
      %v8759 = vpop.permute.xlu0 %8758
      %8760 = vrot.lane.b32.xlu0 %v8659, 96
      %v8761 = vpop.permute.xlu0 %8760
      %8762 = vrot.lane.b32.xlu0 %v8657, 94
      %v8763 = vpop.permute.xlu0 %8762
      %8764 = vrot.lane.b32.xlu0 %v8659, 94
      %v8765 = vpop.permute.xlu0 %8764
      %8766 = vrot.lane.b32.xlu0 %v8657, 92
      %v8767 = vpop.permute.xlu0 %8766
      %8768 = vrot.lane.b32.xlu0 %v8659, 92
      %v8769 = vpop.permute.xlu0 %8768
      %8770 = vrot.lane.b32.xlu0 %v8657, 90
      %v8771 = vpop.permute.xlu0 %8770
      %8772 = vrot.lane.b32.xlu0 %v8659, 90
      %v8773 = vpop.permute.xlu0 %8772
      %8774 = vrot.lane.b32.xlu0 %v8656, 30
      %v8775 = vpop.permute.xlu0 %8774
      %8776 = vrot.lane.b32.xlu0 %v8658, 30
      %v8777 = vpop.permute.xlu0 %8776
      %8778 = vrot.lane.b32.xlu0 %v8663, 30
      %v8779 = vpop.permute.xlu0 %8778
      %8780 = vrot.lane.b32.xlu0 %v8665, 30
      %v8781 = vpop.permute.xlu0 %8780
      %8782 = vrot.lane.b32.xlu0 %v8669, 30
      %v8783 = vpop.permute.xlu0 %8782
      %8784 = vrot.lane.b32.xlu0 %v8671, 30
      %v8785 = vpop.permute.xlu0 %8784
      %8786 = vrot.lane.b32.xlu0 %v8675, 30
      %v8787 = vpop.permute.xlu0 %8786
      %8788 = vrot.lane.b32.xlu0 %v8677, 30
      %v8789 = vpop.permute.xlu0 %8788
      %8790 = vrot.lane.b32.xlu0 %v8755, 30
      %v8791 = vpop.permute.xlu0 %8790
      %8792 = vrot.lane.b32.xlu0 %v8757, 30
      %v8793 = vpop.permute.xlu0 %8792
      %8794 = vrot.lane.b32.xlu0 %v8759, 30
      %v8795 = vpop.permute.xlu0 %8794
      %8796 = vrot.lane.b32.xlu0 %v8761, 30
      %v8797 = vpop.permute.xlu0 %8796
      %8798 = vrot.lane.b32.xlu0 %v8763, 30
      %v8799 = vpop.permute.xlu0 %8798
      %8800 = vrot.lane.b32.xlu0 %v8765, 30
      %v8801 = vpop.permute.xlu0 %8800
      %8802 = vrot.lane.b32.xlu0 %v8767, 30
      %v8803 = vpop.permute.xlu0 %8802
      %8804 = vrot.lane.b32.xlu0 %v8769, 30
      %v8805 = vpop.permute.xlu0 %8804
      %8806 = vrot.lane.b32.xlu0 %v8771, 30
      %v8807 = vpop.permute.xlu0 %8806
      %8808 = vrot.lane.b32.xlu0 %v8773, 30
      %v8809 = vpop.permute.xlu0 %8808
      %v8828 = vpack.c.bf16 %v8658, %v8656
      %v8829 = vpack.c.bf16 %v8665, %v8663
      %v8830 = vpack.c.bf16 %v8671, %v8669
      %v8831 = vpack.c.bf16 %v8677, %v8675
      %v8832 = vpack.c.bf16 %v8683, %v8681
      %v8833 = vpack.c.bf16 %v8689, %v8687
      %v8834 = vpack.c.bf16 %v8695, %v8693
      %v8835 = vpack.c.bf16 %v8701, %v8699
      %v8836 = vpack.c.bf16 %v8707, %v8705
      %v8837 = vpack.c.bf16 %v8713, %v8711
      %v8838 = vpack.c.bf16 %v8719, %v8717
      %v8839 = vpack.c.bf16 %v8725, %v8723
      %v8840 = vpack.c.bf16 %v8731, %v8729
      %v8841 = vpack.c.bf16 %v8737, %v8735
      %v8842 = vpack.c.bf16 %v8743, %v8741
      %v8843 = vpack.c.bf16 %v8749, %v8747
      %v8844 = vpack.c.bf16 %v8777, %v8775
      %v8845 = vpack.c.bf16 %v8781, %v8779
      %v8846 = vpack.c.bf16 %v8785, %v8783
      %v8847 = vpack.c.bf16 %v8789, %v8787
      %v8848 = vpack.c.bf16 %v8793, %v8791
      %v8849 = vpack.c.bf16 %v8797, %v8795
      %v8850 = vpack.c.bf16 %v8801, %v8799
      %v8851 = vpack.c.bf16 %v8805, %v8803
      %v8852 = vpack.c.bf16 %v8809, %v8807
      %v8853 = vld [vmem:[%s6] sm:$0xff]
      %v8854 = vld [vmem:[%s6 + $0x8] sm:$0xff]
      %v8855 = vld [vmem:[%s6 + $0x10] sm:$0xff]
      %v8856 = vld [vmem:[%s6 + $0x18] sm:$0xff]
      %v8857 = vld [vmem:[%s6 + $0x20] sm:$0xff]
      %v8858 = vld [vmem:[%s6 + $0x28] sm:$0xff]
      %v8859 = vld [vmem:[%s6 + $0x30] sm:$0xff]
      %v8860 = vld [vmem:[%s6 + $0x38] sm:$0xff]
      %v8861 = vld [vmem:[%s6 + $0x40] sm:$0xff]
      %v8862 = vld [vmem:[%s6 + $0x48] sm:$0xff]
      %v8863 = vld [vmem:[%s6 + $0x50] sm:$0xff]
      %v8864 = vld [vmem:[%s6 + $0x58] sm:$0xff]
      %v8865 = vld [vmem:[%s6 + $0x60] sm:$0xff]
      %v8866 = vld [vmem:[%s6 + $0x68] sm:$0xff]
      %v8867 = vld [vmem:[%s6 + $0x70] sm:$0xff]
      %v8868 = vld [vmem:[%s6 + $0x78] sm:$0xff]
      %v8869 = vld [vmem:[%s6 + $0x80] sm:$0xff]
      %v8870 = vld [vmem:[%s6 + $0x88] sm:$0xff]
      %v8871 = vld [vmem:[%s6 + $0x90] sm:$0xff]
      %v8872 = vld [vmem:[%s6 + $0x98] sm:$0xff]
      %v8873 = vld [vmem:[%s6 + $0xa0] sm:$0xff]
      %v8874 = vld [vmem:[%s6 + $0xa8] sm:$0xff]
      %v8875 = vld [vmem:[%s6 + $0xb0] sm:$0xff]
      %v8876 = vld [vmem:[%s6 + $0xb8] sm:$0xff]
      %v8877 = vld [vmem:[%s6 + $0xc0] sm:$0xff]
      %v8878 = vld [vmem:[%s6 + $0xc8] sm:$0xff]
      %v8879 = vld [vmem:[%s6 + $0xd0] sm:$0xff]
      %v8880 = vld [vmem:[%s6 + $0xd8] sm:$0xff]
      %v8881 = vld [vmem:[%s6 + $0xe0] sm:$0xff]
      %v8882 = vld [vmem:[%s6 + $0xe8] sm:$0xff]
      %v8883 = vld [vmem:[%s7] sm:$0xff]
      %v8884 = vld [vmem:[%s7 + $0x8] sm:$0xff]
      %v8885 = vld [vmem:[%s7 + $0x10] sm:$0xff]
      %v8886 = vld [vmem:[%s7 + $0x18] sm:$0xff]
      %v8887 = vld [vmem:[%s7 + $0x20] sm:$0xff]
      %v8888 = vld [vmem:[%s7 + $0x28] sm:$0xff]
      %v8889 = vld [vmem:[%s7 + $0x30] sm:$0xff]
      %v8890 = vld [vmem:[%s7 + $0x38] sm:$0xff]
      %v8891 = vld [vmem:[%s7 + $0x40] sm:$0xff]
      %v8892 = vld [vmem:[%s7 + $0x48] sm:$0xff]
      %v8893 = vld [vmem:[%s7 + $0x50] sm:$0xff]
      %v8894 = vld [vmem:[%s7 + $0x58] sm:$0xff]
      %v8895 = vld [vmem:[%s7 + $0x60] sm:$0xff]
      %v8896 = vld [vmem:[%s7 + $0x68] sm:$0xff]
      %v8897 = vld [vmem:[%s7 + $0x70] sm:$0xff]
      %v8928 = vunpack.c.l.b16 %v8853
      %v8929 = vunpack.c.h.b16 %v8853
      %v8930 = vunpack.c.l.b16 %v8854
      %v8931 = vunpack.c.h.b16 %v8854
      %v8932 = vunpack.c.l.b16 %v8855
      %v8933 = vunpack.c.h.b16 %v8855
      %v8934 = vunpack.c.l.b16 %v8856
      %v8935 = vunpack.c.h.b16 %v8856
      %v8936 = vunpack.c.l.b16 %v8857
      %v8937 = vunpack.c.h.b16 %v8857
      %v8938 = vunpack.c.l.b16 %v8858
      %v8939 = vunpack.c.h.b16 %v8858
      %v8940 = vunpack.c.l.b16 %v8859
      %v8941 = vunpack.c.h.b16 %v8859
      %v8942 = vunpack.c.l.b16 %v8860
      %v8943 = vunpack.c.h.b16 %v8860
      %v8944 = vunpack.c.l.b16 %v8861
      %v8945 = vunpack.c.h.b16 %v8861
      %v8946 = vunpack.c.l.b16 %v8862
      %v8947 = vunpack.c.h.b16 %v8862
      %v8948 = vunpack.c.l.b16 %v8863
      %v8949 = vunpack.c.h.b16 %v8863
      %v8950 = vunpack.c.l.b16 %v8864
      %v8951 = vunpack.c.h.b16 %v8864
      %v8952 = vunpack.c.l.b16 %v8865
      %v8953 = vunpack.c.h.b16 %v8865
      %v8954 = vunpack.c.l.b16 %v8866
      %v8955 = vunpack.c.h.b16 %v8866
      %v8956 = vunpack.c.l.b16 %v8867
      %v8957 = vunpack.c.h.b16 %v8867
      %v8958 = vunpack.c.l.b16 %v8868
      %v8959 = vunpack.c.h.b16 %v8868
      %v8960 = vunpack.c.l.b16 %v8869
      %v8961 = vunpack.c.h.b16 %v8869
      %v8962 = vunpack.c.l.b16 %v8870
      %v8963 = vunpack.c.h.b16 %v8870
      %v8964 = vunpack.c.l.b16 %v8871
      %v8965 = vunpack.c.h.b16 %v8871
      %v8966 = vunpack.c.l.b16 %v8872
      %v8967 = vunpack.c.h.b16 %v8872
      %v8968 = vunpack.c.l.b16 %v8873
      %v8969 = vunpack.c.h.b16 %v8873
      %v8970 = vunpack.c.l.b16 %v8874
      %v8971 = vunpack.c.h.b16 %v8874
      %v8972 = vunpack.c.l.b16 %v8875
      %v8973 = vunpack.c.h.b16 %v8875
      %v8974 = vunpack.c.l.b16 %v8876
      %v8975 = vunpack.c.h.b16 %v8876
      %v8976 = vunpack.c.l.b16 %v8877
      %v8977 = vunpack.c.h.b16 %v8877
      %v8978 = vunpack.c.l.b16 %v8878
      %v8979 = vunpack.c.h.b16 %v8878
      %v8980 = vunpack.c.l.b16 %v8879
      %v8981 = vunpack.c.h.b16 %v8879
      %v8982 = vunpack.c.l.b16 %v8880
      %v8983 = vunpack.c.h.b16 %v8880
      %v8984 = vunpack.c.l.b16 %v8881
      %v8985 = vunpack.c.h.b16 %v8881
      %v8986 = vunpack.c.l.b16 %v8882
      %v8987 = vunpack.c.h.b16 %v8882
      %v8988 = vpack.c.b16 %v8932, %v8928
      %v8989 = vpack.c.b16 %v8933, %v8929
      %v8990 = vpack.c.b16 %v8934, %v8930
      %v8991 = vpack.c.b16 %v8935, %v8931
      %v8992 = vpack.c.b16 %v8940, %v8936
      %v8993 = vpack.c.b16 %v8941, %v8937
      %v8994 = vpack.c.b16 %v8942, %v8938
      %v8995 = vpack.c.b16 %v8943, %v8939
      %v8996 = vpack.c.b16 %v8948, %v8944
      %v8997 = vpack.c.b16 %v8949, %v8945
      %v8998 = vpack.c.b16 %v8950, %v8946
      %v8999 = vpack.c.b16 %v8951, %v8947
      %v9000 = vpack.c.b16 %v8956, %v8952
      %v9001 = vpack.c.b16 %v8957, %v8953
      %v9002 = vpack.c.b16 %v8958, %v8954
      %v9003 = vpack.c.b16 %v8959, %v8955
      %v9004 = vpack.c.b16 %v8964, %v8960
      %v9005 = vpack.c.b16 %v8965, %v8961
      %v9006 = vpack.c.b16 %v8966, %v8962
      %v9007 = vpack.c.b16 %v8967, %v8963
      %v9008 = vpack.c.b16 %v8972, %v8968
      %v9009 = vpack.c.b16 %v8973, %v8969
      %v9010 = vpack.c.b16 %v8974, %v8970
      %v9011 = vpack.c.b16 %v8975, %v8971
      %v9012 = vpack.c.b16 %v8980, %v8976
      %v9013 = vpack.c.b16 %v8981, %v8977
      %v9014 = vpack.c.b16 %v8982, %v8978
      %v9015 = vpack.c.b16 %v8983, %v8979
      %v9016 = vpack.c.b16 %v8984, %v8984
      %v9017 = vpack.c.b16 %v8985, %v8985
      %v9018 = vpack.c.b16 %v8986, %v8986
      %v9019 = vpack.c.b16 %v8987, %v8987
      %vm9044 = vcmask 130048
      %v9046 = vsel %vm9044, %v8991, 0
      %v9049 = vsel %vm9044, %v8995, 0
      %v9052 = vsel %vm9044, %v8999, 0
      %v9055 = vsel %vm9044, %v9003, 0
      %v9058 = vsel %vm9044, %v9007, 0
      %v9061 = vsel %vm9044, %v9011, 0
      %v9064 = vsel %vm9044, %v9015, 0
      %v9067 = vsel %vm9044, %v9019, 0
      %9069 = vmatprep.subr.bf16.mxu0 0
      %9070 = vmatpush1.bf16.msra.mxu0 %v8828
      %9071 = vmatprep.subr.bf16.mxu0 0
      %9072 = vmatpush1.bf16.msra.mxu0 %v8829
      %9073 = vmatprep.subr.bf16.mxu0 0
      %9074 = vmatpush1.bf16.msra.mxu0 %v8830
      %9075 = vmatprep.subr.bf16.mxu0 0
      %9076 = vmatpush1.bf16.msra.mxu0 %v8831
      %9077 = vmatprep.subr.bf16.mxu0 0
      %9078 = vmatpush1.bf16.msra.mxu0 %v8832
      %9079 = vmatprep.subr.bf16.mxu0 0
      %9080 = vmatpush1.bf16.msra.mxu0 %v8833
      %9081 = vmatprep.subr.bf16.mxu0 0
      %9082 = vmatpush1.bf16.msra.mxu0 %v8834
      %9083 = vmatprep.subr.bf16.mxu0 0
      %9084 = vmatpush1.bf16.msra.mxu0 %v8835
      %9085 = vmatprep.subr.bf16.mxu0 0
      %9086 = vmatpush1.bf16.msra.mxu0 %v8836
      %9087 = vmatprep.subr.bf16.mxu0 0
      %9088 = vmatpush1.bf16.msra.mxu0 %v8837
      %9089 = vmatprep.subr.bf16.mxu0 0
      %9090 = vmatpush1.bf16.msra.mxu0 %v8838
      %9091 = vmatprep.subr.bf16.mxu0 0
      %9092 = vmatpush1.bf16.msra.mxu0 %v8839
      %9093 = vmatprep.subr.bf16.mxu0 0
      %9094 = vmatpush1.bf16.msra.mxu0 %v8840
      %9095 = vmatprep.subr.bf16.mxu0 0
      %9096 = vmatpush1.bf16.msra.mxu0 %v8841
      %9097 = vmatprep.subr.bf16.mxu0 0
      %9098 = vmatpush1.bf16.msra.mxu0 %v8842
      %9099 = vmatprep.subr.bf16.mxu0 0
      %9100 = vmatpush1.bf16.msra.mxu0 %v8843
      %9101 = vmatprep.mubr.bf16.mxu0 %v8989
      %9102 = vmatmul.mubr.bf16.gmra.mrb[0].mxu0 %v8988
      %v9103 = vpop.f32.mrb[0].mxu0
      %v9104 = vadd.f32 %v8883, %v9103
      %v9105 = vpop.f32.mrb[0].mxu0
      %v9106 = vpop.f32.mrb[0].mxu0
      %v9107 = vadd.f32 %v8884, %v9106
      %v9108 = vpop.f32.mrb[0].mxu0
      %9109 = vmatprep.mubr.bf16.mxu0 %v8993
      %9110 = vmatmul.mubr.bf16.gmra.mrb[0].mxu0 %v8992
      %v9111 = vpop.f32.mrb[0].mxu0
      %v9112 = vadd.f32 %v8885, %v9111
      %v9113 = vpop.f32.mrb[0].mxu0
      %v9114 = vpop.f32.mrb[0].mxu0
      %v9115 = vadd.f32 %v8886, %v9114
      %v9116 = vpop.f32.mrb[0].mxu0
      %9117 = vmatprep.mubr.bf16.mxu0 %v8997
      %9118 = vmatmul.mubr.bf16.gmra.mrb[0].mxu0 %v8996
      %v9119 = vpop.f32.mrb[0].mxu0
      %v9120 = vadd.f32 %v8887, %v9119
      %v9121 = vpop.f32.mrb[0].mxu0
      %v9122 = vpop.f32.mrb[0].mxu0
      %v9123 = vadd.f32 %v8888, %v9122
      %v9124 = vpop.f32.mrb[0].mxu0
      %9125 = vmatprep.mubr.bf16.mxu0 %v9001
      %9126 = vmatmul.mubr.bf16.gmra.mrb[0].mxu0 %v9000
      %v9127 = vpop.f32.mrb[0].mxu0
      %v9128 = vadd.f32 %v8889, %v9127
      %v9129 = vpop.f32.mrb[0].mxu0
      %v9130 = vpop.f32.mrb[0].mxu0
      %v9131 = vadd.f32 %v8890, %v9130
      %v9132 = vpop.f32.mrb[0].mxu0
      %9133 = vmatprep.mubr.bf16.mxu0 %v9005
      %9134 = vmatmul.mubr.bf16.gmra.mrb[0].mxu0 %v9004
      %v9135 = vpop.f32.mrb[0].mxu0
      %v9136 = vadd.f32 %v8891, %v9135
      %v9137 = vpop.f32.mrb[0].mxu0
      %v9138 = vpop.f32.mrb[0].mxu0
      %v9139 = vadd.f32 %v8892, %v9138
      %v9140 = vpop.f32.mrb[0].mxu0
      %9141 = vmatprep.mubr.bf16.mxu0 %v9009
      %9142 = vmatmul.mubr.bf16.gmra.mrb[0].mxu0 %v9008
      %v9143 = vpop.f32.mrb[0].mxu0
      %v9144 = vadd.f32 %v8893, %v9143
      %v9145 = vpop.f32.mrb[0].mxu0
      %v9146 = vpop.f32.mrb[0].mxu0
      %v9147 = vadd.f32 %v8894, %v9146
      %v9148 = vpop.f32.mrb[0].mxu0
      %9149 = vmatprep.mubr.bf16.mxu0 %v9013
      %9150 = vmatmul.mubr.bf16.gmra.mrb[0].mxu0 %v9012
      %v9151 = vpop.f32.mrb[0].mxu0
      %v9152 = vadd.f32 %v8895, %v9151
      %v9153 = vpop.f32.mrb[0].mxu0
      %v9154 = vpop.f32.mrb[0].mxu0
      %v9155 = vadd.f32 %v8896, %v9154
      %v9156 = vpop.f32.mrb[0].mxu0
      %9157 = vmatprep.mubr.bf16.mxu0 %v9017
      %9158 = vmatmul.mubr.bf16.gmra.mrb[0].mxu0 %v9016
      %v9159 = vpop.f32.mrb[0].mxu0
      %v9160 = vadd.f32 %v8897, %v9159
      %v9161 = vpop.f32.mrb[0].mxu0
      %v9162 = vpop.f32.mrb[0].mxu0
      %v9163 = vpop.f32.mrb[0].mxu0
      %9164 = vdwg.mxu0
      %9165 = vmatprep.subr.bf16.mxu0 0
      %9166 = vmatpush1.bf16.msra.mxu0 %v8844
      %9167 = vmatprep.subr.bf16.mxu0 0
      %9168 = vmatpush1.bf16.msra.mxu0 %v8845
      %9169 = vmatprep.subr.bf16.mxu0 0
      %9170 = vmatpush1.bf16.msra.mxu0 %v8846
      %9171 = vmatprep.subr.bf16.mxu0 0
      %9172 = vmatpush1.bf16.msra.mxu0 %v8847
      %9173 = vmatprep.subr.bf16.mxu0 0
      %9174 = vmatpush1.bf16.msra.mxu0 %v8848
      %9175 = vmatprep.subr.bf16.mxu0 0
      %9176 = vmatpush1.bf16.msra.mxu0 %v8849
      %9177 = vmatprep.subr.bf16.mxu0 0
      %9178 = vmatpush1.bf16.msra.mxu0 %v8850
      %9179 = vmatprep.subr.bf16.mxu0 0
      %9180 = vmatpush1.bf16.msra.mxu0 %v8851
      %9181 = vmatprep.subr.bf16.mxu0 0
      %9182 = vmatpush1.bf16.msra.mxu0 %v8852
      %9183 = vmatprep.subr.bf16.mxu0 0
      %9184 = vmatpush1.bf16.msra.mxu0 0
      %9185 = vmatprep.subr.bf16.mxu0 0
      %9186 = vmatpush1.bf16.msra.mxu0 0
      %9187 = vmatprep.subr.bf16.mxu0 0
      %9188 = vmatpush1.bf16.msra.mxu0 0
      %9189 = vmatprep.subr.bf16.mxu0 0
      %9190 = vmatpush1.bf16.msra.mxu0 0
      %9191 = vmatprep.subr.bf16.mxu0 0
      %9192 = vmatpush1.bf16.msra.mxu0 0
      %9193 = vmatprep.subr.bf16.mxu0 0
      %9194 = vmatpush1.bf16.msra.mxu0 0
      %9195 = vmatprep.subr.bf16.mxu0 0
      %9196 = vmatpush1.bf16.msra.mxu0 0
      %9197 = vmatprep.mubr.bf16.mxu0 %v9046
      %9198 = vmatmul.mubr.bf16.gmra.mrb[0].mxu0 %v8990
      %v9199 = vpop.f32.mrb[0].mxu0
      %v9200 = vadd.f32 %v9104, %v9199
      %v9201 = vpop.f32.mrb[0].mxu0
      %v9202 = vpop.f32.mrb[0].mxu0
      %v9203 = vadd.f32 %v9107, %v9202
      %v9204 = vpop.f32.mrb[0].mxu0
      %9205 = vmatprep.mubr.bf16.mxu0 %v9049
      %9206 = vmatmul.mubr.bf16.gmra.mrb[0].mxu0 %v8994
      %v9207 = vpop.f32.mrb[0].mxu0
      %v9208 = vadd.f32 %v9112, %v9207
      %v9209 = vpop.f32.mrb[0].mxu0
      %v9210 = vpop.f32.mrb[0].mxu0
      %v9211 = vadd.f32 %v9115, %v9210
      %v9212 = vpop.f32.mrb[0].mxu0
      %9213 = vmatprep.mubr.bf16.mxu0 %v9052
      %9214 = vmatmul.mubr.bf16.gmra.mrb[0].mxu0 %v8998
      %v9215 = vpop.f32.mrb[0].mxu0
      %v9216 = vadd.f32 %v9120, %v9215
      %v9217 = vpop.f32.mrb[0].mxu0
      %v9218 = vpop.f32.mrb[0].mxu0
      %v9219 = vadd.f32 %v9123, %v9218
      %v9220 = vpop.f32.mrb[0].mxu0
      %9221 = vmatprep.mubr.bf16.mxu0 %v9055
      %9222 = vmatmul.mubr.bf16.gmra.mrb[0].mxu0 %v9002
      %v9223 = vpop.f32.mrb[0].mxu0
      %v9224 = vadd.f32 %v9128, %v9223
      %v9225 = vpop.f32.mrb[0].mxu0
      %v9226 = vpop.f32.mrb[0].mxu0
      %v9227 = vadd.f32 %v9131, %v9226
      %v9228 = vpop.f32.mrb[0].mxu0
      %9229 = vmatprep.mubr.bf16.mxu0 %v9058
      %9230 = vmatmul.mubr.bf16.gmra.mrb[0].mxu0 %v9006
      %v9231 = vpop.f32.mrb[0].mxu0
      %v9232 = vadd.f32 %v9136, %v9231
      %v9233 = vpop.f32.mrb[0].mxu0
      %v9234 = vpop.f32.mrb[0].mxu0
      %v9235 = vadd.f32 %v9139, %v9234
      %v9236 = vpop.f32.mrb[0].mxu0
      %9237 = vmatprep.mubr.bf16.mxu0 %v9061
      %9238 = vmatmul.mubr.bf16.gmra.mrb[0].mxu0 %v9010
      %v9239 = vpop.f32.mrb[0].mxu0
      %v9240 = vadd.f32 %v9144, %v9239
      %v9241 = vpop.f32.mrb[0].mxu0
      %v9242 = vpop.f32.mrb[0].mxu0
      %v9243 = vadd.f32 %v9147, %v9242
      %v9244 = vpop.f32.mrb[0].mxu0
      %9245 = vmatprep.mubr.bf16.mxu0 %v9064
      %9246 = vmatmul.mubr.bf16.gmra.mrb[0].mxu0 %v9014
      %v9247 = vpop.f32.mrb[0].mxu0
      %v9248 = vadd.f32 %v9152, %v9247
      %v9249 = vpop.f32.mrb[0].mxu0
      %v9250 = vpop.f32.mrb[0].mxu0
      %v9251 = vadd.f32 %v9155, %v9250
      %v9252 = vpop.f32.mrb[0].mxu0
      %9253 = vmatprep.mubr.bf16.mxu0 %v9067
      %9254 = vmatmul.mubr.bf16.gmra.mrb[0].mxu0 %v9018
      %v9255 = vpop.f32.mrb[0].mxu0
      %v9256 = vadd.f32 %v9160, %v9255
      %v9257 = vpop.f32.mrb[0].mxu0
      %v9258 = vpop.f32.mrb[0].mxu0
      %v9259 = vpop.f32.mrb[0].mxu0
      %9260 = vdwg.mxu0
      %v9261 = vmax.f32 %v9200, 0.0
      %v9262 = vmax.f32 %v9203, 0.0
      %v9263 = vmax.f32 %v9208, 0.0
      %v9264 = vmax.f32 %v9211, 0.0
      %v9265 = vmax.f32 %v9216, 0.0
      %v9266 = vmax.f32 %v9219, 0.0
      %v9267 = vmax.f32 %v9224, 0.0
      %v9268 = vmax.f32 %v9227, 0.0
      %v9269 = vmax.f32 %v9232, 0.0
      %v9270 = vmax.f32 %v9235, 0.0
      %v9271 = vmax.f32 %v9240, 0.0
      %v9272 = vmax.f32 %v9243, 0.0
      %v9273 = vmax.f32 %v9248, 0.0
      %v9274 = vmax.f32 %v9251, 0.0
      %v9275 = vmax.f32 %v9256, 0.0
      %v9276 = vpack.c.bf16 %v9262, %v9261
      %v9277 = vpack.c.bf16 %v9264, %v9263
      %v9278 = vpack.c.bf16 %v9266, %v9265
      %v9279 = vpack.c.bf16 %v9268, %v9267
      %v9280 = vpack.c.bf16 %v9270, %v9269
      %v9281 = vpack.c.bf16 %v9272, %v9271
      %v9282 = vpack.c.bf16 %v9274, %v9273
      %v9283 = vpack.c.bf16 %v9275, %v9275
      %v9284 = vld [vmem:[%s8] sm:$0xf]
      %v9285 = vld [vmem:[%s8 + $0x4] sm:$0xf]
      %v9286 = vld [vmem:[%s8 + $0x8] sm:$0xf]
      %v9287 = vld [vmem:[%s8 + $0xc] sm:$0xf]
      %v9288 = vld [vmem:[%s8 + $0x10] sm:$0xf]
      %v9289 = vld [vmem:[%s8 + $0x14] sm:$0xf]
      %v9290 = vld [vmem:[%s8 + $0x18] sm:$0xf]
      %v9291 = vld [vmem:[%s8 + $0x1c] sm:$0xf]
      %v9292 = vld [vmem:[%s8 + $0x20] sm:$0xf]
      %v9293 = vld [vmem:[%s8 + $0x24] sm:$0xf]
      %v9294 = vld [vmem:[%s8 + $0x28] sm:$0x3]
      %v9295 = vld [vmem:[%s9] sm:$0xff]
      %v9296 = vld [vmem:[%s9 + $0x8] sm:$0xff]
      %v9297 = vld [vmem:[%s9 + $0x10] sm:$0xff]
      %v9298 = vld [vmem:[%s9 + $0x18] sm:$0xff]
      %v9299 = vld [vmem:[%s9 + $0x20] sm:$0xff]
      %v9300 = vld [vmem:[%s9 + $0x28] sm:$0xff]
      %v9301 = vld [vmem:[%s9 + $0x30] sm:$0xff]
      %v9302 = vld [vmem:[%s9 + $0x38] sm:$0xff]
      %v9303 = vld [vmem:[%s9 + $0x40] sm:$0xff]
      %v9304 = vld [vmem:[%s9 + $0x48] sm:$0xff]
      %v9305 = vld [vmem:[%s9 + $0x50] sm:$0xf]
      %v9317 = vunpack.c.l.b16 %v9284
      %v9318 = vunpack.c.l.b16 %v9285
      %v9319 = vunpack.c.l.b16 %v9286
      %v9320 = vunpack.c.l.b16 %v9287
      %v9321 = vunpack.c.l.b16 %v9288
      %v9322 = vunpack.c.l.b16 %v9289
      %v9323 = vunpack.c.l.b16 %v9290
      %v9324 = vunpack.c.l.b16 %v9291
      %v9325 = vunpack.c.l.b16 %v9292
      %v9326 = vunpack.c.l.b16 %v9293
      %v9327 = vunpack.c.l.b16 %v9294
      %v9328 = vpack.c.b16 %v9318, %v9317
      %v9329 = vpack.c.b16 %v9320, %v9319
      %v9330 = vpack.c.b16 %v9322, %v9321
      %v9331 = vpack.c.b16 %v9324, %v9323
      %v9332 = vpack.c.b16 %v9326, %v9325
      %v9333 = vpack.c.b16 %v9327, %v9327
      %vm9334 = vcmask 982016
      %v9336 = vsel %vm9334, %v9328, 0
      %v9339 = vsel %vm9334, %v9329, 0
      %v9342 = vsel %vm9334, %v9330, 0
      %v9345 = vsel %vm9334, %v9331, 0
      %v9348 = vsel %vm9334, %v9332, 0
      %v9351 = vsel %vm9334, %v9333, 0
      %v9354 = vsel %vm7011, %v9283, 0
      %9356 = vmatprep.subr.bf16.mxu0 0
      %9357 = vmatpush1.bf16.msra.mxu0 %v9276
      %9358 = vmatprep.subr.bf16.mxu0 0
      %9359 = vmatpush1.bf16.msra.mxu0 %v9277
      %9360 = vmatprep.subr.bf16.mxu0 0
      %9361 = vmatpush1.bf16.msra.mxu0 %v9278
      %9362 = vmatprep.subr.bf16.mxu0 0
      %9363 = vmatpush1.bf16.msra.mxu0 %v9279
      %9364 = vmatprep.subr.bf16.mxu0 0
      %9365 = vmatpush1.bf16.msra.mxu0 %v9280
      %9366 = vmatprep.subr.bf16.mxu0 0
      %9367 = vmatpush1.bf16.msra.mxu0 %v9281
      %9368 = vmatprep.subr.bf16.mxu0 0
      %9369 = vmatpush1.bf16.msra.mxu0 %v9282
      %9370 = vmatprep.subr.bf16.mxu0 0
      %9371 = vmatpush1.bf16.msra.mxu0 %v9354
      %9372 = vmatprep.subr.bf16.mxu0 0
      %9373 = vmatpush1.bf16.msra.mxu0 0
      %9374 = vmatprep.subr.bf16.mxu0 0
      %9375 = vmatpush1.bf16.msra.mxu0 0
      %9376 = vmatprep.subr.bf16.mxu0 0
      %9377 = vmatpush1.bf16.msra.mxu0 0
      %9378 = vmatprep.subr.bf16.mxu0 0
      %9379 = vmatpush1.bf16.msra.mxu0 0
      %9380 = vmatprep.subr.bf16.mxu0 0
      %9381 = vmatpush1.bf16.msra.mxu0 0
      %9382 = vmatprep.subr.bf16.mxu0 0
      %9383 = vmatpush1.bf16.msra.mxu0 0
      %9384 = vmatprep.subr.bf16.mxu0 0
      %9385 = vmatpush1.bf16.msra.mxu0 0
      %9386 = vmatprep.subr.bf16.mxu0 0
      %9387 = vmatpush1.bf16.msra.mxu0 0
      %9388 = vmatprep.mubr.bf16.mxu0 0
      %9389 = vmatmul.mubr.bf16.gmra.mrb[0].mxu0 %v9336
      %v9390 = vpop.f32.mrb[0].mxu0
      %v9391 = vadd.f32 %v9295, %v9390
      %v9392 = vpop.f32.mrb[0].mxu0
      %v9393 = vpop.f32.mrb[0].mxu0
      %v9394 = vadd.f32 %v9296, %v9393
      %v9395 = vpop.f32.mrb[0].mxu0
      %9396 = vmatprep.mubr.bf16.mxu0 0
      %9397 = vmatmul.mubr.bf16.gmra.mrb[0].mxu0 %v9339
      %v9398 = vpop.f32.mrb[0].mxu0
      %v9399 = vadd.f32 %v9297, %v9398
      %v9400 = vpop.f32.mrb[0].mxu0
      %v9401 = vpop.f32.mrb[0].mxu0
      %v9402 = vadd.f32 %v9298, %v9401
      %v9403 = vpop.f32.mrb[0].mxu0
      %9404 = vmatprep.mubr.bf16.mxu0 0
      %9405 = vmatmul.mubr.bf16.gmra.mrb[0].mxu0 %v9342
      %v9406 = vpop.f32.mrb[0].mxu0
      %v9407 = vadd.f32 %v9299, %v9406
      %v9408 = vpop.f32.mrb[0].mxu0
      %v9409 = vpop.f32.mrb[0].mxu0
      %v9410 = vadd.f32 %v9300, %v9409
      %v9411 = vpop.f32.mrb[0].mxu0
      %9412 = vmatprep.mubr.bf16.mxu0 0
      %9413 = vmatmul.mubr.bf16.gmra.mrb[0].mxu0 %v9345
      %v9414 = vpop.f32.mrb[0].mxu0
      %v9415 = vadd.f32 %v9301, %v9414
      %v9416 = vpop.f32.mrb[0].mxu0
      %v9417 = vpop.f32.mrb[0].mxu0
      %v9418 = vadd.f32 %v9302, %v9417
      %v9419 = vpop.f32.mrb[0].mxu0
      %9420 = vmatprep.mubr.bf16.mxu0 0
      %9421 = vmatmul.mubr.bf16.gmra.mrb[0].mxu0 %v9348
      %v9422 = vpop.f32.mrb[0].mxu0
      %v9423 = vadd.f32 %v9303, %v9422
      %v9424 = vpop.f32.mrb[0].mxu0
      %v9425 = vpop.f32.mrb[0].mxu0
      %v9426 = vadd.f32 %v9304, %v9425
      %v9427 = vpop.f32.mrb[0].mxu0
      %9428 = vmatprep.mubr.bf16.mxu0 0
      %9429 = vmatmul.mubr.bf16.gmra.mrb[0].mxu0 %v9351
      %v9430 = vpop.f32.mrb[0].mxu0
      %v9431 = vadd.f32 %v9305, %v9430
      %v9432 = vpop.f32.mrb[0].mxu0
      %v9433 = vpop.f32.mrb[0].mxu0
      %v9434 = vpop.f32.mrb[0].mxu0
      %9435 = vdwg.mxu0
      %v9436 = vmax.f32 %v9391, 0.0
      %v9437 = vmax.f32 %v9394, 0.0
      %v9438 = vmax.f32 %v9399, 0.0
      %v9439 = vmax.f32 %v9402, 0.0
      %v9440 = vmax.f32 %v9407, 0.0
      %v9441 = vmax.f32 %v9410, 0.0
      %v9442 = vmax.f32 %v9415, 0.0
      %v9443 = vmax.f32 %v9418, 0.0
      %v9444 = vmax.f32 %v9423, 0.0
      %v9445 = vmax.f32 %v9426, 0.0
      %v9446 = vmax.f32 %v9431, 0.0
      %v9447 = vpack.c.bf16 %v9437, %v9436
      %v9448 = vpack.c.bf16 %v9439, %v9438
      %v9449 = vpack.c.bf16 %v9441, %v9440
      %v9450 = vpack.c.bf16 %v9443, %v9442
      %v9451 = vpack.c.bf16 %v9445, %v9444
      %v9452 = vpack.c.bf16 %v9446, %v9446
      %v9453 = vld [vmem:[%s10] sm:$0xf]
      %v9454 = vld [vmem:[%s10 + $0x4] sm:$0x1]
      %v9455 = vld [vmem:[%s11] sm:$0xff]
      %v9456 = vld [vmem:[%s11 + $0x8] sm:$0x3]
      %v9459 = vunpack.c.l.b16 %v9453
      %v9460 = vunpack.c.l.b16 %v9454
      %v9461 = vpack.c.b16 %v9460, %v9459
      %vm9462 = vcmask 687104
      %v9464 = vsel %vm9462, %v9461, 0
      %v9467 = vsel %vm481, %v9452, 0
      %9469 = vmatprep.subr.bf16.mxu0 0
      %9470 = vmatpush1.bf16.msra.mxu0 %v9447
      %9471 = vmatprep.subr.bf16.mxu0 0
      %9472 = vmatpush1.bf16.msra.mxu0 %v9448
      %9473 = vmatprep.subr.bf16.mxu0 0
      %9474 = vmatpush1.bf16.msra.mxu0 %v9449
      %9475 = vmatprep.subr.bf16.mxu0 0
      %9476 = vmatpush1.bf16.msra.mxu0 %v9450
      %9477 = vmatprep.subr.bf16.mxu0 0
      %9478 = vmatpush1.bf16.msra.mxu0 %v9451
      %9479 = vmatprep.subr.bf16.mxu0 0
      %9480 = vmatpush1.bf16.msra.mxu0 %v9467
      %9481 = vmatprep.subr.bf16.mxu0 0
      %9482 = vmatpush1.bf16.msra.mxu0 0
      %9483 = vmatprep.subr.bf16.mxu0 0
      %9484 = vmatpush1.bf16.msra.mxu0 0
      %9485 = vmatprep.subr.bf16.mxu0 0
      %9486 = vmatpush1.bf16.msra.mxu0 0
      %9487 = vmatprep.subr.bf16.mxu0 0
      %9488 = vmatpush1.bf16.msra.mxu0 0
      %9489 = vmatprep.subr.bf16.mxu0 0
      %9490 = vmatpush1.bf16.msra.mxu0 0
      %9491 = vmatprep.subr.bf16.mxu0 0
      %9492 = vmatpush1.bf16.msra.mxu0 0
      %9493 = vmatprep.subr.bf16.mxu0 0
      %9494 = vmatpush1.bf16.msra.mxu0 0
      %9495 = vmatprep.subr.bf16.mxu0 0
      %9496 = vmatpush1.bf16.msra.mxu0 0
      %9497 = vmatprep.subr.bf16.mxu0 0
      %9498 = vmatpush1.bf16.msra.mxu0 0
      %9499 = vmatprep.subr.bf16.mxu0 0
      %9500 = vmatpush1.bf16.msra.mxu0 0
      %9501 = vmatprep.mubr.bf16.mxu0 0
      %9502 = vmatmul.mubr.bf16.gmra.mrb[0].mxu0 %v9464
      %v9503 = vpop.f32.mrb[0].mxu0
      %v9504 = vadd.f32 %v9455, %v9503
      %v9505 = vpop.f32.mrb[0].mxu0
      %v9506 = vpop.f32.mrb[0].mxu0
      %v9507 = vadd.f32 %v9456, %v9506
      %v9508 = vpop.f32.mrb[0].mxu0
      %9509 = vdwg.mxu0
      %vm9510 = vcmask 7168
      %9511 = vst.msk [vmem:[%s413] sm:$0xff] %vm9510, %v9504
      %vm9512 = vcmask 1024
      %9513 = vst.msk [vmem:[%s413 + $0x8] sm:$0x3] %vm9512, %v9507
      %p9514 = scmp.lt.s32.totalorder %s23, 1
      %s9515 = scalar_select %p9514, %s23, 1
      %s9516 = smul.addr %s9515, 2
      %s9517 = smul.addr %s9516, 8
      %s9518 = scalar_lea.vmem %s12, %s9517
      // Predicated region
      $region69: #{cnn_forward.1} parent=67 // pred_check
        %p9519 = pneg %p298
      $region70: #{cnn_forward.1} parent=67 // pred_check_branch
        %9521 = sbr.rel (%p9519) target = $region72
      $region71: #{cnn_forward.1} parent=67 // pred_region
        _
      $region72: #{cnn_forward.1} parent=67 // pred_fallthru
        _
    $region68: #{cnn_forward.1} parent=5 // pred_fallthru
      _
    %p9522 = scmp.le.s32.totalorder 2, %s18
    // Predicated region
    $region73: #{cnn_forward.1} parent=5 // pred_check
      %p9523 = pneg %p9522
    $region74: #{cnn_forward.1} parent=5 // pred_check_branch
      %9525 = sbr.rel (%p9523) target = $region76
    $region75: #{cnn_forward.1} parent=5 // pred_region
      %s9526 = ssub.s32 %s18, 2
      // Predicated region
      $region77: #{cnn_forward.1} parent=75 // pred_check
        %p9527 = pneg %p304
      $region78: #{cnn_forward.1} parent=75 // pred_check_branch
        %9529 = sbr.rel (%p9527) target = $region80
      $region79: #{cnn_forward.1} parent=75 // pred_region
        %p9530 = scmp.lt.s32.totalorder %s24, 1
        %s9531 = scalar_select %p9530, %s24, 1
        %s9532 = smul.addr %s9531, 2
        %s9533 = smul.addr %s9532, 8
        %s9534 = scalar_lea.vmem %s12, %s9533
      $region80: #{cnn_forward.1} parent=75 // pred_fallthru
        _
    $region76: #{cnn_forward.1} parent=5 // pred_fallthru
      _
  $region6: #{cnn_forward.1} parent=0 // loop_footer
    %s22 = sadd.s32 1, %s18
  $region7: #{cnn_forward.1} parent=0 // loop_footer_branch
    %17 = sbr.rel target = $region3
  $region8: #{cnn_forward.1} parent=0 // loop_exit
    _

</llo_original>
